<compile_context>
chip_gen: v5e
topology: v5e:2x2
jax: 0.10.0
libtpu: 0.0.40
codegen_flags: <defaults>
</compile_context>

<pallas_src>
import numpy as np
import jax
import jax.numpy as jnp
from jax import lax
from jax.experimental import pallas as pl
from jax.experimental.pallas import tpu as pltpu


# ----------------------------- module constants -----------------------------
FACTOR = 4                       # bicubic downsample factor
TAPS = FACTOR * 4                # 16-tap separable bicubic kernel
KSIZE = 21                       # shift-kernel size (valid conv output = lr - 20 = crop 10)
CROP = 10                        # [:, :, 10:-10, 10:-10]
CIN = 3                          # RGB
SHIFTS = [(i, j) for i in range(-2, 2) for j in range(-2, 2)]   # reference loop order
NSHIFT = len(SHIFTS)             # 16
NPHASE = 4                       # shifts per axis


def _bicubic_taps(factor=FACTOR, a=-0.5):
    size = factor * 4
    def cubic(x):
        x = abs(x)
        if x <= 1.0:
            return (a + 2.0) * x ** 3 - (a + 3.0) * x ** 2 + 1.0
        if x < 2.0:
            return a * x ** 3 - 5.0 * a * x ** 2 + 8.0 * a * x - 4.0 * a
        return 0.0
    k = np.array([cubic((i - size // 2 + 0.5) / factor) for i in range(size)], np.float64)
    return (k / k.sum()).astype(np.float32)


# ----------------------- host-side constant matrices ------------------------
def _banded_conv_weight(w_shift, lr_w, out_w):
    """Fold all 16 shift kernels into banded matrices, one block per vertical phase.

    w_shift: (16, 3, 3, K, K) numpy, indexed [s, cout, cin, kh, kw], s = (i+2)*4 + (j+2).
    Returns (4, K*lr_w*3, out_w*4*3) with
      out[h, wo*12 + j*3 + cout] = sum_{kh,w,cin} patch[h, kh*lr_w*3 + w*3 + cin] * B[i, ..., ...]
    reproducing conv2d(lr, kernel[i-2, j-2], VALID) at pixel (h, wo).
    """
    k = w_shift.shape[-1]
    # (s, cout, cin, kh, kw) -> (kh, kw, cin, i, j, cout)
    wt = w_shift.reshape(4, 4, CIN, CIN, k, k).transpose(4, 5, 3, 0, 1, 2)
    b = np.zeros((k, lr_w, CIN, 4, out_w, 4, CIN), np.float32)
    for wo in range(out_w):
        b[:, wo:wo + k, :, :, wo, :, :] = wt
    b = b.transpose(3, 0, 1, 2, 4, 5, 6)            # (i, kh, w, cin, wo, j, cout)
    return b.reshape(4, k * lr_w * CIN, out_w * 4 * CIN)


def _vertical_matrices(hr_h, out_h):
    """A[p, o, r]: vertical bicubic taps for output row o, vertical shift i = p - 2."""
    taps = _bicubic_taps()
    pad_top = (TAPS - FACTOR) // 2
    a = np.zeros((4, out_h, hr_h), np.float32)
    for p in range(4):
        for o in range(out_h):
            base = FACTOR * (o + CROP) - pad_top + (p - 2)
            assert 0 <= base and base + TAPS <= hr_h
            a[p, o, base:base + TAPS] = taps
    return a


def _horizontal_matrix(hr_w, out_w):
    """C[w*3 + c, wo*12 + j*3 + c]: horizontal bicubic taps (all j phases, per channel)."""
    taps = _bicubic_taps()
    pad_left = (TAPS - FACTOR) // 2
    c = np.zeros((hr_w, CIN, out_w, 4, CIN), np.float32)
    for p in range(4):
        for o in range(out_w):
            base = FACTOR * (o + CROP) - pad_left + (p - 2)
            assert 0 <= base and base + TAPS <= hr_w
            for ch in range(CIN):
                c[base:base + TAPS, ch, o, p, ch] = taps
    return c.reshape(hr_w * CIN, out_w * 4 * CIN)


def _blockdiag_vertical(a_vert, bb):
    """Block-diagonal (over the bb images of one batch block) vertical-tap matrix.

    a_vert: (4, Hy, 4H).  Result: (4*bb*Hy, bb*4H) with rows ordered (i, b, o) and
    columns ordered (b, r), matching the row layout of the flattened hr block.
    """
    nph, hy, hh = a_vert.shape
    m = np.zeros((nph, bb, hy, bb, hh), np.float32)
    for b in range(bb):
        m[:, b, :, b, :] = a_vert
    return m.reshape(nph * bb * hy, bb * hh)


def _pick_batch_block(n, hy, hh, target_m=128):
    """Largest bb with bb | n and bb*Hy <= target_m (MXU row budget), sublane-legal block
    shapes, preferring >= 2 grid steps so v7x's two TensorCores both get work."""
    def legal(d):
        if n % d:
            return False
        if d == n:                         # full-array blocks are always legal
            return True
        return (d * hy) % 8 == 0 and (d * hh) % 8 == 0
    cands = [d for d in range(1, n + 1) if legal(d) and d * hy <= target_m]
    if not cands:
        return n
    two_step = [d for d in cands if n // d >= 2]
    return max(two_step) if two_step else max(cands)


# --------------------------------- kernel -----------------------------------
def _shift_loss_kernel(patch_ref, hr_ref, b_ref, a_ref, c_ref, o_ref):
    """One batch block of `bb` images.

    patch_ref: (bb*Hy, K*W*3)     bf16  kh-stacked lr rows (im2col over kh; kw folded into B)
    hr_ref:    (bb*4H, 4W*3)      bf16  hr rows, channels folded into lanes
    b_ref:     (K*W*3, 4*Wy*12)   bf16  banded shift-conv weights, columns (i, wo, j, cout)
    a_ref:     (4*bb*Hy, bb*4H)   bf16  vertical bicubic taps, block-diag over batch,
                                        rows (i, b, o), cols (b, r)
    c_ref:     (4W*3, Wy*12)      bf16  horizontal bicubic taps (all 4 j phases)
    o_ref:     (1, 8, 128)        f32   per-step sum of squared errors, spread over block
    """
    # All 16 shift convolutions for the whole batch block: ONE deep (2016) matmul,
    # M = bb*Hy rows, N = 576 output columns (phase i major).
    x_all = jnp.dot(patch_ref[...], b_ref[...],
                    preferred_element_type=jnp.float32)          # (bb*Hy, 4*Wy*12)

    # Bicubic targets (roll + reflect pad + stride-4 bicubic + crop), separable:
    # horizontal taps first (shared by all vertical phases, M = bb*4H rows), then
    # vertical taps for all 4 phases and all bb images at once (block-diagonal).
    w_h = jnp.dot(hr_ref[...], c_ref[...],
                  preferred_element_type=jnp.float32)            # (bb*4H, Wy*12)
    y_all = jnp.dot(a_ref[...], w_h.astype(jnp.bfloat16),
                    preferred_element_type=jnp.float32)          # (4*bb*Hy, Wy*12)

    rows = patch_ref.shape[0]          # bb*Hy
    ncol = c_ref.shape[1]              # Wy*12
    # Vector accumulator across the 4 vertical phases; single cross-lane reduce at the end.
    acc = jnp.zeros((rows, ncol), jnp.float32)
    for i in range(NPHASE):            # static unroll: x has phase in columns, y in rows
        d = x_all[:, i * ncol:(i + 1) * ncol] - y_all[i * rows:(i + 1) * rows, :]
        acc = acc + d * d
    ssq = jnp.sum(acc)

    # Spread the scalar evenly over the lane-dense (8, 128) block so the wrapper can
    # simply jnp.sum() the whole output (robust to wrapper-side changes).
    blk = o_ref.shape[1] * o_ref.shape[2]
    o_ref[0] = jnp.full(o_ref.shape[1:], ssq * (1.0 / blk), jnp.float32)


# -------------------------------- wrapper -----------------------------------
def shift_loss(hr, lr, w_shift_np):
    """hr: (N, 3, 4H, 4W); lr: (N, 3, H, W); w_shift_np: (16, 3, 3, K, K) numpy."""
    n, _, h, w = lr.shape
    hh, wh = hr.shape[2], hr.shape[3]
    assert hh == FACTOR * h and wh == FACTOR * w
    hy, wy = h - 2 * CROP, w - 2 * CROP
    assert hy > 0 and wy > 0
    k = KSIZE

    kwc = k * w * CIN              # im2col contraction depth (2016 at W=32)
    whc = wh * CIN                 # hr row width with channels in lanes
    nwy = wy * NPHASE * CIN        # Wy*12: one vertical-phase group of output columns

    bb = _pick_batch_block(n, hy, hh)
    steps = n // bb

    # Host-side constant matrices (bf16 operands; the MXU accumulates in f32).
    b_np = _banded_conv_weight(w_shift_np, w, wy)                       # (4, kwc, nwy)
    b_all = jnp.asarray(
        b_np.transpose(1, 0, 2).reshape(kwc, NPHASE * nwy), jnp.bfloat16)   # (kwc, 576)
    a_bd = jnp.asarray(
        _blockdiag_vertical(_vertical_matrices(hh, hy), bb), jnp.bfloat16)  # (4*bb*Hy, bb*4H)
    c_mat = jnp.asarray(_horizontal_matrix(wh, wy), jnp.bfloat16)           # (whc, nwy)

    # TODO(synk): at large images, tile the 4*Wy*12 output columns of b_all (or add a
    #             phase grid axis) so only one (kwc, tile_n) slab of B is resident and
    #             derive vmem_limit_bytes accordingly -- needed to stay under v7x's
    #             64 MiB VMEM; unnecessary at these test shapes (~7 MiB total).
    # TODO(synk): the grid-invariant b_all / a_bd / c_mat could be single-buffered via
    #             pipeline_mode=pl.Buffered(1) to save ~2.7 MiB of VMEM; left at the
    #             default double-buffering here since it is well within budget.

    @jax.jit
    def run(hr, lr, b_all, a_bd, c_mat):
        # channels-last, lane-dense, batch folded into rows (kernel needs no reshapes)
        lr_l = jnp.transpose(lr, (0, 2, 3, 1)).astype(jnp.bfloat16)            # (N, H, W, 3)
        hr_flat = (jnp.transpose(hr, (0, 2, 3, 1))
                   .reshape(n * hh, whc).astype(jnp.bfloat16))                 # (N*4H, 4W*3)
        # TODO(synk): this im2col stack inflates lr 21x in HBM; at real image sizes
        #             build the kh groups in-kernel from raw lr rows instead.
        patch = jnp.stack([lr_l[:, kh:kh + hy] for kh in range(k)], axis=2)    # (N, Hy, K, W, 3)
        patch_flat = patch.reshape(n * hy, kwc)                                # (N*Hy, K*W*3)

        partial = pl.pallas_call(
            _shift_loss_kernel,
            out_shape=jax.ShapeDtypeStruct((steps, 8, 128), jnp.float32),
            grid_spec=pltpu.PrefetchScalarGridSpec(
                num_scalar_prefetch=0,
                grid=(steps,),
                in_specs=[
                    pl.BlockSpec((bb * hy, kwc), lambda s: (s, 0)),
                    pl.BlockSpec((bb * hh, whc), lambda s: (s, 0)),
                    pl.BlockSpec((kwc, NPHASE * nwy), lambda s: (0, 0)),
                    pl.BlockSpec((NPHASE * bb * hy, bb * hh), lambda s: (0, 0)),
                    pl.BlockSpec((whc, nwy), lambda s: (0, 0)),
                ],
                out_specs=pl.BlockSpec((1, 8, 128), lambda s: (s, 0, 0)),
            ),
            compiler_params=pltpu.CompilerParams(
                dimension_semantics=("parallel",),     # batch blocks independent (v7x: 2 TCs)
                vmem_limit_bytes=32 * 1024 * 1024,     # ample here; valid on v5e/v6e/v7x
            ),
        )(patch_flat, hr_flat, b_all, a_bd, c_mat)

        sse = jnp.sum(partial)
        # each F.mse_loss is a mean over N*3*Hy*Wy elements; the reference divides by 16
        return sse / (NSHIFT * n * CIN * hy * wy)

    return run(hr, lr, b_all, a_bd, c_mat)


# ------------------------ literal reference (self-check) --------------------
@jax.jit
def _reference_loss(hr, lr, w_shift):
    """Literal port of the PyTorch forward (roll -> reflect pad -> separable stride-4
    bicubic conv -> crop, plus the 21x21 VALID conv), for a numerical self-check."""
    taps = jnp.asarray(_bicubic_taps())
    k1 = jnp.tile(taps.reshape(1, 1, TAPS, 1), (CIN, 1, 1, 1))
    k2 = jnp.tile(taps.reshape(1, 1, 1, TAPS), (CIN, 1, 1, 1))
    pad = TAPS - FACTOR
    lo, hi = pad // 2, pad - pad // 2
    dn = ("NCHW", "OIHW", "NCHW")

    def bicubic_down(x):
        x = jnp.pad(x, ((0, 0), (0, 0), (lo, hi), (0, 0)), mode="reflect")
        x = lax.conv_general_dilated(x, k1, (FACTOR, 1), "VALID", feature_group_count=CIN,
                                     dimension_numbers=dn, precision=lax.Precision.HIGHEST)
        x = jnp.pad(x, ((0, 0), (0, 0), (0, 0), (lo, hi)), mode="reflect")
        x = lax.conv_general_dilated(x, k2, (1, FACTOR), "VALID", feature_group_count=CIN,
                                     dimension_numbers=dn, precision=lax.Precision.HIGHEST)
        return x

    loss = jnp.zeros((), jnp.float32)
    for s, (i, j) in enumerate(SHIFTS):
        x = lax.conv_general_dilated(lr, w_shift[s], (1, 1), "VALID",
                                     dimension_numbers=dn, precision=lax.Precision.HIGHEST)
        y = bicubic_down(jnp.roll(hr, (-i, -j), axis=(2, 3)))[:, :, CROP:-CROP, CROP:-CROP]
        loss = loss + jnp.mean((x - y) ** 2)
    return loss / NSHIFT


# ---------------------------------- main ------------------------------------
if __name__ == "__main__":
    root = jax.random.PRNGKey(0)
    k_lr, k_hr, k_w = jax.random.split(root, 3)

    N, H, W = 8, 32, 32                         # lr 32x32 -> 12x12 after the 21x21 VALID conv
    lr = jax.random.normal(k_lr, (N, CIN, H, W), jnp.float32)
    hr = jax.random.normal(k_hr, (N, CIN, FACTOR * H, FACTOR * W), jnp.float32)

    # Synthesized stand-in for kernel_dict (see TODOs at top of file).
    w_shift = 0.05 * jax.random.normal(k_w, (NSHIFT, CIN, CIN, KSIZE, KSIZE), jnp.float32)
    w_shift_np = np.asarray(jax.device_get(w_shift), np.float32)

    loss = jax.block_until_ready(shift_loss(hr, lr, w_shift_np))

    ref = jax.block_until_ready(_reference_loss(hr, lr, w_shift))
    rel = abs(float(loss) - float(ref)) / max(abs(float(ref)), 1e-6)
    assert np.isfinite(float(loss)) and rel < 3e-2, (float(loss), float(ref), rel)

    print("KERNEL_OK")
</pallas_src>

<mosaic_0001>
module attributes {stable_mosaic.version = 11 : i64} {
  func.func @_shift_loss_kernel(%arg0: i32, %arg1: memref<48x2016xbf16, #tpu.memory_space<vmem>>, %arg2: memref<512x384xbf16, #tpu.memory_space<vmem>>, %arg3: memref<2016x576xbf16, #tpu.memory_space<vmem>>, %arg4: memref<192x512xbf16, #tpu.memory_space<vmem>>, %arg5: memref<384x144xbf16, #tpu.memory_space<vmem>>, %arg6: memref<1x8x128xf32, #tpu.memory_space<vmem>>) attributes {dimension_semantics = [#tpu.dimension_semantics<parallel>], iteration_bounds = array<i64: 2>, scalar_prefetch = 0 : i64, scratch_operands = 0 : i64, tpu.core_type = #tpu.core_type<tc>, window_params = [{transform_indices = @transform_0, window_bounds = array<i64: 48, 2016>}, {transform_indices = @transform_1, window_bounds = array<i64: 512, 384>}, {pipeline_mode = #tpu.pipeline_mode<synchronous>, transform_indices = @transform_2, window_bounds = array<i64: 2016, 576>}, {pipeline_mode = #tpu.pipeline_mode<synchronous>, transform_indices = @transform_3, window_bounds = array<i64: 192, 512>}, {pipeline_mode = #tpu.pipeline_mode<synchronous>, transform_indices = @transform_4, window_bounds = array<i64: 384, 144>}, {transform_indices = @transform_5, window_bounds = array<i64: 1, 8, 128>}]} {
    %c0 = arith.constant 0 : index
    %c0_0 = arith.constant 0 : index
    %0 = vector.load %arg1[%c0, %c0_0] : memref<48x2016xbf16, #tpu.memory_space<vmem>>, vector<48x2016xbf16>
    %c0_1 = arith.constant 0 : index
    %c0_2 = arith.constant 0 : index
    %1 = vector.load %arg3[%c0_1, %c0_2] : memref<2016x576xbf16, #tpu.memory_space<vmem>>, vector<2016x576xbf16>
    %cst = arith.constant dense<0.000000e+00> : vector<48x576xf32>
    %2 = tpu.matmul %0, %1, %cst {dimension_numbers = #tpu.dot_dimension_numbers<[1], [0], [0], [1], [0, 0, 1, 1], [], []>} : vector<48x2016xbf16>, vector<2016x576xbf16>, vector<48x576xf32> -> vector<48x576xf32>
    %c0_3 = arith.constant 0 : index
    %c0_4 = arith.constant 0 : index
    %3 = vector.load %arg2[%c0_3, %c0_4] : memref<512x384xbf16, #tpu.memory_space<vmem>>, vector<512x384xbf16>
    %c0_5 = arith.constant 0 : index
    %c0_6 = arith.constant 0 : index
    %4 = vector.load %arg5[%c0_5, %c0_6] : memref<384x144xbf16, #tpu.memory_space<vmem>>, vector<384x144xbf16>
    %cst_7 = arith.constant dense<0.000000e+00> : vector<512x144xf32>
    %5 = tpu.matmul %3, %4, %cst_7 {dimension_numbers = #tpu.dot_dimension_numbers<[1], [0], [0], [1], [0, 0, 1, 1], [], []>} : vector<512x384xbf16>, vector<384x144xbf16>, vector<512x144xf32> -> vector<512x144xf32>
    %c0_8 = arith.constant 0 : index
    %c0_9 = arith.constant 0 : index
    %6 = vector.load %arg4[%c0_8, %c0_9] : memref<192x512xbf16, #tpu.memory_space<vmem>>, vector<192x512xbf16>
    %7 = arith.truncf %5 : vector<512x144xf32> to vector<512x144xbf16>
    %cst_10 = arith.constant dense<0.000000e+00> : vector<192x144xf32>
    %8 = tpu.matmul %6, %7, %cst_10 {dimension_numbers = #tpu.dot_dimension_numbers<[1], [0], [0], [1], [0, 0, 1, 1], [], []>} : vector<192x512xbf16>, vector<512x144xbf16>, vector<192x144xf32> -> vector<192x144xf32>
    %cst_11 = arith.constant 0.000000e+00 : f32
    %9 = vector.broadcast %cst_11 : f32 to vector<48x144xf32>
    %10 = vector.extract_strided_slice %2 {offsets = [0, 0], sizes = [48, 144], strides = [1, 1]} : vector<48x576xf32> to vector<48x144xf32>
    %11 = vector.extract_strided_slice %8 {offsets = [0, 0], sizes = [48, 144], strides = [1, 1]} : vector<192x144xf32> to vector<48x144xf32>
    %12 = arith.subf %10, %11 : vector<48x144xf32>
    %13 = arith.mulf %12, %12 : vector<48x144xf32>
    %14 = arith.addf %9, %13 : vector<48x144xf32>
    %15 = vector.extract_strided_slice %2 {offsets = [0, 144], sizes = [48, 144], strides = [1, 1]} : vector<48x576xf32> to vector<48x144xf32>
    %16 = vector.extract_strided_slice %8 {offsets = [48, 0], sizes = [48, 144], strides = [1, 1]} : vector<192x144xf32> to vector<48x144xf32>
    %17 = arith.subf %15, %16 : vector<48x144xf32>
    %18 = arith.mulf %17, %17 : vector<48x144xf32>
    %19 = arith.addf %14, %18 : vector<48x144xf32>
    %20 = vector.extract_strided_slice %2 {offsets = [0, 288], sizes = [48, 144], strides = [1, 1]} : vector<48x576xf32> to vector<48x144xf32>
    %21 = vector.extract_strided_slice %8 {offsets = [96, 0], sizes = [48, 144], strides = [1, 1]} : vector<192x144xf32> to vector<48x144xf32>
    %22 = arith.subf %20, %21 : vector<48x144xf32>
    %23 = arith.mulf %22, %22 : vector<48x144xf32>
    %24 = arith.addf %19, %23 : vector<48x144xf32>
    %25 = vector.extract_strided_slice %2 {offsets = [0, 432], sizes = [48, 144], strides = [1, 1]} : vector<48x576xf32> to vector<48x144xf32>
    %26 = vector.extract_strided_slice %8 {offsets = [144, 0], sizes = [48, 144], strides = [1, 1]} : vector<192x144xf32> to vector<48x144xf32>
    %27 = arith.subf %25, %26 : vector<48x144xf32>
    %28 = arith.mulf %27, %27 : vector<48x144xf32>
    %29 = arith.addf %24, %28 : vector<48x144xf32>
    %30 = vector.shape_cast %29 : vector<48x144xf32> to vector<1x48x144xf32>
    %cst_12 = arith.constant dense<0.000000e+00> : vector<1xf32>
    %31 = vector.multi_reduction <add>, %30, %cst_12 [1, 2] : vector<1x48x144xf32> to vector<1xf32>
    %32 = vector.shape_cast %31 : vector<1xf32> to vector<1x1x1xf32>
    %33 = vector.extract %32[0, 0, 0] : f32 from vector<1x1x1xf32>
    %cst_13 = arith.constant 9.765625E-4 : f32
    %34 = arith.mulf %33, %cst_13 : f32
    %35 = vector.broadcast %34 : f32 to vector<8x128xf32>
    %c0_14 = arith.constant 0 : index
    %c0_15 = arith.constant 0 : index
    %c0_16 = arith.constant 0 : index
    %36 = vector.load %arg6[%c0_14, %c0_15, %c0_16] : memref<1x8x128xf32, #tpu.memory_space<vmem>>, vector<1x8x128xf32>
    %37 = vector.shape_cast %36 : vector<1x8x128xf32> to vector<8x128xf32>
    %38 = vector.shape_cast %35 : vector<8x128xf32> to vector<1x8x128xf32>
    tpu.vector_store %arg6[%c0_14, %c0_15, %c0_16], %38 {strides = array<i32>} : memref<1x8x128xf32, #tpu.memory_space<vmem>>, vector<1x8x128xf32>,
    return
  }
  func.func @transform_0(%arg0: i32) -> (i32, i32) {
    %c0_i32 = arith.constant 0 : i32
    %c0_i32_0 = arith.constant 0 : i32
    return %arg0, %c0_i32 : i32, i32
  }
  func.func @transform_1(%arg0: i32) -> (i32, i32) {
    %c0_i32 = arith.constant 0 : i32
    %c0_i32_0 = arith.constant 0 : i32
    return %arg0, %c0_i32 : i32, i32
  }
  func.func @transform_2(%arg0: i32) -> (i32, i32) {
    %c0_i32 = arith.constant 0 : i32
    %c0_i32_0 = arith.constant 0 : i32
    %c0_i32_1 = arith.constant 0 : i32
    return %c0_i32, %c0_i32_0 : i32, i32
  }
  func.func @transform_3(%arg0: i32) -> (i32, i32) {
    %c0_i32 = arith.constant 0 : i32
    %c0_i32_0 = arith.constant 0 : i32
    %c0_i32_1 = arith.constant 0 : i32
    return %c0_i32, %c0_i32_0 : i32, i32
  }
  func.func @transform_4(%arg0: i32) -> (i32, i32) {
    %c0_i32 = arith.constant 0 : i32
    %c0_i32_0 = arith.constant 0 : i32
    %c0_i32_1 = arith.constant 0 : i32
    return %c0_i32, %c0_i32_0 : i32, i32
  }
  func.func @transform_5(%arg0: i32) -> (i32, i32, i32) {
    %c0_i32 = arith.constant 0 : i32
    %c0_i32_0 = arith.constant 0 : i32
    %c0_i32_1 = arith.constant 0 : i32
    return %arg0, %c0_i32, %c0_i32_0 : i32, i32, i32
  }
}

</mosaic_0001>

<llo_original>
// kernel: run.1
$region0: #{run.1}
  #allocation0 [shape = 'u32[]', space=smem, size = 0x4, offset = 0x4, fixed_abs, tag = 'smem constant byte address 0x4 - core index']
  #allocation1 [shape = 'u32[72,128]{1,0:T(1,128)}', space=vmem, size = 0x9000, scoped, tag = 'internal scratch']
  %s0 = inlined_call_operand.vmem [shape: bf16[96,2016], index: 0, kind: input, shape index: {}]
  %s1 = inlined_call_operand.vmem [shape: bf16[1024,384], index: 1, kind: input, shape index: {}]
  %s2 = inlined_call_operand.vmem [shape: bf16[2016,576], index: 2, kind: input, shape index: {}]
  %s3 = inlined_call_operand.vmem [shape: bf16[192,512], index: 3, kind: input, shape index: {}]
  %s4 = inlined_call_operand.vmem [shape: bf16[384,144], index: 4, kind: input, shape index: {}]
  %s5 = inlined_call_operand.vmem [shape: f32[2,8,128], index: 5, kind: output, shape index: {}]
  %s6 = sld [smem:[#allocation0]]
  $region53: #{run.1} parent=0
    _
  %s8 = ssub.s32 1, %s6
  %s9 = scalar_select 0, %s8, %s6
  loop: start=0, step=1, limit=4
  $region2: #{run.1} parent=0 // loop_pre_header
    _
  $region3: #{run.1} parent=0 // loop_header
    %s11 = sphi 0, %s15
    %p12 = scmp.ge.s32.totalorder %s11, 4
    %s21 = sphi 0, %s23
    %s24 = sphi 0, %s21
    %s25 = sphi 0, %s24
    %s41 = sphi 0, %s25
    %s47 = sphi 0, %s49
    %s50 = sphi 0, %s47
    %s51 = sphi 0, %s50
    %s67 = sphi 0, %s51
    %s71 = sphi 0, %s71
    %s73 = sphi 0, %s71
    %s74 = sphi 0, %s73
    %s88 = sphi 0, %s74
    %s92 = sphi 0, %s92
    %s94 = sphi 0, %s92
    %s95 = sphi 0, %s94
    %s109 = sphi 0, %s95
    %s113 = sphi 0, %s113
    %s115 = sphi 0, %s113
    %s116 = sphi 0, %s115
    %s130 = sphi 0, %s116
    %s136 = sphi 0, %s138
    %s139 = sphi 0, %s136
    %s140 = sphi 0, %s139
    %s156 = sphi 0, %s140
  $region4: #{run.1} parent=0 // loop_header_branch
    %14 = sbr.rel (%p12) target = $region8
  $region5: #{run.1} parent=0 // loop_body
    %s16 = ssub.s32 %s11, 1
    %s17 = ssub.s32 %s11, 2
    %s18 = sadd.s32 %s11, 1
    %s19 = ssub.s32 %s11, %s18
    %p20 = scmp.eq.s32.totalorder %s19, 0
    %s22 = sadd.s32 %s21, 1
    %s23 = scalar_select %p20, %s21, %s22
    %p26 = pneg %p20
    %p27 = scmp.eq.s32.totalorder %s11, 1
    %p28 = por %p26, %p27
    %p29 = scmp.ne.s32.totalorder %s21, %s24
    %p30 = scmp.eq.s32.totalorder %s11, 0
    %p31 = por %p29, %p30
    %p32 = scmp.ne.s32.totalorder %s21, %s24
    %p33 = scmp.eq.s32.totalorder %s16, 1
    %p34 = por %p32, %p33
    %p35 = scmp.ne.s32.totalorder %s24, %s25
    %p36 = scmp.eq.s32.totalorder %s16, 0
    %p37 = por %p35, %p36
    %p38 = scmp.ne.s32.totalorder %s24, %s25
    %p39 = scmp.eq.s32.totalorder %s17, 1
    %p40 = por %p38, %p39
    %p42 = scmp.ne.s32.totalorder %s25, %s41
    %p43 = scmp.eq.s32.totalorder %s17, 0
    %p44 = por %p42, %p43
    %s45 = ssub.s32 %s11, %s18
    %p46 = scmp.eq.s32.totalorder %s45, 0
    %s48 = sadd.s32 %s47, 1
    %s49 = scalar_select %p46, %s47, %s48
    %p52 = pneg %p46
    %p53 = scmp.eq.s32.totalorder %s11, 1
    %p54 = por %p52, %p53
    %p55 = scmp.ne.s32.totalorder %s47, %s50
    %p56 = scmp.eq.s32.totalorder %s11, 0
    %p57 = por %p55, %p56
    %p58 = scmp.ne.s32.totalorder %s47, %s50
    %p59 = scmp.eq.s32.totalorder %s16, 1
    %p60 = por %p58, %p59
    %p61 = scmp.ne.s32.totalorder %s50, %s51
    %p62 = scmp.eq.s32.totalorder %s16, 0
    %p63 = por %p61, %p62
    %p64 = scmp.ne.s32.totalorder %s50, %s51
    %p65 = scmp.eq.s32.totalorder %s17, 1
    %p66 = por %p64, %p65
    %p68 = scmp.ne.s32.totalorder %s51, %s67
    %p69 = scmp.eq.s32.totalorder %s17, 0
    %p70 = por %p68, %p69
    %s72 = sadd.s32 %s71, 1
    %p75 = scmp.eq.s32.totalorder %s11, 1
    %p76 = scmp.ne.s32.totalorder %s71, %s73
    %p77 = scmp.eq.s32.totalorder %s11, 0
    %p78 = por %p76, %p77
    %p79 = scmp.ne.s32.totalorder %s71, %s73
    %p80 = scmp.eq.s32.totalorder %s16, 1
    %p81 = por %p79, %p80
    %p82 = scmp.ne.s32.totalorder %s73, %s74
    %p83 = scmp.eq.s32.totalorder %s16, 0
    %p84 = por %p82, %p83
    %p85 = scmp.ne.s32.totalorder %s73, %s74
    %p86 = scmp.eq.s32.totalorder %s17, 1
    %p87 = por %p85, %p86
    %p89 = scmp.ne.s32.totalorder %s74, %s88
    %p90 = scmp.eq.s32.totalorder %s17, 0
    %p91 = por %p89, %p90
    %s93 = sadd.s32 %s92, 1
    %p96 = scmp.eq.s32.totalorder %s11, 1
    %p97 = scmp.ne.s32.totalorder %s92, %s94
    %p98 = scmp.eq.s32.totalorder %s11, 0
    %p99 = por %p97, %p98
    %p100 = scmp.ne.s32.totalorder %s92, %s94
    %p101 = scmp.eq.s32.totalorder %s16, 1
    %p102 = por %p100, %p101
    %p103 = scmp.ne.s32.totalorder %s94, %s95
    %p104 = scmp.eq.s32.totalorder %s16, 0
    %p105 = por %p103, %p104
    %p106 = scmp.ne.s32.totalorder %s94, %s95
    %p107 = scmp.eq.s32.totalorder %s17, 1
    %p108 = por %p106, %p107
    %p110 = scmp.ne.s32.totalorder %s95, %s109
    %p111 = scmp.eq.s32.totalorder %s17, 0
    %p112 = por %p110, %p111
    %s114 = sadd.s32 %s113, 1
    %p117 = scmp.eq.s32.totalorder %s11, 1
    %p118 = scmp.ne.s32.totalorder %s113, %s115
    %p119 = scmp.eq.s32.totalorder %s11, 0
    %p120 = por %p118, %p119
    %p121 = scmp.ne.s32.totalorder %s113, %s115
    %p122 = scmp.eq.s32.totalorder %s16, 1
    %p123 = por %p121, %p122
    %p124 = scmp.ne.s32.totalorder %s115, %s116
    %p125 = scmp.eq.s32.totalorder %s16, 0
    %p126 = por %p124, %p125
    %p127 = scmp.ne.s32.totalorder %s115, %s116
    %p128 = scmp.eq.s32.totalorder %s17, 1
    %p129 = por %p127, %p128
    %p131 = scmp.ne.s32.totalorder %s116, %s130
    %p132 = scmp.eq.s32.totalorder %s17, 0
    %p133 = por %p131, %p132
    %s134 = ssub.s32 %s11, %s18
    %p135 = scmp.eq.s32.totalorder %s134, 0
    %s137 = sadd.s32 %s136, 1
    %s138 = scalar_select %p135, %s136, %s137
    %p141 = pneg %p135
    %p142 = scmp.eq.s32.totalorder %s11, 1
    %p143 = por %p141, %p142
    %p144 = scmp.ne.s32.totalorder %s136, %s139
    %p145 = scmp.eq.s32.totalorder %s11, 0
    %p146 = por %p144, %p145
    %p147 = scmp.ne.s32.totalorder %s136, %s139
    %p148 = scmp.eq.s32.totalorder %s16, 1
    %p149 = por %p147, %p148
    %p150 = scmp.ne.s32.totalorder %s139, %s140
    %p151 = scmp.eq.s32.totalorder %s16, 0
    %p152 = por %p150, %p151
    %p153 = scmp.ne.s32.totalorder %s139, %s140
    %p154 = scmp.eq.s32.totalorder %s17, 1
    %p155 = por %p153, %p154
    %p157 = scmp.ne.s32.totalorder %s140, %s156
    %p158 = scmp.eq.s32.totalorder %s17, 0
    %p159 = por %p157, %p158
    %p160 = scmp.le.s32.totalorder 1, %s11
    %p161 = scmp.lt.s32.totalorder %s11, 3
    %p162 = pnand %p160, %p161
    %p163 = pneg %p162
    // Predicated region
    $region9: #{run.1} parent=5 // pred_check
      _
    $region10: #{run.1} parent=5 // pred_check_branch
      %165 = sbr.rel (%p162) target = $region12
    $region11: #{run.1} parent=5 // pred_region
      %s166 = ssub.s32 %s11, 1
      // Predicated region
      $region13: #{run.1} parent=11 // pred_check
        %p167 = pneg %p84
      $region14: #{run.1} parent=11 // pred_check_branch
        %169 = sbr.rel (%p167) target = $region16
      $region15: #{run.1} parent=11 // pred_region
        _
      $region16: #{run.1} parent=11 // pred_fallthru
        _
      // Predicated region
      $region17: #{run.1} parent=11 // pred_check
        %p170 = pneg %p105
      $region18: #{run.1} parent=11 // pred_check_branch
        %172 = sbr.rel (%p170) target = $region20
      $region19: #{run.1} parent=11 // pred_region
        _
      $region20: #{run.1} parent=11 // pred_fallthru
        _
      // Predicated region
      $region21: #{run.1} parent=11 // pred_check
        %p173 = pneg %p126
      $region22: #{run.1} parent=11 // pred_check_branch
        %175 = sbr.rel (%p173) target = $region24
      $region23: #{run.1} parent=11 // pred_region
        _
      $region24: #{run.1} parent=11 // pred_fallthru
        _
    $region12: #{run.1} parent=5 // pred_fallthru
      _
    %p176 = scmp.lt.s32.totalorder %s11, 2
    // Predicated region
    $region25: #{run.1} parent=5 // pred_check
      %p177 = pneg %p176
    $region26: #{run.1} parent=5 // pred_check_branch
      %179 = sbr.rel (%p177) target = $region28
    $region27: #{run.1} parent=5 // pred_region
      // Predicated region
      $region29: #{run.1} parent=27 // pred_check
        %p180 = pneg %p31
      $region30: #{run.1} parent=27 // pred_check_branch
        %182 = sbr.rel (%p180) target = $region32
      $region31: #{run.1} parent=27 // pred_region
        %s183 = smul.u32 6, %s11
        %p184 = scmp.lt.s32.totalorder %s183, 11
        %s185 = scalar_select %p184, %s183, 11
        %s186 = smul.addr %s185, 16
        %s187 = smul.addr %s186, 4
        %s188 = scalar_lea.vmem %s0, %s187
        %s189 = smul.u32 6, %s11
      $region32: #{run.1} parent=27 // pred_fallthru
        _
      // Predicated region
      $region33: #{run.1} parent=27 // pred_check
        %p190 = pneg %p57
      $region34: #{run.1} parent=27 // pred_check_branch
        %192 = sbr.rel (%p190) target = $region36
      $region35: #{run.1} parent=27 // pred_region
        %s193 = smul.u32 64, %s11
        %p194 = scmp.lt.s32.totalorder %s193, 127
        %s195 = scalar_select %p194, %s193, 127
        %s196 = smul.addr %s195, 3
        %s197 = smul.addr %s196, 4
        %s198 = scalar_lea.vmem %s1, %s197
        %s199 = smul.u32 64, %s11
      $region36: #{run.1} parent=27 // pred_fallthru
        _
    $region28: #{run.1} parent=5 // pred_fallthru
      _
    %p200 = scmp.le.s32.totalorder 1, %s11
    %p201 = scmp.lt.s32.totalorder %s11, 3
    %p202 = pnand %p200, %p201
    %p203 = pneg %p202
    // Predicated region
    $region37: #{run.1} parent=5 // pred_check
      _
    $region38: #{run.1} parent=5 // pred_check_branch
      %205 = sbr.rel (%p202) target = $region40
    $region39: #{run.1} parent=5 // pred_region
      %s206 = ssub.s32 %s11, 1
      %s207 = smul.u32 6, %s16
      %p208 = scmp.lt.s32.totalorder %s207, 11
      %s209 = scalar_select %p208, %s207, 11
      %s210 = smul.addr %s209, 16
      %s211 = smul.addr %s210, 4
      %s212 = scalar_lea.vmem %s0, %s211
      %p213 = pneg %p37
      %p214 = pneg %p34
      %s215 = smul.u32 64, %s16
      %p216 = scmp.lt.s32.totalorder %s215, 127
      %s217 = scalar_select %p216, %s215, 127
      %s218 = smul.addr %s217, 3
      %s219 = smul.addr %s218, 4
      %s220 = scalar_lea.vmem %s1, %s219
      %p221 = pneg %p63
      %p222 = pneg %p60
      %p223 = pneg %p84
      %p224 = pneg %p81
      %p225 = pneg %p105
      %p226 = pneg %p102
      %p227 = pneg %p126
      %p228 = pneg %p123
      %p229 = pneg %p152
      %p230 = pneg %p149
      %p231 = scmp.lt.s32.totalorder %s16, 1
      %s232 = scalar_select %p231, %s16, 1
      %s233 = smul.addr %s232, 8
      %s234 = scalar_lea.vmem %s5, %s233
      %s235 = smul.u32 6, %s16
      %p236 = scmp.lt.s32.totalorder %s235, 11
      %s237 = scalar_select %p236, %s235, 11
      %s238 = smul.addr %s237, 16
      %s239 = smul.addr %s238, 4
      %s240 = scalar_lea.vmem %s0, %s239
      %s241 = smul.u32 6, %s16
      %s242 = smul.u32 64, %s16
      %p243 = scmp.lt.s32.totalorder %s242, 127
      %s244 = scalar_select %p243, %s242, 127
      %s245 = smul.addr %s244, 3
      %s246 = smul.addr %s245, 4
      %s247 = scalar_lea.vmem %s1, %s246
      %s248 = smul.u32 64, %s16
      %p249 = scmp.lt.s32.totalorder %s16, 1
      %s250 = scalar_select %p249, %s16, 1
      %s251 = smul.addr %s250, 8
      %s252 = scalar_lea.vmem %s5, %s251
      %v254 = vld [vmem:[%s240] sm:$0xff]
      %v255 = vld [vmem:[%s240 + $0x8] sm:$0xff]
      %v256 = vld [vmem:[%s240 + $0x10] sm:$0xff]
      %v257 = vld [vmem:[%s240 + $0x18] sm:$0xff]
      %v258 = vld [vmem:[%s240 + $0x20] sm:$0xff]
      %v259 = vld [vmem:[%s240 + $0x28] sm:$0xff]
      %v260 = vld [vmem:[%s240 + $0x30] sm:$0xff]
      %v261 = vld [vmem:[%s240 + $0x38] sm:$0xff]
      %v262 = vld [vmem:[%s240 + $0x40] sm:$0xff]
      %v263 = vld [vmem:[%s240 + $0x48] sm:$0xff]
      %v264 = vld [vmem:[%s240 + $0x50] sm:$0xff]
      %v265 = vld [vmem:[%s240 + $0x58] sm:$0xff]
      %v266 = vld [vmem:[%s240 + $0x60] sm:$0xff]
      %v267 = vld [vmem:[%s240 + $0x68] sm:$0xff]
      %v268 = vld [vmem:[%s240 + $0x70] sm:$0xff]
      %v269 = vld [vmem:[%s240 + $0x78] sm:$0xff]
      %v270 = vld [vmem:[%s240 + $0x80] sm:$0xff]
      %v271 = vld [vmem:[%s240 + $0x88] sm:$0xff]
      %v272 = vld [vmem:[%s240 + $0x90] sm:$0xff]
      %v273 = vld [vmem:[%s240 + $0x98] sm:$0xff]
      %v274 = vld [vmem:[%s240 + $0xa0] sm:$0xff]
      %v275 = vld [vmem:[%s240 + $0xa8] sm:$0xff]
      %v276 = vld [vmem:[%s240 + $0xb0] sm:$0xff]
      %v277 = vld [vmem:[%s240 + $0xb8] sm:$0xff]
      %v278 = vld [vmem:[%s240 + $0xc0] sm:$0xff]
      %v279 = vld [vmem:[%s240 + $0xc8] sm:$0xff]
      %v280 = vld [vmem:[%s240 + $0xd0] sm:$0xff]
      %v281 = vld [vmem:[%s240 + $0xd8] sm:$0xff]
      %v282 = vld [vmem:[%s240 + $0xe0] sm:$0xff]
      %v283 = vld [vmem:[%s240 + $0xe8] sm:$0xff]
      %v284 = vld [vmem:[%s240 + $0xf0] sm:$0xff]
      %v285 = vld [vmem:[%s240 + $0xf8] sm:$0xff]
      %v286 = vld [vmem:[%s240 + $0x100] sm:$0xff]
      %v287 = vld [vmem:[%s240 + $0x108] sm:$0xff]
      %v288 = vld [vmem:[%s240 + $0x110] sm:$0xff]
      %v289 = vld [vmem:[%s240 + $0x118] sm:$0xff]
      %v290 = vld [vmem:[%s240 + $0x120] sm:$0xff]
      %v291 = vld [vmem:[%s240 + $0x128] sm:$0xff]
      %v292 = vld [vmem:[%s240 + $0x130] sm:$0xff]
      %v293 = vld [vmem:[%s240 + $0x138] sm:$0xff]
      %v294 = vld [vmem:[%s240 + $0x140] sm:$0xff]
      %v295 = vld [vmem:[%s240 + $0x148] sm:$0xff]
      %v296 = vld [vmem:[%s240 + $0x150] sm:$0xff]
      %v297 = vld [vmem:[%s240 + $0x158] sm:$0xff]
      %v298 = vld [vmem:[%s240 + $0x160] sm:$0xff]
      %v299 = vld [vmem:[%s240 + $0x168] sm:$0xff]
      %v300 = vld [vmem:[%s240 + $0x170] sm:$0xff]
      %v301 = vld [vmem:[%s240 + $0x178] sm:$0xff]
      %v302 = vld [vmem:[%s2] sm:$0xff]
      %v303 = vld [vmem:[%s2 + $0x8] sm:$0xff]
      %v304 = vld [vmem:[%s2 + $0x10] sm:$0xf]
      %v305 = vld [vmem:[%s2 + $0x14] sm:$0xff]
      %v306 = vld [vmem:[%s2 + $0x1c] sm:$0xff]
      %v307 = vld [vmem:[%s2 + $0x24] sm:$0xf]
      %v308 = vld [vmem:[%s2 + $0x28] sm:$0xff]
      %v309 = vld [vmem:[%s2 + $0x30] sm:$0xff]
      %v310 = vld [vmem:[%s2 + $0x38] sm:$0xf]
      %v311 = vld [vmem:[%s2 + $0x3c] sm:$0xff]
      %v312 = vld [vmem:[%s2 + $0x44] sm:$0xff]
      %v313 = vld [vmem:[%s2 + $0x4c] sm:$0xf]
      %v314 = vld [vmem:[%s2 + $0x50] sm:$0xff]
      %v315 = vld [vmem:[%s2 + $0x58] sm:$0xff]
      %v316 = vld [vmem:[%s2 + $0x60] sm:$0xf]
      %v317 = vld [vmem:[%s2 + $0x64] sm:$0xff]
      %v318 = vld [vmem:[%s2 + $0x6c] sm:$0xff]
      %v319 = vld [vmem:[%s2 + $0x74] sm:$0xf]
      %v320 = vld [vmem:[%s2 + $0x78] sm:$0xff]
      %v321 = vld [vmem:[%s2 + $0x80] sm:$0xff]
      %v322 = vld [vmem:[%s2 + $0x88] sm:$0xf]
      %v323 = vld [vmem:[%s2 + $0x8c] sm:$0xff]
      %v324 = vld [vmem:[%s2 + $0x94] sm:$0xff]
      %v325 = vld [vmem:[%s2 + $0x9c] sm:$0xf]
      %v326 = vld [vmem:[%s2 + $0xa0] sm:$0xff]
      %v327 = vld [vmem:[%s2 + $0xa8] sm:$0xff]
      %v328 = vld [vmem:[%s2 + $0xb0] sm:$0xf]
      %v329 = vld [vmem:[%s2 + $0xb4] sm:$0xff]
      %v330 = vld [vmem:[%s2 + $0xbc] sm:$0xff]
      %v331 = vld [vmem:[%s2 + $0xc4] sm:$0xf]
      %v332 = vld [vmem:[%s2 + $0xc8] sm:$0xff]
      %v333 = vld [vmem:[%s2 + $0xd0] sm:$0xff]
      %v334 = vld [vmem:[%s2 + $0xd8] sm:$0xf]
      %v335 = vld [vmem:[%s2 + $0xdc] sm:$0xff]
      %v336 = vld [vmem:[%s2 + $0xe4] sm:$0xff]
      %v337 = vld [vmem:[%s2 + $0xec] sm:$0xf]
      %v338 = vld [vmem:[%s2 + $0xf0] sm:$0xff]
      %v339 = vld [vmem:[%s2 + $0xf8] sm:$0xff]
      %v340 = vld [vmem:[%s2 + $0x100] sm:$0xf]
      %v341 = vld [vmem:[%s2 + $0x104] sm:$0xff]
      %v342 = vld [vmem:[%s2 + $0x10c] sm:$0xff]
      %v343 = vld [vmem:[%s2 + $0x114] sm:$0xf]
      %v344 = vld [vmem:[%s2 + $0x118] sm:$0xff]
      %v345 = vld [vmem:[%s2 + $0x120] sm:$0xff]
      %v346 = vld [vmem:[%s2 + $0x128] sm:$0xf]
      %v347 = vld [vmem:[%s2 + $0x12c] sm:$0xff]
      %v348 = vld [vmem:[%s2 + $0x134] sm:$0xff]
      %v349 = vld [vmem:[%s2 + $0x13c] sm:$0xf]
      %v350 = vld [vmem:[%s2 + $0x140] sm:$0xff]
      %v351 = vld [vmem:[%s2 + $0x148] sm:$0xff]
      %v352 = vld [vmem:[%s2 + $0x150] sm:$0xf]
      %v353 = vld [vmem:[%s2 + $0x154] sm:$0xff]
      %v354 = vld [vmem:[%s2 + $0x15c] sm:$0xff]
      %v355 = vld [vmem:[%s2 + $0x164] sm:$0xf]
      %v356 = vld [vmem:[%s2 + $0x168] sm:$0xff]
      %v357 = vld [vmem:[%s2 + $0x170] sm:$0xff]
      %v358 = vld [vmem:[%s2 + $0x178] sm:$0xf]
      %v359 = vld [vmem:[%s2 + $0x17c] sm:$0xff]
      %v360 = vld [vmem:[%s2 + $0x184] sm:$0xff]
      %v361 = vld [vmem:[%s2 + $0x18c] sm:$0xf]
      %v362 = vld [vmem:[%s2 + $0x190] sm:$0xff]
      %v363 = vld [vmem:[%s2 + $0x198] sm:$0xff]
      %v364 = vld [vmem:[%s2 + $0x1a0] sm:$0xf]
      %v365 = vld [vmem:[%s2 + $0x1a4] sm:$0xff]
      %v366 = vld [vmem:[%s2 + $0x1ac] sm:$0xff]
      %v367 = vld [vmem:[%s2 + $0x1b4] sm:$0xf]
      %v368 = vld [vmem:[%s2 + $0x1b8] sm:$0xff]
      %v369 = vld [vmem:[%s2 + $0x1c0] sm:$0xff]
      %v370 = vld [vmem:[%s2 + $0x1c8] sm:$0xf]
      %v371 = vld [vmem:[%s2 + $0x1cc] sm:$0xff]
      %v372 = vld [vmem:[%s2 + $0x1d4] sm:$0xff]
      %v373 = vld [vmem:[%s2 + $0x1dc] sm:$0xf]
      %v374 = vld [vmem:[%s2 + $0x1e0] sm:$0xff]
      %v375 = vld [vmem:[%s2 + $0x1e8] sm:$0xff]
      %v376 = vld [vmem:[%s2 + $0x1f0] sm:$0xf]
      %v377 = vld [vmem:[%s2 + $0x1f4] sm:$0xff]
      %v378 = vld [vmem:[%s2 + $0x1fc] sm:$0xff]
      %v379 = vld [vmem:[%s2 + $0x204] sm:$0xf]
      %v380 = vld [vmem:[%s2 + $0x208] sm:$0xff]
      %v381 = vld [vmem:[%s2 + $0x210] sm:$0xff]
      %v382 = vld [vmem:[%s2 + $0x218] sm:$0xf]
      %v383 = vld [vmem:[%s2 + $0x21c] sm:$0xff]
      %v384 = vld [vmem:[%s2 + $0x224] sm:$0xff]
      %v385 = vld [vmem:[%s2 + $0x22c] sm:$0xf]
      %v386 = vld [vmem:[%s2 + $0x230] sm:$0xff]
      %v387 = vld [vmem:[%s2 + $0x238] sm:$0xff]
      %v388 = vld [vmem:[%s2 + $0x240] sm:$0xf]
      %v389 = vld [vmem:[%s2 + $0x244] sm:$0xff]
      %v390 = vld [vmem:[%s2 + $0x24c] sm:$0xff]
      %v391 = vld [vmem:[%s2 + $0x254] sm:$0xf]
      %v392 = vld [vmem:[%s2 + $0x258] sm:$0xff]
      %v393 = vld [vmem:[%s2 + $0x260] sm:$0xff]
      %v394 = vld [vmem:[%s2 + $0x268] sm:$0xf]
      %v395 = vld [vmem:[%s2 + $0x26c] sm:$0xff]
      %v396 = vld [vmem:[%s2 + $0x274] sm:$0xff]
      %v397 = vld [vmem:[%s2 + $0x27c] sm:$0xf]
      %v398 = vld [vmem:[%s2 + $0x280] sm:$0xff]
      %v399 = vld [vmem:[%s2 + $0x288] sm:$0xff]
      %v400 = vld [vmem:[%s2 + $0x290] sm:$0xf]
      %v401 = vld [vmem:[%s2 + $0x294] sm:$0xff]
      %v402 = vld [vmem:[%s2 + $0x29c] sm:$0xff]
      %v403 = vld [vmem:[%s2 + $0x2a4] sm:$0xf]
      %v404 = vld [vmem:[%s2 + $0x2a8] sm:$0xff]
      %v405 = vld [vmem:[%s2 + $0x2b0] sm:$0xff]
      %v406 = vld [vmem:[%s2 + $0x2b8] sm:$0xf]
      %v407 = vld [vmem:[%s2 + $0x2bc] sm:$0xff]
      %v408 = vld [vmem:[%s2 + $0x2c4] sm:$0xff]
      %v409 = vld [vmem:[%s2 + $0x2cc] sm:$0xf]
      %v410 = vld [vmem:[%s2 + $0x2d0] sm:$0xff]
      %v411 = vld [vmem:[%s2 + $0x2d8] sm:$0xff]
      %v412 = vld [vmem:[%s2 + $0x2e0] sm:$0xf]
      %v413 = vld [vmem:[%s2 + $0x2e4] sm:$0xff]
      %v414 = vld [vmem:[%s2 + $0x2ec] sm:$0xff]
      %v415 = vld [vmem:[%s2 + $0x2f4] sm:$0xf]
      %v416 = vld [vmem:[%s2 + $0x2f8] sm:$0xff]
      %v417 = vld [vmem:[%s2 + $0x300] sm:$0xff]
      %v418 = vld [vmem:[%s2 + $0x308] sm:$0xf]
      %v419 = vld [vmem:[%s2 + $0x30c] sm:$0xff]
      %v420 = vld [vmem:[%s2 + $0x314] sm:$0xff]
      %v421 = vld [vmem:[%s2 + $0x31c] sm:$0xf]
      %v422 = vld [vmem:[%s2 + $0x320] sm:$0xff]
      %v423 = vld [vmem:[%s2 + $0x328] sm:$0xff]
      %v424 = vld [vmem:[%s2 + $0x330] sm:$0xf]
      %v425 = vld [vmem:[%s2 + $0x334] sm:$0xff]
      %v426 = vld [vmem:[%s2 + $0x33c] sm:$0xff]
      %v427 = vld [vmem:[%s2 + $0x344] sm:$0xf]
      %v428 = vld [vmem:[%s2 + $0x348] sm:$0xff]
      %v429 = vld [vmem:[%s2 + $0x350] sm:$0xff]
      %v430 = vld [vmem:[%s2 + $0x358] sm:$0xf]
      %v431 = vld [vmem:[%s2 + $0x35c] sm:$0xff]
      %v432 = vld [vmem:[%s2 + $0x364] sm:$0xff]
      %v433 = vld [vmem:[%s2 + $0x36c] sm:$0xf]
      %v434 = vld [vmem:[%s2 + $0x370] sm:$0xff]
      %v435 = vld [vmem:[%s2 + $0x378] sm:$0xff]
      %v436 = vld [vmem:[%s2 + $0x380] sm:$0xf]
      %v437 = vld [vmem:[%s2 + $0x384] sm:$0xff]
      %v438 = vld [vmem:[%s2 + $0x38c] sm:$0xff]
      %v439 = vld [vmem:[%s2 + $0x394] sm:$0xf]
      %v440 = vld [vmem:[%s2 + $0x398] sm:$0xff]
      %v441 = vld [vmem:[%s2 + $0x3a0] sm:$0xff]
      %v442 = vld [vmem:[%s2 + $0x3a8] sm:$0xf]
      %v443 = vld [vmem:[%s2 + $0x3ac] sm:$0xff]
      %v444 = vld [vmem:[%s2 + $0x3b4] sm:$0xff]
      %v445 = vld [vmem:[%s2 + $0x3bc] sm:$0xf]
      %v446 = vld [vmem:[%s2 + $0x3c0] sm:$0xff]
      %v447 = vld [vmem:[%s2 + $0x3c8] sm:$0xff]
      %v448 = vld [vmem:[%s2 + $0x3d0] sm:$0xf]
      %v449 = vld [vmem:[%s2 + $0x3d4] sm:$0xff]
      %v450 = vld [vmem:[%s2 + $0x3dc] sm:$0xff]
      %v451 = vld [vmem:[%s2 + $0x3e4] sm:$0xf]
      %v452 = vld [vmem:[%s2 + $0x3e8] sm:$0xff]
      %v453 = vld [vmem:[%s2 + $0x3f0] sm:$0xff]
      %v454 = vld [vmem:[%s2 + $0x3f8] sm:$0xf]
      %v455 = vld [vmem:[%s2 + $0x3fc] sm:$0xff]
      %v456 = vld [vmem:[%s2 + $0x404] sm:$0xff]
      %v457 = vld [vmem:[%s2 + $0x40c] sm:$0xf]
      %v458 = vld [vmem:[%s2 + $0x410] sm:$0xff]
      %v459 = vld [vmem:[%s2 + $0x418] sm:$0xff]
      %v460 = vld [vmem:[%s2 + $0x420] sm:$0xf]
      %v461 = vld [vmem:[%s2 + $0x424] sm:$0xff]
      %v462 = vld [vmem:[%s2 + $0x42c] sm:$0xff]
      %v463 = vld [vmem:[%s2 + $0x434] sm:$0xf]
      %v464 = vld [vmem:[%s2 + $0x438] sm:$0xff]
      %v465 = vld [vmem:[%s2 + $0x440] sm:$0xff]
      %v466 = vld [vmem:[%s2 + $0x448] sm:$0xf]
      %v467 = vld [vmem:[%s2 + $0x44c] sm:$0xff]
      %v468 = vld [vmem:[%s2 + $0x454] sm:$0xff]
      %v469 = vld [vmem:[%s2 + $0x45c] sm:$0xf]
      %v470 = vld [vmem:[%s2 + $0x460] sm:$0xff]
      %v471 = vld [vmem:[%s2 + $0x468] sm:$0xff]
      %v472 = vld [vmem:[%s2 + $0x470] sm:$0xf]
      %v473 = vld [vmem:[%s2 + $0x474] sm:$0xff]
      %v474 = vld [vmem:[%s2 + $0x47c] sm:$0xff]
      %v475 = vld [vmem:[%s2 + $0x484] sm:$0xf]
      %v476 = vld [vmem:[%s2 + $0x488] sm:$0xff]
      %v477 = vld [vmem:[%s2 + $0x490] sm:$0xff]
      %v478 = vld [vmem:[%s2 + $0x498] sm:$0xf]
      %v479 = vld [vmem:[%s2 + $0x49c] sm:$0xff]
      %v480 = vld [vmem:[%s2 + $0x4a4] sm:$0xff]
      %v481 = vld [vmem:[%s2 + $0x4ac] sm:$0xf]
      %v482 = vld [vmem:[%s2 + $0x4b0] sm:$0xff]
      %v483 = vld [vmem:[%s2 + $0x4b8] sm:$0xff]
      %v484 = vld [vmem:[%s2 + $0x4c0] sm:$0xf]
      %v485 = vld [vmem:[%s2 + $0x4c4] sm:$0xff]
      %v486 = vld [vmem:[%s2 + $0x4cc] sm:$0xff]
      %v487 = vld [vmem:[%s2 + $0x4d4] sm:$0xf]
      %v488 = vld [vmem:[%s2 + $0x4d8] sm:$0xff]
      %v489 = vld [vmem:[%s2 + $0x4e0] sm:$0xff]
      %v490 = vld [vmem:[%s2 + $0x4e8] sm:$0xf]
      %v491 = vld [vmem:[%s2 + $0x4ec] sm:$0xff]
      %v492 = vld [vmem:[%s2 + $0x4f4] sm:$0xff]
      %v493 = vld [vmem:[%s2 + $0x4fc] sm:$0xf]
      %v494 = vld [vmem:[%s2 + $0x500] sm:$0xff]
      %v495 = vld [vmem:[%s2 + $0x508] sm:$0xff]
      %v496 = vld [vmem:[%s2 + $0x510] sm:$0xf]
      %v497 = vld [vmem:[%s2 + $0x514] sm:$0xff]
      %v498 = vld [vmem:[%s2 + $0x51c] sm:$0xff]
      %v499 = vld [vmem:[%s2 + $0x524] sm:$0xf]
      %v500 = vld [vmem:[%s2 + $0x528] sm:$0xff]
      %v501 = vld [vmem:[%s2 + $0x530] sm:$0xff]
      %v502 = vld [vmem:[%s2 + $0x538] sm:$0xf]
      %v503 = vld [vmem:[%s2 + $0x53c] sm:$0xff]
      %v504 = vld [vmem:[%s2 + $0x544] sm:$0xff]
      %v505 = vld [vmem:[%s2 + $0x54c] sm:$0xf]
      %v506 = vld [vmem:[%s2 + $0x550] sm:$0xff]
      %v507 = vld [vmem:[%s2 + $0x558] sm:$0xff]
      %v508 = vld [vmem:[%s2 + $0x560] sm:$0xf]
      %v509 = vld [vmem:[%s2 + $0x564] sm:$0xff]
      %v510 = vld [vmem:[%s2 + $0x56c] sm:$0xff]
      %v511 = vld [vmem:[%s2 + $0x574] sm:$0xf]
      %v512 = vld [vmem:[%s2 + $0x578] sm:$0xff]
      %v513 = vld [vmem:[%s2 + $0x580] sm:$0xff]
      %v514 = vld [vmem:[%s2 + $0x588] sm:$0xf]
      %v515 = vld [vmem:[%s2 + $0x58c] sm:$0xff]
      %v516 = vld [vmem:[%s2 + $0x594] sm:$0xff]
      %v517 = vld [vmem:[%s2 + $0x59c] sm:$0xf]
      %v518 = vld [vmem:[%s2 + $0x5a0] sm:$0xff]
      %v519 = vld [vmem:[%s2 + $0x5a8] sm:$0xff]
      %v520 = vld [vmem:[%s2 + $0x5b0] sm:$0xf]
      %v521 = vld [vmem:[%s2 + $0x5b4] sm:$0xff]
      %v522 = vld [vmem:[%s2 + $0x5bc] sm:$0xff]
      %v523 = vld [vmem:[%s2 + $0x5c4] sm:$0xf]
      %v524 = vld [vmem:[%s2 + $0x5c8] sm:$0xff]
      %v525 = vld [vmem:[%s2 + $0x5d0] sm:$0xff]
      %v526 = vld [vmem:[%s2 + $0x5d8] sm:$0xf]
      %v527 = vld [vmem:[%s2 + $0x5dc] sm:$0xff]
      %v528 = vld [vmem:[%s2 + $0x5e4] sm:$0xff]
      %v529 = vld [vmem:[%s2 + $0x5ec] sm:$0xf]
      %v530 = vld [vmem:[%s2 + $0x5f0] sm:$0xff]
      %v531 = vld [vmem:[%s2 + $0x5f8] sm:$0xff]
      %v532 = vld [vmem:[%s2 + $0x600] sm:$0xf]
      %v533 = vld [vmem:[%s2 + $0x604] sm:$0xff]
      %v534 = vld [vmem:[%s2 + $0x60c] sm:$0xff]
      %v535 = vld [vmem:[%s2 + $0x614] sm:$0xf]
      %v536 = vld [vmem:[%s2 + $0x618] sm:$0xff]
      %v537 = vld [vmem:[%s2 + $0x620] sm:$0xff]
      %v538 = vld [vmem:[%s2 + $0x628] sm:$0xf]
      %v539 = vld [vmem:[%s2 + $0x62c] sm:$0xff]
      %v540 = vld [vmem:[%s2 + $0x634] sm:$0xff]
      %v541 = vld [vmem:[%s2 + $0x63c] sm:$0xf]
      %v542 = vld [vmem:[%s2 + $0x640] sm:$0xff]
      %v543 = vld [vmem:[%s2 + $0x648] sm:$0xff]
      %v544 = vld [vmem:[%s2 + $0x650] sm:$0xf]
      %v545 = vld [vmem:[%s2 + $0x654] sm:$0xff]
      %v546 = vld [vmem:[%s2 + $0x65c] sm:$0xff]
      %v547 = vld [vmem:[%s2 + $0x664] sm:$0xf]
      %v548 = vld [vmem:[%s2 + $0x668] sm:$0xff]
      %v549 = vld [vmem:[%s2 + $0x670] sm:$0xff]
      %v550 = vld [vmem:[%s2 + $0x678] sm:$0xf]
      %v551 = vld [vmem:[%s2 + $0x67c] sm:$0xff]
      %v552 = vld [vmem:[%s2 + $0x684] sm:$0xff]
      %v553 = vld [vmem:[%s2 + $0x68c] sm:$0xf]
      %v554 = vld [vmem:[%s2 + $0x690] sm:$0xff]
      %v555 = vld [vmem:[%s2 + $0x698] sm:$0xff]
      %v556 = vld [vmem:[%s2 + $0x6a0] sm:$0xf]
      %v557 = vld [vmem:[%s2 + $0x6a4] sm:$0xff]
      %v558 = vld [vmem:[%s2 + $0x6ac] sm:$0xff]
      %v559 = vld [vmem:[%s2 + $0x6b4] sm:$0xf]
      %v560 = vld [vmem:[%s2 + $0x6b8] sm:$0xff]
      %v561 = vld [vmem:[%s2 + $0x6c0] sm:$0xff]
      %v562 = vld [vmem:[%s2 + $0x6c8] sm:$0xf]
      %v563 = vld [vmem:[%s2 + $0x6cc] sm:$0xff]
      %v564 = vld [vmem:[%s2 + $0x6d4] sm:$0xff]
      %v565 = vld [vmem:[%s2 + $0x6dc] sm:$0xf]
      %v566 = vld [vmem:[%s2 + $0x6e0] sm:$0xff]
      %v567 = vld [vmem:[%s2 + $0x6e8] sm:$0xff]
      %v568 = vld [vmem:[%s2 + $0x6f0] sm:$0xf]
      %v569 = vld [vmem:[%s2 + $0x6f4] sm:$0xff]
      %v570 = vld [vmem:[%s2 + $0x6fc] sm:$0xff]
      %v571 = vld [vmem:[%s2 + $0x704] sm:$0xf]
      %v572 = vld [vmem:[%s2 + $0x708] sm:$0xff]
      %v573 = vld [vmem:[%s2 + $0x710] sm:$0xff]
      %v574 = vld [vmem:[%s2 + $0x718] sm:$0xf]
      %v575 = vld [vmem:[%s2 + $0x71c] sm:$0xff]
      %v576 = vld [vmem:[%s2 + $0x724] sm:$0xff]
      %v577 = vld [vmem:[%s2 + $0x72c] sm:$0xf]
      %v578 = vld [vmem:[%s2 + $0x730] sm:$0xff]
      %v579 = vld [vmem:[%s2 + $0x738] sm:$0xff]
      %v580 = vld [vmem:[%s2 + $0x740] sm:$0xf]
      %v581 = vld [vmem:[%s2 + $0x744] sm:$0xff]
      %v582 = vld [vmem:[%s2 + $0x74c] sm:$0xff]
      %v583 = vld [vmem:[%s2 + $0x754] sm:$0xf]
      %v584 = vld [vmem:[%s2 + $0x758] sm:$0xff]
      %v585 = vld [vmem:[%s2 + $0x760] sm:$0xff]
      %v586 = vld [vmem:[%s2 + $0x768] sm:$0xf]
      %v587 = vld [vmem:[%s2 + $0x76c] sm:$0xff]
      %v588 = vld [vmem:[%s2 + $0x774] sm:$0xff]
      %v589 = vld [vmem:[%s2 + $0x77c] sm:$0xf]
      %v590 = vld [vmem:[%s2 + $0x780] sm:$0xff]
      %v591 = vld [vmem:[%s2 + $0x788] sm:$0xff]
      %v592 = vld [vmem:[%s2 + $0x790] sm:$0xf]
      %v593 = vld [vmem:[%s2 + $0x794] sm:$0xff]
      %v594 = vld [vmem:[%s2 + $0x79c] sm:$0xff]
      %v595 = vld [vmem:[%s2 + $0x7a4] sm:$0xf]
      %v596 = vld [vmem:[%s2 + $0x7a8] sm:$0xff]
      %v597 = vld [vmem:[%s2 + $0x7b0] sm:$0xff]
      %v598 = vld [vmem:[%s2 + $0x7b8] sm:$0xf]
      %v599 = vld [vmem:[%s2 + $0x7bc] sm:$0xff]
      %v600 = vld [vmem:[%s2 + $0x7c4] sm:$0xff]
      %v601 = vld [vmem:[%s2 + $0x7cc] sm:$0xf]
      %v602 = vld [vmem:[%s2 + $0x7d0] sm:$0xff]
      %v603 = vld [vmem:[%s2 + $0x7d8] sm:$0xff]
      %v604 = vld [vmem:[%s2 + $0x7e0] sm:$0xf]
      %v605 = vld [vmem:[%s2 + $0x7e4] sm:$0xff]
      %v606 = vld [vmem:[%s2 + $0x7ec] sm:$0xff]
      %v607 = vld [vmem:[%s2 + $0x7f4] sm:$0xf]
      %v608 = vld [vmem:[%s2 + $0x7f8] sm:$0xff]
      %v609 = vld [vmem:[%s2 + $0x800] sm:$0xff]
      %v610 = vld [vmem:[%s2 + $0x808] sm:$0xf]
      %v611 = vld [vmem:[%s2 + $0x80c] sm:$0xff]
      %v612 = vld [vmem:[%s2 + $0x814] sm:$0xff]
      %v613 = vld [vmem:[%s2 + $0x81c] sm:$0xf]
      %v614 = vld [vmem:[%s2 + $0x820] sm:$0xff]
      %v615 = vld [vmem:[%s2 + $0x828] sm:$0xff]
      %v616 = vld [vmem:[%s2 + $0x830] sm:$0xf]
      %v617 = vld [vmem:[%s2 + $0x834] sm:$0xff]
      %v618 = vld [vmem:[%s2 + $0x83c] sm:$0xff]
      %v619 = vld [vmem:[%s2 + $0x844] sm:$0xf]
      %v620 = vld [vmem:[%s2 + $0x848] sm:$0xff]
      %v621 = vld [vmem:[%s2 + $0x850] sm:$0xff]
      %v622 = vld [vmem:[%s2 + $0x858] sm:$0xf]
      %v623 = vld [vmem:[%s2 + $0x85c] sm:$0xff]
      %v624 = vld [vmem:[%s2 + $0x864] sm:$0xff]
      %v625 = vld [vmem:[%s2 + $0x86c] sm:$0xf]
      %v626 = vld [vmem:[%s2 + $0x870] sm:$0xff]
      %v627 = vld [vmem:[%s2 + $0x878] sm:$0xff]
      %v628 = vld [vmem:[%s2 + $0x880] sm:$0xf]
      %v629 = vld [vmem:[%s2 + $0x884] sm:$0xff]
      %v630 = vld [vmem:[%s2 + $0x88c] sm:$0xff]
      %v631 = vld [vmem:[%s2 + $0x894] sm:$0xf]
      %v632 = vld [vmem:[%s2 + $0x898] sm:$0xff]
      %v633 = vld [vmem:[%s2 + $0x8a0] sm:$0xff]
      %v634 = vld [vmem:[%s2 + $0x8a8] sm:$0xf]
      %v635 = vld [vmem:[%s2 + $0x8ac] sm:$0xff]
      %v636 = vld [vmem:[%s2 + $0x8b4] sm:$0xff]
      %v637 = vld [vmem:[%s2 + $0x8bc] sm:$0xf]
      %v638 = vld [vmem:[%s2 + $0x8c0] sm:$0xff]
      %v639 = vld [vmem:[%s2 + $0x8c8] sm:$0xff]
      %v640 = vld [vmem:[%s2 + $0x8d0] sm:$0xf]
      %v641 = vld [vmem:[%s2 + $0x8d4] sm:$0xff]
      %v642 = vld [vmem:[%s2 + $0x8dc] sm:$0xff]
      %v643 = vld [vmem:[%s2 + $0x8e4] sm:$0xf]
      %v644 = vld [vmem:[%s2 + $0x8e8] sm:$0xff]
      %v645 = vld [vmem:[%s2 + $0x8f0] sm:$0xff]
      %v646 = vld [vmem:[%s2 + $0x8f8] sm:$0xf]
      %v647 = vld [vmem:[%s2 + $0x8fc] sm:$0xff]
      %v648 = vld [vmem:[%s2 + $0x904] sm:$0xff]
      %v649 = vld [vmem:[%s2 + $0x90c] sm:$0xf]
      %v650 = vld [vmem:[%s2 + $0x910] sm:$0xff]
      %v651 = vld [vmem:[%s2 + $0x918] sm:$0xff]
      %v652 = vld [vmem:[%s2 + $0x920] sm:$0xf]
      %v653 = vld [vmem:[%s2 + $0x924] sm:$0xff]
      %v654 = vld [vmem:[%s2 + $0x92c] sm:$0xff]
      %v655 = vld [vmem:[%s2 + $0x934] sm:$0xf]
      %v656 = vld [vmem:[%s2 + $0x938] sm:$0xff]
      %v657 = vld [vmem:[%s2 + $0x940] sm:$0xff]
      %v658 = vld [vmem:[%s2 + $0x948] sm:$0xf]
      %v659 = vld [vmem:[%s2 + $0x94c] sm:$0xff]
      %v660 = vld [vmem:[%s2 + $0x954] sm:$0xff]
      %v661 = vld [vmem:[%s2 + $0x95c] sm:$0xf]
      %v662 = vld [vmem:[%s2 + $0x960] sm:$0xff]
      %v663 = vld [vmem:[%s2 + $0x968] sm:$0xff]
      %v664 = vld [vmem:[%s2 + $0x970] sm:$0xf]
      %v665 = vld [vmem:[%s2 + $0x974] sm:$0xff]
      %v666 = vld [vmem:[%s2 + $0x97c] sm:$0xff]
      %v667 = vld [vmem:[%s2 + $0x984] sm:$0xf]
      %v668 = vld [vmem:[%s2 + $0x988] sm:$0xff]
      %v669 = vld [vmem:[%s2 + $0x990] sm:$0xff]
      %v670 = vld [vmem:[%s2 + $0x998] sm:$0xf]
      %v671 = vld [vmem:[%s2 + $0x99c] sm:$0xff]
      %v672 = vld [vmem:[%s2 + $0x9a4] sm:$0xff]
      %v673 = vld [vmem:[%s2 + $0x9ac] sm:$0xf]
      %v674 = vld [vmem:[%s2 + $0x9b0] sm:$0xff]
      %v675 = vld [vmem:[%s2 + $0x9b8] sm:$0xff]
      %v676 = vld [vmem:[%s2 + $0x9c0] sm:$0xf]
      %v677 = vld [vmem:[%s2 + $0x9c4] sm:$0xff]
      %v678 = vld [vmem:[%s2 + $0x9cc] sm:$0xff]
      %v679 = vld [vmem:[%s2 + $0x9d4] sm:$0xf]
      %v680 = vld [vmem:[%s2 + $0x9d8] sm:$0xff]
      %v681 = vld [vmem:[%s2 + $0x9e0] sm:$0xff]
      %v682 = vld [vmem:[%s2 + $0x9e8] sm:$0xf]
      %v683 = vld [vmem:[%s2 + $0x9ec] sm:$0xff]
      %v684 = vld [vmem:[%s2 + $0x9f4] sm:$0xff]
      %v685 = vld [vmem:[%s2 + $0x9fc] sm:$0xf]
      %v686 = vld [vmem:[%s2 + $0xa00] sm:$0xff]
      %v687 = vld [vmem:[%s2 + $0xa08] sm:$0xff]
      %v688 = vld [vmem:[%s2 + $0xa10] sm:$0xf]
      %v689 = vld [vmem:[%s2 + $0xa14] sm:$0xff]
      %v690 = vld [vmem:[%s2 + $0xa1c] sm:$0xff]
      %v691 = vld [vmem:[%s2 + $0xa24] sm:$0xf]
      %v692 = vld [vmem:[%s2 + $0xa28] sm:$0xff]
      %v693 = vld [vmem:[%s2 + $0xa30] sm:$0xff]
      %v694 = vld [vmem:[%s2 + $0xa38] sm:$0xf]
      %v695 = vld [vmem:[%s2 + $0xa3c] sm:$0xff]
      %v696 = vld [vmem:[%s2 + $0xa44] sm:$0xff]
      %v697 = vld [vmem:[%s2 + $0xa4c] sm:$0xf]
      %v698 = vld [vmem:[%s2 + $0xa50] sm:$0xff]
      %v699 = vld [vmem:[%s2 + $0xa58] sm:$0xff]
      %v700 = vld [vmem:[%s2 + $0xa60] sm:$0xf]
      %v701 = vld [vmem:[%s2 + $0xa64] sm:$0xff]
      %v702 = vld [vmem:[%s2 + $0xa6c] sm:$0xff]
      %v703 = vld [vmem:[%s2 + $0xa74] sm:$0xf]
      %v704 = vld [vmem:[%s2 + $0xa78] sm:$0xff]
      %v705 = vld [vmem:[%s2 + $0xa80] sm:$0xff]
      %v706 = vld [vmem:[%s2 + $0xa88] sm:$0xf]
      %v707 = vld [vmem:[%s2 + $0xa8c] sm:$0xff]
      %v708 = vld [vmem:[%s2 + $0xa94] sm:$0xff]
      %v709 = vld [vmem:[%s2 + $0xa9c] sm:$0xf]
      %v710 = vld [vmem:[%s2 + $0xaa0] sm:$0xff]
      %v711 = vld [vmem:[%s2 + $0xaa8] sm:$0xff]
      %v712 = vld [vmem:[%s2 + $0xab0] sm:$0xf]
      %v713 = vld [vmem:[%s2 + $0xab4] sm:$0xff]
      %v714 = vld [vmem:[%s2 + $0xabc] sm:$0xff]
      %v715 = vld [vmem:[%s2 + $0xac4] sm:$0xf]
      %v716 = vld [vmem:[%s2 + $0xac8] sm:$0xff]
      %v717 = vld [vmem:[%s2 + $0xad0] sm:$0xff]
      %v718 = vld [vmem:[%s2 + $0xad8] sm:$0xf]
      %v719 = vld [vmem:[%s2 + $0xadc] sm:$0xff]
      %v720 = vld [vmem:[%s2 + $0xae4] sm:$0xff]
      %v721 = vld [vmem:[%s2 + $0xaec] sm:$0xf]
      %v722 = vld [vmem:[%s2 + $0xaf0] sm:$0xff]
      %v723 = vld [vmem:[%s2 + $0xaf8] sm:$0xff]
      %v724 = vld [vmem:[%s2 + $0xb00] sm:$0xf]
      %v725 = vld [vmem:[%s2 + $0xb04] sm:$0xff]
      %v726 = vld [vmem:[%s2 + $0xb0c] sm:$0xff]
      %v727 = vld [vmem:[%s2 + $0xb14] sm:$0xf]
      %v728 = vld [vmem:[%s2 + $0xb18] sm:$0xff]
      %v729 = vld [vmem:[%s2 + $0xb20] sm:$0xff]
      %v730 = vld [vmem:[%s2 + $0xb28] sm:$0xf]
      %v731 = vld [vmem:[%s2 + $0xb2c] sm:$0xff]
      %v732 = vld [vmem:[%s2 + $0xb34] sm:$0xff]
      %v733 = vld [vmem:[%s2 + $0xb3c] sm:$0xf]
      %v734 = vld [vmem:[%s2 + $0xb40] sm:$0xff]
      %v735 = vld [vmem:[%s2 + $0xb48] sm:$0xff]
      %v736 = vld [vmem:[%s2 + $0xb50] sm:$0xf]
      %v737 = vld [vmem:[%s2 + $0xb54] sm:$0xff]
      %v738 = vld [vmem:[%s2 + $0xb5c] sm:$0xff]
      %v739 = vld [vmem:[%s2 + $0xb64] sm:$0xf]
      %v740 = vld [vmem:[%s2 + $0xb68] sm:$0xff]
      %v741 = vld [vmem:[%s2 + $0xb70] sm:$0xff]
      %v742 = vld [vmem:[%s2 + $0xb78] sm:$0xf]
      %v743 = vld [vmem:[%s2 + $0xb7c] sm:$0xff]
      %v744 = vld [vmem:[%s2 + $0xb84] sm:$0xff]
      %v745 = vld [vmem:[%s2 + $0xb8c] sm:$0xf]
      %v746 = vld [vmem:[%s2 + $0xb90] sm:$0xff]
      %v747 = vld [vmem:[%s2 + $0xb98] sm:$0xff]
      %v748 = vld [vmem:[%s2 + $0xba0] sm:$0xf]
      %v749 = vld [vmem:[%s2 + $0xba4] sm:$0xff]
      %v750 = vld [vmem:[%s2 + $0xbac] sm:$0xff]
      %v751 = vld [vmem:[%s2 + $0xbb4] sm:$0xf]
      %v752 = vld [vmem:[%s2 + $0xbb8] sm:$0xff]
      %v753 = vld [vmem:[%s2 + $0xbc0] sm:$0xff]
      %v754 = vld [vmem:[%s2 + $0xbc8] sm:$0xf]
      %v755 = vld [vmem:[%s2 + $0xbcc] sm:$0xff]
      %v756 = vld [vmem:[%s2 + $0xbd4] sm:$0xff]
      %v757 = vld [vmem:[%s2 + $0xbdc] sm:$0xf]
      %v758 = vld [vmem:[%s2 + $0xbe0] sm:$0xff]
      %v759 = vld [vmem:[%s2 + $0xbe8] sm:$0xff]
      %v760 = vld [vmem:[%s2 + $0xbf0] sm:$0xf]
      %v761 = vld [vmem:[%s2 + $0xbf4] sm:$0xff]
      %v762 = vld [vmem:[%s2 + $0xbfc] sm:$0xff]
      %v763 = vld [vmem:[%s2 + $0xc04] sm:$0xf]
      %v764 = vld [vmem:[%s2 + $0xc08] sm:$0xff]
      %v765 = vld [vmem:[%s2 + $0xc10] sm:$0xff]
      %v766 = vld [vmem:[%s2 + $0xc18] sm:$0xf]
      %v767 = vld [vmem:[%s2 + $0xc1c] sm:$0xff]
      %v768 = vld [vmem:[%s2 + $0xc24] sm:$0xff]
      %v769 = vld [vmem:[%s2 + $0xc2c] sm:$0xf]
      %v770 = vld [vmem:[%s2 + $0xc30] sm:$0xff]
      %v771 = vld [vmem:[%s2 + $0xc38] sm:$0xff]
      %v772 = vld [vmem:[%s2 + $0xc40] sm:$0xf]
      %v773 = vld [vmem:[%s2 + $0xc44] sm:$0xff]
      %v774 = vld [vmem:[%s2 + $0xc4c] sm:$0xff]
      %v775 = vld [vmem:[%s2 + $0xc54] sm:$0xf]
      %v776 = vld [vmem:[%s2 + $0xc58] sm:$0xff]
      %v777 = vld [vmem:[%s2 + $0xc60] sm:$0xff]
      %v778 = vld [vmem:[%s2 + $0xc68] sm:$0xf]
      %v779 = vld [vmem:[%s2 + $0xc6c] sm:$0xff]
      %v780 = vld [vmem:[%s2 + $0xc74] sm:$0xff]
      %v781 = vld [vmem:[%s2 + $0xc7c] sm:$0xf]
      %v782 = vld [vmem:[%s2 + $0xc80] sm:$0xff]
      %v783 = vld [vmem:[%s2 + $0xc88] sm:$0xff]
      %v784 = vld [vmem:[%s2 + $0xc90] sm:$0xf]
      %v785 = vld [vmem:[%s2 + $0xc94] sm:$0xff]
      %v786 = vld [vmem:[%s2 + $0xc9c] sm:$0xff]
      %v787 = vld [vmem:[%s2 + $0xca4] sm:$0xf]
      %v788 = vld [vmem:[%s2 + $0xca8] sm:$0xff]
      %v789 = vld [vmem:[%s2 + $0xcb0] sm:$0xff]
      %v790 = vld [vmem:[%s2 + $0xcb8] sm:$0xf]
      %v791 = vld [vmem:[%s2 + $0xcbc] sm:$0xff]
      %v792 = vld [vmem:[%s2 + $0xcc4] sm:$0xff]
      %v793 = vld [vmem:[%s2 + $0xccc] sm:$0xf]
      %v794 = vld [vmem:[%s2 + $0xcd0] sm:$0xff]
      %v795 = vld [vmem:[%s2 + $0xcd8] sm:$0xff]
      %v796 = vld [vmem:[%s2 + $0xce0] sm:$0xf]
      %v797 = vld [vmem:[%s2 + $0xce4] sm:$0xff]
      %v798 = vld [vmem:[%s2 + $0xcec] sm:$0xff]
      %v799 = vld [vmem:[%s2 + $0xcf4] sm:$0xf]
      %v800 = vld [vmem:[%s2 + $0xcf8] sm:$0xff]
      %v801 = vld [vmem:[%s2 + $0xd00] sm:$0xff]
      %v802 = vld [vmem:[%s2 + $0xd08] sm:$0xf]
      %v803 = vld [vmem:[%s2 + $0xd0c] sm:$0xff]
      %v804 = vld [vmem:[%s2 + $0xd14] sm:$0xff]
      %v805 = vld [vmem:[%s2 + $0xd1c] sm:$0xf]
      %v806 = vld [vmem:[%s2 + $0xd20] sm:$0xff]
      %v807 = vld [vmem:[%s2 + $0xd28] sm:$0xff]
      %v808 = vld [vmem:[%s2 + $0xd30] sm:$0xf]
      %v809 = vld [vmem:[%s2 + $0xd34] sm:$0xff]
      %v810 = vld [vmem:[%s2 + $0xd3c] sm:$0xff]
      %v811 = vld [vmem:[%s2 + $0xd44] sm:$0xf]
      %v812 = vld [vmem:[%s2 + $0xd48] sm:$0xff]
      %v813 = vld [vmem:[%s2 + $0xd50] sm:$0xff]
      %v814 = vld [vmem:[%s2 + $0xd58] sm:$0xf]
      %v815 = vld [vmem:[%s2 + $0xd5c] sm:$0xff]
      %v816 = vld [vmem:[%s2 + $0xd64] sm:$0xff]
      %v817 = vld [vmem:[%s2 + $0xd6c] sm:$0xf]
      %v818 = vld [vmem:[%s2 + $0xd70] sm:$0xff]
      %v819 = vld [vmem:[%s2 + $0xd78] sm:$0xff]
      %v820 = vld [vmem:[%s2 + $0xd80] sm:$0xf]
      %v821 = vld [vmem:[%s2 + $0xd84] sm:$0xff]
      %v822 = vld [vmem:[%s2 + $0xd8c] sm:$0xff]
      %v823 = vld [vmem:[%s2 + $0xd94] sm:$0xf]
      %v824 = vld [vmem:[%s2 + $0xd98] sm:$0xff]
      %v825 = vld [vmem:[%s2 + $0xda0] sm:$0xff]
      %v826 = vld [vmem:[%s2 + $0xda8] sm:$0xf]
      %v827 = vld [vmem:[%s2 + $0xdac] sm:$0xff]
      %v828 = vld [vmem:[%s2 + $0xdb4] sm:$0xff]
      %v829 = vld [vmem:[%s2 + $0xdbc] sm:$0xf]
      %v830 = vld [vmem:[%s2 + $0xdc0] sm:$0xff]
      %v831 = vld [vmem:[%s2 + $0xdc8] sm:$0xff]
      %v832 = vld [vmem:[%s2 + $0xdd0] sm:$0xf]
      %v833 = vld [vmem:[%s2 + $0xdd4] sm:$0xff]
      %v834 = vld [vmem:[%s2 + $0xddc] sm:$0xff]
      %v835 = vld [vmem:[%s2 + $0xde4] sm:$0xf]
      %v836 = vld [vmem:[%s2 + $0xde8] sm:$0xff]
      %v837 = vld [vmem:[%s2 + $0xdf0] sm:$0xff]
      %v838 = vld [vmem:[%s2 + $0xdf8] sm:$0xf]
      %v839 = vld [vmem:[%s2 + $0xdfc] sm:$0xff]
      %v840 = vld [vmem:[%s2 + $0xe04] sm:$0xff]
      %v841 = vld [vmem:[%s2 + $0xe0c] sm:$0xf]
      %v842 = vld [vmem:[%s2 + $0xe10] sm:$0xff]
      %v843 = vld [vmem:[%s2 + $0xe18] sm:$0xff]
      %v844 = vld [vmem:[%s2 + $0xe20] sm:$0xf]
      %v845 = vld [vmem:[%s2 + $0xe24] sm:$0xff]
      %v846 = vld [vmem:[%s2 + $0xe2c] sm:$0xff]
      %v847 = vld [vmem:[%s2 + $0xe34] sm:$0xf]
      %v848 = vld [vmem:[%s2 + $0xe38] sm:$0xff]
      %v849 = vld [vmem:[%s2 + $0xe40] sm:$0xff]
      %v850 = vld [vmem:[%s2 + $0xe48] sm:$0xf]
      %v851 = vld [vmem:[%s2 + $0xe4c] sm:$0xff]
      %v852 = vld [vmem:[%s2 + $0xe54] sm:$0xff]
      %v853 = vld [vmem:[%s2 + $0xe5c] sm:$0xf]
      %v854 = vld [vmem:[%s2 + $0xe60] sm:$0xff]
      %v855 = vld [vmem:[%s2 + $0xe68] sm:$0xff]
      %v856 = vld [vmem:[%s2 + $0xe70] sm:$0xf]
      %v857 = vld [vmem:[%s2 + $0xe74] sm:$0xff]
      %v858 = vld [vmem:[%s2 + $0xe7c] sm:$0xff]
      %v859 = vld [vmem:[%s2 + $0xe84] sm:$0xf]
      %v860 = vld [vmem:[%s2 + $0xe88] sm:$0xff]
      %v861 = vld [vmem:[%s2 + $0xe90] sm:$0xff]
      %v862 = vld [vmem:[%s2 + $0xe98] sm:$0xf]
      %v863 = vld [vmem:[%s2 + $0xe9c] sm:$0xff]
      %v864 = vld [vmem:[%s2 + $0xea4] sm:$0xff]
      %v865 = vld [vmem:[%s2 + $0xeac] sm:$0xf]
      %v866 = vld [vmem:[%s2 + $0xeb0] sm:$0xff]
      %v867 = vld [vmem:[%s2 + $0xeb8] sm:$0xff]
      %v868 = vld [vmem:[%s2 + $0xec0] sm:$0xf]
      %v869 = vld [vmem:[%s2 + $0xec4] sm:$0xff]
      %v870 = vld [vmem:[%s2 + $0xecc] sm:$0xff]
      %v871 = vld [vmem:[%s2 + $0xed4] sm:$0xf]
      %v872 = vld [vmem:[%s2 + $0xed8] sm:$0xff]
      %v873 = vld [vmem:[%s2 + $0xee0] sm:$0xff]
      %v874 = vld [vmem:[%s2 + $0xee8] sm:$0xf]
      %v875 = vld [vmem:[%s2 + $0xeec] sm:$0xff]
      %v876 = vld [vmem:[%s2 + $0xef4] sm:$0xff]
      %v877 = vld [vmem:[%s2 + $0xefc] sm:$0xf]
      %v878 = vld [vmem:[%s2 + $0xf00] sm:$0xff]
      %v879 = vld [vmem:[%s2 + $0xf08] sm:$0xff]
      %v880 = vld [vmem:[%s2 + $0xf10] sm:$0xf]
      %v881 = vld [vmem:[%s2 + $0xf14] sm:$0xff]
      %v882 = vld [vmem:[%s2 + $0xf1c] sm:$0xff]
      %v883 = vld [vmem:[%s2 + $0xf24] sm:$0xf]
      %v884 = vld [vmem:[%s2 + $0xf28] sm:$0xff]
      %v885 = vld [vmem:[%s2 + $0xf30] sm:$0xff]
      %v886 = vld [vmem:[%s2 + $0xf38] sm:$0xf]
      %v887 = vld [vmem:[%s2 + $0xf3c] sm:$0xff]
      %v888 = vld [vmem:[%s2 + $0xf44] sm:$0xff]
      %v889 = vld [vmem:[%s2 + $0xf4c] sm:$0xf]
      %v890 = vld [vmem:[%s2 + $0xf50] sm:$0xff]
      %v891 = vld [vmem:[%s2 + $0xf58] sm:$0xff]
      %v892 = vld [vmem:[%s2 + $0xf60] sm:$0xf]
      %v893 = vld [vmem:[%s2 + $0xf64] sm:$0xff]
      %v894 = vld [vmem:[%s2 + $0xf6c] sm:$0xff]
      %v895 = vld [vmem:[%s2 + $0xf74] sm:$0xf]
      %v896 = vld [vmem:[%s2 + $0xf78] sm:$0xff]
      %v897 = vld [vmem:[%s2 + $0xf80] sm:$0xff]
      %v898 = vld [vmem:[%s2 + $0xf88] sm:$0xf]
      %v899 = vld [vmem:[%s2 + $0xf8c] sm:$0xff]
      %v900 = vld [vmem:[%s2 + $0xf94] sm:$0xff]
      %v901 = vld [vmem:[%s2 + $0xf9c] sm:$0xf]
      %v902 = vld [vmem:[%s2 + $0xfa0] sm:$0xff]
      %v903 = vld [vmem:[%s2 + $0xfa8] sm:$0xff]
      %v904 = vld [vmem:[%s2 + $0xfb0] sm:$0xf]
      %v905 = vld [vmem:[%s2 + $0xfb4] sm:$0xff]
      %v906 = vld [vmem:[%s2 + $0xfbc] sm:$0xff]
      %v907 = vld [vmem:[%s2 + $0xfc4] sm:$0xf]
      %v908 = vld [vmem:[%s2 + $0xfc8] sm:$0xff]
      %v909 = vld [vmem:[%s2 + $0xfd0] sm:$0xff]
      %v910 = vld [vmem:[%s2 + $0xfd8] sm:$0xf]
      %v911 = vld [vmem:[%s2 + $0xfdc] sm:$0xff]
      %v912 = vld [vmem:[%s2 + $0xfe4] sm:$0xff]
      %v913 = vld [vmem:[%s2 + $0xfec] sm:$0xf]
      %v914 = vld [vmem:[%s2 + $0xff0] sm:$0xff]
      %v915 = vld [vmem:[%s2 + $0xff8] sm:$0xff]
      %v916 = vld [vmem:[%s2 + $0x1000] sm:$0xf]
      %v917 = vld [vmem:[%s2 + $0x1004] sm:$0xff]
      %v918 = vld [vmem:[%s2 + $0x100c] sm:$0xff]
      %v919 = vld [vmem:[%s2 + $0x1014] sm:$0xf]
      %v920 = vld [vmem:[%s2 + $0x1018] sm:$0xff]
      %v921 = vld [vmem:[%s2 + $0x1020] sm:$0xff]
      %v922 = vld [vmem:[%s2 + $0x1028] sm:$0xf]
      %v923 = vld [vmem:[%s2 + $0x102c] sm:$0xff]
      %v924 = vld [vmem:[%s2 + $0x1034] sm:$0xff]
      %v925 = vld [vmem:[%s2 + $0x103c] sm:$0xf]
      %v926 = vld [vmem:[%s2 + $0x1040] sm:$0xff]
      %v927 = vld [vmem:[%s2 + $0x1048] sm:$0xff]
      %v928 = vld [vmem:[%s2 + $0x1050] sm:$0xf]
      %v929 = vld [vmem:[%s2 + $0x1054] sm:$0xff]
      %v930 = vld [vmem:[%s2 + $0x105c] sm:$0xff]
      %v931 = vld [vmem:[%s2 + $0x1064] sm:$0xf]
      %v932 = vld [vmem:[%s2 + $0x1068] sm:$0xff]
      %v933 = vld [vmem:[%s2 + $0x1070] sm:$0xff]
      %v934 = vld [vmem:[%s2 + $0x1078] sm:$0xf]
      %v935 = vld [vmem:[%s2 + $0x107c] sm:$0xff]
      %v936 = vld [vmem:[%s2 + $0x1084] sm:$0xff]
      %v937 = vld [vmem:[%s2 + $0x108c] sm:$0xf]
      %v938 = vld [vmem:[%s2 + $0x1090] sm:$0xff]
      %v939 = vld [vmem:[%s2 + $0x1098] sm:$0xff]
      %v940 = vld [vmem:[%s2 + $0x10a0] sm:$0xf]
      %v941 = vld [vmem:[%s2 + $0x10a4] sm:$0xff]
      %v942 = vld [vmem:[%s2 + $0x10ac] sm:$0xff]
      %v943 = vld [vmem:[%s2 + $0x10b4] sm:$0xf]
      %v944 = vld [vmem:[%s2 + $0x10b8] sm:$0xff]
      %v945 = vld [vmem:[%s2 + $0x10c0] sm:$0xff]
      %v946 = vld [vmem:[%s2 + $0x10c8] sm:$0xf]
      %v947 = vld [vmem:[%s2 + $0x10cc] sm:$0xff]
      %v948 = vld [vmem:[%s2 + $0x10d4] sm:$0xff]
      %v949 = vld [vmem:[%s2 + $0x10dc] sm:$0xf]
      %v950 = vld [vmem:[%s2 + $0x10e0] sm:$0xff]
      %v951 = vld [vmem:[%s2 + $0x10e8] sm:$0xff]
      %v952 = vld [vmem:[%s2 + $0x10f0] sm:$0xf]
      %v953 = vld [vmem:[%s2 + $0x10f4] sm:$0xff]
      %v954 = vld [vmem:[%s2 + $0x10fc] sm:$0xff]
      %v955 = vld [vmem:[%s2 + $0x1104] sm:$0xf]
      %v956 = vld [vmem:[%s2 + $0x1108] sm:$0xff]
      %v957 = vld [vmem:[%s2 + $0x1110] sm:$0xff]
      %v958 = vld [vmem:[%s2 + $0x1118] sm:$0xf]
      %v959 = vld [vmem:[%s2 + $0x111c] sm:$0xff]
      %v960 = vld [vmem:[%s2 + $0x1124] sm:$0xff]
      %v961 = vld [vmem:[%s2 + $0x112c] sm:$0xf]
      %v962 = vld [vmem:[%s2 + $0x1130] sm:$0xff]
      %v963 = vld [vmem:[%s2 + $0x1138] sm:$0xff]
      %v964 = vld [vmem:[%s2 + $0x1140] sm:$0xf]
      %v965 = vld [vmem:[%s2 + $0x1144] sm:$0xff]
      %v966 = vld [vmem:[%s2 + $0x114c] sm:$0xff]
      %v967 = vld [vmem:[%s2 + $0x1154] sm:$0xf]
      %v968 = vld [vmem:[%s2 + $0x1158] sm:$0xff]
      %v969 = vld [vmem:[%s2 + $0x1160] sm:$0xff]
      %v970 = vld [vmem:[%s2 + $0x1168] sm:$0xf]
      %v971 = vld [vmem:[%s2 + $0x116c] sm:$0xff]
      %v972 = vld [vmem:[%s2 + $0x1174] sm:$0xff]
      %v973 = vld [vmem:[%s2 + $0x117c] sm:$0xf]
      %v974 = vld [vmem:[%s2 + $0x1180] sm:$0xff]
      %v975 = vld [vmem:[%s2 + $0x1188] sm:$0xff]
      %v976 = vld [vmem:[%s2 + $0x1190] sm:$0xf]
      %v977 = vld [vmem:[%s2 + $0x1194] sm:$0xff]
      %v978 = vld [vmem:[%s2 + $0x119c] sm:$0xff]
      %v979 = vld [vmem:[%s2 + $0x11a4] sm:$0xf]
      %v980 = vld [vmem:[%s2 + $0x11a8] sm:$0xff]
      %v981 = vld [vmem:[%s2 + $0x11b0] sm:$0xff]
      %v982 = vld [vmem:[%s2 + $0x11b8] sm:$0xf]
      %v983 = vld [vmem:[%s2 + $0x11bc] sm:$0xff]
      %v984 = vld [vmem:[%s2 + $0x11c4] sm:$0xff]
      %v985 = vld [vmem:[%s2 + $0x11cc] sm:$0xf]
      %v986 = vld [vmem:[%s2 + $0x11d0] sm:$0xff]
      %v987 = vld [vmem:[%s2 + $0x11d8] sm:$0xff]
      %v988 = vld [vmem:[%s2 + $0x11e0] sm:$0xf]
      %v989 = vld [vmem:[%s2 + $0x11e4] sm:$0xff]
      %v990 = vld [vmem:[%s2 + $0x11ec] sm:$0xff]
      %v991 = vld [vmem:[%s2 + $0x11f4] sm:$0xf]
      %v992 = vld [vmem:[%s2 + $0x11f8] sm:$0xff]
      %v993 = vld [vmem:[%s2 + $0x1200] sm:$0xff]
      %v994 = vld [vmem:[%s2 + $0x1208] sm:$0xf]
      %v995 = vld [vmem:[%s2 + $0x120c] sm:$0xff]
      %v996 = vld [vmem:[%s2 + $0x1214] sm:$0xff]
      %v997 = vld [vmem:[%s2 + $0x121c] sm:$0xf]
      %v998 = vld [vmem:[%s2 + $0x1220] sm:$0xff]
      %v999 = vld [vmem:[%s2 + $0x1228] sm:$0xff]
      %v1000 = vld [vmem:[%s2 + $0x1230] sm:$0xf]
      %v1001 = vld [vmem:[%s2 + $0x1234] sm:$0xff]
      %v1002 = vld [vmem:[%s2 + $0x123c] sm:$0xff]
      %v1003 = vld [vmem:[%s2 + $0x1244] sm:$0xf]
      %v1004 = vld [vmem:[%s2 + $0x1248] sm:$0xff]
      %v1005 = vld [vmem:[%s2 + $0x1250] sm:$0xff]
      %v1006 = vld [vmem:[%s2 + $0x1258] sm:$0xf]
      %v1007 = vld [vmem:[%s2 + $0x125c] sm:$0xff]
      %v1008 = vld [vmem:[%s2 + $0x1264] sm:$0xff]
      %v1009 = vld [vmem:[%s2 + $0x126c] sm:$0xf]
      %v1010 = vld [vmem:[%s2 + $0x1270] sm:$0xff]
      %v1011 = vld [vmem:[%s2 + $0x1278] sm:$0xff]
      %v1012 = vld [vmem:[%s2 + $0x1280] sm:$0xf]
      %v1013 = vld [vmem:[%s2 + $0x1284] sm:$0xff]
      %v1014 = vld [vmem:[%s2 + $0x128c] sm:$0xff]
      %v1015 = vld [vmem:[%s2 + $0x1294] sm:$0xf]
      %v1016 = vld [vmem:[%s2 + $0x1298] sm:$0xff]
      %v1017 = vld [vmem:[%s2 + $0x12a0] sm:$0xff]
      %v1018 = vld [vmem:[%s2 + $0x12a8] sm:$0xf]
      %v1019 = vld [vmem:[%s2 + $0x12ac] sm:$0xff]
      %v1020 = vld [vmem:[%s2 + $0x12b4] sm:$0xff]
      %v1021 = vld [vmem:[%s2 + $0x12bc] sm:$0xf]
      %v1022 = vld [vmem:[%s2 + $0x12c0] sm:$0xff]
      %v1023 = vld [vmem:[%s2 + $0x12c8] sm:$0xff]
      %v1024 = vld [vmem:[%s2 + $0x12d0] sm:$0xf]
      %v1025 = vld [vmem:[%s2 + $0x12d4] sm:$0xff]
      %v1026 = vld [vmem:[%s2 + $0x12dc] sm:$0xff]
      %v1027 = vld [vmem:[%s2 + $0x12e4] sm:$0xf]
      %v1028 = vld [vmem:[%s2 + $0x12e8] sm:$0xff]
      %v1029 = vld [vmem:[%s2 + $0x12f0] sm:$0xff]
      %v1030 = vld [vmem:[%s2 + $0x12f8] sm:$0xf]
      %v1031 = vld [vmem:[%s2 + $0x12fc] sm:$0xff]
      %v1032 = vld [vmem:[%s2 + $0x1304] sm:$0xff]
      %v1033 = vld [vmem:[%s2 + $0x130c] sm:$0xf]
      %v1034 = vld [vmem:[%s2 + $0x1310] sm:$0xff]
      %v1035 = vld [vmem:[%s2 + $0x1318] sm:$0xff]
      %v1036 = vld [vmem:[%s2 + $0x1320] sm:$0xf]
      %v1037 = vld [vmem:[%s2 + $0x1324] sm:$0xff]
      %v1038 = vld [vmem:[%s2 + $0x132c] sm:$0xff]
      %v1039 = vld [vmem:[%s2 + $0x1334] sm:$0xf]
      %v1040 = vld [vmem:[%s2 + $0x1338] sm:$0xff]
      %v1041 = vld [vmem:[%s2 + $0x1340] sm:$0xff]
      %v1042 = vld [vmem:[%s2 + $0x1348] sm:$0xf]
      %v1043 = vld [vmem:[%s2 + $0x134c] sm:$0xff]
      %v1044 = vld [vmem:[%s2 + $0x1354] sm:$0xff]
      %v1045 = vld [vmem:[%s2 + $0x135c] sm:$0xf]
      %v1046 = vld [vmem:[%s2 + $0x1360] sm:$0xff]
      %v1047 = vld [vmem:[%s2 + $0x1368] sm:$0xff]
      %v1048 = vld [vmem:[%s2 + $0x1370] sm:$0xf]
      %v1049 = vld [vmem:[%s2 + $0x1374] sm:$0xff]
      %v1050 = vld [vmem:[%s2 + $0x137c] sm:$0xff]
      %v1051 = vld [vmem:[%s2 + $0x1384] sm:$0xf]
      %v1052 = vld [vmem:[%s2 + $0x1388] sm:$0xff]
      %v1053 = vld [vmem:[%s2 + $0x1390] sm:$0xff]
      %v1054 = vld [vmem:[%s2 + $0x1398] sm:$0xf]
      %v1055 = vld [vmem:[%s2 + $0x139c] sm:$0xff]
      %v1056 = vld [vmem:[%s2 + $0x13a4] sm:$0xff]
      %v1057 = vld [vmem:[%s2 + $0x13ac] sm:$0xf]
      %v1106 = vunpack.c.l.b16 %v254
      %v1107 = vunpack.c.h.b16 %v254
      %v1108 = vunpack.c.l.b16 %v255
      %v1109 = vunpack.c.h.b16 %v255
      %v1110 = vunpack.c.l.b16 %v256
      %v1111 = vunpack.c.h.b16 %v256
      %v1112 = vunpack.c.l.b16 %v257
      %v1113 = vunpack.c.h.b16 %v257
      %v1114 = vunpack.c.l.b16 %v258
      %v1115 = vunpack.c.h.b16 %v258
      %v1116 = vunpack.c.l.b16 %v259
      %v1117 = vunpack.c.h.b16 %v259
      %v1118 = vunpack.c.l.b16 %v260
      %v1119 = vunpack.c.h.b16 %v260
      %v1120 = vunpack.c.l.b16 %v261
      %v1121 = vunpack.c.h.b16 %v261
      %v1122 = vunpack.c.l.b16 %v262
      %v1123 = vunpack.c.h.b16 %v262
      %v1124 = vunpack.c.l.b16 %v263
      %v1125 = vunpack.c.h.b16 %v263
      %v1126 = vunpack.c.l.b16 %v264
      %v1127 = vunpack.c.h.b16 %v264
      %v1128 = vunpack.c.l.b16 %v265
      %v1129 = vunpack.c.h.b16 %v265
      %v1130 = vunpack.c.l.b16 %v266
      %v1131 = vunpack.c.h.b16 %v266
      %v1132 = vunpack.c.l.b16 %v267
      %v1133 = vunpack.c.h.b16 %v267
      %v1134 = vunpack.c.l.b16 %v268
      %v1135 = vunpack.c.h.b16 %v268
      %v1136 = vunpack.c.l.b16 %v269
      %v1137 = vunpack.c.h.b16 %v269
      %v1138 = vunpack.c.l.b16 %v270
      %v1139 = vunpack.c.h.b16 %v270
      %v1140 = vunpack.c.l.b16 %v271
      %v1141 = vunpack.c.h.b16 %v271
      %v1142 = vunpack.c.l.b16 %v272
      %v1143 = vunpack.c.h.b16 %v272
      %v1144 = vunpack.c.l.b16 %v273
      %v1145 = vunpack.c.h.b16 %v273
      %v1146 = vunpack.c.l.b16 %v274
      %v1147 = vunpack.c.h.b16 %v274
      %v1148 = vunpack.c.l.b16 %v275
      %v1149 = vunpack.c.h.b16 %v275
      %v1150 = vunpack.c.l.b16 %v276
      %v1151 = vunpack.c.h.b16 %v276
      %v1152 = vunpack.c.l.b16 %v277
      %v1153 = vunpack.c.h.b16 %v277
      %v1154 = vunpack.c.l.b16 %v278
      %v1155 = vunpack.c.h.b16 %v278
      %v1156 = vunpack.c.l.b16 %v279
      %v1157 = vunpack.c.h.b16 %v279
      %v1158 = vunpack.c.l.b16 %v280
      %v1159 = vunpack.c.h.b16 %v280
      %v1160 = vunpack.c.l.b16 %v281
      %v1161 = vunpack.c.h.b16 %v281
      %v1162 = vunpack.c.l.b16 %v282
      %v1163 = vunpack.c.h.b16 %v282
      %v1164 = vunpack.c.l.b16 %v283
      %v1165 = vunpack.c.h.b16 %v283
      %v1166 = vunpack.c.l.b16 %v284
      %v1167 = vunpack.c.h.b16 %v284
      %v1168 = vunpack.c.l.b16 %v285
      %v1169 = vunpack.c.h.b16 %v285
      %v1170 = vunpack.c.l.b16 %v286
      %v1171 = vunpack.c.h.b16 %v286
      %v1172 = vunpack.c.l.b16 %v287
      %v1173 = vunpack.c.h.b16 %v287
      %v1174 = vunpack.c.l.b16 %v288
      %v1175 = vunpack.c.h.b16 %v288
      %v1176 = vunpack.c.l.b16 %v289
      %v1177 = vunpack.c.h.b16 %v289
      %v1178 = vunpack.c.l.b16 %v290
      %v1179 = vunpack.c.h.b16 %v290
      %v1180 = vunpack.c.l.b16 %v291
      %v1181 = vunpack.c.h.b16 %v291
      %v1182 = vunpack.c.l.b16 %v292
      %v1183 = vunpack.c.h.b16 %v292
      %v1184 = vunpack.c.l.b16 %v293
      %v1185 = vunpack.c.h.b16 %v293
      %v1186 = vunpack.c.l.b16 %v294
      %v1187 = vunpack.c.h.b16 %v294
      %v1188 = vunpack.c.l.b16 %v295
      %v1189 = vunpack.c.h.b16 %v295
      %v1190 = vunpack.c.l.b16 %v296
      %v1191 = vunpack.c.h.b16 %v296
      %v1192 = vunpack.c.l.b16 %v297
      %v1193 = vunpack.c.h.b16 %v297
      %v1194 = vunpack.c.l.b16 %v298
      %v1195 = vunpack.c.h.b16 %v298
      %v1196 = vunpack.c.l.b16 %v299
      %v1197 = vunpack.c.h.b16 %v299
      %v1198 = vunpack.c.l.b16 %v300
      %v1199 = vunpack.c.h.b16 %v300
      %v1200 = vunpack.c.l.b16 %v301
      %v1201 = vunpack.c.h.b16 %v301
      %v1202 = vpack.c.b16 %v1122, %v1106
      %v1203 = vpack.c.b16 %v1123, %v1107
      %v1204 = vpack.c.b16 %v1124, %v1108
      %v1205 = vpack.c.b16 %v1125, %v1109
      %v1206 = vpack.c.b16 %v1126, %v1110
      %v1207 = vpack.c.b16 %v1127, %v1111
      %v1208 = vpack.c.b16 %v1128, %v1112
      %v1209 = vpack.c.b16 %v1129, %v1113
      %v1210 = vpack.c.b16 %v1130, %v1114
      %v1211 = vpack.c.b16 %v1131, %v1115
      %v1212 = vpack.c.b16 %v1132, %v1116
      %v1213 = vpack.c.b16 %v1133, %v1117
      %v1214 = vpack.c.b16 %v1134, %v1118
      %v1215 = vpack.c.b16 %v1135, %v1119
      %v1216 = vpack.c.b16 %v1136, %v1120
      %v1217 = vpack.c.b16 %v1137, %v1121
      %v1218 = vpack.c.b16 %v1154, %v1138
      %v1219 = vpack.c.b16 %v1155, %v1139
      %v1220 = vpack.c.b16 %v1156, %v1140
      %v1221 = vpack.c.b16 %v1157, %v1141
      %v1222 = vpack.c.b16 %v1158, %v1142
      %v1223 = vpack.c.b16 %v1159, %v1143
      %v1224 = vpack.c.b16 %v1160, %v1144
      %v1225 = vpack.c.b16 %v1161, %v1145
      %v1226 = vpack.c.b16 %v1162, %v1146
      %v1227 = vpack.c.b16 %v1163, %v1147
      %v1228 = vpack.c.b16 %v1164, %v1148
      %v1229 = vpack.c.b16 %v1165, %v1149
      %v1230 = vpack.c.b16 %v1166, %v1150
      %v1231 = vpack.c.b16 %v1167, %v1151
      %v1232 = vpack.c.b16 %v1168, %v1152
      %v1233 = vpack.c.b16 %v1169, %v1153
      %v1234 = vpack.c.b16 %v1186, %v1170
      %v1235 = vpack.c.b16 %v1187, %v1171
      %v1236 = vpack.c.b16 %v1188, %v1172
      %v1237 = vpack.c.b16 %v1189, %v1173
      %v1238 = vpack.c.b16 %v1190, %v1174
      %v1239 = vpack.c.b16 %v1191, %v1175
      %v1240 = vpack.c.b16 %v1192, %v1176
      %v1241 = vpack.c.b16 %v1193, %v1177
      %v1242 = vpack.c.b16 %v1194, %v1178
      %v1243 = vpack.c.b16 %v1195, %v1179
      %v1244 = vpack.c.b16 %v1196, %v1180
      %v1245 = vpack.c.b16 %v1197, %v1181
      %v1246 = vpack.c.b16 %v1198, %v1182
      %v1247 = vpack.c.b16 %v1199, %v1183
      %v1248 = vpack.c.b16 %v1200, %v1184
      %v1249 = vpack.c.b16 %v1201, %v1185
      %v2051 = vunpack.c.l.b16 %v302
      %v2052 = vunpack.c.h.b16 %v302
      %v2053 = vunpack.c.l.b16 %v303
      %v2054 = vunpack.c.h.b16 %v303
      %v2055 = vunpack.c.l.b16 %v304
      %v2056 = vunpack.c.l.b16 %v305
      %v2057 = vunpack.c.h.b16 %v305
      %v2058 = vunpack.c.l.b16 %v306
      %v2059 = vunpack.c.h.b16 %v306
      %v2060 = vunpack.c.l.b16 %v307
      %v2061 = vunpack.c.l.b16 %v308
      %v2062 = vunpack.c.h.b16 %v308
      %v2063 = vunpack.c.l.b16 %v309
      %v2064 = vunpack.c.h.b16 %v309
      %v2065 = vunpack.c.l.b16 %v310
      %v2066 = vunpack.c.l.b16 %v311
      %v2067 = vunpack.c.h.b16 %v311
      %v2068 = vunpack.c.l.b16 %v312
      %v2069 = vunpack.c.h.b16 %v312
      %v2070 = vunpack.c.l.b16 %v313
      %v2071 = vunpack.c.l.b16 %v314
      %v2072 = vunpack.c.h.b16 %v314
      %v2073 = vunpack.c.l.b16 %v315
      %v2074 = vunpack.c.h.b16 %v315
      %v2075 = vunpack.c.l.b16 %v316
      %v2076 = vunpack.c.l.b16 %v317
      %v2077 = vunpack.c.h.b16 %v317
      %v2078 = vunpack.c.l.b16 %v318
      %v2079 = vunpack.c.h.b16 %v318
      %v2080 = vunpack.c.l.b16 %v319
      %v2081 = vunpack.c.l.b16 %v320
      %v2082 = vunpack.c.h.b16 %v320
      %v2083 = vunpack.c.l.b16 %v321
      %v2084 = vunpack.c.h.b16 %v321
      %v2085 = vunpack.c.l.b16 %v322
      %v2086 = vunpack.c.l.b16 %v323
      %v2087 = vunpack.c.h.b16 %v323
      %v2088 = vunpack.c.l.b16 %v324
      %v2089 = vunpack.c.h.b16 %v324
      %v2090 = vunpack.c.l.b16 %v325
      %v2091 = vunpack.c.l.b16 %v326
      %v2092 = vunpack.c.h.b16 %v326
      %v2093 = vunpack.c.l.b16 %v327
      %v2094 = vunpack.c.h.b16 %v327
      %v2095 = vunpack.c.l.b16 %v328
      %v2096 = vunpack.c.l.b16 %v329
      %v2097 = vunpack.c.h.b16 %v329
      %v2098 = vunpack.c.l.b16 %v330
      %v2099 = vunpack.c.h.b16 %v330
      %v2100 = vunpack.c.l.b16 %v331
      %v2101 = vunpack.c.l.b16 %v332
      %v2102 = vunpack.c.h.b16 %v332
      %v2103 = vunpack.c.l.b16 %v333
      %v2104 = vunpack.c.h.b16 %v333
      %v2105 = vunpack.c.l.b16 %v334
      %v2106 = vunpack.c.l.b16 %v335
      %v2107 = vunpack.c.h.b16 %v335
      %v2108 = vunpack.c.l.b16 %v336
      %v2109 = vunpack.c.h.b16 %v336
      %v2110 = vunpack.c.l.b16 %v337
      %v2111 = vunpack.c.l.b16 %v338
      %v2112 = vunpack.c.h.b16 %v338
      %v2113 = vunpack.c.l.b16 %v339
      %v2114 = vunpack.c.h.b16 %v339
      %v2115 = vunpack.c.l.b16 %v340
      %v2116 = vunpack.c.l.b16 %v341
      %v2117 = vunpack.c.h.b16 %v341
      %v2118 = vunpack.c.l.b16 %v342
      %v2119 = vunpack.c.h.b16 %v342
      %v2120 = vunpack.c.l.b16 %v343
      %v2121 = vunpack.c.l.b16 %v344
      %v2122 = vunpack.c.h.b16 %v344
      %v2123 = vunpack.c.l.b16 %v345
      %v2124 = vunpack.c.h.b16 %v345
      %v2125 = vunpack.c.l.b16 %v346
      %v2126 = vunpack.c.l.b16 %v347
      %v2127 = vunpack.c.h.b16 %v347
      %v2128 = vunpack.c.l.b16 %v348
      %v2129 = vunpack.c.h.b16 %v348
      %v2130 = vunpack.c.l.b16 %v349
      %v2131 = vunpack.c.l.b16 %v350
      %v2132 = vunpack.c.h.b16 %v350
      %v2133 = vunpack.c.l.b16 %v351
      %v2134 = vunpack.c.h.b16 %v351
      %v2135 = vunpack.c.l.b16 %v352
      %v2136 = vunpack.c.l.b16 %v353
      %v2137 = vunpack.c.h.b16 %v353
      %v2138 = vunpack.c.l.b16 %v354
      %v2139 = vunpack.c.h.b16 %v354
      %v2140 = vunpack.c.l.b16 %v355
      %v2141 = vunpack.c.l.b16 %v356
      %v2142 = vunpack.c.h.b16 %v356
      %v2143 = vunpack.c.l.b16 %v357
      %v2144 = vunpack.c.h.b16 %v357
      %v2145 = vunpack.c.l.b16 %v358
      %v2146 = vunpack.c.l.b16 %v359
      %v2147 = vunpack.c.h.b16 %v359
      %v2148 = vunpack.c.l.b16 %v360
      %v2149 = vunpack.c.h.b16 %v360
      %v2150 = vunpack.c.l.b16 %v361
      %v2151 = vunpack.c.l.b16 %v362
      %v2152 = vunpack.c.h.b16 %v362
      %v2153 = vunpack.c.l.b16 %v363
      %v2154 = vunpack.c.h.b16 %v363
      %v2155 = vunpack.c.l.b16 %v364
      %v2156 = vunpack.c.l.b16 %v365
      %v2157 = vunpack.c.h.b16 %v365
      %v2158 = vunpack.c.l.b16 %v366
      %v2159 = vunpack.c.h.b16 %v366
      %v2160 = vunpack.c.l.b16 %v367
      %v2161 = vunpack.c.l.b16 %v368
      %v2162 = vunpack.c.h.b16 %v368
      %v2163 = vunpack.c.l.b16 %v369
      %v2164 = vunpack.c.h.b16 %v369
      %v2165 = vunpack.c.l.b16 %v370
      %v2166 = vunpack.c.l.b16 %v371
      %v2167 = vunpack.c.h.b16 %v371
      %v2168 = vunpack.c.l.b16 %v372
      %v2169 = vunpack.c.h.b16 %v372
      %v2170 = vunpack.c.l.b16 %v373
      %v2171 = vunpack.c.l.b16 %v374
      %v2172 = vunpack.c.h.b16 %v374
      %v2173 = vunpack.c.l.b16 %v375
      %v2174 = vunpack.c.h.b16 %v375
      %v2175 = vunpack.c.l.b16 %v376
      %v2176 = vunpack.c.l.b16 %v377
      %v2177 = vunpack.c.h.b16 %v377
      %v2178 = vunpack.c.l.b16 %v378
      %v2179 = vunpack.c.h.b16 %v378
      %v2180 = vunpack.c.l.b16 %v379
      %v2181 = vunpack.c.l.b16 %v380
      %v2182 = vunpack.c.h.b16 %v380
      %v2183 = vunpack.c.l.b16 %v381
      %v2184 = vunpack.c.h.b16 %v381
      %v2185 = vunpack.c.l.b16 %v382
      %v2186 = vunpack.c.l.b16 %v383
      %v2187 = vunpack.c.h.b16 %v383
      %v2188 = vunpack.c.l.b16 %v384
      %v2189 = vunpack.c.h.b16 %v384
      %v2190 = vunpack.c.l.b16 %v385
      %v2191 = vunpack.c.l.b16 %v386
      %v2192 = vunpack.c.h.b16 %v386
      %v2193 = vunpack.c.l.b16 %v387
      %v2194 = vunpack.c.h.b16 %v387
      %v2195 = vunpack.c.l.b16 %v388
      %v2196 = vunpack.c.l.b16 %v389
      %v2197 = vunpack.c.h.b16 %v389
      %v2198 = vunpack.c.l.b16 %v390
      %v2199 = vunpack.c.h.b16 %v390
      %v2200 = vunpack.c.l.b16 %v391
      %v2201 = vunpack.c.l.b16 %v392
      %v2202 = vunpack.c.h.b16 %v392
      %v2203 = vunpack.c.l.b16 %v393
      %v2204 = vunpack.c.h.b16 %v393
      %v2205 = vunpack.c.l.b16 %v394
      %v2206 = vunpack.c.l.b16 %v395
      %v2207 = vunpack.c.h.b16 %v395
      %v2208 = vunpack.c.l.b16 %v396
      %v2209 = vunpack.c.h.b16 %v396
      %v2210 = vunpack.c.l.b16 %v397
      %v2211 = vunpack.c.l.b16 %v398
      %v2212 = vunpack.c.h.b16 %v398
      %v2213 = vunpack.c.l.b16 %v399
      %v2214 = vunpack.c.h.b16 %v399
      %v2215 = vunpack.c.l.b16 %v400
      %v2216 = vunpack.c.l.b16 %v401
      %v2217 = vunpack.c.h.b16 %v401
      %v2218 = vunpack.c.l.b16 %v402
      %v2219 = vunpack.c.h.b16 %v402
      %v2220 = vunpack.c.l.b16 %v403
      %v2221 = vunpack.c.l.b16 %v404
      %v2222 = vunpack.c.h.b16 %v404
      %v2223 = vunpack.c.l.b16 %v405
      %v2224 = vunpack.c.h.b16 %v405
      %v2225 = vunpack.c.l.b16 %v406
      %v2226 = vunpack.c.l.b16 %v407
      %v2227 = vunpack.c.h.b16 %v407
      %v2228 = vunpack.c.l.b16 %v408
      %v2229 = vunpack.c.h.b16 %v408
      %v2230 = vunpack.c.l.b16 %v409
      %v2231 = vunpack.c.l.b16 %v410
      %v2232 = vunpack.c.h.b16 %v410
      %v2233 = vunpack.c.l.b16 %v411
      %v2234 = vunpack.c.h.b16 %v411
      %v2235 = vunpack.c.l.b16 %v412
      %v2236 = vunpack.c.l.b16 %v413
      %v2237 = vunpack.c.h.b16 %v413
      %v2238 = vunpack.c.l.b16 %v414
      %v2239 = vunpack.c.h.b16 %v414
      %v2240 = vunpack.c.l.b16 %v415
      %v2241 = vunpack.c.l.b16 %v416
      %v2242 = vunpack.c.h.b16 %v416
      %v2243 = vunpack.c.l.b16 %v417
      %v2244 = vunpack.c.h.b16 %v417
      %v2245 = vunpack.c.l.b16 %v418
      %v2246 = vunpack.c.l.b16 %v419
      %v2247 = vunpack.c.h.b16 %v419
      %v2248 = vunpack.c.l.b16 %v420
      %v2249 = vunpack.c.h.b16 %v420
      %v2250 = vunpack.c.l.b16 %v421
      %v2251 = vunpack.c.l.b16 %v422
      %v2252 = vunpack.c.h.b16 %v422
      %v2253 = vunpack.c.l.b16 %v423
      %v2254 = vunpack.c.h.b16 %v423
      %v2255 = vunpack.c.l.b16 %v424
      %v2256 = vunpack.c.l.b16 %v425
      %v2257 = vunpack.c.h.b16 %v425
      %v2258 = vunpack.c.l.b16 %v426
      %v2259 = vunpack.c.h.b16 %v426
      %v2260 = vunpack.c.l.b16 %v427
      %v2261 = vunpack.c.l.b16 %v428
      %v2262 = vunpack.c.h.b16 %v428
      %v2263 = vunpack.c.l.b16 %v429
      %v2264 = vunpack.c.h.b16 %v429
      %v2265 = vunpack.c.l.b16 %v430
      %v2266 = vunpack.c.l.b16 %v431
      %v2267 = vunpack.c.h.b16 %v431
      %v2268 = vunpack.c.l.b16 %v432
      %v2269 = vunpack.c.h.b16 %v432
      %v2270 = vunpack.c.l.b16 %v433
      %v2271 = vunpack.c.l.b16 %v434
      %v2272 = vunpack.c.h.b16 %v434
      %v2273 = vunpack.c.l.b16 %v435
      %v2274 = vunpack.c.h.b16 %v435
      %v2275 = vunpack.c.l.b16 %v436
      %v2276 = vunpack.c.l.b16 %v437
      %v2277 = vunpack.c.h.b16 %v437
      %v2278 = vunpack.c.l.b16 %v438
      %v2279 = vunpack.c.h.b16 %v438
      %v2280 = vunpack.c.l.b16 %v439
      %v2281 = vunpack.c.l.b16 %v440
      %v2282 = vunpack.c.h.b16 %v440
      %v2283 = vunpack.c.l.b16 %v441
      %v2284 = vunpack.c.h.b16 %v441
      %v2285 = vunpack.c.l.b16 %v442
      %v2286 = vunpack.c.l.b16 %v443
      %v2287 = vunpack.c.h.b16 %v443
      %v2288 = vunpack.c.l.b16 %v444
      %v2289 = vunpack.c.h.b16 %v444
      %v2290 = vunpack.c.l.b16 %v445
      %v2291 = vunpack.c.l.b16 %v446
      %v2292 = vunpack.c.h.b16 %v446
      %v2293 = vunpack.c.l.b16 %v447
      %v2294 = vunpack.c.h.b16 %v447
      %v2295 = vunpack.c.l.b16 %v448
      %v2296 = vunpack.c.l.b16 %v449
      %v2297 = vunpack.c.h.b16 %v449
      %v2298 = vunpack.c.l.b16 %v450
      %v2299 = vunpack.c.h.b16 %v450
      %v2300 = vunpack.c.l.b16 %v451
      %v2301 = vunpack.c.l.b16 %v452
      %v2302 = vunpack.c.h.b16 %v452
      %v2303 = vunpack.c.l.b16 %v453
      %v2304 = vunpack.c.h.b16 %v453
      %v2305 = vunpack.c.l.b16 %v454
      %v2306 = vunpack.c.l.b16 %v455
      %v2307 = vunpack.c.h.b16 %v455
      %v2308 = vunpack.c.l.b16 %v456
      %v2309 = vunpack.c.h.b16 %v456
      %v2310 = vunpack.c.l.b16 %v457
      %v2311 = vunpack.c.l.b16 %v458
      %v2312 = vunpack.c.h.b16 %v458
      %v2313 = vunpack.c.l.b16 %v459
      %v2314 = vunpack.c.h.b16 %v459
      %v2315 = vunpack.c.l.b16 %v460
      %v2316 = vunpack.c.l.b16 %v461
      %v2317 = vunpack.c.h.b16 %v461
      %v2318 = vunpack.c.l.b16 %v462
      %v2319 = vunpack.c.h.b16 %v462
      %v2320 = vunpack.c.l.b16 %v463
      %v2321 = vunpack.c.l.b16 %v464
      %v2322 = vunpack.c.h.b16 %v464
      %v2323 = vunpack.c.l.b16 %v465
      %v2324 = vunpack.c.h.b16 %v465
      %v2325 = vunpack.c.l.b16 %v466
      %v2326 = vunpack.c.l.b16 %v467
      %v2327 = vunpack.c.h.b16 %v467
      %v2328 = vunpack.c.l.b16 %v468
      %v2329 = vunpack.c.h.b16 %v468
      %v2330 = vunpack.c.l.b16 %v469
      %v2331 = vunpack.c.l.b16 %v470
      %v2332 = vunpack.c.h.b16 %v470
      %v2333 = vunpack.c.l.b16 %v471
      %v2334 = vunpack.c.h.b16 %v471
      %v2335 = vunpack.c.l.b16 %v472
      %v2336 = vunpack.c.l.b16 %v473
      %v2337 = vunpack.c.h.b16 %v473
      %v2338 = vunpack.c.l.b16 %v474
      %v2339 = vunpack.c.h.b16 %v474
      %v2340 = vunpack.c.l.b16 %v475
      %v2341 = vunpack.c.l.b16 %v476
      %v2342 = vunpack.c.h.b16 %v476
      %v2343 = vunpack.c.l.b16 %v477
      %v2344 = vunpack.c.h.b16 %v477
      %v2345 = vunpack.c.l.b16 %v478
      %v2346 = vunpack.c.l.b16 %v479
      %v2347 = vunpack.c.h.b16 %v479
      %v2348 = vunpack.c.l.b16 %v480
      %v2349 = vunpack.c.h.b16 %v480
      %v2350 = vunpack.c.l.b16 %v481
      %v2351 = vunpack.c.l.b16 %v482
      %v2352 = vunpack.c.h.b16 %v482
      %v2353 = vunpack.c.l.b16 %v483
      %v2354 = vunpack.c.h.b16 %v483
      %v2355 = vunpack.c.l.b16 %v484
      %v2356 = vunpack.c.l.b16 %v485
      %v2357 = vunpack.c.h.b16 %v485
      %v2358 = vunpack.c.l.b16 %v486
      %v2359 = vunpack.c.h.b16 %v486
      %v2360 = vunpack.c.l.b16 %v487
      %v2361 = vunpack.c.l.b16 %v488
      %v2362 = vunpack.c.h.b16 %v488
      %v2363 = vunpack.c.l.b16 %v489
      %v2364 = vunpack.c.h.b16 %v489
      %v2365 = vunpack.c.l.b16 %v490
      %v2366 = vunpack.c.l.b16 %v491
      %v2367 = vunpack.c.h.b16 %v491
      %v2368 = vunpack.c.l.b16 %v492
      %v2369 = vunpack.c.h.b16 %v492
      %v2370 = vunpack.c.l.b16 %v493
      %v2371 = vunpack.c.l.b16 %v494
      %v2372 = vunpack.c.h.b16 %v494
      %v2373 = vunpack.c.l.b16 %v495
      %v2374 = vunpack.c.h.b16 %v495
      %v2375 = vunpack.c.l.b16 %v496
      %v2376 = vunpack.c.l.b16 %v497
      %v2377 = vunpack.c.h.b16 %v497
      %v2378 = vunpack.c.l.b16 %v498
      %v2379 = vunpack.c.h.b16 %v498
      %v2380 = vunpack.c.l.b16 %v499
      %v2381 = vunpack.c.l.b16 %v500
      %v2382 = vunpack.c.h.b16 %v500
      %v2383 = vunpack.c.l.b16 %v501
      %v2384 = vunpack.c.h.b16 %v501
      %v2385 = vunpack.c.l.b16 %v502
      %v2386 = vunpack.c.l.b16 %v503
      %v2387 = vunpack.c.h.b16 %v503
      %v2388 = vunpack.c.l.b16 %v504
      %v2389 = vunpack.c.h.b16 %v504
      %v2390 = vunpack.c.l.b16 %v505
      %v2391 = vunpack.c.l.b16 %v506
      %v2392 = vunpack.c.h.b16 %v506
      %v2393 = vunpack.c.l.b16 %v507
      %v2394 = vunpack.c.h.b16 %v507
      %v2395 = vunpack.c.l.b16 %v508
      %v2396 = vunpack.c.l.b16 %v509
      %v2397 = vunpack.c.h.b16 %v509
      %v2398 = vunpack.c.l.b16 %v510
      %v2399 = vunpack.c.h.b16 %v510
      %v2400 = vunpack.c.l.b16 %v511
      %v2401 = vunpack.c.l.b16 %v512
      %v2402 = vunpack.c.h.b16 %v512
      %v2403 = vunpack.c.l.b16 %v513
      %v2404 = vunpack.c.h.b16 %v513
      %v2405 = vunpack.c.l.b16 %v514
      %v2406 = vunpack.c.l.b16 %v515
      %v2407 = vunpack.c.h.b16 %v515
      %v2408 = vunpack.c.l.b16 %v516
      %v2409 = vunpack.c.h.b16 %v516
      %v2410 = vunpack.c.l.b16 %v517
      %v2411 = vunpack.c.l.b16 %v518
      %v2412 = vunpack.c.h.b16 %v518
      %v2413 = vunpack.c.l.b16 %v519
      %v2414 = vunpack.c.h.b16 %v519
      %v2415 = vunpack.c.l.b16 %v520
      %v2416 = vunpack.c.l.b16 %v521
      %v2417 = vunpack.c.h.b16 %v521
      %v2418 = vunpack.c.l.b16 %v522
      %v2419 = vunpack.c.h.b16 %v522
      %v2420 = vunpack.c.l.b16 %v523
      %v2421 = vunpack.c.l.b16 %v524
      %v2422 = vunpack.c.h.b16 %v524
      %v2423 = vunpack.c.l.b16 %v525
      %v2424 = vunpack.c.h.b16 %v525
      %v2425 = vunpack.c.l.b16 %v526
      %v2426 = vunpack.c.l.b16 %v527
      %v2427 = vunpack.c.h.b16 %v527
      %v2428 = vunpack.c.l.b16 %v528
      %v2429 = vunpack.c.h.b16 %v528
      %v2430 = vunpack.c.l.b16 %v529
      %v2431 = vunpack.c.l.b16 %v530
      %v2432 = vunpack.c.h.b16 %v530
      %v2433 = vunpack.c.l.b16 %v531
      %v2434 = vunpack.c.h.b16 %v531
      %v2435 = vunpack.c.l.b16 %v532
      %v2436 = vunpack.c.l.b16 %v533
      %v2437 = vunpack.c.h.b16 %v533
      %v2438 = vunpack.c.l.b16 %v534
      %v2439 = vunpack.c.h.b16 %v534
      %v2440 = vunpack.c.l.b16 %v535
      %v2441 = vunpack.c.l.b16 %v536
      %v2442 = vunpack.c.h.b16 %v536
      %v2443 = vunpack.c.l.b16 %v537
      %v2444 = vunpack.c.h.b16 %v537
      %v2445 = vunpack.c.l.b16 %v538
      %v2446 = vunpack.c.l.b16 %v539
      %v2447 = vunpack.c.h.b16 %v539
      %v2448 = vunpack.c.l.b16 %v540
      %v2449 = vunpack.c.h.b16 %v540
      %v2450 = vunpack.c.l.b16 %v541
      %v2451 = vunpack.c.l.b16 %v542
      %v2452 = vunpack.c.h.b16 %v542
      %v2453 = vunpack.c.l.b16 %v543
      %v2454 = vunpack.c.h.b16 %v543
      %v2455 = vunpack.c.l.b16 %v544
      %v2456 = vunpack.c.l.b16 %v545
      %v2457 = vunpack.c.h.b16 %v545
      %v2458 = vunpack.c.l.b16 %v546
      %v2459 = vunpack.c.h.b16 %v546
      %v2460 = vunpack.c.l.b16 %v547
      %v2461 = vunpack.c.l.b16 %v548
      %v2462 = vunpack.c.h.b16 %v548
      %v2463 = vunpack.c.l.b16 %v549
      %v2464 = vunpack.c.h.b16 %v549
      %v2465 = vunpack.c.l.b16 %v550
      %v2466 = vunpack.c.l.b16 %v551
      %v2467 = vunpack.c.h.b16 %v551
      %v2468 = vunpack.c.l.b16 %v552
      %v2469 = vunpack.c.h.b16 %v552
      %v2470 = vunpack.c.l.b16 %v553
      %v2471 = vunpack.c.l.b16 %v554
      %v2472 = vunpack.c.h.b16 %v554
      %v2473 = vunpack.c.l.b16 %v555
      %v2474 = vunpack.c.h.b16 %v555
      %v2475 = vunpack.c.l.b16 %v556
      %v2476 = vunpack.c.l.b16 %v557
      %v2477 = vunpack.c.h.b16 %v557
      %v2478 = vunpack.c.l.b16 %v558
      %v2479 = vunpack.c.h.b16 %v558
      %v2480 = vunpack.c.l.b16 %v559
      %v2481 = vunpack.c.l.b16 %v560
      %v2482 = vunpack.c.h.b16 %v560
      %v2483 = vunpack.c.l.b16 %v561
      %v2484 = vunpack.c.h.b16 %v561
      %v2485 = vunpack.c.l.b16 %v562
      %v2486 = vunpack.c.l.b16 %v563
      %v2487 = vunpack.c.h.b16 %v563
      %v2488 = vunpack.c.l.b16 %v564
      %v2489 = vunpack.c.h.b16 %v564
      %v2490 = vunpack.c.l.b16 %v565
      %v2491 = vunpack.c.l.b16 %v566
      %v2492 = vunpack.c.h.b16 %v566
      %v2493 = vunpack.c.l.b16 %v567
      %v2494 = vunpack.c.h.b16 %v567
      %v2495 = vunpack.c.l.b16 %v568
      %v2496 = vunpack.c.l.b16 %v569
      %v2497 = vunpack.c.h.b16 %v569
      %v2498 = vunpack.c.l.b16 %v570
      %v2499 = vunpack.c.h.b16 %v570
      %v2500 = vunpack.c.l.b16 %v571
      %v2501 = vunpack.c.l.b16 %v572
      %v2502 = vunpack.c.h.b16 %v572
      %v2503 = vunpack.c.l.b16 %v573
      %v2504 = vunpack.c.h.b16 %v573
      %v2505 = vunpack.c.l.b16 %v574
      %v2506 = vunpack.c.l.b16 %v575
      %v2507 = vunpack.c.h.b16 %v575
      %v2508 = vunpack.c.l.b16 %v576
      %v2509 = vunpack.c.h.b16 %v576
      %v2510 = vunpack.c.l.b16 %v577
      %v2511 = vunpack.c.l.b16 %v578
      %v2512 = vunpack.c.h.b16 %v578
      %v2513 = vunpack.c.l.b16 %v579
      %v2514 = vunpack.c.h.b16 %v579
      %v2515 = vunpack.c.l.b16 %v580
      %v2516 = vunpack.c.l.b16 %v581
      %v2517 = vunpack.c.h.b16 %v581
      %v2518 = vunpack.c.l.b16 %v582
      %v2519 = vunpack.c.h.b16 %v582
      %v2520 = vunpack.c.l.b16 %v583
      %v2521 = vunpack.c.l.b16 %v584
      %v2522 = vunpack.c.h.b16 %v584
      %v2523 = vunpack.c.l.b16 %v585
      %v2524 = vunpack.c.h.b16 %v585
      %v2525 = vunpack.c.l.b16 %v586
      %v2526 = vunpack.c.l.b16 %v587
      %v2527 = vunpack.c.h.b16 %v587
      %v2528 = vunpack.c.l.b16 %v588
      %v2529 = vunpack.c.h.b16 %v588
      %v2530 = vunpack.c.l.b16 %v589
      %v2531 = vunpack.c.l.b16 %v590
      %v2532 = vunpack.c.h.b16 %v590
      %v2533 = vunpack.c.l.b16 %v591
      %v2534 = vunpack.c.h.b16 %v591
      %v2535 = vunpack.c.l.b16 %v592
      %v2536 = vunpack.c.l.b16 %v593
      %v2537 = vunpack.c.h.b16 %v593
      %v2538 = vunpack.c.l.b16 %v594
      %v2539 = vunpack.c.h.b16 %v594
      %v2540 = vunpack.c.l.b16 %v595
      %v2541 = vunpack.c.l.b16 %v596
      %v2542 = vunpack.c.h.b16 %v596
      %v2543 = vunpack.c.l.b16 %v597
      %v2544 = vunpack.c.h.b16 %v597
      %v2545 = vunpack.c.l.b16 %v598
      %v2546 = vunpack.c.l.b16 %v599
      %v2547 = vunpack.c.h.b16 %v599
      %v2548 = vunpack.c.l.b16 %v600
      %v2549 = vunpack.c.h.b16 %v600
      %v2550 = vunpack.c.l.b16 %v601
      %v2551 = vunpack.c.l.b16 %v602
      %v2552 = vunpack.c.h.b16 %v602
      %v2553 = vunpack.c.l.b16 %v603
      %v2554 = vunpack.c.h.b16 %v603
      %v2555 = vunpack.c.l.b16 %v604
      %v2556 = vunpack.c.l.b16 %v605
      %v2557 = vunpack.c.h.b16 %v605
      %v2558 = vunpack.c.l.b16 %v606
      %v2559 = vunpack.c.h.b16 %v606
      %v2560 = vunpack.c.l.b16 %v607
      %v2561 = vunpack.c.l.b16 %v608
      %v2562 = vunpack.c.h.b16 %v608
      %v2563 = vunpack.c.l.b16 %v609
      %v2564 = vunpack.c.h.b16 %v609
      %v2565 = vunpack.c.l.b16 %v610
      %v2566 = vunpack.c.l.b16 %v611
      %v2567 = vunpack.c.h.b16 %v611
      %v2568 = vunpack.c.l.b16 %v612
      %v2569 = vunpack.c.h.b16 %v612
      %v2570 = vunpack.c.l.b16 %v613
      %v2571 = vunpack.c.l.b16 %v614
      %v2572 = vunpack.c.h.b16 %v614
      %v2573 = vunpack.c.l.b16 %v615
      %v2574 = vunpack.c.h.b16 %v615
      %v2575 = vunpack.c.l.b16 %v616
      %v2576 = vunpack.c.l.b16 %v617
      %v2577 = vunpack.c.h.b16 %v617
      %v2578 = vunpack.c.l.b16 %v618
      %v2579 = vunpack.c.h.b16 %v618
      %v2580 = vunpack.c.l.b16 %v619
      %v2581 = vunpack.c.l.b16 %v620
      %v2582 = vunpack.c.h.b16 %v620
      %v2583 = vunpack.c.l.b16 %v621
      %v2584 = vunpack.c.h.b16 %v621
      %v2585 = vunpack.c.l.b16 %v622
      %v2586 = vunpack.c.l.b16 %v623
      %v2587 = vunpack.c.h.b16 %v623
      %v2588 = vunpack.c.l.b16 %v624
      %v2589 = vunpack.c.h.b16 %v624
      %v2590 = vunpack.c.l.b16 %v625
      %v2591 = vunpack.c.l.b16 %v626
      %v2592 = vunpack.c.h.b16 %v626
      %v2593 = vunpack.c.l.b16 %v627
      %v2594 = vunpack.c.h.b16 %v627
      %v2595 = vunpack.c.l.b16 %v628
      %v2596 = vunpack.c.l.b16 %v629
      %v2597 = vunpack.c.h.b16 %v629
      %v2598 = vunpack.c.l.b16 %v630
      %v2599 = vunpack.c.h.b16 %v630
      %v2600 = vunpack.c.l.b16 %v631
      %v2601 = vunpack.c.l.b16 %v632
      %v2602 = vunpack.c.h.b16 %v632
      %v2603 = vunpack.c.l.b16 %v633
      %v2604 = vunpack.c.h.b16 %v633
      %v2605 = vunpack.c.l.b16 %v634
      %v2606 = vunpack.c.l.b16 %v635
      %v2607 = vunpack.c.h.b16 %v635
      %v2608 = vunpack.c.l.b16 %v636
      %v2609 = vunpack.c.h.b16 %v636
      %v2610 = vunpack.c.l.b16 %v637
      %v2611 = vunpack.c.l.b16 %v638
      %v2612 = vunpack.c.h.b16 %v638
      %v2613 = vunpack.c.l.b16 %v639
      %v2614 = vunpack.c.h.b16 %v639
      %v2615 = vunpack.c.l.b16 %v640
      %v2616 = vunpack.c.l.b16 %v641
      %v2617 = vunpack.c.h.b16 %v641
      %v2618 = vunpack.c.l.b16 %v642
      %v2619 = vunpack.c.h.b16 %v642
      %v2620 = vunpack.c.l.b16 %v643
      %v2621 = vunpack.c.l.b16 %v644
      %v2622 = vunpack.c.h.b16 %v644
      %v2623 = vunpack.c.l.b16 %v645
      %v2624 = vunpack.c.h.b16 %v645
      %v2625 = vunpack.c.l.b16 %v646
      %v2626 = vunpack.c.l.b16 %v647
      %v2627 = vunpack.c.h.b16 %v647
      %v2628 = vunpack.c.l.b16 %v648
      %v2629 = vunpack.c.h.b16 %v648
      %v2630 = vunpack.c.l.b16 %v649
      %v2631 = vunpack.c.l.b16 %v650
      %v2632 = vunpack.c.h.b16 %v650
      %v2633 = vunpack.c.l.b16 %v651
      %v2634 = vunpack.c.h.b16 %v651
      %v2635 = vunpack.c.l.b16 %v652
      %v2636 = vunpack.c.l.b16 %v653
      %v2637 = vunpack.c.h.b16 %v653
      %v2638 = vunpack.c.l.b16 %v654
      %v2639 = vunpack.c.h.b16 %v654
      %v2640 = vunpack.c.l.b16 %v655
      %v2641 = vunpack.c.l.b16 %v656
      %v2642 = vunpack.c.h.b16 %v656
      %v2643 = vunpack.c.l.b16 %v657
      %v2644 = vunpack.c.h.b16 %v657
      %v2645 = vunpack.c.l.b16 %v658
      %v2646 = vunpack.c.l.b16 %v659
      %v2647 = vunpack.c.h.b16 %v659
      %v2648 = vunpack.c.l.b16 %v660
      %v2649 = vunpack.c.h.b16 %v660
      %v2650 = vunpack.c.l.b16 %v661
      %v2651 = vunpack.c.l.b16 %v662
      %v2652 = vunpack.c.h.b16 %v662
      %v2653 = vunpack.c.l.b16 %v663
      %v2654 = vunpack.c.h.b16 %v663
      %v2655 = vunpack.c.l.b16 %v664
      %v2656 = vunpack.c.l.b16 %v665
      %v2657 = vunpack.c.h.b16 %v665
      %v2658 = vunpack.c.l.b16 %v666
      %v2659 = vunpack.c.h.b16 %v666
      %v2660 = vunpack.c.l.b16 %v667
      %v2661 = vunpack.c.l.b16 %v668
      %v2662 = vunpack.c.h.b16 %v668
      %v2663 = vunpack.c.l.b16 %v669
      %v2664 = vunpack.c.h.b16 %v669
      %v2665 = vunpack.c.l.b16 %v670
      %v2666 = vunpack.c.l.b16 %v671
      %v2667 = vunpack.c.h.b16 %v671
      %v2668 = vunpack.c.l.b16 %v672
      %v2669 = vunpack.c.h.b16 %v672
      %v2670 = vunpack.c.l.b16 %v673
      %v2671 = vunpack.c.l.b16 %v674
      %v2672 = vunpack.c.h.b16 %v674
      %v2673 = vunpack.c.l.b16 %v675
      %v2674 = vunpack.c.h.b16 %v675
      %v2675 = vunpack.c.l.b16 %v676
      %v2676 = vunpack.c.l.b16 %v677
      %v2677 = vunpack.c.h.b16 %v677
      %v2678 = vunpack.c.l.b16 %v678
      %v2679 = vunpack.c.h.b16 %v678
      %v2680 = vunpack.c.l.b16 %v679
      %v2681 = vunpack.c.l.b16 %v680
      %v2682 = vunpack.c.h.b16 %v680
      %v2683 = vunpack.c.l.b16 %v681
      %v2684 = vunpack.c.h.b16 %v681
      %v2685 = vunpack.c.l.b16 %v682
      %v2686 = vunpack.c.l.b16 %v683
      %v2687 = vunpack.c.h.b16 %v683
      %v2688 = vunpack.c.l.b16 %v684
      %v2689 = vunpack.c.h.b16 %v684
      %v2690 = vunpack.c.l.b16 %v685
      %v2691 = vunpack.c.l.b16 %v686
      %v2692 = vunpack.c.h.b16 %v686
      %v2693 = vunpack.c.l.b16 %v687
      %v2694 = vunpack.c.h.b16 %v687
      %v2695 = vunpack.c.l.b16 %v688
      %v2696 = vunpack.c.l.b16 %v689
      %v2697 = vunpack.c.h.b16 %v689
      %v2698 = vunpack.c.l.b16 %v690
      %v2699 = vunpack.c.h.b16 %v690
      %v2700 = vunpack.c.l.b16 %v691
      %v2701 = vunpack.c.l.b16 %v692
      %v2702 = vunpack.c.h.b16 %v692
      %v2703 = vunpack.c.l.b16 %v693
      %v2704 = vunpack.c.h.b16 %v693
      %v2705 = vunpack.c.l.b16 %v694
      %v2706 = vunpack.c.l.b16 %v695
      %v2707 = vunpack.c.h.b16 %v695
      %v2708 = vunpack.c.l.b16 %v696
      %v2709 = vunpack.c.h.b16 %v696
      %v2710 = vunpack.c.l.b16 %v697
      %v2711 = vunpack.c.l.b16 %v698
      %v2712 = vunpack.c.h.b16 %v698
      %v2713 = vunpack.c.l.b16 %v699
      %v2714 = vunpack.c.h.b16 %v699
      %v2715 = vunpack.c.l.b16 %v700
      %v2716 = vunpack.c.l.b16 %v701
      %v2717 = vunpack.c.h.b16 %v701
      %v2718 = vunpack.c.l.b16 %v702
      %v2719 = vunpack.c.h.b16 %v702
      %v2720 = vunpack.c.l.b16 %v703
      %v2721 = vunpack.c.l.b16 %v704
      %v2722 = vunpack.c.h.b16 %v704
      %v2723 = vunpack.c.l.b16 %v705
      %v2724 = vunpack.c.h.b16 %v705
      %v2725 = vunpack.c.l.b16 %v706
      %v2726 = vunpack.c.l.b16 %v707
      %v2727 = vunpack.c.h.b16 %v707
      %v2728 = vunpack.c.l.b16 %v708
      %v2729 = vunpack.c.h.b16 %v708
      %v2730 = vunpack.c.l.b16 %v709
      %v2731 = vunpack.c.l.b16 %v710
      %v2732 = vunpack.c.h.b16 %v710
      %v2733 = vunpack.c.l.b16 %v711
      %v2734 = vunpack.c.h.b16 %v711
      %v2735 = vunpack.c.l.b16 %v712
      %v2736 = vunpack.c.l.b16 %v713
      %v2737 = vunpack.c.h.b16 %v713
      %v2738 = vunpack.c.l.b16 %v714
      %v2739 = vunpack.c.h.b16 %v714
      %v2740 = vunpack.c.l.b16 %v715
      %v2741 = vunpack.c.l.b16 %v716
      %v2742 = vunpack.c.h.b16 %v716
      %v2743 = vunpack.c.l.b16 %v717
      %v2744 = vunpack.c.h.b16 %v717
      %v2745 = vunpack.c.l.b16 %v718
      %v2746 = vunpack.c.l.b16 %v719
      %v2747 = vunpack.c.h.b16 %v719
      %v2748 = vunpack.c.l.b16 %v720
      %v2749 = vunpack.c.h.b16 %v720
      %v2750 = vunpack.c.l.b16 %v721
      %v2751 = vunpack.c.l.b16 %v722
      %v2752 = vunpack.c.h.b16 %v722
      %v2753 = vunpack.c.l.b16 %v723
      %v2754 = vunpack.c.h.b16 %v723
      %v2755 = vunpack.c.l.b16 %v724
      %v2756 = vunpack.c.l.b16 %v725
      %v2757 = vunpack.c.h.b16 %v725
      %v2758 = vunpack.c.l.b16 %v726
      %v2759 = vunpack.c.h.b16 %v726
      %v2760 = vunpack.c.l.b16 %v727
      %v2761 = vunpack.c.l.b16 %v728
      %v2762 = vunpack.c.h.b16 %v728
      %v2763 = vunpack.c.l.b16 %v729
      %v2764 = vunpack.c.h.b16 %v729
      %v2765 = vunpack.c.l.b16 %v730
      %v2766 = vunpack.c.l.b16 %v731
      %v2767 = vunpack.c.h.b16 %v731
      %v2768 = vunpack.c.l.b16 %v732
      %v2769 = vunpack.c.h.b16 %v732
      %v2770 = vunpack.c.l.b16 %v733
      %v2771 = vunpack.c.l.b16 %v734
      %v2772 = vunpack.c.h.b16 %v734
      %v2773 = vunpack.c.l.b16 %v735
      %v2774 = vunpack.c.h.b16 %v735
      %v2775 = vunpack.c.l.b16 %v736
      %v2776 = vunpack.c.l.b16 %v737
      %v2777 = vunpack.c.h.b16 %v737
      %v2778 = vunpack.c.l.b16 %v738
      %v2779 = vunpack.c.h.b16 %v738
      %v2780 = vunpack.c.l.b16 %v739
      %v2781 = vunpack.c.l.b16 %v740
      %v2782 = vunpack.c.h.b16 %v740
      %v2783 = vunpack.c.l.b16 %v741
      %v2784 = vunpack.c.h.b16 %v741
      %v2785 = vunpack.c.l.b16 %v742
      %v2786 = vunpack.c.l.b16 %v743
      %v2787 = vunpack.c.h.b16 %v743
      %v2788 = vunpack.c.l.b16 %v744
      %v2789 = vunpack.c.h.b16 %v744
      %v2790 = vunpack.c.l.b16 %v745
      %v2791 = vunpack.c.l.b16 %v746
      %v2792 = vunpack.c.h.b16 %v746
      %v2793 = vunpack.c.l.b16 %v747
      %v2794 = vunpack.c.h.b16 %v747
      %v2795 = vunpack.c.l.b16 %v748
      %v2796 = vunpack.c.l.b16 %v749
      %v2797 = vunpack.c.h.b16 %v749
      %v2798 = vunpack.c.l.b16 %v750
      %v2799 = vunpack.c.h.b16 %v750
      %v2800 = vunpack.c.l.b16 %v751
      %v2801 = vunpack.c.l.b16 %v752
      %v2802 = vunpack.c.h.b16 %v752
      %v2803 = vunpack.c.l.b16 %v753
      %v2804 = vunpack.c.h.b16 %v753
      %v2805 = vunpack.c.l.b16 %v754
      %v2806 = vunpack.c.l.b16 %v755
      %v2807 = vunpack.c.h.b16 %v755
      %v2808 = vunpack.c.l.b16 %v756
      %v2809 = vunpack.c.h.b16 %v756
      %v2810 = vunpack.c.l.b16 %v757
      %v2811 = vunpack.c.l.b16 %v758
      %v2812 = vunpack.c.h.b16 %v758
      %v2813 = vunpack.c.l.b16 %v759
      %v2814 = vunpack.c.h.b16 %v759
      %v2815 = vunpack.c.l.b16 %v760
      %v2816 = vunpack.c.l.b16 %v761
      %v2817 = vunpack.c.h.b16 %v761
      %v2818 = vunpack.c.l.b16 %v762
      %v2819 = vunpack.c.h.b16 %v762
      %v2820 = vunpack.c.l.b16 %v763
      %v2821 = vunpack.c.l.b16 %v764
      %v2822 = vunpack.c.h.b16 %v764
      %v2823 = vunpack.c.l.b16 %v765
      %v2824 = vunpack.c.h.b16 %v765
      %v2825 = vunpack.c.l.b16 %v766
      %v2826 = vunpack.c.l.b16 %v767
      %v2827 = vunpack.c.h.b16 %v767
      %v2828 = vunpack.c.l.b16 %v768
      %v2829 = vunpack.c.h.b16 %v768
      %v2830 = vunpack.c.l.b16 %v769
      %v2831 = vunpack.c.l.b16 %v770
      %v2832 = vunpack.c.h.b16 %v770
      %v2833 = vunpack.c.l.b16 %v771
      %v2834 = vunpack.c.h.b16 %v771
      %v2835 = vunpack.c.l.b16 %v772
      %v2836 = vunpack.c.l.b16 %v773
      %v2837 = vunpack.c.h.b16 %v773
      %v2838 = vunpack.c.l.b16 %v774
      %v2839 = vunpack.c.h.b16 %v774
      %v2840 = vunpack.c.l.b16 %v775
      %v2841 = vunpack.c.l.b16 %v776
      %v2842 = vunpack.c.h.b16 %v776
      %v2843 = vunpack.c.l.b16 %v777
      %v2844 = vunpack.c.h.b16 %v777
      %v2845 = vunpack.c.l.b16 %v778
      %v2846 = vunpack.c.l.b16 %v779
      %v2847 = vunpack.c.h.b16 %v779
      %v2848 = vunpack.c.l.b16 %v780
      %v2849 = vunpack.c.h.b16 %v780
      %v2850 = vunpack.c.l.b16 %v781
      %v2851 = vunpack.c.l.b16 %v782
      %v2852 = vunpack.c.h.b16 %v782
      %v2853 = vunpack.c.l.b16 %v783
      %v2854 = vunpack.c.h.b16 %v783
      %v2855 = vunpack.c.l.b16 %v784
      %v2856 = vunpack.c.l.b16 %v785
      %v2857 = vunpack.c.h.b16 %v785
      %v2858 = vunpack.c.l.b16 %v786
      %v2859 = vunpack.c.h.b16 %v786
      %v2860 = vunpack.c.l.b16 %v787
      %v2861 = vunpack.c.l.b16 %v788
      %v2862 = vunpack.c.h.b16 %v788
      %v2863 = vunpack.c.l.b16 %v789
      %v2864 = vunpack.c.h.b16 %v789
      %v2865 = vunpack.c.l.b16 %v790
      %v2866 = vunpack.c.l.b16 %v791
      %v2867 = vunpack.c.h.b16 %v791
      %v2868 = vunpack.c.l.b16 %v792
      %v2869 = vunpack.c.h.b16 %v792
      %v2870 = vunpack.c.l.b16 %v793
      %v2871 = vunpack.c.l.b16 %v794
      %v2872 = vunpack.c.h.b16 %v794
      %v2873 = vunpack.c.l.b16 %v795
      %v2874 = vunpack.c.h.b16 %v795
      %v2875 = vunpack.c.l.b16 %v796
      %v2876 = vunpack.c.l.b16 %v797
      %v2877 = vunpack.c.h.b16 %v797
      %v2878 = vunpack.c.l.b16 %v798
      %v2879 = vunpack.c.h.b16 %v798
      %v2880 = vunpack.c.l.b16 %v799
      %v2881 = vunpack.c.l.b16 %v800
      %v2882 = vunpack.c.h.b16 %v800
      %v2883 = vunpack.c.l.b16 %v801
      %v2884 = vunpack.c.h.b16 %v801
      %v2885 = vunpack.c.l.b16 %v802
      %v2886 = vunpack.c.l.b16 %v803
      %v2887 = vunpack.c.h.b16 %v803
      %v2888 = vunpack.c.l.b16 %v804
      %v2889 = vunpack.c.h.b16 %v804
      %v2890 = vunpack.c.l.b16 %v805
      %v2891 = vunpack.c.l.b16 %v806
      %v2892 = vunpack.c.h.b16 %v806
      %v2893 = vunpack.c.l.b16 %v807
      %v2894 = vunpack.c.h.b16 %v807
      %v2895 = vunpack.c.l.b16 %v808
      %v2896 = vunpack.c.l.b16 %v809
      %v2897 = vunpack.c.h.b16 %v809
      %v2898 = vunpack.c.l.b16 %v810
      %v2899 = vunpack.c.h.b16 %v810
      %v2900 = vunpack.c.l.b16 %v811
      %v2901 = vunpack.c.l.b16 %v812
      %v2902 = vunpack.c.h.b16 %v812
      %v2903 = vunpack.c.l.b16 %v813
      %v2904 = vunpack.c.h.b16 %v813
      %v2905 = vunpack.c.l.b16 %v814
      %v2906 = vunpack.c.l.b16 %v815
      %v2907 = vunpack.c.h.b16 %v815
      %v2908 = vunpack.c.l.b16 %v816
      %v2909 = vunpack.c.h.b16 %v816
      %v2910 = vunpack.c.l.b16 %v817
      %v2911 = vunpack.c.l.b16 %v818
      %v2912 = vunpack.c.h.b16 %v818
      %v2913 = vunpack.c.l.b16 %v819
      %v2914 = vunpack.c.h.b16 %v819
      %v2915 = vunpack.c.l.b16 %v820
      %v2916 = vunpack.c.l.b16 %v821
      %v2917 = vunpack.c.h.b16 %v821
      %v2918 = vunpack.c.l.b16 %v822
      %v2919 = vunpack.c.h.b16 %v822
      %v2920 = vunpack.c.l.b16 %v823
      %v2921 = vunpack.c.l.b16 %v824
      %v2922 = vunpack.c.h.b16 %v824
      %v2923 = vunpack.c.l.b16 %v825
      %v2924 = vunpack.c.h.b16 %v825
      %v2925 = vunpack.c.l.b16 %v826
      %v2926 = vunpack.c.l.b16 %v827
      %v2927 = vunpack.c.h.b16 %v827
      %v2928 = vunpack.c.l.b16 %v828
      %v2929 = vunpack.c.h.b16 %v828
      %v2930 = vunpack.c.l.b16 %v829
      %v2931 = vunpack.c.l.b16 %v830
      %v2932 = vunpack.c.h.b16 %v830
      %v2933 = vunpack.c.l.b16 %v831
      %v2934 = vunpack.c.h.b16 %v831
      %v2935 = vunpack.c.l.b16 %v832
      %v2936 = vunpack.c.l.b16 %v833
      %v2937 = vunpack.c.h.b16 %v833
      %v2938 = vunpack.c.l.b16 %v834
      %v2939 = vunpack.c.h.b16 %v834
      %v2940 = vunpack.c.l.b16 %v835
      %v2941 = vunpack.c.l.b16 %v836
      %v2942 = vunpack.c.h.b16 %v836
      %v2943 = vunpack.c.l.b16 %v837
      %v2944 = vunpack.c.h.b16 %v837
      %v2945 = vunpack.c.l.b16 %v838
      %v2946 = vunpack.c.l.b16 %v839
      %v2947 = vunpack.c.h.b16 %v839
      %v2948 = vunpack.c.l.b16 %v840
      %v2949 = vunpack.c.h.b16 %v840
      %v2950 = vunpack.c.l.b16 %v841
      %v2951 = vunpack.c.l.b16 %v842
      %v2952 = vunpack.c.h.b16 %v842
      %v2953 = vunpack.c.l.b16 %v843
      %v2954 = vunpack.c.h.b16 %v843
      %v2955 = vunpack.c.l.b16 %v844
      %v2956 = vunpack.c.l.b16 %v845
      %v2957 = vunpack.c.h.b16 %v845
      %v2958 = vunpack.c.l.b16 %v846
      %v2959 = vunpack.c.h.b16 %v846
      %v2960 = vunpack.c.l.b16 %v847
      %v2961 = vunpack.c.l.b16 %v848
      %v2962 = vunpack.c.h.b16 %v848
      %v2963 = vunpack.c.l.b16 %v849
      %v2964 = vunpack.c.h.b16 %v849
      %v2965 = vunpack.c.l.b16 %v850
      %v2966 = vunpack.c.l.b16 %v851
      %v2967 = vunpack.c.h.b16 %v851
      %v2968 = vunpack.c.l.b16 %v852
      %v2969 = vunpack.c.h.b16 %v852
      %v2970 = vunpack.c.l.b16 %v853
      %v2971 = vunpack.c.l.b16 %v854
      %v2972 = vunpack.c.h.b16 %v854
      %v2973 = vunpack.c.l.b16 %v855
      %v2974 = vunpack.c.h.b16 %v855
      %v2975 = vunpack.c.l.b16 %v856
      %v2976 = vunpack.c.l.b16 %v857
      %v2977 = vunpack.c.h.b16 %v857
      %v2978 = vunpack.c.l.b16 %v858
      %v2979 = vunpack.c.h.b16 %v858
      %v2980 = vunpack.c.l.b16 %v859
      %v2981 = vunpack.c.l.b16 %v860
      %v2982 = vunpack.c.h.b16 %v860
      %v2983 = vunpack.c.l.b16 %v861
      %v2984 = vunpack.c.h.b16 %v861
      %v2985 = vunpack.c.l.b16 %v862
      %v2986 = vunpack.c.l.b16 %v863
      %v2987 = vunpack.c.h.b16 %v863
      %v2988 = vunpack.c.l.b16 %v864
      %v2989 = vunpack.c.h.b16 %v864
      %v2990 = vunpack.c.l.b16 %v865
      %v2991 = vunpack.c.l.b16 %v866
      %v2992 = vunpack.c.h.b16 %v866
      %v2993 = vunpack.c.l.b16 %v867
      %v2994 = vunpack.c.h.b16 %v867
      %v2995 = vunpack.c.l.b16 %v868
      %v2996 = vunpack.c.l.b16 %v869
      %v2997 = vunpack.c.h.b16 %v869
      %v2998 = vunpack.c.l.b16 %v870
      %v2999 = vunpack.c.h.b16 %v870
      %v3000 = vunpack.c.l.b16 %v871
      %v3001 = vunpack.c.l.b16 %v872
      %v3002 = vunpack.c.h.b16 %v872
      %v3003 = vunpack.c.l.b16 %v873
      %v3004 = vunpack.c.h.b16 %v873
      %v3005 = vunpack.c.l.b16 %v874
      %v3006 = vunpack.c.l.b16 %v875
      %v3007 = vunpack.c.h.b16 %v875
      %v3008 = vunpack.c.l.b16 %v876
      %v3009 = vunpack.c.h.b16 %v876
      %v3010 = vunpack.c.l.b16 %v877
      %v3011 = vunpack.c.l.b16 %v878
      %v3012 = vunpack.c.h.b16 %v878
      %v3013 = vunpack.c.l.b16 %v879
      %v3014 = vunpack.c.h.b16 %v879
      %v3015 = vunpack.c.l.b16 %v880
      %v3016 = vunpack.c.l.b16 %v881
      %v3017 = vunpack.c.h.b16 %v881
      %v3018 = vunpack.c.l.b16 %v882
      %v3019 = vunpack.c.h.b16 %v882
      %v3020 = vunpack.c.l.b16 %v883
      %v3021 = vunpack.c.l.b16 %v884
      %v3022 = vunpack.c.h.b16 %v884
      %v3023 = vunpack.c.l.b16 %v885
      %v3024 = vunpack.c.h.b16 %v885
      %v3025 = vunpack.c.l.b16 %v886
      %v3026 = vunpack.c.l.b16 %v887
      %v3027 = vunpack.c.h.b16 %v887
      %v3028 = vunpack.c.l.b16 %v888
      %v3029 = vunpack.c.h.b16 %v888
      %v3030 = vunpack.c.l.b16 %v889
      %v3031 = vunpack.c.l.b16 %v890
      %v3032 = vunpack.c.h.b16 %v890
      %v3033 = vunpack.c.l.b16 %v891
      %v3034 = vunpack.c.h.b16 %v891
      %v3035 = vunpack.c.l.b16 %v892
      %v3036 = vunpack.c.l.b16 %v893
      %v3037 = vunpack.c.h.b16 %v893
      %v3038 = vunpack.c.l.b16 %v894
      %v3039 = vunpack.c.h.b16 %v894
      %v3040 = vunpack.c.l.b16 %v895
      %v3041 = vunpack.c.l.b16 %v896
      %v3042 = vunpack.c.h.b16 %v896
      %v3043 = vunpack.c.l.b16 %v897
      %v3044 = vunpack.c.h.b16 %v897
      %v3045 = vunpack.c.l.b16 %v898
      %v3046 = vunpack.c.l.b16 %v899
      %v3047 = vunpack.c.h.b16 %v899
      %v3048 = vunpack.c.l.b16 %v900
      %v3049 = vunpack.c.h.b16 %v900
      %v3050 = vunpack.c.l.b16 %v901
      %v3051 = vunpack.c.l.b16 %v902
      %v3052 = vunpack.c.h.b16 %v902
      %v3053 = vunpack.c.l.b16 %v903
      %v3054 = vunpack.c.h.b16 %v903
      %v3055 = vunpack.c.l.b16 %v904
      %v3056 = vunpack.c.l.b16 %v905
      %v3057 = vunpack.c.h.b16 %v905
      %v3058 = vunpack.c.l.b16 %v906
      %v3059 = vunpack.c.h.b16 %v906
      %v3060 = vunpack.c.l.b16 %v907
      %v3061 = vunpack.c.l.b16 %v908
      %v3062 = vunpack.c.h.b16 %v908
      %v3063 = vunpack.c.l.b16 %v909
      %v3064 = vunpack.c.h.b16 %v909
      %v3065 = vunpack.c.l.b16 %v910
      %v3066 = vunpack.c.l.b16 %v911
      %v3067 = vunpack.c.h.b16 %v911
      %v3068 = vunpack.c.l.b16 %v912
      %v3069 = vunpack.c.h.b16 %v912
      %v3070 = vunpack.c.l.b16 %v913
      %v3071 = vunpack.c.l.b16 %v914
      %v3072 = vunpack.c.h.b16 %v914
      %v3073 = vunpack.c.l.b16 %v915
      %v3074 = vunpack.c.h.b16 %v915
      %v3075 = vunpack.c.l.b16 %v916
      %v3076 = vunpack.c.l.b16 %v917
      %v3077 = vunpack.c.h.b16 %v917
      %v3078 = vunpack.c.l.b16 %v918
      %v3079 = vunpack.c.h.b16 %v918
      %v3080 = vunpack.c.l.b16 %v919
      %v3081 = vunpack.c.l.b16 %v920
      %v3082 = vunpack.c.h.b16 %v920
      %v3083 = vunpack.c.l.b16 %v921
      %v3084 = vunpack.c.h.b16 %v921
      %v3085 = vunpack.c.l.b16 %v922
      %v3086 = vunpack.c.l.b16 %v923
      %v3087 = vunpack.c.h.b16 %v923
      %v3088 = vunpack.c.l.b16 %v924
      %v3089 = vunpack.c.h.b16 %v924
      %v3090 = vunpack.c.l.b16 %v925
      %v3091 = vunpack.c.l.b16 %v926
      %v3092 = vunpack.c.h.b16 %v926
      %v3093 = vunpack.c.l.b16 %v927
      %v3094 = vunpack.c.h.b16 %v927
      %v3095 = vunpack.c.l.b16 %v928
      %v3096 = vunpack.c.l.b16 %v929
      %v3097 = vunpack.c.h.b16 %v929
      %v3098 = vunpack.c.l.b16 %v930
      %v3099 = vunpack.c.h.b16 %v930
      %v3100 = vunpack.c.l.b16 %v931
      %v3101 = vunpack.c.l.b16 %v932
      %v3102 = vunpack.c.h.b16 %v932
      %v3103 = vunpack.c.l.b16 %v933
      %v3104 = vunpack.c.h.b16 %v933
      %v3105 = vunpack.c.l.b16 %v934
      %v3106 = vunpack.c.l.b16 %v935
      %v3107 = vunpack.c.h.b16 %v935
      %v3108 = vunpack.c.l.b16 %v936
      %v3109 = vunpack.c.h.b16 %v936
      %v3110 = vunpack.c.l.b16 %v937
      %v3111 = vunpack.c.l.b16 %v938
      %v3112 = vunpack.c.h.b16 %v938
      %v3113 = vunpack.c.l.b16 %v939
      %v3114 = vunpack.c.h.b16 %v939
      %v3115 = vunpack.c.l.b16 %v940
      %v3116 = vunpack.c.l.b16 %v941
      %v3117 = vunpack.c.h.b16 %v941
      %v3118 = vunpack.c.l.b16 %v942
      %v3119 = vunpack.c.h.b16 %v942
      %v3120 = vunpack.c.l.b16 %v943
      %v3121 = vunpack.c.l.b16 %v944
      %v3122 = vunpack.c.h.b16 %v944
      %v3123 = vunpack.c.l.b16 %v945
      %v3124 = vunpack.c.h.b16 %v945
      %v3125 = vunpack.c.l.b16 %v946
      %v3126 = vunpack.c.l.b16 %v947
      %v3127 = vunpack.c.h.b16 %v947
      %v3128 = vunpack.c.l.b16 %v948
      %v3129 = vunpack.c.h.b16 %v948
      %v3130 = vunpack.c.l.b16 %v949
      %v3131 = vunpack.c.l.b16 %v950
      %v3132 = vunpack.c.h.b16 %v950
      %v3133 = vunpack.c.l.b16 %v951
      %v3134 = vunpack.c.h.b16 %v951
      %v3135 = vunpack.c.l.b16 %v952
      %v3136 = vunpack.c.l.b16 %v953
      %v3137 = vunpack.c.h.b16 %v953
      %v3138 = vunpack.c.l.b16 %v954
      %v3139 = vunpack.c.h.b16 %v954
      %v3140 = vunpack.c.l.b16 %v955
      %v3141 = vunpack.c.l.b16 %v956
      %v3142 = vunpack.c.h.b16 %v956
      %v3143 = vunpack.c.l.b16 %v957
      %v3144 = vunpack.c.h.b16 %v957
      %v3145 = vunpack.c.l.b16 %v958
      %v3146 = vunpack.c.l.b16 %v959
      %v3147 = vunpack.c.h.b16 %v959
      %v3148 = vunpack.c.l.b16 %v960
      %v3149 = vunpack.c.h.b16 %v960
      %v3150 = vunpack.c.l.b16 %v961
      %v3151 = vunpack.c.l.b16 %v962
      %v3152 = vunpack.c.h.b16 %v962
      %v3153 = vunpack.c.l.b16 %v963
      %v3154 = vunpack.c.h.b16 %v963
      %v3155 = vunpack.c.l.b16 %v964
      %v3156 = vunpack.c.l.b16 %v965
      %v3157 = vunpack.c.h.b16 %v965
      %v3158 = vunpack.c.l.b16 %v966
      %v3159 = vunpack.c.h.b16 %v966
      %v3160 = vunpack.c.l.b16 %v967
      %v3161 = vunpack.c.l.b16 %v968
      %v3162 = vunpack.c.h.b16 %v968
      %v3163 = vunpack.c.l.b16 %v969
      %v3164 = vunpack.c.h.b16 %v969
      %v3165 = vunpack.c.l.b16 %v970
      %v3166 = vunpack.c.l.b16 %v971
      %v3167 = vunpack.c.h.b16 %v971
      %v3168 = vunpack.c.l.b16 %v972
      %v3169 = vunpack.c.h.b16 %v972
      %v3170 = vunpack.c.l.b16 %v973
      %v3171 = vunpack.c.l.b16 %v974
      %v3172 = vunpack.c.h.b16 %v974
      %v3173 = vunpack.c.l.b16 %v975
      %v3174 = vunpack.c.h.b16 %v975
      %v3175 = vunpack.c.l.b16 %v976
      %v3176 = vunpack.c.l.b16 %v977
      %v3177 = vunpack.c.h.b16 %v977
      %v3178 = vunpack.c.l.b16 %v978
      %v3179 = vunpack.c.h.b16 %v978
      %v3180 = vunpack.c.l.b16 %v979
      %v3181 = vunpack.c.l.b16 %v980
      %v3182 = vunpack.c.h.b16 %v980
      %v3183 = vunpack.c.l.b16 %v981
      %v3184 = vunpack.c.h.b16 %v981
      %v3185 = vunpack.c.l.b16 %v982
      %v3186 = vunpack.c.l.b16 %v983
      %v3187 = vunpack.c.h.b16 %v983
      %v3188 = vunpack.c.l.b16 %v984
      %v3189 = vunpack.c.h.b16 %v984
      %v3190 = vunpack.c.l.b16 %v985
      %v3191 = vunpack.c.l.b16 %v986
      %v3192 = vunpack.c.h.b16 %v986
      %v3193 = vunpack.c.l.b16 %v987
      %v3194 = vunpack.c.h.b16 %v987
      %v3195 = vunpack.c.l.b16 %v988
      %v3196 = vunpack.c.l.b16 %v989
      %v3197 = vunpack.c.h.b16 %v989
      %v3198 = vunpack.c.l.b16 %v990
      %v3199 = vunpack.c.h.b16 %v990
      %v3200 = vunpack.c.l.b16 %v991
      %v3201 = vunpack.c.l.b16 %v992
      %v3202 = vunpack.c.h.b16 %v992
      %v3203 = vunpack.c.l.b16 %v993
      %v3204 = vunpack.c.h.b16 %v993
      %v3205 = vunpack.c.l.b16 %v994
      %v3206 = vunpack.c.l.b16 %v995
      %v3207 = vunpack.c.h.b16 %v995
      %v3208 = vunpack.c.l.b16 %v996
      %v3209 = vunpack.c.h.b16 %v996
      %v3210 = vunpack.c.l.b16 %v997
      %v3211 = vunpack.c.l.b16 %v998
      %v3212 = vunpack.c.h.b16 %v998
      %v3213 = vunpack.c.l.b16 %v999
      %v3214 = vunpack.c.h.b16 %v999
      %v3215 = vunpack.c.l.b16 %v1000
      %v3216 = vunpack.c.l.b16 %v1001
      %v3217 = vunpack.c.h.b16 %v1001
      %v3218 = vunpack.c.l.b16 %v1002
      %v3219 = vunpack.c.h.b16 %v1002
      %v3220 = vunpack.c.l.b16 %v1003
      %v3221 = vunpack.c.l.b16 %v1004
      %v3222 = vunpack.c.h.b16 %v1004
      %v3223 = vunpack.c.l.b16 %v1005
      %v3224 = vunpack.c.h.b16 %v1005
      %v3225 = vunpack.c.l.b16 %v1006
      %v3226 = vunpack.c.l.b16 %v1007
      %v3227 = vunpack.c.h.b16 %v1007
      %v3228 = vunpack.c.l.b16 %v1008
      %v3229 = vunpack.c.h.b16 %v1008
      %v3230 = vunpack.c.l.b16 %v1009
      %v3231 = vunpack.c.l.b16 %v1010
      %v3232 = vunpack.c.h.b16 %v1010
      %v3233 = vunpack.c.l.b16 %v1011
      %v3234 = vunpack.c.h.b16 %v1011
      %v3235 = vunpack.c.l.b16 %v1012
      %v3236 = vunpack.c.l.b16 %v1013
      %v3237 = vunpack.c.h.b16 %v1013
      %v3238 = vunpack.c.l.b16 %v1014
      %v3239 = vunpack.c.h.b16 %v1014
      %v3240 = vunpack.c.l.b16 %v1015
      %v3241 = vunpack.c.l.b16 %v1016
      %v3242 = vunpack.c.h.b16 %v1016
      %v3243 = vunpack.c.l.b16 %v1017
      %v3244 = vunpack.c.h.b16 %v1017
      %v3245 = vunpack.c.l.b16 %v1018
      %v3246 = vunpack.c.l.b16 %v1019
      %v3247 = vunpack.c.h.b16 %v1019
      %v3248 = vunpack.c.l.b16 %v1020
      %v3249 = vunpack.c.h.b16 %v1020
      %v3250 = vunpack.c.l.b16 %v1021
      %v3251 = vunpack.c.l.b16 %v1022
      %v3252 = vunpack.c.h.b16 %v1022
      %v3253 = vunpack.c.l.b16 %v1023
      %v3254 = vunpack.c.h.b16 %v1023
      %v3255 = vunpack.c.l.b16 %v1024
      %v3256 = vunpack.c.l.b16 %v1025
      %v3257 = vunpack.c.h.b16 %v1025
      %v3258 = vunpack.c.l.b16 %v1026
      %v3259 = vunpack.c.h.b16 %v1026
      %v3260 = vunpack.c.l.b16 %v1027
      %v3261 = vunpack.c.l.b16 %v1028
      %v3262 = vunpack.c.h.b16 %v1028
      %v3263 = vunpack.c.l.b16 %v1029
      %v3264 = vunpack.c.h.b16 %v1029
      %v3265 = vunpack.c.l.b16 %v1030
      %v3266 = vunpack.c.l.b16 %v1031
      %v3267 = vunpack.c.h.b16 %v1031
      %v3268 = vunpack.c.l.b16 %v1032
      %v3269 = vunpack.c.h.b16 %v1032
      %v3270 = vunpack.c.l.b16 %v1033
      %v3271 = vunpack.c.l.b16 %v1034
      %v3272 = vunpack.c.h.b16 %v1034
      %v3273 = vunpack.c.l.b16 %v1035
      %v3274 = vunpack.c.h.b16 %v1035
      %v3275 = vunpack.c.l.b16 %v1036
      %v3276 = vunpack.c.l.b16 %v1037
      %v3277 = vunpack.c.h.b16 %v1037
      %v3278 = vunpack.c.l.b16 %v1038
      %v3279 = vunpack.c.h.b16 %v1038
      %v3280 = vunpack.c.l.b16 %v1039
      %v3281 = vunpack.c.l.b16 %v1040
      %v3282 = vunpack.c.h.b16 %v1040
      %v3283 = vunpack.c.l.b16 %v1041
      %v3284 = vunpack.c.h.b16 %v1041
      %v3285 = vunpack.c.l.b16 %v1042
      %v3286 = vunpack.c.l.b16 %v1043
      %v3287 = vunpack.c.h.b16 %v1043
      %v3288 = vunpack.c.l.b16 %v1044
      %v3289 = vunpack.c.h.b16 %v1044
      %v3290 = vunpack.c.l.b16 %v1045
      %v3291 = vunpack.c.l.b16 %v1046
      %v3292 = vunpack.c.h.b16 %v1046
      %v3293 = vunpack.c.l.b16 %v1047
      %v3294 = vunpack.c.h.b16 %v1047
      %v3295 = vunpack.c.l.b16 %v1048
      %v3296 = vunpack.c.l.b16 %v1049
      %v3297 = vunpack.c.h.b16 %v1049
      %v3298 = vunpack.c.l.b16 %v1050
      %v3299 = vunpack.c.h.b16 %v1050
      %v3300 = vunpack.c.l.b16 %v1051
      %v3301 = vunpack.c.l.b16 %v1052
      %v3302 = vunpack.c.h.b16 %v1052
      %v3303 = vunpack.c.l.b16 %v1053
      %v3304 = vunpack.c.h.b16 %v1053
      %v3305 = vunpack.c.l.b16 %v1054
      %v3306 = vunpack.c.l.b16 %v1055
      %v3307 = vunpack.c.h.b16 %v1055
      %v3308 = vunpack.c.l.b16 %v1056
      %v3309 = vunpack.c.h.b16 %v1056
      %v3310 = vunpack.c.l.b16 %v1057
      %v3311 = vpack.c.b16 %v2056, %v2051
      %v3312 = vpack.c.b16 %v2057, %v2052
      %v3313 = vpack.c.b16 %v2058, %v2053
      %v3314 = vpack.c.b16 %v2059, %v2054
      %v3315 = vpack.c.b16 %v2060, %v2055
      %v3316 = vpack.c.b16 %v2066, %v2061
      %v3317 = vpack.c.b16 %v2067, %v2062
      %v3318 = vpack.c.b16 %v2068, %v2063
      %v3319 = vpack.c.b16 %v2069, %v2064
      %v3320 = vpack.c.b16 %v2070, %v2065
      %v3321 = vpack.c.b16 %v2076, %v2071
      %v3322 = vpack.c.b16 %v2077, %v2072
      %v3323 = vpack.c.b16 %v2078, %v2073
      %v3324 = vpack.c.b16 %v2079, %v2074
      %v3325 = vpack.c.b16 %v2080, %v2075
      %v3326 = vpack.c.b16 %v2086, %v2081
      %v3327 = vpack.c.b16 %v2087, %v2082
      %v3328 = vpack.c.b16 %v2088, %v2083
      %v3329 = vpack.c.b16 %v2089, %v2084
      %v3330 = vpack.c.b16 %v2090, %v2085
      %v3331 = vpack.c.b16 %v2096, %v2091
      %v3332 = vpack.c.b16 %v2097, %v2092
      %v3333 = vpack.c.b16 %v2098, %v2093
      %v3334 = vpack.c.b16 %v2099, %v2094
      %v3335 = vpack.c.b16 %v2100, %v2095
      %v3336 = vpack.c.b16 %v2106, %v2101
      %v3337 = vpack.c.b16 %v2107, %v2102
      %v3338 = vpack.c.b16 %v2108, %v2103
      %v3339 = vpack.c.b16 %v2109, %v2104
      %v3340 = vpack.c.b16 %v2110, %v2105
      %v3341 = vpack.c.b16 %v2116, %v2111
      %v3342 = vpack.c.b16 %v2117, %v2112
      %v3343 = vpack.c.b16 %v2118, %v2113
      %v3344 = vpack.c.b16 %v2119, %v2114
      %v3345 = vpack.c.b16 %v2120, %v2115
      %v3346 = vpack.c.b16 %v2126, %v2121
      %v3347 = vpack.c.b16 %v2127, %v2122
      %v3348 = vpack.c.b16 %v2128, %v2123
      %v3349 = vpack.c.b16 %v2129, %v2124
      %v3350 = vpack.c.b16 %v2130, %v2125
      %v3351 = vpack.c.b16 %v2136, %v2131
      %v3352 = vpack.c.b16 %v2137, %v2132
      %v3353 = vpack.c.b16 %v2138, %v2133
      %v3354 = vpack.c.b16 %v2139, %v2134
      %v3355 = vpack.c.b16 %v2140, %v2135
      %v3356 = vpack.c.b16 %v2146, %v2141
      %v3357 = vpack.c.b16 %v2147, %v2142
      %v3358 = vpack.c.b16 %v2148, %v2143
      %v3359 = vpack.c.b16 %v2149, %v2144
      %v3360 = vpack.c.b16 %v2150, %v2145
      %v3361 = vpack.c.b16 %v2156, %v2151
      %v3362 = vpack.c.b16 %v2157, %v2152
      %v3363 = vpack.c.b16 %v2158, %v2153
      %v3364 = vpack.c.b16 %v2159, %v2154
      %v3365 = vpack.c.b16 %v2160, %v2155
      %v3366 = vpack.c.b16 %v2166, %v2161
      %v3367 = vpack.c.b16 %v2167, %v2162
      %v3368 = vpack.c.b16 %v2168, %v2163
      %v3369 = vpack.c.b16 %v2169, %v2164
      %v3370 = vpack.c.b16 %v2170, %v2165
      %v3371 = vpack.c.b16 %v2176, %v2171
      %v3372 = vpack.c.b16 %v2177, %v2172
      %v3373 = vpack.c.b16 %v2178, %v2173
      %v3374 = vpack.c.b16 %v2179, %v2174
      %v3375 = vpack.c.b16 %v2180, %v2175
      %v3376 = vpack.c.b16 %v2186, %v2181
      %v3377 = vpack.c.b16 %v2187, %v2182
      %v3378 = vpack.c.b16 %v2188, %v2183
      %v3379 = vpack.c.b16 %v2189, %v2184
      %v3380 = vpack.c.b16 %v2190, %v2185
      %v3381 = vpack.c.b16 %v2196, %v2191
      %v3382 = vpack.c.b16 %v2197, %v2192
      %v3383 = vpack.c.b16 %v2198, %v2193
      %v3384 = vpack.c.b16 %v2199, %v2194
      %v3385 = vpack.c.b16 %v2200, %v2195
      %v3386 = vpack.c.b16 %v2206, %v2201
      %v3387 = vpack.c.b16 %v2207, %v2202
      %v3388 = vpack.c.b16 %v2208, %v2203
      %v3389 = vpack.c.b16 %v2209, %v2204
      %v3390 = vpack.c.b16 %v2210, %v2205
      %v3391 = vpack.c.b16 %v2216, %v2211
      %v3392 = vpack.c.b16 %v2217, %v2212
      %v3393 = vpack.c.b16 %v2218, %v2213
      %v3394 = vpack.c.b16 %v2219, %v2214
      %v3395 = vpack.c.b16 %v2220, %v2215
      %v3396 = vpack.c.b16 %v2226, %v2221
      %v3397 = vpack.c.b16 %v2227, %v2222
      %v3398 = vpack.c.b16 %v2228, %v2223
      %v3399 = vpack.c.b16 %v2229, %v2224
      %v3400 = vpack.c.b16 %v2230, %v2225
      %v3401 = vpack.c.b16 %v2236, %v2231
      %v3402 = vpack.c.b16 %v2237, %v2232
      %v3403 = vpack.c.b16 %v2238, %v2233
      %v3404 = vpack.c.b16 %v2239, %v2234
      %v3405 = vpack.c.b16 %v2240, %v2235
      %v3406 = vpack.c.b16 %v2246, %v2241
      %v3407 = vpack.c.b16 %v2247, %v2242
      %v3408 = vpack.c.b16 %v2248, %v2243
      %v3409 = vpack.c.b16 %v2249, %v2244
      %v3410 = vpack.c.b16 %v2250, %v2245
      %v3411 = vpack.c.b16 %v2256, %v2251
      %v3412 = vpack.c.b16 %v2257, %v2252
      %v3413 = vpack.c.b16 %v2258, %v2253
      %v3414 = vpack.c.b16 %v2259, %v2254
      %v3415 = vpack.c.b16 %v2260, %v2255
      %v3416 = vpack.c.b16 %v2266, %v2261
      %v3417 = vpack.c.b16 %v2267, %v2262
      %v3418 = vpack.c.b16 %v2268, %v2263
      %v3419 = vpack.c.b16 %v2269, %v2264
      %v3420 = vpack.c.b16 %v2270, %v2265
      %v3421 = vpack.c.b16 %v2276, %v2271
      %v3422 = vpack.c.b16 %v2277, %v2272
      %v3423 = vpack.c.b16 %v2278, %v2273
      %v3424 = vpack.c.b16 %v2279, %v2274
      %v3425 = vpack.c.b16 %v2280, %v2275
      %v3426 = vpack.c.b16 %v2286, %v2281
      %v3427 = vpack.c.b16 %v2287, %v2282
      %v3428 = vpack.c.b16 %v2288, %v2283
      %v3429 = vpack.c.b16 %v2289, %v2284
      %v3430 = vpack.c.b16 %v2290, %v2285
      %v3431 = vpack.c.b16 %v2296, %v2291
      %v3432 = vpack.c.b16 %v2297, %v2292
      %v3433 = vpack.c.b16 %v2298, %v2293
      %v3434 = vpack.c.b16 %v2299, %v2294
      %v3435 = vpack.c.b16 %v2300, %v2295
      %v3436 = vpack.c.b16 %v2306, %v2301
      %v3437 = vpack.c.b16 %v2307, %v2302
      %v3438 = vpack.c.b16 %v2308, %v2303
      %v3439 = vpack.c.b16 %v2309, %v2304
      %v3440 = vpack.c.b16 %v2310, %v2305
      %v3441 = vpack.c.b16 %v2316, %v2311
      %v3442 = vpack.c.b16 %v2317, %v2312
      %v3443 = vpack.c.b16 %v2318, %v2313
      %v3444 = vpack.c.b16 %v2319, %v2314
      %v3445 = vpack.c.b16 %v2320, %v2315
      %v3446 = vpack.c.b16 %v2326, %v2321
      %v3447 = vpack.c.b16 %v2327, %v2322
      %v3448 = vpack.c.b16 %v2328, %v2323
      %v3449 = vpack.c.b16 %v2329, %v2324
      %v3450 = vpack.c.b16 %v2330, %v2325
      %v3451 = vpack.c.b16 %v2336, %v2331
      %v3452 = vpack.c.b16 %v2337, %v2332
      %v3453 = vpack.c.b16 %v2338, %v2333
      %v3454 = vpack.c.b16 %v2339, %v2334
      %v3455 = vpack.c.b16 %v2340, %v2335
      %v3456 = vpack.c.b16 %v2346, %v2341
      %v3457 = vpack.c.b16 %v2347, %v2342
      %v3458 = vpack.c.b16 %v2348, %v2343
      %v3459 = vpack.c.b16 %v2349, %v2344
      %v3460 = vpack.c.b16 %v2350, %v2345
      %v3461 = vpack.c.b16 %v2356, %v2351
      %v3462 = vpack.c.b16 %v2357, %v2352
      %v3463 = vpack.c.b16 %v2358, %v2353
      %v3464 = vpack.c.b16 %v2359, %v2354
      %v3465 = vpack.c.b16 %v2360, %v2355
      %v3466 = vpack.c.b16 %v2366, %v2361
      %v3467 = vpack.c.b16 %v2367, %v2362
      %v3468 = vpack.c.b16 %v2368, %v2363
      %v3469 = vpack.c.b16 %v2369, %v2364
      %v3470 = vpack.c.b16 %v2370, %v2365
      %v3471 = vpack.c.b16 %v2376, %v2371
      %v3472 = vpack.c.b16 %v2377, %v2372
      %v3473 = vpack.c.b16 %v2378, %v2373
      %v3474 = vpack.c.b16 %v2379, %v2374
      %v3475 = vpack.c.b16 %v2380, %v2375
      %v3476 = vpack.c.b16 %v2386, %v2381
      %v3477 = vpack.c.b16 %v2387, %v2382
      %v3478 = vpack.c.b16 %v2388, %v2383
      %v3479 = vpack.c.b16 %v2389, %v2384
      %v3480 = vpack.c.b16 %v2390, %v2385
      %v3481 = vpack.c.b16 %v2396, %v2391
      %v3482 = vpack.c.b16 %v2397, %v2392
      %v3483 = vpack.c.b16 %v2398, %v2393
      %v3484 = vpack.c.b16 %v2399, %v2394
      %v3485 = vpack.c.b16 %v2400, %v2395
      %v3486 = vpack.c.b16 %v2406, %v2401
      %v3487 = vpack.c.b16 %v2407, %v2402
      %v3488 = vpack.c.b16 %v2408, %v2403
      %v3489 = vpack.c.b16 %v2409, %v2404
      %v3490 = vpack.c.b16 %v2410, %v2405
      %v3491 = vpack.c.b16 %v2416, %v2411
      %v3492 = vpack.c.b16 %v2417, %v2412
      %v3493 = vpack.c.b16 %v2418, %v2413
      %v3494 = vpack.c.b16 %v2419, %v2414
      %v3495 = vpack.c.b16 %v2420, %v2415
      %v3496 = vpack.c.b16 %v2426, %v2421
      %v3497 = vpack.c.b16 %v2427, %v2422
      %v3498 = vpack.c.b16 %v2428, %v2423
      %v3499 = vpack.c.b16 %v2429, %v2424
      %v3500 = vpack.c.b16 %v2430, %v2425
      %v3501 = vpack.c.b16 %v2436, %v2431
      %v3502 = vpack.c.b16 %v2437, %v2432
      %v3503 = vpack.c.b16 %v2438, %v2433
      %v3504 = vpack.c.b16 %v2439, %v2434
      %v3505 = vpack.c.b16 %v2440, %v2435
      %v3506 = vpack.c.b16 %v2446, %v2441
      %v3507 = vpack.c.b16 %v2447, %v2442
      %v3508 = vpack.c.b16 %v2448, %v2443
      %v3509 = vpack.c.b16 %v2449, %v2444
      %v3510 = vpack.c.b16 %v2450, %v2445
      %v3511 = vpack.c.b16 %v2456, %v2451
      %v3512 = vpack.c.b16 %v2457, %v2452
      %v3513 = vpack.c.b16 %v2458, %v2453
      %v3514 = vpack.c.b16 %v2459, %v2454
      %v3515 = vpack.c.b16 %v2460, %v2455
      %v3516 = vpack.c.b16 %v2466, %v2461
      %v3517 = vpack.c.b16 %v2467, %v2462
      %v3518 = vpack.c.b16 %v2468, %v2463
      %v3519 = vpack.c.b16 %v2469, %v2464
      %v3520 = vpack.c.b16 %v2470, %v2465
      %v3521 = vpack.c.b16 %v2476, %v2471
      %v3522 = vpack.c.b16 %v2477, %v2472
      %v3523 = vpack.c.b16 %v2478, %v2473
      %v3524 = vpack.c.b16 %v2479, %v2474
      %v3525 = vpack.c.b16 %v2480, %v2475
      %v3526 = vpack.c.b16 %v2486, %v2481
      %v3527 = vpack.c.b16 %v2487, %v2482
      %v3528 = vpack.c.b16 %v2488, %v2483
      %v3529 = vpack.c.b16 %v2489, %v2484
      %v3530 = vpack.c.b16 %v2490, %v2485
      %v3531 = vpack.c.b16 %v2496, %v2491
      %v3532 = vpack.c.b16 %v2497, %v2492
      %v3533 = vpack.c.b16 %v2498, %v2493
      %v3534 = vpack.c.b16 %v2499, %v2494
      %v3535 = vpack.c.b16 %v2500, %v2495
      %v3536 = vpack.c.b16 %v2506, %v2501
      %v3537 = vpack.c.b16 %v2507, %v2502
      %v3538 = vpack.c.b16 %v2508, %v2503
      %v3539 = vpack.c.b16 %v2509, %v2504
      %v3540 = vpack.c.b16 %v2510, %v2505
      %v3541 = vpack.c.b16 %v2516, %v2511
      %v3542 = vpack.c.b16 %v2517, %v2512
      %v3543 = vpack.c.b16 %v2518, %v2513
      %v3544 = vpack.c.b16 %v2519, %v2514
      %v3545 = vpack.c.b16 %v2520, %v2515
      %v3546 = vpack.c.b16 %v2526, %v2521
      %v3547 = vpack.c.b16 %v2527, %v2522
      %v3548 = vpack.c.b16 %v2528, %v2523
      %v3549 = vpack.c.b16 %v2529, %v2524
      %v3550 = vpack.c.b16 %v2530, %v2525
      %v3551 = vpack.c.b16 %v2536, %v2531
      %v3552 = vpack.c.b16 %v2537, %v2532
      %v3553 = vpack.c.b16 %v2538, %v2533
      %v3554 = vpack.c.b16 %v2539, %v2534
      %v3555 = vpack.c.b16 %v2540, %v2535
      %v3556 = vpack.c.b16 %v2546, %v2541
      %v3557 = vpack.c.b16 %v2547, %v2542
      %v3558 = vpack.c.b16 %v2548, %v2543
      %v3559 = vpack.c.b16 %v2549, %v2544
      %v3560 = vpack.c.b16 %v2550, %v2545
      %v3561 = vpack.c.b16 %v2556, %v2551
      %v3562 = vpack.c.b16 %v2557, %v2552
      %v3563 = vpack.c.b16 %v2558, %v2553
      %v3564 = vpack.c.b16 %v2559, %v2554
      %v3565 = vpack.c.b16 %v2560, %v2555
      %v3566 = vpack.c.b16 %v2566, %v2561
      %v3567 = vpack.c.b16 %v2567, %v2562
      %v3568 = vpack.c.b16 %v2568, %v2563
      %v3569 = vpack.c.b16 %v2569, %v2564
      %v3570 = vpack.c.b16 %v2570, %v2565
      %v3571 = vpack.c.b16 %v2576, %v2571
      %v3572 = vpack.c.b16 %v2577, %v2572
      %v3573 = vpack.c.b16 %v2578, %v2573
      %v3574 = vpack.c.b16 %v2579, %v2574
      %v3575 = vpack.c.b16 %v2580, %v2575
      %v3576 = vpack.c.b16 %v2586, %v2581
      %v3577 = vpack.c.b16 %v2587, %v2582
      %v3578 = vpack.c.b16 %v2588, %v2583
      %v3579 = vpack.c.b16 %v2589, %v2584
      %v3580 = vpack.c.b16 %v2590, %v2585
      %v3581 = vpack.c.b16 %v2596, %v2591
      %v3582 = vpack.c.b16 %v2597, %v2592
      %v3583 = vpack.c.b16 %v2598, %v2593
      %v3584 = vpack.c.b16 %v2599, %v2594
      %v3585 = vpack.c.b16 %v2600, %v2595
      %v3586 = vpack.c.b16 %v2606, %v2601
      %v3587 = vpack.c.b16 %v2607, %v2602
      %v3588 = vpack.c.b16 %v2608, %v2603
      %v3589 = vpack.c.b16 %v2609, %v2604
      %v3590 = vpack.c.b16 %v2610, %v2605
      %v3591 = vpack.c.b16 %v2616, %v2611
      %v3592 = vpack.c.b16 %v2617, %v2612
      %v3593 = vpack.c.b16 %v2618, %v2613
      %v3594 = vpack.c.b16 %v2619, %v2614
      %v3595 = vpack.c.b16 %v2620, %v2615
      %v3596 = vpack.c.b16 %v2626, %v2621
      %v3597 = vpack.c.b16 %v2627, %v2622
      %v3598 = vpack.c.b16 %v2628, %v2623
      %v3599 = vpack.c.b16 %v2629, %v2624
      %v3600 = vpack.c.b16 %v2630, %v2625
      %v3601 = vpack.c.b16 %v2636, %v2631
      %v3602 = vpack.c.b16 %v2637, %v2632
      %v3603 = vpack.c.b16 %v2638, %v2633
      %v3604 = vpack.c.b16 %v2639, %v2634
      %v3605 = vpack.c.b16 %v2640, %v2635
      %v3606 = vpack.c.b16 %v2646, %v2641
      %v3607 = vpack.c.b16 %v2647, %v2642
      %v3608 = vpack.c.b16 %v2648, %v2643
      %v3609 = vpack.c.b16 %v2649, %v2644
      %v3610 = vpack.c.b16 %v2650, %v2645
      %v3611 = vpack.c.b16 %v2656, %v2651
      %v3612 = vpack.c.b16 %v2657, %v2652
      %v3613 = vpack.c.b16 %v2658, %v2653
      %v3614 = vpack.c.b16 %v2659, %v2654
      %v3615 = vpack.c.b16 %v2660, %v2655
      %v3616 = vpack.c.b16 %v2666, %v2661
      %v3617 = vpack.c.b16 %v2667, %v2662
      %v3618 = vpack.c.b16 %v2668, %v2663
      %v3619 = vpack.c.b16 %v2669, %v2664
      %v3620 = vpack.c.b16 %v2670, %v2665
      %v3621 = vpack.c.b16 %v2676, %v2671
      %v3622 = vpack.c.b16 %v2677, %v2672
      %v3623 = vpack.c.b16 %v2678, %v2673
      %v3624 = vpack.c.b16 %v2679, %v2674
      %v3625 = vpack.c.b16 %v2680, %v2675
      %v3626 = vpack.c.b16 %v2686, %v2681
      %v3627 = vpack.c.b16 %v2687, %v2682
      %v3628 = vpack.c.b16 %v2688, %v2683
      %v3629 = vpack.c.b16 %v2689, %v2684
      %v3630 = vpack.c.b16 %v2690, %v2685
      %v3631 = vpack.c.b16 %v2696, %v2691
      %v3632 = vpack.c.b16 %v2697, %v2692
      %v3633 = vpack.c.b16 %v2698, %v2693
      %v3634 = vpack.c.b16 %v2699, %v2694
      %v3635 = vpack.c.b16 %v2700, %v2695
      %v3636 = vpack.c.b16 %v2706, %v2701
      %v3637 = vpack.c.b16 %v2707, %v2702
      %v3638 = vpack.c.b16 %v2708, %v2703
      %v3639 = vpack.c.b16 %v2709, %v2704
      %v3640 = vpack.c.b16 %v2710, %v2705
      %v3641 = vpack.c.b16 %v2716, %v2711
      %v3642 = vpack.c.b16 %v2717, %v2712
      %v3643 = vpack.c.b16 %v2718, %v2713
      %v3644 = vpack.c.b16 %v2719, %v2714
      %v3645 = vpack.c.b16 %v2720, %v2715
      %v3646 = vpack.c.b16 %v2726, %v2721
      %v3647 = vpack.c.b16 %v2727, %v2722
      %v3648 = vpack.c.b16 %v2728, %v2723
      %v3649 = vpack.c.b16 %v2729, %v2724
      %v3650 = vpack.c.b16 %v2730, %v2725
      %v3651 = vpack.c.b16 %v2736, %v2731
      %v3652 = vpack.c.b16 %v2737, %v2732
      %v3653 = vpack.c.b16 %v2738, %v2733
      %v3654 = vpack.c.b16 %v2739, %v2734
      %v3655 = vpack.c.b16 %v2740, %v2735
      %v3656 = vpack.c.b16 %v2746, %v2741
      %v3657 = vpack.c.b16 %v2747, %v2742
      %v3658 = vpack.c.b16 %v2748, %v2743
      %v3659 = vpack.c.b16 %v2749, %v2744
      %v3660 = vpack.c.b16 %v2750, %v2745
      %v3661 = vpack.c.b16 %v2756, %v2751
      %v3662 = vpack.c.b16 %v2757, %v2752
      %v3663 = vpack.c.b16 %v2758, %v2753
      %v3664 = vpack.c.b16 %v2759, %v2754
      %v3665 = vpack.c.b16 %v2760, %v2755
      %v3666 = vpack.c.b16 %v2766, %v2761
      %v3667 = vpack.c.b16 %v2767, %v2762
      %v3668 = vpack.c.b16 %v2768, %v2763
      %v3669 = vpack.c.b16 %v2769, %v2764
      %v3670 = vpack.c.b16 %v2770, %v2765
      %v3671 = vpack.c.b16 %v2776, %v2771
      %v3672 = vpack.c.b16 %v2777, %v2772
      %v3673 = vpack.c.b16 %v2778, %v2773
      %v3674 = vpack.c.b16 %v2779, %v2774
      %v3675 = vpack.c.b16 %v2780, %v2775
      %v3676 = vpack.c.b16 %v2786, %v2781
      %v3677 = vpack.c.b16 %v2787, %v2782
      %v3678 = vpack.c.b16 %v2788, %v2783
      %v3679 = vpack.c.b16 %v2789, %v2784
      %v3680 = vpack.c.b16 %v2790, %v2785
      %v3681 = vpack.c.b16 %v2796, %v2791
      %v3682 = vpack.c.b16 %v2797, %v2792
      %v3683 = vpack.c.b16 %v2798, %v2793
      %v3684 = vpack.c.b16 %v2799, %v2794
      %v3685 = vpack.c.b16 %v2800, %v2795
      %v3686 = vpack.c.b16 %v2806, %v2801
      %v3687 = vpack.c.b16 %v2807, %v2802
      %v3688 = vpack.c.b16 %v2808, %v2803
      %v3689 = vpack.c.b16 %v2809, %v2804
      %v3690 = vpack.c.b16 %v2810, %v2805
      %v3691 = vpack.c.b16 %v2816, %v2811
      %v3692 = vpack.c.b16 %v2817, %v2812
      %v3693 = vpack.c.b16 %v2818, %v2813
      %v3694 = vpack.c.b16 %v2819, %v2814
      %v3695 = vpack.c.b16 %v2820, %v2815
      %v3696 = vpack.c.b16 %v2826, %v2821
      %v3697 = vpack.c.b16 %v2827, %v2822
      %v3698 = vpack.c.b16 %v2828, %v2823
      %v3699 = vpack.c.b16 %v2829, %v2824
      %v3700 = vpack.c.b16 %v2830, %v2825
      %v3701 = vpack.c.b16 %v2836, %v2831
      %v3702 = vpack.c.b16 %v2837, %v2832
      %v3703 = vpack.c.b16 %v2838, %v2833
      %v3704 = vpack.c.b16 %v2839, %v2834
      %v3705 = vpack.c.b16 %v2840, %v2835
      %v3706 = vpack.c.b16 %v2846, %v2841
      %v3707 = vpack.c.b16 %v2847, %v2842
      %v3708 = vpack.c.b16 %v2848, %v2843
      %v3709 = vpack.c.b16 %v2849, %v2844
      %v3710 = vpack.c.b16 %v2850, %v2845
      %v3711 = vpack.c.b16 %v2856, %v2851
      %v3712 = vpack.c.b16 %v2857, %v2852
      %v3713 = vpack.c.b16 %v2858, %v2853
      %v3714 = vpack.c.b16 %v2859, %v2854
      %v3715 = vpack.c.b16 %v2860, %v2855
      %v3716 = vpack.c.b16 %v2866, %v2861
      %v3717 = vpack.c.b16 %v2867, %v2862
      %v3718 = vpack.c.b16 %v2868, %v2863
      %v3719 = vpack.c.b16 %v2869, %v2864
      %v3720 = vpack.c.b16 %v2870, %v2865
      %v3721 = vpack.c.b16 %v2876, %v2871
      %v3722 = vpack.c.b16 %v2877, %v2872
      %v3723 = vpack.c.b16 %v2878, %v2873
      %v3724 = vpack.c.b16 %v2879, %v2874
      %v3725 = vpack.c.b16 %v2880, %v2875
      %v3726 = vpack.c.b16 %v2886, %v2881
      %v3727 = vpack.c.b16 %v2887, %v2882
      %v3728 = vpack.c.b16 %v2888, %v2883
      %v3729 = vpack.c.b16 %v2889, %v2884
      %v3730 = vpack.c.b16 %v2890, %v2885
      %v3731 = vpack.c.b16 %v2896, %v2891
      %v3732 = vpack.c.b16 %v2897, %v2892
      %v3733 = vpack.c.b16 %v2898, %v2893
      %v3734 = vpack.c.b16 %v2899, %v2894
      %v3735 = vpack.c.b16 %v2900, %v2895
      %v3736 = vpack.c.b16 %v2906, %v2901
      %v3737 = vpack.c.b16 %v2907, %v2902
      %v3738 = vpack.c.b16 %v2908, %v2903
      %v3739 = vpack.c.b16 %v2909, %v2904
      %v3740 = vpack.c.b16 %v2910, %v2905
      %v3741 = vpack.c.b16 %v2916, %v2911
      %v3742 = vpack.c.b16 %v2917, %v2912
      %v3743 = vpack.c.b16 %v2918, %v2913
      %v3744 = vpack.c.b16 %v2919, %v2914
      %v3745 = vpack.c.b16 %v2920, %v2915
      %v3746 = vpack.c.b16 %v2926, %v2921
      %v3747 = vpack.c.b16 %v2927, %v2922
      %v3748 = vpack.c.b16 %v2928, %v2923
      %v3749 = vpack.c.b16 %v2929, %v2924
      %v3750 = vpack.c.b16 %v2930, %v2925
      %v3751 = vpack.c.b16 %v2936, %v2931
      %v3752 = vpack.c.b16 %v2937, %v2932
      %v3753 = vpack.c.b16 %v2938, %v2933
      %v3754 = vpack.c.b16 %v2939, %v2934
      %v3755 = vpack.c.b16 %v2940, %v2935
      %v3756 = vpack.c.b16 %v2946, %v2941
      %v3757 = vpack.c.b16 %v2947, %v2942
      %v3758 = vpack.c.b16 %v2948, %v2943
      %v3759 = vpack.c.b16 %v2949, %v2944
      %v3760 = vpack.c.b16 %v2950, %v2945
      %v3761 = vpack.c.b16 %v2956, %v2951
      %v3762 = vpack.c.b16 %v2957, %v2952
      %v3763 = vpack.c.b16 %v2958, %v2953
      %v3764 = vpack.c.b16 %v2959, %v2954
      %v3765 = vpack.c.b16 %v2960, %v2955
      %v3766 = vpack.c.b16 %v2966, %v2961
      %v3767 = vpack.c.b16 %v2967, %v2962
      %v3768 = vpack.c.b16 %v2968, %v2963
      %v3769 = vpack.c.b16 %v2969, %v2964
      %v3770 = vpack.c.b16 %v2970, %v2965
      %v3771 = vpack.c.b16 %v2976, %v2971
      %v3772 = vpack.c.b16 %v2977, %v2972
      %v3773 = vpack.c.b16 %v2978, %v2973
      %v3774 = vpack.c.b16 %v2979, %v2974
      %v3775 = vpack.c.b16 %v2980, %v2975
      %v3776 = vpack.c.b16 %v2986, %v2981
      %v3777 = vpack.c.b16 %v2987, %v2982
      %v3778 = vpack.c.b16 %v2988, %v2983
      %v3779 = vpack.c.b16 %v2989, %v2984
      %v3780 = vpack.c.b16 %v2990, %v2985
      %v3781 = vpack.c.b16 %v2996, %v2991
      %v3782 = vpack.c.b16 %v2997, %v2992
      %v3783 = vpack.c.b16 %v2998, %v2993
      %v3784 = vpack.c.b16 %v2999, %v2994
      %v3785 = vpack.c.b16 %v3000, %v2995
      %v3786 = vpack.c.b16 %v3006, %v3001
      %v3787 = vpack.c.b16 %v3007, %v3002
      %v3788 = vpack.c.b16 %v3008, %v3003
      %v3789 = vpack.c.b16 %v3009, %v3004
      %v3790 = vpack.c.b16 %v3010, %v3005
      %v3791 = vpack.c.b16 %v3016, %v3011
      %v3792 = vpack.c.b16 %v3017, %v3012
      %v3793 = vpack.c.b16 %v3018, %v3013
      %v3794 = vpack.c.b16 %v3019, %v3014
      %v3795 = vpack.c.b16 %v3020, %v3015
      %v3796 = vpack.c.b16 %v3026, %v3021
      %v3797 = vpack.c.b16 %v3027, %v3022
      %v3798 = vpack.c.b16 %v3028, %v3023
      %v3799 = vpack.c.b16 %v3029, %v3024
      %v3800 = vpack.c.b16 %v3030, %v3025
      %v3801 = vpack.c.b16 %v3036, %v3031
      %v3802 = vpack.c.b16 %v3037, %v3032
      %v3803 = vpack.c.b16 %v3038, %v3033
      %v3804 = vpack.c.b16 %v3039, %v3034
      %v3805 = vpack.c.b16 %v3040, %v3035
      %v3806 = vpack.c.b16 %v3046, %v3041
      %v3807 = vpack.c.b16 %v3047, %v3042
      %v3808 = vpack.c.b16 %v3048, %v3043
      %v3809 = vpack.c.b16 %v3049, %v3044
      %v3810 = vpack.c.b16 %v3050, %v3045
      %v3811 = vpack.c.b16 %v3056, %v3051
      %v3812 = vpack.c.b16 %v3057, %v3052
      %v3813 = vpack.c.b16 %v3058, %v3053
      %v3814 = vpack.c.b16 %v3059, %v3054
      %v3815 = vpack.c.b16 %v3060, %v3055
      %v3816 = vpack.c.b16 %v3066, %v3061
      %v3817 = vpack.c.b16 %v3067, %v3062
      %v3818 = vpack.c.b16 %v3068, %v3063
      %v3819 = vpack.c.b16 %v3069, %v3064
      %v3820 = vpack.c.b16 %v3070, %v3065
      %v3821 = vpack.c.b16 %v3076, %v3071
      %v3822 = vpack.c.b16 %v3077, %v3072
      %v3823 = vpack.c.b16 %v3078, %v3073
      %v3824 = vpack.c.b16 %v3079, %v3074
      %v3825 = vpack.c.b16 %v3080, %v3075
      %v3826 = vpack.c.b16 %v3086, %v3081
      %v3827 = vpack.c.b16 %v3087, %v3082
      %v3828 = vpack.c.b16 %v3088, %v3083
      %v3829 = vpack.c.b16 %v3089, %v3084
      %v3830 = vpack.c.b16 %v3090, %v3085
      %v3831 = vpack.c.b16 %v3096, %v3091
      %v3832 = vpack.c.b16 %v3097, %v3092
      %v3833 = vpack.c.b16 %v3098, %v3093
      %v3834 = vpack.c.b16 %v3099, %v3094
      %v3835 = vpack.c.b16 %v3100, %v3095
      %v3836 = vpack.c.b16 %v3106, %v3101
      %v3837 = vpack.c.b16 %v3107, %v3102
      %v3838 = vpack.c.b16 %v3108, %v3103
      %v3839 = vpack.c.b16 %v3109, %v3104
      %v3840 = vpack.c.b16 %v3110, %v3105
      %v3841 = vpack.c.b16 %v3116, %v3111
      %v3842 = vpack.c.b16 %v3117, %v3112
      %v3843 = vpack.c.b16 %v3118, %v3113
      %v3844 = vpack.c.b16 %v3119, %v3114
      %v3845 = vpack.c.b16 %v3120, %v3115
      %v3846 = vpack.c.b16 %v3126, %v3121
      %v3847 = vpack.c.b16 %v3127, %v3122
      %v3848 = vpack.c.b16 %v3128, %v3123
      %v3849 = vpack.c.b16 %v3129, %v3124
      %v3850 = vpack.c.b16 %v3130, %v3125
      %v3851 = vpack.c.b16 %v3136, %v3131
      %v3852 = vpack.c.b16 %v3137, %v3132
      %v3853 = vpack.c.b16 %v3138, %v3133
      %v3854 = vpack.c.b16 %v3139, %v3134
      %v3855 = vpack.c.b16 %v3140, %v3135
      %v3856 = vpack.c.b16 %v3146, %v3141
      %v3857 = vpack.c.b16 %v3147, %v3142
      %v3858 = vpack.c.b16 %v3148, %v3143
      %v3859 = vpack.c.b16 %v3149, %v3144
      %v3860 = vpack.c.b16 %v3150, %v3145
      %v3861 = vpack.c.b16 %v3156, %v3151
      %v3862 = vpack.c.b16 %v3157, %v3152
      %v3863 = vpack.c.b16 %v3158, %v3153
      %v3864 = vpack.c.b16 %v3159, %v3154
      %v3865 = vpack.c.b16 %v3160, %v3155
      %v3866 = vpack.c.b16 %v3166, %v3161
      %v3867 = vpack.c.b16 %v3167, %v3162
      %v3868 = vpack.c.b16 %v3168, %v3163
      %v3869 = vpack.c.b16 %v3169, %v3164
      %v3870 = vpack.c.b16 %v3170, %v3165
      %v3871 = vpack.c.b16 %v3176, %v3171
      %v3872 = vpack.c.b16 %v3177, %v3172
      %v3873 = vpack.c.b16 %v3178, %v3173
      %v3874 = vpack.c.b16 %v3179, %v3174
      %v3875 = vpack.c.b16 %v3180, %v3175
      %v3876 = vpack.c.b16 %v3186, %v3181
      %v3877 = vpack.c.b16 %v3187, %v3182
      %v3878 = vpack.c.b16 %v3188, %v3183
      %v3879 = vpack.c.b16 %v3189, %v3184
      %v3880 = vpack.c.b16 %v3190, %v3185
      %v3881 = vpack.c.b16 %v3196, %v3191
      %v3882 = vpack.c.b16 %v3197, %v3192
      %v3883 = vpack.c.b16 %v3198, %v3193
      %v3884 = vpack.c.b16 %v3199, %v3194
      %v3885 = vpack.c.b16 %v3200, %v3195
      %v3886 = vpack.c.b16 %v3206, %v3201
      %v3887 = vpack.c.b16 %v3207, %v3202
      %v3888 = vpack.c.b16 %v3208, %v3203
      %v3889 = vpack.c.b16 %v3209, %v3204
      %v3890 = vpack.c.b16 %v3210, %v3205
      %v3891 = vpack.c.b16 %v3216, %v3211
      %v3892 = vpack.c.b16 %v3217, %v3212
      %v3893 = vpack.c.b16 %v3218, %v3213
      %v3894 = vpack.c.b16 %v3219, %v3214
      %v3895 = vpack.c.b16 %v3220, %v3215
      %v3896 = vpack.c.b16 %v3226, %v3221
      %v3897 = vpack.c.b16 %v3227, %v3222
      %v3898 = vpack.c.b16 %v3228, %v3223
      %v3899 = vpack.c.b16 %v3229, %v3224
      %v3900 = vpack.c.b16 %v3230, %v3225
      %v3901 = vpack.c.b16 %v3236, %v3231
      %v3902 = vpack.c.b16 %v3237, %v3232
      %v3903 = vpack.c.b16 %v3238, %v3233
      %v3904 = vpack.c.b16 %v3239, %v3234
      %v3905 = vpack.c.b16 %v3240, %v3235
      %v3906 = vpack.c.b16 %v3246, %v3241
      %v3907 = vpack.c.b16 %v3247, %v3242
      %v3908 = vpack.c.b16 %v3248, %v3243
      %v3909 = vpack.c.b16 %v3249, %v3244
      %v3910 = vpack.c.b16 %v3250, %v3245
      %v3911 = vpack.c.b16 %v3256, %v3251
      %v3912 = vpack.c.b16 %v3257, %v3252
      %v3913 = vpack.c.b16 %v3258, %v3253
      %v3914 = vpack.c.b16 %v3259, %v3254
      %v3915 = vpack.c.b16 %v3260, %v3255
      %v3916 = vpack.c.b16 %v3266, %v3261
      %v3917 = vpack.c.b16 %v3267, %v3262
      %v3918 = vpack.c.b16 %v3268, %v3263
      %v3919 = vpack.c.b16 %v3269, %v3264
      %v3920 = vpack.c.b16 %v3270, %v3265
      %v3921 = vpack.c.b16 %v3276, %v3271
      %v3922 = vpack.c.b16 %v3277, %v3272
      %v3923 = vpack.c.b16 %v3278, %v3273
      %v3924 = vpack.c.b16 %v3279, %v3274
      %v3925 = vpack.c.b16 %v3280, %v3275
      %v3926 = vpack.c.b16 %v3286, %v3281
      %v3927 = vpack.c.b16 %v3287, %v3282
      %v3928 = vpack.c.b16 %v3288, %v3283
      %v3929 = vpack.c.b16 %v3289, %v3284
      %v3930 = vpack.c.b16 %v3290, %v3285
      %v3931 = vpack.c.b16 %v3296, %v3291
      %v3932 = vpack.c.b16 %v3297, %v3292
      %v3933 = vpack.c.b16 %v3298, %v3293
      %v3934 = vpack.c.b16 %v3299, %v3294
      %v3935 = vpack.c.b16 %v3300, %v3295
      %v3936 = vpack.c.b16 %v3306, %v3301
      %v3937 = vpack.c.b16 %v3307, %v3302
      %v3938 = vpack.c.b16 %v3308, %v3303
      %v3939 = vpack.c.b16 %v3309, %v3304
      %v3940 = vpack.c.b16 %v3310, %v3305
      %vm4571 = vcmask 785408
      %v4573 = vsel %vm4571, %v1217, 0
      %v4576 = vsel %vm4571, %v1233, 0
      %v4579 = vsel %vm4571, %v1249, 0
      %4581 = vmatpush.bf16.msra.mxu0 %v3346
      %4582 = vmatpush.bf16.msra.mxu0 %v3341
      %4583 = vmatpush.bf16.msra.mxu0 %v3336
      %4584 = vmatpush.bf16.msra.mxu0 %v3331
      %4585 = vmatpush.bf16.msra.mxu0 %v3326
      %4586 = vmatpush.bf16.msra.mxu0 %v3321
      %4587 = vmatpush.bf16.msra.mxu0 %v3316
      %4588 = vmatpush.bf16.msra.mxu0 %v3311
      %4589 = vmatmul.bf16.gmra.mxu0 %v1202
      %v4590 = vpop.f32.mrf.mxu0
      %v4591 = vadd.f32 0.0, %v4590
      %v4592 = vpop.f32.mrf.mxu0
      %v4593 = vadd.f32 0.0, %v4592
      %4594 = vmatmul.bf16.gmra.mxu0 %v1218
      %v4595 = vpop.f32.mrf.mxu0
      %v4596 = vadd.f32 0.0, %v4595
      %v4597 = vpop.f32.mrf.mxu0
      %v4598 = vadd.f32 0.0, %v4597
      %4599 = vmatmul.bf16.gmra.mxu0 %v1234
      %v4600 = vpop.f32.mrf.mxu0
      %v4601 = vadd.f32 0.0, %v4600
      %v4602 = vpop.f32.mrf.mxu0
      %v4603 = vadd.f32 0.0, %v4602
      %4604 = vdwg.mxu0
      %4605 = vmatpush.bf16.msra.mxu0 %v3386
      %4606 = vmatpush.bf16.msra.mxu0 %v3381
      %4607 = vmatpush.bf16.msra.mxu0 %v3376
      %4608 = vmatpush.bf16.msra.mxu0 %v3371
      %4609 = vmatpush.bf16.msra.mxu0 %v3366
      %4610 = vmatpush.bf16.msra.mxu0 %v3361
      %4611 = vmatpush.bf16.msra.mxu0 %v3356
      %4612 = vmatpush.bf16.msra.mxu0 %v3351
      %4613 = vmatmul.bf16.gmra.mxu0 %v1203
      %v4614 = vpop.f32.mrf.mxu0
      %v4615 = vadd.f32 %v4591, %v4614
      %v4616 = vpop.f32.mrf.mxu0
      %v4617 = vadd.f32 %v4593, %v4616
      %4618 = vmatmul.bf16.gmra.mxu0 %v1219
      %v4619 = vpop.f32.mrf.mxu0
      %v4620 = vadd.f32 %v4596, %v4619
      %v4621 = vpop.f32.mrf.mxu0
      %v4622 = vadd.f32 %v4598, %v4621
      %4623 = vmatmul.bf16.gmra.mxu0 %v1235
      %v4624 = vpop.f32.mrf.mxu0
      %v4625 = vadd.f32 %v4601, %v4624
      %v4626 = vpop.f32.mrf.mxu0
      %v4627 = vadd.f32 %v4603, %v4626
      %4628 = vdwg.mxu0
      %4629 = vmatpush.bf16.msra.mxu0 %v3426
      %4630 = vmatpush.bf16.msra.mxu0 %v3421
      %4631 = vmatpush.bf16.msra.mxu0 %v3416
      %4632 = vmatpush.bf16.msra.mxu0 %v3411
      %4633 = vmatpush.bf16.msra.mxu0 %v3406
      %4634 = vmatpush.bf16.msra.mxu0 %v3401
      %4635 = vmatpush.bf16.msra.mxu0 %v3396
      %4636 = vmatpush.bf16.msra.mxu0 %v3391
      %4637 = vmatmul.bf16.gmra.mxu0 %v1204
      %v4638 = vpop.f32.mrf.mxu0
      %v4639 = vadd.f32 %v4615, %v4638
      %v4640 = vpop.f32.mrf.mxu0
      %v4641 = vadd.f32 %v4617, %v4640
      %4642 = vmatmul.bf16.gmra.mxu0 %v1220
      %v4643 = vpop.f32.mrf.mxu0
      %v4644 = vadd.f32 %v4620, %v4643
      %v4645 = vpop.f32.mrf.mxu0
      %v4646 = vadd.f32 %v4622, %v4645
      %4647 = vmatmul.bf16.gmra.mxu0 %v1236
      %v4648 = vpop.f32.mrf.mxu0
      %v4649 = vadd.f32 %v4625, %v4648
      %v4650 = vpop.f32.mrf.mxu0
      %v4651 = vadd.f32 %v4627, %v4650
      %4652 = vdwg.mxu0
      %4653 = vmatpush.bf16.msra.mxu0 %v3466
      %4654 = vmatpush.bf16.msra.mxu0 %v3461
      %4655 = vmatpush.bf16.msra.mxu0 %v3456
      %4656 = vmatpush.bf16.msra.mxu0 %v3451
      %4657 = vmatpush.bf16.msra.mxu0 %v3446
      %4658 = vmatpush.bf16.msra.mxu0 %v3441
      %4659 = vmatpush.bf16.msra.mxu0 %v3436
      %4660 = vmatpush.bf16.msra.mxu0 %v3431
      %4661 = vmatmul.bf16.gmra.mxu0 %v1205
      %v4662 = vpop.f32.mrf.mxu0
      %v4663 = vadd.f32 %v4639, %v4662
      %v4664 = vpop.f32.mrf.mxu0
      %v4665 = vadd.f32 %v4641, %v4664
      %4666 = vmatmul.bf16.gmra.mxu0 %v1221
      %v4667 = vpop.f32.mrf.mxu0
      %v4668 = vadd.f32 %v4644, %v4667
      %v4669 = vpop.f32.mrf.mxu0
      %v4670 = vadd.f32 %v4646, %v4669
      %4671 = vmatmul.bf16.gmra.mxu0 %v1237
      %v4672 = vpop.f32.mrf.mxu0
      %v4673 = vadd.f32 %v4649, %v4672
      %v4674 = vpop.f32.mrf.mxu0
      %v4675 = vadd.f32 %v4651, %v4674
      %4676 = vdwg.mxu0
      %4677 = vmatpush.bf16.msra.mxu0 %v3506
      %4678 = vmatpush.bf16.msra.mxu0 %v3501
      %4679 = vmatpush.bf16.msra.mxu0 %v3496
      %4680 = vmatpush.bf16.msra.mxu0 %v3491
      %4681 = vmatpush.bf16.msra.mxu0 %v3486
      %4682 = vmatpush.bf16.msra.mxu0 %v3481
      %4683 = vmatpush.bf16.msra.mxu0 %v3476
      %4684 = vmatpush.bf16.msra.mxu0 %v3471
      %4685 = vmatmul.bf16.gmra.mxu0 %v1206
      %v4686 = vpop.f32.mrf.mxu0
      %v4687 = vadd.f32 %v4663, %v4686
      %v4688 = vpop.f32.mrf.mxu0
      %v4689 = vadd.f32 %v4665, %v4688
      %4690 = vmatmul.bf16.gmra.mxu0 %v1222
      %v4691 = vpop.f32.mrf.mxu0
      %v4692 = vadd.f32 %v4668, %v4691
      %v4693 = vpop.f32.mrf.mxu0
      %v4694 = vadd.f32 %v4670, %v4693
      %4695 = vmatmul.bf16.gmra.mxu0 %v1238
      %v4696 = vpop.f32.mrf.mxu0
      %v4697 = vadd.f32 %v4673, %v4696
      %v4698 = vpop.f32.mrf.mxu0
      %v4699 = vadd.f32 %v4675, %v4698
      %4700 = vdwg.mxu0
      %4701 = vmatpush.bf16.msra.mxu0 %v3546
      %4702 = vmatpush.bf16.msra.mxu0 %v3541
      %4703 = vmatpush.bf16.msra.mxu0 %v3536
      %4704 = vmatpush.bf16.msra.mxu0 %v3531
      %4705 = vmatpush.bf16.msra.mxu0 %v3526
      %4706 = vmatpush.bf16.msra.mxu0 %v3521
      %4707 = vmatpush.bf16.msra.mxu0 %v3516
      %4708 = vmatpush.bf16.msra.mxu0 %v3511
      %4709 = vmatmul.bf16.gmra.mxu0 %v1207
      %v4710 = vpop.f32.mrf.mxu0
      %v4711 = vadd.f32 %v4687, %v4710
      %v4712 = vpop.f32.mrf.mxu0
      %v4713 = vadd.f32 %v4689, %v4712
      %4714 = vmatmul.bf16.gmra.mxu0 %v1223
      %v4715 = vpop.f32.mrf.mxu0
      %v4716 = vadd.f32 %v4692, %v4715
      %v4717 = vpop.f32.mrf.mxu0
      %v4718 = vadd.f32 %v4694, %v4717
      %4719 = vmatmul.bf16.gmra.mxu0 %v1239
      %v4720 = vpop.f32.mrf.mxu0
      %v4721 = vadd.f32 %v4697, %v4720
      %v4722 = vpop.f32.mrf.mxu0
      %v4723 = vadd.f32 %v4699, %v4722
      %4724 = vdwg.mxu0
      %4725 = vmatpush.bf16.msra.mxu0 %v3586
      %4726 = vmatpush.bf16.msra.mxu0 %v3581
      %4727 = vmatpush.bf16.msra.mxu0 %v3576
      %4728 = vmatpush.bf16.msra.mxu0 %v3571
      %4729 = vmatpush.bf16.msra.mxu0 %v3566
      %4730 = vmatpush.bf16.msra.mxu0 %v3561
      %4731 = vmatpush.bf16.msra.mxu0 %v3556
      %4732 = vmatpush.bf16.msra.mxu0 %v3551
      %4733 = vmatmul.bf16.gmra.mxu0 %v1208
      %v4734 = vpop.f32.mrf.mxu0
      %v4735 = vadd.f32 %v4711, %v4734
      %v4736 = vpop.f32.mrf.mxu0
      %v4737 = vadd.f32 %v4713, %v4736
      %4738 = vmatmul.bf16.gmra.mxu0 %v1224
      %v4739 = vpop.f32.mrf.mxu0
      %v4740 = vadd.f32 %v4716, %v4739
      %v4741 = vpop.f32.mrf.mxu0
      %v4742 = vadd.f32 %v4718, %v4741
      %4743 = vmatmul.bf16.gmra.mxu0 %v1240
      %v4744 = vpop.f32.mrf.mxu0
      %v4745 = vadd.f32 %v4721, %v4744
      %v4746 = vpop.f32.mrf.mxu0
      %v4747 = vadd.f32 %v4723, %v4746
      %4748 = vdwg.mxu0
      %4749 = vmatpush.bf16.msra.mxu0 %v3626
      %4750 = vmatpush.bf16.msra.mxu0 %v3621
      %4751 = vmatpush.bf16.msra.mxu0 %v3616
      %4752 = vmatpush.bf16.msra.mxu0 %v3611
      %4753 = vmatpush.bf16.msra.mxu0 %v3606
      %4754 = vmatpush.bf16.msra.mxu0 %v3601
      %4755 = vmatpush.bf16.msra.mxu0 %v3596
      %4756 = vmatpush.bf16.msra.mxu0 %v3591
      %4757 = vmatmul.bf16.gmra.mxu0 %v1209
      %v4758 = vpop.f32.mrf.mxu0
      %v4759 = vadd.f32 %v4735, %v4758
      %v4760 = vpop.f32.mrf.mxu0
      %v4761 = vadd.f32 %v4737, %v4760
      %4762 = vmatmul.bf16.gmra.mxu0 %v1225
      %v4763 = vpop.f32.mrf.mxu0
      %v4764 = vadd.f32 %v4740, %v4763
      %v4765 = vpop.f32.mrf.mxu0
      %v4766 = vadd.f32 %v4742, %v4765
      %4767 = vmatmul.bf16.gmra.mxu0 %v1241
      %v4768 = vpop.f32.mrf.mxu0
      %v4769 = vadd.f32 %v4745, %v4768
      %v4770 = vpop.f32.mrf.mxu0
      %v4771 = vadd.f32 %v4747, %v4770
      %4772 = vdwg.mxu0
      %4773 = vmatpush.bf16.msra.mxu0 %v3666
      %4774 = vmatpush.bf16.msra.mxu0 %v3661
      %4775 = vmatpush.bf16.msra.mxu0 %v3656
      %4776 = vmatpush.bf16.msra.mxu0 %v3651
      %4777 = vmatpush.bf16.msra.mxu0 %v3646
      %4778 = vmatpush.bf16.msra.mxu0 %v3641
      %4779 = vmatpush.bf16.msra.mxu0 %v3636
      %4780 = vmatpush.bf16.msra.mxu0 %v3631
      %4781 = vmatmul.bf16.gmra.mxu0 %v1210
      %v4782 = vpop.f32.mrf.mxu0
      %v4783 = vadd.f32 %v4759, %v4782
      %v4784 = vpop.f32.mrf.mxu0
      %v4785 = vadd.f32 %v4761, %v4784
      %4786 = vmatmul.bf16.gmra.mxu0 %v1226
      %v4787 = vpop.f32.mrf.mxu0
      %v4788 = vadd.f32 %v4764, %v4787
      %v4789 = vpop.f32.mrf.mxu0
      %v4790 = vadd.f32 %v4766, %v4789
      %4791 = vmatmul.bf16.gmra.mxu0 %v1242
      %v4792 = vpop.f32.mrf.mxu0
      %v4793 = vadd.f32 %v4769, %v4792
      %v4794 = vpop.f32.mrf.mxu0
      %v4795 = vadd.f32 %v4771, %v4794
      %4796 = vdwg.mxu0
      %4797 = vmatpush.bf16.msra.mxu0 %v3706
      %4798 = vmatpush.bf16.msra.mxu0 %v3701
      %4799 = vmatpush.bf16.msra.mxu0 %v3696
      %4800 = vmatpush.bf16.msra.mxu0 %v3691
      %4801 = vmatpush.bf16.msra.mxu0 %v3686
      %4802 = vmatpush.bf16.msra.mxu0 %v3681
      %4803 = vmatpush.bf16.msra.mxu0 %v3676
      %4804 = vmatpush.bf16.msra.mxu0 %v3671
      %4805 = vmatmul.bf16.gmra.mxu0 %v1211
      %v4806 = vpop.f32.mrf.mxu0
      %v4807 = vadd.f32 %v4783, %v4806
      %v4808 = vpop.f32.mrf.mxu0
      %v4809 = vadd.f32 %v4785, %v4808
      %4810 = vmatmul.bf16.gmra.mxu0 %v1227
      %v4811 = vpop.f32.mrf.mxu0
      %v4812 = vadd.f32 %v4788, %v4811
      %v4813 = vpop.f32.mrf.mxu0
      %v4814 = vadd.f32 %v4790, %v4813
      %4815 = vmatmul.bf16.gmra.mxu0 %v1243
      %v4816 = vpop.f32.mrf.mxu0
      %v4817 = vadd.f32 %v4793, %v4816
      %v4818 = vpop.f32.mrf.mxu0
      %v4819 = vadd.f32 %v4795, %v4818
      %4820 = vdwg.mxu0
      %4821 = vmatpush.bf16.msra.mxu0 %v3746
      %4822 = vmatpush.bf16.msra.mxu0 %v3741
      %4823 = vmatpush.bf16.msra.mxu0 %v3736
      %4824 = vmatpush.bf16.msra.mxu0 %v3731
      %4825 = vmatpush.bf16.msra.mxu0 %v3726
      %4826 = vmatpush.bf16.msra.mxu0 %v3721
      %4827 = vmatpush.bf16.msra.mxu0 %v3716
      %4828 = vmatpush.bf16.msra.mxu0 %v3711
      %4829 = vmatmul.bf16.gmra.mxu0 %v1212
      %v4830 = vpop.f32.mrf.mxu0
      %v4831 = vadd.f32 %v4807, %v4830
      %v4832 = vpop.f32.mrf.mxu0
      %v4833 = vadd.f32 %v4809, %v4832
      %4834 = vmatmul.bf16.gmra.mxu0 %v1228
      %v4835 = vpop.f32.mrf.mxu0
      %v4836 = vadd.f32 %v4812, %v4835
      %v4837 = vpop.f32.mrf.mxu0
      %v4838 = vadd.f32 %v4814, %v4837
      %4839 = vmatmul.bf16.gmra.mxu0 %v1244
      %v4840 = vpop.f32.mrf.mxu0
      %v4841 = vadd.f32 %v4817, %v4840
      %v4842 = vpop.f32.mrf.mxu0
      %v4843 = vadd.f32 %v4819, %v4842
      %4844 = vdwg.mxu0
      %4845 = vmatpush.bf16.msra.mxu0 %v3786
      %4846 = vmatpush.bf16.msra.mxu0 %v3781
      %4847 = vmatpush.bf16.msra.mxu0 %v3776
      %4848 = vmatpush.bf16.msra.mxu0 %v3771
      %4849 = vmatpush.bf16.msra.mxu0 %v3766
      %4850 = vmatpush.bf16.msra.mxu0 %v3761
      %4851 = vmatpush.bf16.msra.mxu0 %v3756
      %4852 = vmatpush.bf16.msra.mxu0 %v3751
      %4853 = vmatmul.bf16.gmra.mxu0 %v1213
      %v4854 = vpop.f32.mrf.mxu0
      %v4855 = vadd.f32 %v4831, %v4854
      %v4856 = vpop.f32.mrf.mxu0
      %v4857 = vadd.f32 %v4833, %v4856
      %4858 = vmatmul.bf16.gmra.mxu0 %v1229
      %v4859 = vpop.f32.mrf.mxu0
      %v4860 = vadd.f32 %v4836, %v4859
      %v4861 = vpop.f32.mrf.mxu0
      %v4862 = vadd.f32 %v4838, %v4861
      %4863 = vmatmul.bf16.gmra.mxu0 %v1245
      %v4864 = vpop.f32.mrf.mxu0
      %v4865 = vadd.f32 %v4841, %v4864
      %v4866 = vpop.f32.mrf.mxu0
      %v4867 = vadd.f32 %v4843, %v4866
      %4868 = vdwg.mxu0
      %4869 = vmatpush.bf16.msra.mxu0 %v3826
      %4870 = vmatpush.bf16.msra.mxu0 %v3821
      %4871 = vmatpush.bf16.msra.mxu0 %v3816
      %4872 = vmatpush.bf16.msra.mxu0 %v3811
      %4873 = vmatpush.bf16.msra.mxu0 %v3806
      %4874 = vmatpush.bf16.msra.mxu0 %v3801
      %4875 = vmatpush.bf16.msra.mxu0 %v3796
      %4876 = vmatpush.bf16.msra.mxu0 %v3791
      %4877 = vmatmul.bf16.gmra.mxu0 %v1214
      %v4878 = vpop.f32.mrf.mxu0
      %v4879 = vadd.f32 %v4855, %v4878
      %v4880 = vpop.f32.mrf.mxu0
      %v4881 = vadd.f32 %v4857, %v4880
      %4882 = vmatmul.bf16.gmra.mxu0 %v1230
      %v4883 = vpop.f32.mrf.mxu0
      %v4884 = vadd.f32 %v4860, %v4883
      %v4885 = vpop.f32.mrf.mxu0
      %v4886 = vadd.f32 %v4862, %v4885
      %4887 = vmatmul.bf16.gmra.mxu0 %v1246
      %v4888 = vpop.f32.mrf.mxu0
      %v4889 = vadd.f32 %v4865, %v4888
      %v4890 = vpop.f32.mrf.mxu0
      %v4891 = vadd.f32 %v4867, %v4890
      %4892 = vdwg.mxu0
      %4893 = vmatpush.bf16.msra.mxu0 %v3866
      %4894 = vmatpush.bf16.msra.mxu0 %v3861
      %4895 = vmatpush.bf16.msra.mxu0 %v3856
      %4896 = vmatpush.bf16.msra.mxu0 %v3851
      %4897 = vmatpush.bf16.msra.mxu0 %v3846
      %4898 = vmatpush.bf16.msra.mxu0 %v3841
      %4899 = vmatpush.bf16.msra.mxu0 %v3836
      %4900 = vmatpush.bf16.msra.mxu0 %v3831
      %4901 = vmatmul.bf16.gmra.mxu0 %v1215
      %v4902 = vpop.f32.mrf.mxu0
      %v4903 = vadd.f32 %v4879, %v4902
      %v4904 = vpop.f32.mrf.mxu0
      %v4905 = vadd.f32 %v4881, %v4904
      %4906 = vmatmul.bf16.gmra.mxu0 %v1231
      %v4907 = vpop.f32.mrf.mxu0
      %v4908 = vadd.f32 %v4884, %v4907
      %v4909 = vpop.f32.mrf.mxu0
      %v4910 = vadd.f32 %v4886, %v4909
      %4911 = vmatmul.bf16.gmra.mxu0 %v1247
      %v4912 = vpop.f32.mrf.mxu0
      %v4913 = vadd.f32 %v4889, %v4912
      %v4914 = vpop.f32.mrf.mxu0
      %v4915 = vadd.f32 %v4891, %v4914
      %4916 = vdwg.mxu0
      %4917 = vmatpush.bf16.msra.mxu0 %v3906
      %4918 = vmatpush.bf16.msra.mxu0 %v3901
      %4919 = vmatpush.bf16.msra.mxu0 %v3896
      %4920 = vmatpush.bf16.msra.mxu0 %v3891
      %4921 = vmatpush.bf16.msra.mxu0 %v3886
      %4922 = vmatpush.bf16.msra.mxu0 %v3881
      %4923 = vmatpush.bf16.msra.mxu0 %v3876
      %4924 = vmatpush.bf16.msra.mxu0 %v3871
      %4925 = vmatmul.bf16.gmra.mxu0 %v1216
      %v4926 = vpop.f32.mrf.mxu0
      %v4927 = vadd.f32 %v4903, %v4926
      %v4928 = vpop.f32.mrf.mxu0
      %v4929 = vadd.f32 %v4905, %v4928
      %4930 = vmatmul.bf16.gmra.mxu0 %v1232
      %v4931 = vpop.f32.mrf.mxu0
      %v4932 = vadd.f32 %v4908, %v4931
      %v4933 = vpop.f32.mrf.mxu0
      %v4934 = vadd.f32 %v4910, %v4933
      %4935 = vmatmul.bf16.gmra.mxu0 %v1248
      %v4936 = vpop.f32.mrf.mxu0
      %v4937 = vadd.f32 %v4913, %v4936
      %v4938 = vpop.f32.mrf.mxu0
      %v4939 = vadd.f32 %v4915, %v4938
      %4940 = vdwg.mxu0
      %4941 = vmatpush.bf16.msra.mxu0 0
      %4942 = vmatpush.bf16.msra.mxu0 0
      %4943 = vmatpush.bf16.msra.mxu0 %v3936
      %4944 = vmatpush.bf16.msra.mxu0 %v3931
      %4945 = vmatpush.bf16.msra.mxu0 %v3926
      %4946 = vmatpush.bf16.msra.mxu0 %v3921
      %4947 = vmatpush.bf16.msra.mxu0 %v3916
      %4948 = vmatpush.bf16.msra.mxu0 %v3911
      %4949 = vmatmul.bf16.gmra.mxu0 %v4573
      %v4950 = vpop.f32.mrf.mxu0
      %v4951 = vadd.f32 %v4927, %v4950
      %v4952 = vpop.f32.mrf.mxu0
      %v4953 = vadd.f32 %v4929, %v4952
      %4954 = vmatmul.bf16.gmra.mxu0 %v4576
      %v4955 = vpop.f32.mrf.mxu0
      %v4956 = vadd.f32 %v4932, %v4955
      %v4957 = vpop.f32.mrf.mxu0
      %v4958 = vadd.f32 %v4934, %v4957
      %4959 = vmatmul.bf16.gmra.mxu0 %v4579
      %v4960 = vpop.f32.mrf.mxu0
      %v4961 = vadd.f32 %v4937, %v4960
      %v4962 = vpop.f32.mrf.mxu0
      %v4963 = vadd.f32 %v4939, %v4962
      %4964 = vdwg.mxu0
      %4965 = vmatpush.bf16.msra.mxu0 %v3347
      %4966 = vmatpush.bf16.msra.mxu0 %v3342
      %4967 = vmatpush.bf16.msra.mxu0 %v3337
      %4968 = vmatpush.bf16.msra.mxu0 %v3332
      %4969 = vmatpush.bf16.msra.mxu0 %v3327
      %4970 = vmatpush.bf16.msra.mxu0 %v3322
      %4971 = vmatpush.bf16.msra.mxu0 %v3317
      %4972 = vmatpush.bf16.msra.mxu0 %v3312
      %4973 = vmatmul.bf16.gmra.mxu0 %v1202
      %v4974 = vpop.f32.mrf.mxu0
      %v4975 = vadd.f32 0.0, %v4974
      %v4976 = vpop.f32.mrf.mxu0
      %v4977 = vadd.f32 0.0, %v4976
      %4978 = vmatmul.bf16.gmra.mxu0 %v1218
      %v4979 = vpop.f32.mrf.mxu0
      %v4980 = vadd.f32 0.0, %v4979
      %v4981 = vpop.f32.mrf.mxu0
      %v4982 = vadd.f32 0.0, %v4981
      %4983 = vmatmul.bf16.gmra.mxu0 %v1234
      %v4984 = vpop.f32.mrf.mxu0
      %v4985 = vadd.f32 0.0, %v4984
      %v4986 = vpop.f32.mrf.mxu0
      %v4987 = vadd.f32 0.0, %v4986
      %4988 = vdwg.mxu0
      %4989 = vmatpush.bf16.msra.mxu0 %v3387
      %4990 = vmatpush.bf16.msra.mxu0 %v3382
      %4991 = vmatpush.bf16.msra.mxu0 %v3377
      %4992 = vmatpush.bf16.msra.mxu0 %v3372
      %4993 = vmatpush.bf16.msra.mxu0 %v3367
      %4994 = vmatpush.bf16.msra.mxu0 %v3362
      %4995 = vmatpush.bf16.msra.mxu0 %v3357
      %4996 = vmatpush.bf16.msra.mxu0 %v3352
      %4997 = vmatmul.bf16.gmra.mxu0 %v1203
      %v4998 = vpop.f32.mrf.mxu0
      %v4999 = vadd.f32 %v4975, %v4998
      %v5000 = vpop.f32.mrf.mxu0
      %v5001 = vadd.f32 %v4977, %v5000
      %5002 = vmatmul.bf16.gmra.mxu0 %v1219
      %v5003 = vpop.f32.mrf.mxu0
      %v5004 = vadd.f32 %v4980, %v5003
      %v5005 = vpop.f32.mrf.mxu0
      %v5006 = vadd.f32 %v4982, %v5005
      %5007 = vmatmul.bf16.gmra.mxu0 %v1235
      %v5008 = vpop.f32.mrf.mxu0
      %v5009 = vadd.f32 %v4985, %v5008
      %v5010 = vpop.f32.mrf.mxu0
      %v5011 = vadd.f32 %v4987, %v5010
      %5012 = vdwg.mxu0
      %5013 = vmatpush.bf16.msra.mxu0 %v3427
      %5014 = vmatpush.bf16.msra.mxu0 %v3422
      %5015 = vmatpush.bf16.msra.mxu0 %v3417
      %5016 = vmatpush.bf16.msra.mxu0 %v3412
      %5017 = vmatpush.bf16.msra.mxu0 %v3407
      %5018 = vmatpush.bf16.msra.mxu0 %v3402
      %5019 = vmatpush.bf16.msra.mxu0 %v3397
      %5020 = vmatpush.bf16.msra.mxu0 %v3392
      %5021 = vmatmul.bf16.gmra.mxu0 %v1204
      %v5022 = vpop.f32.mrf.mxu0
      %v5023 = vadd.f32 %v4999, %v5022
      %v5024 = vpop.f32.mrf.mxu0
      %v5025 = vadd.f32 %v5001, %v5024
      %5026 = vmatmul.bf16.gmra.mxu0 %v1220
      %v5027 = vpop.f32.mrf.mxu0
      %v5028 = vadd.f32 %v5004, %v5027
      %v5029 = vpop.f32.mrf.mxu0
      %v5030 = vadd.f32 %v5006, %v5029
      %5031 = vmatmul.bf16.gmra.mxu0 %v1236
      %v5032 = vpop.f32.mrf.mxu0
      %v5033 = vadd.f32 %v5009, %v5032
      %v5034 = vpop.f32.mrf.mxu0
      %v5035 = vadd.f32 %v5011, %v5034
      %5036 = vdwg.mxu0
      %5037 = vmatpush.bf16.msra.mxu0 %v3467
      %5038 = vmatpush.bf16.msra.mxu0 %v3462
      %5039 = vmatpush.bf16.msra.mxu0 %v3457
      %5040 = vmatpush.bf16.msra.mxu0 %v3452
      %5041 = vmatpush.bf16.msra.mxu0 %v3447
      %5042 = vmatpush.bf16.msra.mxu0 %v3442
      %5043 = vmatpush.bf16.msra.mxu0 %v3437
      %5044 = vmatpush.bf16.msra.mxu0 %v3432
      %5045 = vmatmul.bf16.gmra.mxu0 %v1205
      %v5046 = vpop.f32.mrf.mxu0
      %v5047 = vadd.f32 %v5023, %v5046
      %v5048 = vpop.f32.mrf.mxu0
      %v5049 = vadd.f32 %v5025, %v5048
      %5050 = vmatmul.bf16.gmra.mxu0 %v1221
      %v5051 = vpop.f32.mrf.mxu0
      %v5052 = vadd.f32 %v5028, %v5051
      %v5053 = vpop.f32.mrf.mxu0
      %v5054 = vadd.f32 %v5030, %v5053
      %5055 = vmatmul.bf16.gmra.mxu0 %v1237
      %v5056 = vpop.f32.mrf.mxu0
      %v5057 = vadd.f32 %v5033, %v5056
      %v5058 = vpop.f32.mrf.mxu0
      %v5059 = vadd.f32 %v5035, %v5058
      %5060 = vdwg.mxu0
      %5061 = vmatpush.bf16.msra.mxu0 %v3507
      %5062 = vmatpush.bf16.msra.mxu0 %v3502
      %5063 = vmatpush.bf16.msra.mxu0 %v3497
      %5064 = vmatpush.bf16.msra.mxu0 %v3492
      %5065 = vmatpush.bf16.msra.mxu0 %v3487
      %5066 = vmatpush.bf16.msra.mxu0 %v3482
      %5067 = vmatpush.bf16.msra.mxu0 %v3477
      %5068 = vmatpush.bf16.msra.mxu0 %v3472
      %5069 = vmatmul.bf16.gmra.mxu0 %v1206
      %v5070 = vpop.f32.mrf.mxu0
      %v5071 = vadd.f32 %v5047, %v5070
      %v5072 = vpop.f32.mrf.mxu0
      %v5073 = vadd.f32 %v5049, %v5072
      %5074 = vmatmul.bf16.gmra.mxu0 %v1222
      %v5075 = vpop.f32.mrf.mxu0
      %v5076 = vadd.f32 %v5052, %v5075
      %v5077 = vpop.f32.mrf.mxu0
      %v5078 = vadd.f32 %v5054, %v5077
      %5079 = vmatmul.bf16.gmra.mxu0 %v1238
      %v5080 = vpop.f32.mrf.mxu0
      %v5081 = vadd.f32 %v5057, %v5080
      %v5082 = vpop.f32.mrf.mxu0
      %v5083 = vadd.f32 %v5059, %v5082
      %5084 = vdwg.mxu0
      %5085 = vmatpush.bf16.msra.mxu0 %v3547
      %5086 = vmatpush.bf16.msra.mxu0 %v3542
      %5087 = vmatpush.bf16.msra.mxu0 %v3537
      %5088 = vmatpush.bf16.msra.mxu0 %v3532
      %5089 = vmatpush.bf16.msra.mxu0 %v3527
      %5090 = vmatpush.bf16.msra.mxu0 %v3522
      %5091 = vmatpush.bf16.msra.mxu0 %v3517
      %5092 = vmatpush.bf16.msra.mxu0 %v3512
      %5093 = vmatmul.bf16.gmra.mxu0 %v1207
      %v5094 = vpop.f32.mrf.mxu0
      %v5095 = vadd.f32 %v5071, %v5094
      %v5096 = vpop.f32.mrf.mxu0
      %v5097 = vadd.f32 %v5073, %v5096
      %5098 = vmatmul.bf16.gmra.mxu0 %v1223
      %v5099 = vpop.f32.mrf.mxu0
      %v5100 = vadd.f32 %v5076, %v5099
      %v5101 = vpop.f32.mrf.mxu0
      %v5102 = vadd.f32 %v5078, %v5101
      %5103 = vmatmul.bf16.gmra.mxu0 %v1239
      %v5104 = vpop.f32.mrf.mxu0
      %v5105 = vadd.f32 %v5081, %v5104
      %v5106 = vpop.f32.mrf.mxu0
      %v5107 = vadd.f32 %v5083, %v5106
      %5108 = vdwg.mxu0
      %5109 = vmatpush.bf16.msra.mxu0 %v3587
      %5110 = vmatpush.bf16.msra.mxu0 %v3582
      %5111 = vmatpush.bf16.msra.mxu0 %v3577
      %5112 = vmatpush.bf16.msra.mxu0 %v3572
      %5113 = vmatpush.bf16.msra.mxu0 %v3567
      %5114 = vmatpush.bf16.msra.mxu0 %v3562
      %5115 = vmatpush.bf16.msra.mxu0 %v3557
      %5116 = vmatpush.bf16.msra.mxu0 %v3552
      %5117 = vmatmul.bf16.gmra.mxu0 %v1208
      %v5118 = vpop.f32.mrf.mxu0
      %v5119 = vadd.f32 %v5095, %v5118
      %v5120 = vpop.f32.mrf.mxu0
      %v5121 = vadd.f32 %v5097, %v5120
      %5122 = vmatmul.bf16.gmra.mxu0 %v1224
      %v5123 = vpop.f32.mrf.mxu0
      %v5124 = vadd.f32 %v5100, %v5123
      %v5125 = vpop.f32.mrf.mxu0
      %v5126 = vadd.f32 %v5102, %v5125
      %5127 = vmatmul.bf16.gmra.mxu0 %v1240
      %v5128 = vpop.f32.mrf.mxu0
      %v5129 = vadd.f32 %v5105, %v5128
      %v5130 = vpop.f32.mrf.mxu0
      %v5131 = vadd.f32 %v5107, %v5130
      %5132 = vdwg.mxu0
      %5133 = vmatpush.bf16.msra.mxu0 %v3627
      %5134 = vmatpush.bf16.msra.mxu0 %v3622
      %5135 = vmatpush.bf16.msra.mxu0 %v3617
      %5136 = vmatpush.bf16.msra.mxu0 %v3612
      %5137 = vmatpush.bf16.msra.mxu0 %v3607
      %5138 = vmatpush.bf16.msra.mxu0 %v3602
      %5139 = vmatpush.bf16.msra.mxu0 %v3597
      %5140 = vmatpush.bf16.msra.mxu0 %v3592
      %5141 = vmatmul.bf16.gmra.mxu0 %v1209
      %v5142 = vpop.f32.mrf.mxu0
      %v5143 = vadd.f32 %v5119, %v5142
      %v5144 = vpop.f32.mrf.mxu0
      %v5145 = vadd.f32 %v5121, %v5144
      %5146 = vmatmul.bf16.gmra.mxu0 %v1225
      %v5147 = vpop.f32.mrf.mxu0
      %v5148 = vadd.f32 %v5124, %v5147
      %v5149 = vpop.f32.mrf.mxu0
      %v5150 = vadd.f32 %v5126, %v5149
      %5151 = vmatmul.bf16.gmra.mxu0 %v1241
      %v5152 = vpop.f32.mrf.mxu0
      %v5153 = vadd.f32 %v5129, %v5152
      %v5154 = vpop.f32.mrf.mxu0
      %v5155 = vadd.f32 %v5131, %v5154
      %5156 = vdwg.mxu0
      %5157 = vmatpush.bf16.msra.mxu0 %v3667
      %5158 = vmatpush.bf16.msra.mxu0 %v3662
      %5159 = vmatpush.bf16.msra.mxu0 %v3657
      %5160 = vmatpush.bf16.msra.mxu0 %v3652
      %5161 = vmatpush.bf16.msra.mxu0 %v3647
      %5162 = vmatpush.bf16.msra.mxu0 %v3642
      %5163 = vmatpush.bf16.msra.mxu0 %v3637
      %5164 = vmatpush.bf16.msra.mxu0 %v3632
      %5165 = vmatmul.bf16.gmra.mxu0 %v1210
      %v5166 = vpop.f32.mrf.mxu0
      %v5167 = vadd.f32 %v5143, %v5166
      %v5168 = vpop.f32.mrf.mxu0
      %v5169 = vadd.f32 %v5145, %v5168
      %5170 = vmatmul.bf16.gmra.mxu0 %v1226
      %v5171 = vpop.f32.mrf.mxu0
      %v5172 = vadd.f32 %v5148, %v5171
      %v5173 = vpop.f32.mrf.mxu0
      %v5174 = vadd.f32 %v5150, %v5173
      %5175 = vmatmul.bf16.gmra.mxu0 %v1242
      %v5176 = vpop.f32.mrf.mxu0
      %v5177 = vadd.f32 %v5153, %v5176
      %v5178 = vpop.f32.mrf.mxu0
      %v5179 = vadd.f32 %v5155, %v5178
      %5180 = vdwg.mxu0
      %5181 = vmatpush.bf16.msra.mxu0 %v3707
      %5182 = vmatpush.bf16.msra.mxu0 %v3702
      %5183 = vmatpush.bf16.msra.mxu0 %v3697
      %5184 = vmatpush.bf16.msra.mxu0 %v3692
      %5185 = vmatpush.bf16.msra.mxu0 %v3687
      %5186 = vmatpush.bf16.msra.mxu0 %v3682
      %5187 = vmatpush.bf16.msra.mxu0 %v3677
      %5188 = vmatpush.bf16.msra.mxu0 %v3672
      %5189 = vmatmul.bf16.gmra.mxu0 %v1211
      %v5190 = vpop.f32.mrf.mxu0
      %v5191 = vadd.f32 %v5167, %v5190
      %v5192 = vpop.f32.mrf.mxu0
      %v5193 = vadd.f32 %v5169, %v5192
      %5194 = vmatmul.bf16.gmra.mxu0 %v1227
      %v5195 = vpop.f32.mrf.mxu0
      %v5196 = vadd.f32 %v5172, %v5195
      %v5197 = vpop.f32.mrf.mxu0
      %v5198 = vadd.f32 %v5174, %v5197
      %5199 = vmatmul.bf16.gmra.mxu0 %v1243
      %v5200 = vpop.f32.mrf.mxu0
      %v5201 = vadd.f32 %v5177, %v5200
      %v5202 = vpop.f32.mrf.mxu0
      %v5203 = vadd.f32 %v5179, %v5202
      %5204 = vdwg.mxu0
      %5205 = vmatpush.bf16.msra.mxu0 %v3747
      %5206 = vmatpush.bf16.msra.mxu0 %v3742
      %5207 = vmatpush.bf16.msra.mxu0 %v3737
      %5208 = vmatpush.bf16.msra.mxu0 %v3732
      %5209 = vmatpush.bf16.msra.mxu0 %v3727
      %5210 = vmatpush.bf16.msra.mxu0 %v3722
      %5211 = vmatpush.bf16.msra.mxu0 %v3717
      %5212 = vmatpush.bf16.msra.mxu0 %v3712
      %5213 = vmatmul.bf16.gmra.mxu0 %v1212
      %v5214 = vpop.f32.mrf.mxu0
      %v5215 = vadd.f32 %v5191, %v5214
      %v5216 = vpop.f32.mrf.mxu0
      %v5217 = vadd.f32 %v5193, %v5216
      %5218 = vmatmul.bf16.gmra.mxu0 %v1228
      %v5219 = vpop.f32.mrf.mxu0
      %v5220 = vadd.f32 %v5196, %v5219
      %v5221 = vpop.f32.mrf.mxu0
      %v5222 = vadd.f32 %v5198, %v5221
      %5223 = vmatmul.bf16.gmra.mxu0 %v1244
      %v5224 = vpop.f32.mrf.mxu0
      %v5225 = vadd.f32 %v5201, %v5224
      %v5226 = vpop.f32.mrf.mxu0
      %v5227 = vadd.f32 %v5203, %v5226
      %5228 = vdwg.mxu0
      %5229 = vmatpush.bf16.msra.mxu0 %v3787
      %5230 = vmatpush.bf16.msra.mxu0 %v3782
      %5231 = vmatpush.bf16.msra.mxu0 %v3777
      %5232 = vmatpush.bf16.msra.mxu0 %v3772
      %5233 = vmatpush.bf16.msra.mxu0 %v3767
      %5234 = vmatpush.bf16.msra.mxu0 %v3762
      %5235 = vmatpush.bf16.msra.mxu0 %v3757
      %5236 = vmatpush.bf16.msra.mxu0 %v3752
      %5237 = vmatmul.bf16.gmra.mxu0 %v1213
      %v5238 = vpop.f32.mrf.mxu0
      %v5239 = vadd.f32 %v5215, %v5238
      %v5240 = vpop.f32.mrf.mxu0
      %v5241 = vadd.f32 %v5217, %v5240
      %5242 = vmatmul.bf16.gmra.mxu0 %v1229
      %v5243 = vpop.f32.mrf.mxu0
      %v5244 = vadd.f32 %v5220, %v5243
      %v5245 = vpop.f32.mrf.mxu0
      %v5246 = vadd.f32 %v5222, %v5245
      %5247 = vmatmul.bf16.gmra.mxu0 %v1245
      %v5248 = vpop.f32.mrf.mxu0
      %v5249 = vadd.f32 %v5225, %v5248
      %v5250 = vpop.f32.mrf.mxu0
      %v5251 = vadd.f32 %v5227, %v5250
      %5252 = vdwg.mxu0
      %5253 = vmatpush.bf16.msra.mxu0 %v3827
      %5254 = vmatpush.bf16.msra.mxu0 %v3822
      %5255 = vmatpush.bf16.msra.mxu0 %v3817
      %5256 = vmatpush.bf16.msra.mxu0 %v3812
      %5257 = vmatpush.bf16.msra.mxu0 %v3807
      %5258 = vmatpush.bf16.msra.mxu0 %v3802
      %5259 = vmatpush.bf16.msra.mxu0 %v3797
      %5260 = vmatpush.bf16.msra.mxu0 %v3792
      %5261 = vmatmul.bf16.gmra.mxu0 %v1214
      %v5262 = vpop.f32.mrf.mxu0
      %v5263 = vadd.f32 %v5239, %v5262
      %v5264 = vpop.f32.mrf.mxu0
      %v5265 = vadd.f32 %v5241, %v5264
      %5266 = vmatmul.bf16.gmra.mxu0 %v1230
      %v5267 = vpop.f32.mrf.mxu0
      %v5268 = vadd.f32 %v5244, %v5267
      %v5269 = vpop.f32.mrf.mxu0
      %v5270 = vadd.f32 %v5246, %v5269
      %5271 = vmatmul.bf16.gmra.mxu0 %v1246
      %v5272 = vpop.f32.mrf.mxu0
      %v5273 = vadd.f32 %v5249, %v5272
      %v5274 = vpop.f32.mrf.mxu0
      %v5275 = vadd.f32 %v5251, %v5274
      %5276 = vdwg.mxu0
      %5277 = vmatpush.bf16.msra.mxu0 %v3867
      %5278 = vmatpush.bf16.msra.mxu0 %v3862
      %5279 = vmatpush.bf16.msra.mxu0 %v3857
      %5280 = vmatpush.bf16.msra.mxu0 %v3852
      %5281 = vmatpush.bf16.msra.mxu0 %v3847
      %5282 = vmatpush.bf16.msra.mxu0 %v3842
      %5283 = vmatpush.bf16.msra.mxu0 %v3837
      %5284 = vmatpush.bf16.msra.mxu0 %v3832
      %5285 = vmatmul.bf16.gmra.mxu0 %v1215
      %v5286 = vpop.f32.mrf.mxu0
      %v5287 = vadd.f32 %v5263, %v5286
      %v5288 = vpop.f32.mrf.mxu0
      %v5289 = vadd.f32 %v5265, %v5288
      %5290 = vmatmul.bf16.gmra.mxu0 %v1231
      %v5291 = vpop.f32.mrf.mxu0
      %v5292 = vadd.f32 %v5268, %v5291
      %v5293 = vpop.f32.mrf.mxu0
      %v5294 = vadd.f32 %v5270, %v5293
      %5295 = vmatmul.bf16.gmra.mxu0 %v1247
      %v5296 = vpop.f32.mrf.mxu0
      %v5297 = vadd.f32 %v5273, %v5296
      %v5298 = vpop.f32.mrf.mxu0
      %v5299 = vadd.f32 %v5275, %v5298
      %5300 = vdwg.mxu0
      %5301 = vmatpush.bf16.msra.mxu0 %v3907
      %5302 = vmatpush.bf16.msra.mxu0 %v3902
      %5303 = vmatpush.bf16.msra.mxu0 %v3897
      %5304 = vmatpush.bf16.msra.mxu0 %v3892
      %5305 = vmatpush.bf16.msra.mxu0 %v3887
      %5306 = vmatpush.bf16.msra.mxu0 %v3882
      %5307 = vmatpush.bf16.msra.mxu0 %v3877
      %5308 = vmatpush.bf16.msra.mxu0 %v3872
      %5309 = vmatmul.bf16.gmra.mxu0 %v1216
      %v5310 = vpop.f32.mrf.mxu0
      %v5311 = vadd.f32 %v5287, %v5310
      %v5312 = vpop.f32.mrf.mxu0
      %v5313 = vadd.f32 %v5289, %v5312
      %5314 = vmatmul.bf16.gmra.mxu0 %v1232
      %v5315 = vpop.f32.mrf.mxu0
      %v5316 = vadd.f32 %v5292, %v5315
      %v5317 = vpop.f32.mrf.mxu0
      %v5318 = vadd.f32 %v5294, %v5317
      %5319 = vmatmul.bf16.gmra.mxu0 %v1248
      %v5320 = vpop.f32.mrf.mxu0
      %v5321 = vadd.f32 %v5297, %v5320
      %v5322 = vpop.f32.mrf.mxu0
      %v5323 = vadd.f32 %v5299, %v5322
      %5324 = vdwg.mxu0
      %5325 = vmatpush.bf16.msra.mxu0 0
      %5326 = vmatpush.bf16.msra.mxu0 0
      %5327 = vmatpush.bf16.msra.mxu0 %v3937
      %5328 = vmatpush.bf16.msra.mxu0 %v3932
      %5329 = vmatpush.bf16.msra.mxu0 %v3927
      %5330 = vmatpush.bf16.msra.mxu0 %v3922
      %5331 = vmatpush.bf16.msra.mxu0 %v3917
      %5332 = vmatpush.bf16.msra.mxu0 %v3912
      %5333 = vmatmul.bf16.gmra.mxu0 %v4573
      %v5334 = vpop.f32.mrf.mxu0
      %v5335 = vadd.f32 %v5311, %v5334
      %v5336 = vpop.f32.mrf.mxu0
      %v5337 = vadd.f32 %v5313, %v5336
      %5338 = vmatmul.bf16.gmra.mxu0 %v4576
      %v5339 = vpop.f32.mrf.mxu0
      %v5340 = vadd.f32 %v5316, %v5339
      %v5341 = vpop.f32.mrf.mxu0
      %v5342 = vadd.f32 %v5318, %v5341
      %5343 = vmatmul.bf16.gmra.mxu0 %v4579
      %v5344 = vpop.f32.mrf.mxu0
      %v5345 = vadd.f32 %v5321, %v5344
      %v5346 = vpop.f32.mrf.mxu0
      %v5347 = vadd.f32 %v5323, %v5346
      %5348 = vdwg.mxu0
      %5349 = vmatpush.bf16.msra.mxu0 %v3348
      %5350 = vmatpush.bf16.msra.mxu0 %v3343
      %5351 = vmatpush.bf16.msra.mxu0 %v3338
      %5352 = vmatpush.bf16.msra.mxu0 %v3333
      %5353 = vmatpush.bf16.msra.mxu0 %v3328
      %5354 = vmatpush.bf16.msra.mxu0 %v3323
      %5355 = vmatpush.bf16.msra.mxu0 %v3318
      %5356 = vmatpush.bf16.msra.mxu0 %v3313
      %5357 = vmatmul.bf16.gmra.mxu0 %v1202
      %v5358 = vpop.f32.mrf.mxu0
      %v5359 = vadd.f32 0.0, %v5358
      %v5360 = vpop.f32.mrf.mxu0
      %v5361 = vadd.f32 0.0, %v5360
      %5362 = vmatmul.bf16.gmra.mxu0 %v1218
      %v5363 = vpop.f32.mrf.mxu0
      %v5364 = vadd.f32 0.0, %v5363
      %v5365 = vpop.f32.mrf.mxu0
      %v5366 = vadd.f32 0.0, %v5365
      %5367 = vmatmul.bf16.gmra.mxu0 %v1234
      %v5368 = vpop.f32.mrf.mxu0
      %v5369 = vadd.f32 0.0, %v5368
      %v5370 = vpop.f32.mrf.mxu0
      %v5371 = vadd.f32 0.0, %v5370
      %5372 = vdwg.mxu0
      %5373 = vmatpush.bf16.msra.mxu0 %v3388
      %5374 = vmatpush.bf16.msra.mxu0 %v3383
      %5375 = vmatpush.bf16.msra.mxu0 %v3378
      %5376 = vmatpush.bf16.msra.mxu0 %v3373
      %5377 = vmatpush.bf16.msra.mxu0 %v3368
      %5378 = vmatpush.bf16.msra.mxu0 %v3363
      %5379 = vmatpush.bf16.msra.mxu0 %v3358
      %5380 = vmatpush.bf16.msra.mxu0 %v3353
      %5381 = vmatmul.bf16.gmra.mxu0 %v1203
      %v5382 = vpop.f32.mrf.mxu0
      %v5383 = vadd.f32 %v5359, %v5382
      %v5384 = vpop.f32.mrf.mxu0
      %v5385 = vadd.f32 %v5361, %v5384
      %5386 = vmatmul.bf16.gmra.mxu0 %v1219
      %v5387 = vpop.f32.mrf.mxu0
      %v5388 = vadd.f32 %v5364, %v5387
      %v5389 = vpop.f32.mrf.mxu0
      %v5390 = vadd.f32 %v5366, %v5389
      %5391 = vmatmul.bf16.gmra.mxu0 %v1235
      %v5392 = vpop.f32.mrf.mxu0
      %v5393 = vadd.f32 %v5369, %v5392
      %v5394 = vpop.f32.mrf.mxu0
      %v5395 = vadd.f32 %v5371, %v5394
      %5396 = vdwg.mxu0
      %5397 = vmatpush.bf16.msra.mxu0 %v3428
      %5398 = vmatpush.bf16.msra.mxu0 %v3423
      %5399 = vmatpush.bf16.msra.mxu0 %v3418
      %5400 = vmatpush.bf16.msra.mxu0 %v3413
      %5401 = vmatpush.bf16.msra.mxu0 %v3408
      %5402 = vmatpush.bf16.msra.mxu0 %v3403
      %5403 = vmatpush.bf16.msra.mxu0 %v3398
      %5404 = vmatpush.bf16.msra.mxu0 %v3393
      %5405 = vmatmul.bf16.gmra.mxu0 %v1204
      %v5406 = vpop.f32.mrf.mxu0
      %v5407 = vadd.f32 %v5383, %v5406
      %v5408 = vpop.f32.mrf.mxu0
      %v5409 = vadd.f32 %v5385, %v5408
      %5410 = vmatmul.bf16.gmra.mxu0 %v1220
      %v5411 = vpop.f32.mrf.mxu0
      %v5412 = vadd.f32 %v5388, %v5411
      %v5413 = vpop.f32.mrf.mxu0
      %v5414 = vadd.f32 %v5390, %v5413
      %5415 = vmatmul.bf16.gmra.mxu0 %v1236
      %v5416 = vpop.f32.mrf.mxu0
      %v5417 = vadd.f32 %v5393, %v5416
      %v5418 = vpop.f32.mrf.mxu0
      %v5419 = vadd.f32 %v5395, %v5418
      %5420 = vdwg.mxu0
      %5421 = vmatpush.bf16.msra.mxu0 %v3468
      %5422 = vmatpush.bf16.msra.mxu0 %v3463
      %5423 = vmatpush.bf16.msra.mxu0 %v3458
      %5424 = vmatpush.bf16.msra.mxu0 %v3453
      %5425 = vmatpush.bf16.msra.mxu0 %v3448
      %5426 = vmatpush.bf16.msra.mxu0 %v3443
      %5427 = vmatpush.bf16.msra.mxu0 %v3438
      %5428 = vmatpush.bf16.msra.mxu0 %v3433
      %5429 = vmatmul.bf16.gmra.mxu0 %v1205
      %v5430 = vpop.f32.mrf.mxu0
      %v5431 = vadd.f32 %v5407, %v5430
      %v5432 = vpop.f32.mrf.mxu0
      %v5433 = vadd.f32 %v5409, %v5432
      %5434 = vmatmul.bf16.gmra.mxu0 %v1221
      %v5435 = vpop.f32.mrf.mxu0
      %v5436 = vadd.f32 %v5412, %v5435
      %v5437 = vpop.f32.mrf.mxu0
      %v5438 = vadd.f32 %v5414, %v5437
      %5439 = vmatmul.bf16.gmra.mxu0 %v1237
      %v5440 = vpop.f32.mrf.mxu0
      %v5441 = vadd.f32 %v5417, %v5440
      %v5442 = vpop.f32.mrf.mxu0
      %v5443 = vadd.f32 %v5419, %v5442
      %5444 = vdwg.mxu0
      %5445 = vmatpush.bf16.msra.mxu0 %v3508
      %5446 = vmatpush.bf16.msra.mxu0 %v3503
      %5447 = vmatpush.bf16.msra.mxu0 %v3498
      %5448 = vmatpush.bf16.msra.mxu0 %v3493
      %5449 = vmatpush.bf16.msra.mxu0 %v3488
      %5450 = vmatpush.bf16.msra.mxu0 %v3483
      %5451 = vmatpush.bf16.msra.mxu0 %v3478
      %5452 = vmatpush.bf16.msra.mxu0 %v3473
      %5453 = vmatmul.bf16.gmra.mxu0 %v1206
      %v5454 = vpop.f32.mrf.mxu0
      %v5455 = vadd.f32 %v5431, %v5454
      %v5456 = vpop.f32.mrf.mxu0
      %v5457 = vadd.f32 %v5433, %v5456
      %5458 = vmatmul.bf16.gmra.mxu0 %v1222
      %v5459 = vpop.f32.mrf.mxu0
      %v5460 = vadd.f32 %v5436, %v5459
      %v5461 = vpop.f32.mrf.mxu0
      %v5462 = vadd.f32 %v5438, %v5461
      %5463 = vmatmul.bf16.gmra.mxu0 %v1238
      %v5464 = vpop.f32.mrf.mxu0
      %v5465 = vadd.f32 %v5441, %v5464
      %v5466 = vpop.f32.mrf.mxu0
      %v5467 = vadd.f32 %v5443, %v5466
      %5468 = vdwg.mxu0
      %5469 = vmatpush.bf16.msra.mxu0 %v3548
      %5470 = vmatpush.bf16.msra.mxu0 %v3543
      %5471 = vmatpush.bf16.msra.mxu0 %v3538
      %5472 = vmatpush.bf16.msra.mxu0 %v3533
      %5473 = vmatpush.bf16.msra.mxu0 %v3528
      %5474 = vmatpush.bf16.msra.mxu0 %v3523
      %5475 = vmatpush.bf16.msra.mxu0 %v3518
      %5476 = vmatpush.bf16.msra.mxu0 %v3513
      %5477 = vmatmul.bf16.gmra.mxu0 %v1207
      %v5478 = vpop.f32.mrf.mxu0
      %v5479 = vadd.f32 %v5455, %v5478
      %v5480 = vpop.f32.mrf.mxu0
      %v5481 = vadd.f32 %v5457, %v5480
      %5482 = vmatmul.bf16.gmra.mxu0 %v1223
      %v5483 = vpop.f32.mrf.mxu0
      %v5484 = vadd.f32 %v5460, %v5483
      %v5485 = vpop.f32.mrf.mxu0
      %v5486 = vadd.f32 %v5462, %v5485
      %5487 = vmatmul.bf16.gmra.mxu0 %v1239
      %v5488 = vpop.f32.mrf.mxu0
      %v5489 = vadd.f32 %v5465, %v5488
      %v5490 = vpop.f32.mrf.mxu0
      %v5491 = vadd.f32 %v5467, %v5490
      %5492 = vdwg.mxu0
      %5493 = vmatpush.bf16.msra.mxu0 %v3588
      %5494 = vmatpush.bf16.msra.mxu0 %v3583
      %5495 = vmatpush.bf16.msra.mxu0 %v3578
      %5496 = vmatpush.bf16.msra.mxu0 %v3573
      %5497 = vmatpush.bf16.msra.mxu0 %v3568
      %5498 = vmatpush.bf16.msra.mxu0 %v3563
      %5499 = vmatpush.bf16.msra.mxu0 %v3558
      %5500 = vmatpush.bf16.msra.mxu0 %v3553
      %5501 = vmatmul.bf16.gmra.mxu0 %v1208
      %v5502 = vpop.f32.mrf.mxu0
      %v5503 = vadd.f32 %v5479, %v5502
      %v5504 = vpop.f32.mrf.mxu0
      %v5505 = vadd.f32 %v5481, %v5504
      %5506 = vmatmul.bf16.gmra.mxu0 %v1224
      %v5507 = vpop.f32.mrf.mxu0
      %v5508 = vadd.f32 %v5484, %v5507
      %v5509 = vpop.f32.mrf.mxu0
      %v5510 = vadd.f32 %v5486, %v5509
      %5511 = vmatmul.bf16.gmra.mxu0 %v1240
      %v5512 = vpop.f32.mrf.mxu0
      %v5513 = vadd.f32 %v5489, %v5512
      %v5514 = vpop.f32.mrf.mxu0
      %v5515 = vadd.f32 %v5491, %v5514
      %5516 = vdwg.mxu0
      %5517 = vmatpush.bf16.msra.mxu0 %v3628
      %5518 = vmatpush.bf16.msra.mxu0 %v3623
      %5519 = vmatpush.bf16.msra.mxu0 %v3618
      %5520 = vmatpush.bf16.msra.mxu0 %v3613
      %5521 = vmatpush.bf16.msra.mxu0 %v3608
      %5522 = vmatpush.bf16.msra.mxu0 %v3603
      %5523 = vmatpush.bf16.msra.mxu0 %v3598
      %5524 = vmatpush.bf16.msra.mxu0 %v3593
      %5525 = vmatmul.bf16.gmra.mxu0 %v1209
      %v5526 = vpop.f32.mrf.mxu0
      %v5527 = vadd.f32 %v5503, %v5526
      %v5528 = vpop.f32.mrf.mxu0
      %v5529 = vadd.f32 %v5505, %v5528
      %5530 = vmatmul.bf16.gmra.mxu0 %v1225
      %v5531 = vpop.f32.mrf.mxu0
      %v5532 = vadd.f32 %v5508, %v5531
      %v5533 = vpop.f32.mrf.mxu0
      %v5534 = vadd.f32 %v5510, %v5533
      %5535 = vmatmul.bf16.gmra.mxu0 %v1241
      %v5536 = vpop.f32.mrf.mxu0
      %v5537 = vadd.f32 %v5513, %v5536
      %v5538 = vpop.f32.mrf.mxu0
      %v5539 = vadd.f32 %v5515, %v5538
      %5540 = vdwg.mxu0
      %5541 = vmatpush.bf16.msra.mxu0 %v3668
      %5542 = vmatpush.bf16.msra.mxu0 %v3663
      %5543 = vmatpush.bf16.msra.mxu0 %v3658
      %5544 = vmatpush.bf16.msra.mxu0 %v3653
      %5545 = vmatpush.bf16.msra.mxu0 %v3648
      %5546 = vmatpush.bf16.msra.mxu0 %v3643
      %5547 = vmatpush.bf16.msra.mxu0 %v3638
      %5548 = vmatpush.bf16.msra.mxu0 %v3633
      %5549 = vmatmul.bf16.gmra.mxu0 %v1210
      %v5550 = vpop.f32.mrf.mxu0
      %v5551 = vadd.f32 %v5527, %v5550
      %v5552 = vpop.f32.mrf.mxu0
      %v5553 = vadd.f32 %v5529, %v5552
      %5554 = vmatmul.bf16.gmra.mxu0 %v1226
      %v5555 = vpop.f32.mrf.mxu0
      %v5556 = vadd.f32 %v5532, %v5555
      %v5557 = vpop.f32.mrf.mxu0
      %v5558 = vadd.f32 %v5534, %v5557
      %5559 = vmatmul.bf16.gmra.mxu0 %v1242
      %v5560 = vpop.f32.mrf.mxu0
      %v5561 = vadd.f32 %v5537, %v5560
      %v5562 = vpop.f32.mrf.mxu0
      %v5563 = vadd.f32 %v5539, %v5562
      %5564 = vdwg.mxu0
      %5565 = vmatpush.bf16.msra.mxu0 %v3708
      %5566 = vmatpush.bf16.msra.mxu0 %v3703
      %5567 = vmatpush.bf16.msra.mxu0 %v3698
      %5568 = vmatpush.bf16.msra.mxu0 %v3693
      %5569 = vmatpush.bf16.msra.mxu0 %v3688
      %5570 = vmatpush.bf16.msra.mxu0 %v3683
      %5571 = vmatpush.bf16.msra.mxu0 %v3678
      %5572 = vmatpush.bf16.msra.mxu0 %v3673
      %5573 = vmatmul.bf16.gmra.mxu0 %v1211
      %v5574 = vpop.f32.mrf.mxu0
      %v5575 = vadd.f32 %v5551, %v5574
      %v5576 = vpop.f32.mrf.mxu0
      %v5577 = vadd.f32 %v5553, %v5576
      %5578 = vmatmul.bf16.gmra.mxu0 %v1227
      %v5579 = vpop.f32.mrf.mxu0
      %v5580 = vadd.f32 %v5556, %v5579
      %v5581 = vpop.f32.mrf.mxu0
      %v5582 = vadd.f32 %v5558, %v5581
      %5583 = vmatmul.bf16.gmra.mxu0 %v1243
      %v5584 = vpop.f32.mrf.mxu0
      %v5585 = vadd.f32 %v5561, %v5584
      %v5586 = vpop.f32.mrf.mxu0
      %v5587 = vadd.f32 %v5563, %v5586
      %5588 = vdwg.mxu0
      %5589 = vmatpush.bf16.msra.mxu0 %v3748
      %5590 = vmatpush.bf16.msra.mxu0 %v3743
      %5591 = vmatpush.bf16.msra.mxu0 %v3738
      %5592 = vmatpush.bf16.msra.mxu0 %v3733
      %5593 = vmatpush.bf16.msra.mxu0 %v3728
      %5594 = vmatpush.bf16.msra.mxu0 %v3723
      %5595 = vmatpush.bf16.msra.mxu0 %v3718
      %5596 = vmatpush.bf16.msra.mxu0 %v3713
      %5597 = vmatmul.bf16.gmra.mxu0 %v1212
      %v5598 = vpop.f32.mrf.mxu0
      %v5599 = vadd.f32 %v5575, %v5598
      %v5600 = vpop.f32.mrf.mxu0
      %v5601 = vadd.f32 %v5577, %v5600
      %5602 = vmatmul.bf16.gmra.mxu0 %v1228
      %v5603 = vpop.f32.mrf.mxu0
      %v5604 = vadd.f32 %v5580, %v5603
      %v5605 = vpop.f32.mrf.mxu0
      %v5606 = vadd.f32 %v5582, %v5605
      %5607 = vmatmul.bf16.gmra.mxu0 %v1244
      %v5608 = vpop.f32.mrf.mxu0
      %v5609 = vadd.f32 %v5585, %v5608
      %v5610 = vpop.f32.mrf.mxu0
      %v5611 = vadd.f32 %v5587, %v5610
      %5612 = vdwg.mxu0
      %5613 = vmatpush.bf16.msra.mxu0 %v3788
      %5614 = vmatpush.bf16.msra.mxu0 %v3783
      %5615 = vmatpush.bf16.msra.mxu0 %v3778
      %5616 = vmatpush.bf16.msra.mxu0 %v3773
      %5617 = vmatpush.bf16.msra.mxu0 %v3768
      %5618 = vmatpush.bf16.msra.mxu0 %v3763
      %5619 = vmatpush.bf16.msra.mxu0 %v3758
      %5620 = vmatpush.bf16.msra.mxu0 %v3753
      %5621 = vmatmul.bf16.gmra.mxu0 %v1213
      %v5622 = vpop.f32.mrf.mxu0
      %v5623 = vadd.f32 %v5599, %v5622
      %v5624 = vpop.f32.mrf.mxu0
      %v5625 = vadd.f32 %v5601, %v5624
      %5626 = vmatmul.bf16.gmra.mxu0 %v1229
      %v5627 = vpop.f32.mrf.mxu0
      %v5628 = vadd.f32 %v5604, %v5627
      %v5629 = vpop.f32.mrf.mxu0
      %v5630 = vadd.f32 %v5606, %v5629
      %5631 = vmatmul.bf16.gmra.mxu0 %v1245
      %v5632 = vpop.f32.mrf.mxu0
      %v5633 = vadd.f32 %v5609, %v5632
      %v5634 = vpop.f32.mrf.mxu0
      %v5635 = vadd.f32 %v5611, %v5634
      %5636 = vdwg.mxu0
      %5637 = vmatpush.bf16.msra.mxu0 %v3828
      %5638 = vmatpush.bf16.msra.mxu0 %v3823
      %5639 = vmatpush.bf16.msra.mxu0 %v3818
      %5640 = vmatpush.bf16.msra.mxu0 %v3813
      %5641 = vmatpush.bf16.msra.mxu0 %v3808
      %5642 = vmatpush.bf16.msra.mxu0 %v3803
      %5643 = vmatpush.bf16.msra.mxu0 %v3798
      %5644 = vmatpush.bf16.msra.mxu0 %v3793
      %5645 = vmatmul.bf16.gmra.mxu0 %v1214
      %v5646 = vpop.f32.mrf.mxu0
      %v5647 = vadd.f32 %v5623, %v5646
      %v5648 = vpop.f32.mrf.mxu0
      %v5649 = vadd.f32 %v5625, %v5648
      %5650 = vmatmul.bf16.gmra.mxu0 %v1230
      %v5651 = vpop.f32.mrf.mxu0
      %v5652 = vadd.f32 %v5628, %v5651
      %v5653 = vpop.f32.mrf.mxu0
      %v5654 = vadd.f32 %v5630, %v5653
      %5655 = vmatmul.bf16.gmra.mxu0 %v1246
      %v5656 = vpop.f32.mrf.mxu0
      %v5657 = vadd.f32 %v5633, %v5656
      %v5658 = vpop.f32.mrf.mxu0
      %v5659 = vadd.f32 %v5635, %v5658
      %5660 = vdwg.mxu0
      %5661 = vmatpush.bf16.msra.mxu0 %v3868
      %5662 = vmatpush.bf16.msra.mxu0 %v3863
      %5663 = vmatpush.bf16.msra.mxu0 %v3858
      %5664 = vmatpush.bf16.msra.mxu0 %v3853
      %5665 = vmatpush.bf16.msra.mxu0 %v3848
      %5666 = vmatpush.bf16.msra.mxu0 %v3843
      %5667 = vmatpush.bf16.msra.mxu0 %v3838
      %5668 = vmatpush.bf16.msra.mxu0 %v3833
      %5669 = vmatmul.bf16.gmra.mxu0 %v1215
      %v5670 = vpop.f32.mrf.mxu0
      %v5671 = vadd.f32 %v5647, %v5670
      %v5672 = vpop.f32.mrf.mxu0
      %v5673 = vadd.f32 %v5649, %v5672
      %5674 = vmatmul.bf16.gmra.mxu0 %v1231
      %v5675 = vpop.f32.mrf.mxu0
      %v5676 = vadd.f32 %v5652, %v5675
      %v5677 = vpop.f32.mrf.mxu0
      %v5678 = vadd.f32 %v5654, %v5677
      %5679 = vmatmul.bf16.gmra.mxu0 %v1247
      %v5680 = vpop.f32.mrf.mxu0
      %v5681 = vadd.f32 %v5657, %v5680
      %v5682 = vpop.f32.mrf.mxu0
      %v5683 = vadd.f32 %v5659, %v5682
      %5684 = vdwg.mxu0
      %5685 = vmatpush.bf16.msra.mxu0 %v3908
      %5686 = vmatpush.bf16.msra.mxu0 %v3903
      %5687 = vmatpush.bf16.msra.mxu0 %v3898
      %5688 = vmatpush.bf16.msra.mxu0 %v3893
      %5689 = vmatpush.bf16.msra.mxu0 %v3888
      %5690 = vmatpush.bf16.msra.mxu0 %v3883
      %5691 = vmatpush.bf16.msra.mxu0 %v3878
      %5692 = vmatpush.bf16.msra.mxu0 %v3873
      %5693 = vmatmul.bf16.gmra.mxu0 %v1216
      %v5694 = vpop.f32.mrf.mxu0
      %v5695 = vadd.f32 %v5671, %v5694
      %v5696 = vpop.f32.mrf.mxu0
      %v5697 = vadd.f32 %v5673, %v5696
      %5698 = vmatmul.bf16.gmra.mxu0 %v1232
      %v5699 = vpop.f32.mrf.mxu0
      %v5700 = vadd.f32 %v5676, %v5699
      %v5701 = vpop.f32.mrf.mxu0
      %v5702 = vadd.f32 %v5678, %v5701
      %5703 = vmatmul.bf16.gmra.mxu0 %v1248
      %v5704 = vpop.f32.mrf.mxu0
      %v5705 = vadd.f32 %v5681, %v5704
      %v5706 = vpop.f32.mrf.mxu0
      %v5707 = vadd.f32 %v5683, %v5706
      %5708 = vdwg.mxu0
      %5709 = vmatpush.bf16.msra.mxu0 0
      %5710 = vmatpush.bf16.msra.mxu0 0
      %5711 = vmatpush.bf16.msra.mxu0 %v3938
      %5712 = vmatpush.bf16.msra.mxu0 %v3933
      %5713 = vmatpush.bf16.msra.mxu0 %v3928
      %5714 = vmatpush.bf16.msra.mxu0 %v3923
      %5715 = vmatpush.bf16.msra.mxu0 %v3918
      %5716 = vmatpush.bf16.msra.mxu0 %v3913
      %5717 = vmatmul.bf16.gmra.mxu0 %v4573
      %v5718 = vpop.f32.mrf.mxu0
      %v5719 = vadd.f32 %v5695, %v5718
      %v5720 = vpop.f32.mrf.mxu0
      %v5721 = vadd.f32 %v5697, %v5720
      %5722 = vmatmul.bf16.gmra.mxu0 %v4576
      %v5723 = vpop.f32.mrf.mxu0
      %v5724 = vadd.f32 %v5700, %v5723
      %v5725 = vpop.f32.mrf.mxu0
      %v5726 = vadd.f32 %v5702, %v5725
      %5727 = vmatmul.bf16.gmra.mxu0 %v4579
      %v5728 = vpop.f32.mrf.mxu0
      %v5729 = vadd.f32 %v5705, %v5728
      %v5730 = vpop.f32.mrf.mxu0
      %v5731 = vadd.f32 %v5707, %v5730
      %5732 = vdwg.mxu0
      %5733 = vmatpush.bf16.msra.mxu0 %v3349
      %5734 = vmatpush.bf16.msra.mxu0 %v3344
      %5735 = vmatpush.bf16.msra.mxu0 %v3339
      %5736 = vmatpush.bf16.msra.mxu0 %v3334
      %5737 = vmatpush.bf16.msra.mxu0 %v3329
      %5738 = vmatpush.bf16.msra.mxu0 %v3324
      %5739 = vmatpush.bf16.msra.mxu0 %v3319
      %5740 = vmatpush.bf16.msra.mxu0 %v3314
      %5741 = vmatmul.bf16.gmra.mxu0 %v1202
      %v5742 = vpop.f32.mrf.mxu0
      %v5743 = vadd.f32 0.0, %v5742
      %v5744 = vpop.f32.mrf.mxu0
      %v5745 = vadd.f32 0.0, %v5744
      %5746 = vmatmul.bf16.gmra.mxu0 %v1218
      %v5747 = vpop.f32.mrf.mxu0
      %v5748 = vadd.f32 0.0, %v5747
      %v5749 = vpop.f32.mrf.mxu0
      %v5750 = vadd.f32 0.0, %v5749
      %5751 = vmatmul.bf16.gmra.mxu0 %v1234
      %v5752 = vpop.f32.mrf.mxu0
      %v5753 = vadd.f32 0.0, %v5752
      %v5754 = vpop.f32.mrf.mxu0
      %v5755 = vadd.f32 0.0, %v5754
      %5756 = vdwg.mxu0
      %5757 = vmatpush.bf16.msra.mxu0 %v3389
      %5758 = vmatpush.bf16.msra.mxu0 %v3384
      %5759 = vmatpush.bf16.msra.mxu0 %v3379
      %5760 = vmatpush.bf16.msra.mxu0 %v3374
      %5761 = vmatpush.bf16.msra.mxu0 %v3369
      %5762 = vmatpush.bf16.msra.mxu0 %v3364
      %5763 = vmatpush.bf16.msra.mxu0 %v3359
      %5764 = vmatpush.bf16.msra.mxu0 %v3354
      %5765 = vmatmul.bf16.gmra.mxu0 %v1203
      %v5766 = vpop.f32.mrf.mxu0
      %v5767 = vadd.f32 %v5743, %v5766
      %v5768 = vpop.f32.mrf.mxu0
      %v5769 = vadd.f32 %v5745, %v5768
      %5770 = vmatmul.bf16.gmra.mxu0 %v1219
      %v5771 = vpop.f32.mrf.mxu0
      %v5772 = vadd.f32 %v5748, %v5771
      %v5773 = vpop.f32.mrf.mxu0
      %v5774 = vadd.f32 %v5750, %v5773
      %5775 = vmatmul.bf16.gmra.mxu0 %v1235
      %v5776 = vpop.f32.mrf.mxu0
      %v5777 = vadd.f32 %v5753, %v5776
      %v5778 = vpop.f32.mrf.mxu0
      %v5779 = vadd.f32 %v5755, %v5778
      %5780 = vdwg.mxu0
      %5781 = vmatpush.bf16.msra.mxu0 %v3429
      %5782 = vmatpush.bf16.msra.mxu0 %v3424
      %5783 = vmatpush.bf16.msra.mxu0 %v3419
      %5784 = vmatpush.bf16.msra.mxu0 %v3414
      %5785 = vmatpush.bf16.msra.mxu0 %v3409
      %5786 = vmatpush.bf16.msra.mxu0 %v3404
      %5787 = vmatpush.bf16.msra.mxu0 %v3399
      %5788 = vmatpush.bf16.msra.mxu0 %v3394
      %5789 = vmatmul.bf16.gmra.mxu0 %v1204
      %v5790 = vpop.f32.mrf.mxu0
      %v5791 = vadd.f32 %v5767, %v5790
      %v5792 = vpop.f32.mrf.mxu0
      %v5793 = vadd.f32 %v5769, %v5792
      %5794 = vmatmul.bf16.gmra.mxu0 %v1220
      %v5795 = vpop.f32.mrf.mxu0
      %v5796 = vadd.f32 %v5772, %v5795
      %v5797 = vpop.f32.mrf.mxu0
      %v5798 = vadd.f32 %v5774, %v5797
      %5799 = vmatmul.bf16.gmra.mxu0 %v1236
      %v5800 = vpop.f32.mrf.mxu0
      %v5801 = vadd.f32 %v5777, %v5800
      %v5802 = vpop.f32.mrf.mxu0
      %v5803 = vadd.f32 %v5779, %v5802
      %5804 = vdwg.mxu0
      %5805 = vmatpush.bf16.msra.mxu0 %v3469
      %5806 = vmatpush.bf16.msra.mxu0 %v3464
      %5807 = vmatpush.bf16.msra.mxu0 %v3459
      %5808 = vmatpush.bf16.msra.mxu0 %v3454
      %5809 = vmatpush.bf16.msra.mxu0 %v3449
      %5810 = vmatpush.bf16.msra.mxu0 %v3444
      %5811 = vmatpush.bf16.msra.mxu0 %v3439
      %5812 = vmatpush.bf16.msra.mxu0 %v3434
      %5813 = vmatmul.bf16.gmra.mxu0 %v1205
      %v5814 = vpop.f32.mrf.mxu0
      %v5815 = vadd.f32 %v5791, %v5814
      %v5816 = vpop.f32.mrf.mxu0
      %v5817 = vadd.f32 %v5793, %v5816
      %5818 = vmatmul.bf16.gmra.mxu0 %v1221
      %v5819 = vpop.f32.mrf.mxu0
      %v5820 = vadd.f32 %v5796, %v5819
      %v5821 = vpop.f32.mrf.mxu0
      %v5822 = vadd.f32 %v5798, %v5821
      %5823 = vmatmul.bf16.gmra.mxu0 %v1237
      %v5824 = vpop.f32.mrf.mxu0
      %v5825 = vadd.f32 %v5801, %v5824
      %v5826 = vpop.f32.mrf.mxu0
      %v5827 = vadd.f32 %v5803, %v5826
      %5828 = vdwg.mxu0
      %5829 = vmatpush.bf16.msra.mxu0 %v3509
      %5830 = vmatpush.bf16.msra.mxu0 %v3504
      %5831 = vmatpush.bf16.msra.mxu0 %v3499
      %5832 = vmatpush.bf16.msra.mxu0 %v3494
      %5833 = vmatpush.bf16.msra.mxu0 %v3489
      %5834 = vmatpush.bf16.msra.mxu0 %v3484
      %5835 = vmatpush.bf16.msra.mxu0 %v3479
      %5836 = vmatpush.bf16.msra.mxu0 %v3474
      %5837 = vmatmul.bf16.gmra.mxu0 %v1206
      %v5838 = vpop.f32.mrf.mxu0
      %v5839 = vadd.f32 %v5815, %v5838
      %v5840 = vpop.f32.mrf.mxu0
      %v5841 = vadd.f32 %v5817, %v5840
      %5842 = vmatmul.bf16.gmra.mxu0 %v1222
      %v5843 = vpop.f32.mrf.mxu0
      %v5844 = vadd.f32 %v5820, %v5843
      %v5845 = vpop.f32.mrf.mxu0
      %v5846 = vadd.f32 %v5822, %v5845
      %5847 = vmatmul.bf16.gmra.mxu0 %v1238
      %v5848 = vpop.f32.mrf.mxu0
      %v5849 = vadd.f32 %v5825, %v5848
      %v5850 = vpop.f32.mrf.mxu0
      %v5851 = vadd.f32 %v5827, %v5850
      %5852 = vdwg.mxu0
      %5853 = vmatpush.bf16.msra.mxu0 %v3549
      %5854 = vmatpush.bf16.msra.mxu0 %v3544
      %5855 = vmatpush.bf16.msra.mxu0 %v3539
      %5856 = vmatpush.bf16.msra.mxu0 %v3534
      %5857 = vmatpush.bf16.msra.mxu0 %v3529
      %5858 = vmatpush.bf16.msra.mxu0 %v3524
      %5859 = vmatpush.bf16.msra.mxu0 %v3519
      %5860 = vmatpush.bf16.msra.mxu0 %v3514
      %5861 = vmatmul.bf16.gmra.mxu0 %v1207
      %v5862 = vpop.f32.mrf.mxu0
      %v5863 = vadd.f32 %v5839, %v5862
      %v5864 = vpop.f32.mrf.mxu0
      %v5865 = vadd.f32 %v5841, %v5864
      %5866 = vmatmul.bf16.gmra.mxu0 %v1223
      %v5867 = vpop.f32.mrf.mxu0
      %v5868 = vadd.f32 %v5844, %v5867
      %v5869 = vpop.f32.mrf.mxu0
      %v5870 = vadd.f32 %v5846, %v5869
      %5871 = vmatmul.bf16.gmra.mxu0 %v1239
      %v5872 = vpop.f32.mrf.mxu0
      %v5873 = vadd.f32 %v5849, %v5872
      %v5874 = vpop.f32.mrf.mxu0
      %v5875 = vadd.f32 %v5851, %v5874
      %5876 = vdwg.mxu0
      %5877 = vmatpush.bf16.msra.mxu0 %v3589
      %5878 = vmatpush.bf16.msra.mxu0 %v3584
      %5879 = vmatpush.bf16.msra.mxu0 %v3579
      %5880 = vmatpush.bf16.msra.mxu0 %v3574
      %5881 = vmatpush.bf16.msra.mxu0 %v3569
      %5882 = vmatpush.bf16.msra.mxu0 %v3564
      %5883 = vmatpush.bf16.msra.mxu0 %v3559
      %5884 = vmatpush.bf16.msra.mxu0 %v3554
      %5885 = vmatmul.bf16.gmra.mxu0 %v1208
      %v5886 = vpop.f32.mrf.mxu0
      %v5887 = vadd.f32 %v5863, %v5886
      %v5888 = vpop.f32.mrf.mxu0
      %v5889 = vadd.f32 %v5865, %v5888
      %5890 = vmatmul.bf16.gmra.mxu0 %v1224
      %v5891 = vpop.f32.mrf.mxu0
      %v5892 = vadd.f32 %v5868, %v5891
      %v5893 = vpop.f32.mrf.mxu0
      %v5894 = vadd.f32 %v5870, %v5893
      %5895 = vmatmul.bf16.gmra.mxu0 %v1240
      %v5896 = vpop.f32.mrf.mxu0
      %v5897 = vadd.f32 %v5873, %v5896
      %v5898 = vpop.f32.mrf.mxu0
      %v5899 = vadd.f32 %v5875, %v5898
      %5900 = vdwg.mxu0
      %5901 = vmatpush.bf16.msra.mxu0 %v3629
      %5902 = vmatpush.bf16.msra.mxu0 %v3624
      %5903 = vmatpush.bf16.msra.mxu0 %v3619
      %5904 = vmatpush.bf16.msra.mxu0 %v3614
      %5905 = vmatpush.bf16.msra.mxu0 %v3609
      %5906 = vmatpush.bf16.msra.mxu0 %v3604
      %5907 = vmatpush.bf16.msra.mxu0 %v3599
      %5908 = vmatpush.bf16.msra.mxu0 %v3594
      %5909 = vmatmul.bf16.gmra.mxu0 %v1209
      %v5910 = vpop.f32.mrf.mxu0
      %v5911 = vadd.f32 %v5887, %v5910
      %v5912 = vpop.f32.mrf.mxu0
      %v5913 = vadd.f32 %v5889, %v5912
      %5914 = vmatmul.bf16.gmra.mxu0 %v1225
      %v5915 = vpop.f32.mrf.mxu0
      %v5916 = vadd.f32 %v5892, %v5915
      %v5917 = vpop.f32.mrf.mxu0
      %v5918 = vadd.f32 %v5894, %v5917
      %5919 = vmatmul.bf16.gmra.mxu0 %v1241
      %v5920 = vpop.f32.mrf.mxu0
      %v5921 = vadd.f32 %v5897, %v5920
      %v5922 = vpop.f32.mrf.mxu0
      %v5923 = vadd.f32 %v5899, %v5922
      %5924 = vdwg.mxu0
      %5925 = vmatpush.bf16.msra.mxu0 %v3669
      %5926 = vmatpush.bf16.msra.mxu0 %v3664
      %5927 = vmatpush.bf16.msra.mxu0 %v3659
      %5928 = vmatpush.bf16.msra.mxu0 %v3654
      %5929 = vmatpush.bf16.msra.mxu0 %v3649
      %5930 = vmatpush.bf16.msra.mxu0 %v3644
      %5931 = vmatpush.bf16.msra.mxu0 %v3639
      %5932 = vmatpush.bf16.msra.mxu0 %v3634
      %5933 = vmatmul.bf16.gmra.mxu0 %v1210
      %v5934 = vpop.f32.mrf.mxu0
      %v5935 = vadd.f32 %v5911, %v5934
      %v5936 = vpop.f32.mrf.mxu0
      %v5937 = vadd.f32 %v5913, %v5936
      %5938 = vmatmul.bf16.gmra.mxu0 %v1226
      %v5939 = vpop.f32.mrf.mxu0
      %v5940 = vadd.f32 %v5916, %v5939
      %v5941 = vpop.f32.mrf.mxu0
      %v5942 = vadd.f32 %v5918, %v5941
      %5943 = vmatmul.bf16.gmra.mxu0 %v1242
      %v5944 = vpop.f32.mrf.mxu0
      %v5945 = vadd.f32 %v5921, %v5944
      %v5946 = vpop.f32.mrf.mxu0
      %v5947 = vadd.f32 %v5923, %v5946
      %5948 = vdwg.mxu0
      %5949 = vmatpush.bf16.msra.mxu0 %v3709
      %5950 = vmatpush.bf16.msra.mxu0 %v3704
      %5951 = vmatpush.bf16.msra.mxu0 %v3699
      %5952 = vmatpush.bf16.msra.mxu0 %v3694
      %5953 = vmatpush.bf16.msra.mxu0 %v3689
      %5954 = vmatpush.bf16.msra.mxu0 %v3684
      %5955 = vmatpush.bf16.msra.mxu0 %v3679
      %5956 = vmatpush.bf16.msra.mxu0 %v3674
      %5957 = vmatmul.bf16.gmra.mxu0 %v1211
      %v5958 = vpop.f32.mrf.mxu0
      %v5959 = vadd.f32 %v5935, %v5958
      %v5960 = vpop.f32.mrf.mxu0
      %v5961 = vadd.f32 %v5937, %v5960
      %5962 = vmatmul.bf16.gmra.mxu0 %v1227
      %v5963 = vpop.f32.mrf.mxu0
      %v5964 = vadd.f32 %v5940, %v5963
      %v5965 = vpop.f32.mrf.mxu0
      %v5966 = vadd.f32 %v5942, %v5965
      %5967 = vmatmul.bf16.gmra.mxu0 %v1243
      %v5968 = vpop.f32.mrf.mxu0
      %v5969 = vadd.f32 %v5945, %v5968
      %v5970 = vpop.f32.mrf.mxu0
      %v5971 = vadd.f32 %v5947, %v5970
      %5972 = vdwg.mxu0
      %5973 = vmatpush.bf16.msra.mxu0 %v3749
      %5974 = vmatpush.bf16.msra.mxu0 %v3744
      %5975 = vmatpush.bf16.msra.mxu0 %v3739
      %5976 = vmatpush.bf16.msra.mxu0 %v3734
      %5977 = vmatpush.bf16.msra.mxu0 %v3729
      %5978 = vmatpush.bf16.msra.mxu0 %v3724
      %5979 = vmatpush.bf16.msra.mxu0 %v3719
      %5980 = vmatpush.bf16.msra.mxu0 %v3714
      %5981 = vmatmul.bf16.gmra.mxu0 %v1212
      %v5982 = vpop.f32.mrf.mxu0
      %v5983 = vadd.f32 %v5959, %v5982
      %v5984 = vpop.f32.mrf.mxu0
      %v5985 = vadd.f32 %v5961, %v5984
      %5986 = vmatmul.bf16.gmra.mxu0 %v1228
      %v5987 = vpop.f32.mrf.mxu0
      %v5988 = vadd.f32 %v5964, %v5987
      %v5989 = vpop.f32.mrf.mxu0
      %v5990 = vadd.f32 %v5966, %v5989
      %5991 = vmatmul.bf16.gmra.mxu0 %v1244
      %v5992 = vpop.f32.mrf.mxu0
      %v5993 = vadd.f32 %v5969, %v5992
      %v5994 = vpop.f32.mrf.mxu0
      %v5995 = vadd.f32 %v5971, %v5994
      %5996 = vdwg.mxu0
      %5997 = vmatpush.bf16.msra.mxu0 %v3789
      %5998 = vmatpush.bf16.msra.mxu0 %v3784
      %5999 = vmatpush.bf16.msra.mxu0 %v3779
      %6000 = vmatpush.bf16.msra.mxu0 %v3774
      %6001 = vmatpush.bf16.msra.mxu0 %v3769
      %6002 = vmatpush.bf16.msra.mxu0 %v3764
      %6003 = vmatpush.bf16.msra.mxu0 %v3759
      %6004 = vmatpush.bf16.msra.mxu0 %v3754
      %6005 = vmatmul.bf16.gmra.mxu0 %v1213
      %v6006 = vpop.f32.mrf.mxu0
      %v6007 = vadd.f32 %v5983, %v6006
      %v6008 = vpop.f32.mrf.mxu0
      %v6009 = vadd.f32 %v5985, %v6008
      %6010 = vmatmul.bf16.gmra.mxu0 %v1229
      %v6011 = vpop.f32.mrf.mxu0
      %v6012 = vadd.f32 %v5988, %v6011
      %v6013 = vpop.f32.mrf.mxu0
      %v6014 = vadd.f32 %v5990, %v6013
      %6015 = vmatmul.bf16.gmra.mxu0 %v1245
      %v6016 = vpop.f32.mrf.mxu0
      %v6017 = vadd.f32 %v5993, %v6016
      %v6018 = vpop.f32.mrf.mxu0
      %v6019 = vadd.f32 %v5995, %v6018
      %6020 = vdwg.mxu0
      %6021 = vmatpush.bf16.msra.mxu0 %v3829
      %6022 = vmatpush.bf16.msra.mxu0 %v3824
      %6023 = vmatpush.bf16.msra.mxu0 %v3819
      %6024 = vmatpush.bf16.msra.mxu0 %v3814
      %6025 = vmatpush.bf16.msra.mxu0 %v3809
      %6026 = vmatpush.bf16.msra.mxu0 %v3804
      %6027 = vmatpush.bf16.msra.mxu0 %v3799
      %6028 = vmatpush.bf16.msra.mxu0 %v3794
      %6029 = vmatmul.bf16.gmra.mxu0 %v1214
      %v6030 = vpop.f32.mrf.mxu0
      %v6031 = vadd.f32 %v6007, %v6030
      %v6032 = vpop.f32.mrf.mxu0
      %v6033 = vadd.f32 %v6009, %v6032
      %6034 = vmatmul.bf16.gmra.mxu0 %v1230
      %v6035 = vpop.f32.mrf.mxu0
      %v6036 = vadd.f32 %v6012, %v6035
      %v6037 = vpop.f32.mrf.mxu0
      %v6038 = vadd.f32 %v6014, %v6037
      %6039 = vmatmul.bf16.gmra.mxu0 %v1246
      %v6040 = vpop.f32.mrf.mxu0
      %v6041 = vadd.f32 %v6017, %v6040
      %v6042 = vpop.f32.mrf.mxu0
      %v6043 = vadd.f32 %v6019, %v6042
      %6044 = vdwg.mxu0
      %6045 = vmatpush.bf16.msra.mxu0 %v3869
      %6046 = vmatpush.bf16.msra.mxu0 %v3864
      %6047 = vmatpush.bf16.msra.mxu0 %v3859
      %6048 = vmatpush.bf16.msra.mxu0 %v3854
      %6049 = vmatpush.bf16.msra.mxu0 %v3849
      %6050 = vmatpush.bf16.msra.mxu0 %v3844
      %6051 = vmatpush.bf16.msra.mxu0 %v3839
      %6052 = vmatpush.bf16.msra.mxu0 %v3834
      %6053 = vmatmul.bf16.gmra.mxu0 %v1215
      %v6054 = vpop.f32.mrf.mxu0
      %v6055 = vadd.f32 %v6031, %v6054
      %v6056 = vpop.f32.mrf.mxu0
      %v6057 = vadd.f32 %v6033, %v6056
      %6058 = vmatmul.bf16.gmra.mxu0 %v1231
      %v6059 = vpop.f32.mrf.mxu0
      %v6060 = vadd.f32 %v6036, %v6059
      %v6061 = vpop.f32.mrf.mxu0
      %v6062 = vadd.f32 %v6038, %v6061
      %6063 = vmatmul.bf16.gmra.mxu0 %v1247
      %v6064 = vpop.f32.mrf.mxu0
      %v6065 = vadd.f32 %v6041, %v6064
      %v6066 = vpop.f32.mrf.mxu0
      %v6067 = vadd.f32 %v6043, %v6066
      %6068 = vdwg.mxu0
      %6069 = vmatpush.bf16.msra.mxu0 %v3909
      %6070 = vmatpush.bf16.msra.mxu0 %v3904
      %6071 = vmatpush.bf16.msra.mxu0 %v3899
      %6072 = vmatpush.bf16.msra.mxu0 %v3894
      %6073 = vmatpush.bf16.msra.mxu0 %v3889
      %6074 = vmatpush.bf16.msra.mxu0 %v3884
      %6075 = vmatpush.bf16.msra.mxu0 %v3879
      %6076 = vmatpush.bf16.msra.mxu0 %v3874
      %6077 = vmatmul.bf16.gmra.mxu0 %v1216
      %v6078 = vpop.f32.mrf.mxu0
      %v6079 = vadd.f32 %v6055, %v6078
      %v6080 = vpop.f32.mrf.mxu0
      %v6081 = vadd.f32 %v6057, %v6080
      %6082 = vmatmul.bf16.gmra.mxu0 %v1232
      %v6083 = vpop.f32.mrf.mxu0
      %v6084 = vadd.f32 %v6060, %v6083
      %v6085 = vpop.f32.mrf.mxu0
      %v6086 = vadd.f32 %v6062, %v6085
      %6087 = vmatmul.bf16.gmra.mxu0 %v1248
      %v6088 = vpop.f32.mrf.mxu0
      %v6089 = vadd.f32 %v6065, %v6088
      %v6090 = vpop.f32.mrf.mxu0
      %v6091 = vadd.f32 %v6067, %v6090
      %6092 = vdwg.mxu0
      %6093 = vmatpush.bf16.msra.mxu0 0
      %6094 = vmatpush.bf16.msra.mxu0 0
      %6095 = vmatpush.bf16.msra.mxu0 %v3939
      %6096 = vmatpush.bf16.msra.mxu0 %v3934
      %6097 = vmatpush.bf16.msra.mxu0 %v3929
      %6098 = vmatpush.bf16.msra.mxu0 %v3924
      %6099 = vmatpush.bf16.msra.mxu0 %v3919
      %6100 = vmatpush.bf16.msra.mxu0 %v3914
      %6101 = vmatmul.bf16.gmra.mxu0 %v4573
      %v6102 = vpop.f32.mrf.mxu0
      %v6103 = vadd.f32 %v6079, %v6102
      %v6104 = vpop.f32.mrf.mxu0
      %v6105 = vadd.f32 %v6081, %v6104
      %6106 = vmatmul.bf16.gmra.mxu0 %v4576
      %v6107 = vpop.f32.mrf.mxu0
      %v6108 = vadd.f32 %v6084, %v6107
      %v6109 = vpop.f32.mrf.mxu0
      %v6110 = vadd.f32 %v6086, %v6109
      %6111 = vmatmul.bf16.gmra.mxu0 %v4579
      %v6112 = vpop.f32.mrf.mxu0
      %v6113 = vadd.f32 %v6089, %v6112
      %v6114 = vpop.f32.mrf.mxu0
      %v6115 = vadd.f32 %v6091, %v6114
      %6116 = vdwg.mxu0
      %6117 = vmatpush.bf16.msra.mxu0 %v3350
      %6118 = vmatpush.bf16.msra.mxu0 %v3345
      %6119 = vmatpush.bf16.msra.mxu0 %v3340
      %6120 = vmatpush.bf16.msra.mxu0 %v3335
      %6121 = vmatpush.bf16.msra.mxu0 %v3330
      %6122 = vmatpush.bf16.msra.mxu0 %v3325
      %6123 = vmatpush.bf16.msra.mxu0 %v3320
      %6124 = vmatpush.bf16.msra.mxu0 %v3315
      %6125 = vmatmul.bf16.gmra.mxu0 %v1202
      %v6126 = vpop.f32.mrf.mxu0
      %v6127 = vadd.f32 0.0, %v6126
      %v6128 = vpop.f32.mrf.mxu0
      %v6129 = vadd.f32 0.0, %v6128
      %6130 = vmatmul.bf16.gmra.mxu0 %v1218
      %v6131 = vpop.f32.mrf.mxu0
      %v6132 = vadd.f32 0.0, %v6131
      %v6133 = vpop.f32.mrf.mxu0
      %v6134 = vadd.f32 0.0, %v6133
      %6135 = vmatmul.bf16.gmra.mxu0 %v1234
      %v6136 = vpop.f32.mrf.mxu0
      %v6137 = vadd.f32 0.0, %v6136
      %v6138 = vpop.f32.mrf.mxu0
      %v6139 = vadd.f32 0.0, %v6138
      %6140 = vdwg.mxu0
      %6141 = vmatpush.bf16.msra.mxu0 %v3390
      %6142 = vmatpush.bf16.msra.mxu0 %v3385
      %6143 = vmatpush.bf16.msra.mxu0 %v3380
      %6144 = vmatpush.bf16.msra.mxu0 %v3375
      %6145 = vmatpush.bf16.msra.mxu0 %v3370
      %6146 = vmatpush.bf16.msra.mxu0 %v3365
      %6147 = vmatpush.bf16.msra.mxu0 %v3360
      %6148 = vmatpush.bf16.msra.mxu0 %v3355
      %6149 = vmatmul.bf16.gmra.mxu0 %v1203
      %v6150 = vpop.f32.mrf.mxu0
      %v6151 = vadd.f32 %v6127, %v6150
      %v6152 = vpop.f32.mrf.mxu0
      %v6153 = vadd.f32 %v6129, %v6152
      %6154 = vmatmul.bf16.gmra.mxu0 %v1219
      %v6155 = vpop.f32.mrf.mxu0
      %v6156 = vadd.f32 %v6132, %v6155
      %v6157 = vpop.f32.mrf.mxu0
      %v6158 = vadd.f32 %v6134, %v6157
      %6159 = vmatmul.bf16.gmra.mxu0 %v1235
      %v6160 = vpop.f32.mrf.mxu0
      %v6161 = vadd.f32 %v6137, %v6160
      %v6162 = vpop.f32.mrf.mxu0
      %v6163 = vadd.f32 %v6139, %v6162
      %6164 = vdwg.mxu0
      %6165 = vmatpush.bf16.msra.mxu0 %v3430
      %6166 = vmatpush.bf16.msra.mxu0 %v3425
      %6167 = vmatpush.bf16.msra.mxu0 %v3420
      %6168 = vmatpush.bf16.msra.mxu0 %v3415
      %6169 = vmatpush.bf16.msra.mxu0 %v3410
      %6170 = vmatpush.bf16.msra.mxu0 %v3405
      %6171 = vmatpush.bf16.msra.mxu0 %v3400
      %6172 = vmatpush.bf16.msra.mxu0 %v3395
      %6173 = vmatmul.bf16.gmra.mxu0 %v1204
      %v6174 = vpop.f32.mrf.mxu0
      %v6175 = vadd.f32 %v6151, %v6174
      %v6176 = vpop.f32.mrf.mxu0
      %v6177 = vadd.f32 %v6153, %v6176
      %6178 = vmatmul.bf16.gmra.mxu0 %v1220
      %v6179 = vpop.f32.mrf.mxu0
      %v6180 = vadd.f32 %v6156, %v6179
      %v6181 = vpop.f32.mrf.mxu0
      %v6182 = vadd.f32 %v6158, %v6181
      %6183 = vmatmul.bf16.gmra.mxu0 %v1236
      %v6184 = vpop.f32.mrf.mxu0
      %v6185 = vadd.f32 %v6161, %v6184
      %v6186 = vpop.f32.mrf.mxu0
      %v6187 = vadd.f32 %v6163, %v6186
      %6188 = vdwg.mxu0
      %6189 = vmatpush.bf16.msra.mxu0 %v3470
      %6190 = vmatpush.bf16.msra.mxu0 %v3465
      %6191 = vmatpush.bf16.msra.mxu0 %v3460
      %6192 = vmatpush.bf16.msra.mxu0 %v3455
      %6193 = vmatpush.bf16.msra.mxu0 %v3450
      %6194 = vmatpush.bf16.msra.mxu0 %v3445
      %6195 = vmatpush.bf16.msra.mxu0 %v3440
      %6196 = vmatpush.bf16.msra.mxu0 %v3435
      %6197 = vmatmul.bf16.gmra.mxu0 %v1205
      %v6198 = vpop.f32.mrf.mxu0
      %v6199 = vadd.f32 %v6175, %v6198
      %v6200 = vpop.f32.mrf.mxu0
      %v6201 = vadd.f32 %v6177, %v6200
      %6202 = vmatmul.bf16.gmra.mxu0 %v1221
      %v6203 = vpop.f32.mrf.mxu0
      %v6204 = vadd.f32 %v6180, %v6203
      %v6205 = vpop.f32.mrf.mxu0
      %v6206 = vadd.f32 %v6182, %v6205
      %6207 = vmatmul.bf16.gmra.mxu0 %v1237
      %v6208 = vpop.f32.mrf.mxu0
      %v6209 = vadd.f32 %v6185, %v6208
      %v6210 = vpop.f32.mrf.mxu0
      %v6211 = vadd.f32 %v6187, %v6210
      %6212 = vdwg.mxu0
      %6213 = vmatpush.bf16.msra.mxu0 %v3510
      %6214 = vmatpush.bf16.msra.mxu0 %v3505
      %6215 = vmatpush.bf16.msra.mxu0 %v3500
      %6216 = vmatpush.bf16.msra.mxu0 %v3495
      %6217 = vmatpush.bf16.msra.mxu0 %v3490
      %6218 = vmatpush.bf16.msra.mxu0 %v3485
      %6219 = vmatpush.bf16.msra.mxu0 %v3480
      %6220 = vmatpush.bf16.msra.mxu0 %v3475
      %6221 = vmatmul.bf16.gmra.mxu0 %v1206
      %v6222 = vpop.f32.mrf.mxu0
      %v6223 = vadd.f32 %v6199, %v6222
      %v6224 = vpop.f32.mrf.mxu0
      %v6225 = vadd.f32 %v6201, %v6224
      %6226 = vmatmul.bf16.gmra.mxu0 %v1222
      %v6227 = vpop.f32.mrf.mxu0
      %v6228 = vadd.f32 %v6204, %v6227
      %v6229 = vpop.f32.mrf.mxu0
      %v6230 = vadd.f32 %v6206, %v6229
      %6231 = vmatmul.bf16.gmra.mxu0 %v1238
      %v6232 = vpop.f32.mrf.mxu0
      %v6233 = vadd.f32 %v6209, %v6232
      %v6234 = vpop.f32.mrf.mxu0
      %v6235 = vadd.f32 %v6211, %v6234
      %6236 = vdwg.mxu0
      %6237 = vmatpush.bf16.msra.mxu0 %v3550
      %6238 = vmatpush.bf16.msra.mxu0 %v3545
      %6239 = vmatpush.bf16.msra.mxu0 %v3540
      %6240 = vmatpush.bf16.msra.mxu0 %v3535
      %6241 = vmatpush.bf16.msra.mxu0 %v3530
      %6242 = vmatpush.bf16.msra.mxu0 %v3525
      %6243 = vmatpush.bf16.msra.mxu0 %v3520
      %6244 = vmatpush.bf16.msra.mxu0 %v3515
      %6245 = vmatmul.bf16.gmra.mxu0 %v1207
      %v6246 = vpop.f32.mrf.mxu0
      %v6247 = vadd.f32 %v6223, %v6246
      %v6248 = vpop.f32.mrf.mxu0
      %v6249 = vadd.f32 %v6225, %v6248
      %6250 = vmatmul.bf16.gmra.mxu0 %v1223
      %v6251 = vpop.f32.mrf.mxu0
      %v6252 = vadd.f32 %v6228, %v6251
      %v6253 = vpop.f32.mrf.mxu0
      %v6254 = vadd.f32 %v6230, %v6253
      %6255 = vmatmul.bf16.gmra.mxu0 %v1239
      %v6256 = vpop.f32.mrf.mxu0
      %v6257 = vadd.f32 %v6233, %v6256
      %v6258 = vpop.f32.mrf.mxu0
      %v6259 = vadd.f32 %v6235, %v6258
      %6260 = vdwg.mxu0
      %6261 = vmatpush.bf16.msra.mxu0 %v3590
      %6262 = vmatpush.bf16.msra.mxu0 %v3585
      %6263 = vmatpush.bf16.msra.mxu0 %v3580
      %6264 = vmatpush.bf16.msra.mxu0 %v3575
      %6265 = vmatpush.bf16.msra.mxu0 %v3570
      %6266 = vmatpush.bf16.msra.mxu0 %v3565
      %6267 = vmatpush.bf16.msra.mxu0 %v3560
      %6268 = vmatpush.bf16.msra.mxu0 %v3555
      %6269 = vmatmul.bf16.gmra.mxu0 %v1208
      %v6270 = vpop.f32.mrf.mxu0
      %v6271 = vadd.f32 %v6247, %v6270
      %v6272 = vpop.f32.mrf.mxu0
      %v6273 = vadd.f32 %v6249, %v6272
      %6274 = vmatmul.bf16.gmra.mxu0 %v1224
      %v6275 = vpop.f32.mrf.mxu0
      %v6276 = vadd.f32 %v6252, %v6275
      %v6277 = vpop.f32.mrf.mxu0
      %v6278 = vadd.f32 %v6254, %v6277
      %6279 = vmatmul.bf16.gmra.mxu0 %v1240
      %v6280 = vpop.f32.mrf.mxu0
      %v6281 = vadd.f32 %v6257, %v6280
      %v6282 = vpop.f32.mrf.mxu0
      %v6283 = vadd.f32 %v6259, %v6282
      %6284 = vdwg.mxu0
      %6285 = vmatpush.bf16.msra.mxu0 %v3630
      %6286 = vmatpush.bf16.msra.mxu0 %v3625
      %6287 = vmatpush.bf16.msra.mxu0 %v3620
      %6288 = vmatpush.bf16.msra.mxu0 %v3615
      %6289 = vmatpush.bf16.msra.mxu0 %v3610
      %6290 = vmatpush.bf16.msra.mxu0 %v3605
      %6291 = vmatpush.bf16.msra.mxu0 %v3600
      %6292 = vmatpush.bf16.msra.mxu0 %v3595
      %6293 = vmatmul.bf16.gmra.mxu0 %v1209
      %v6294 = vpop.f32.mrf.mxu0
      %v6295 = vadd.f32 %v6271, %v6294
      %v6296 = vpop.f32.mrf.mxu0
      %v6297 = vadd.f32 %v6273, %v6296
      %6298 = vmatmul.bf16.gmra.mxu0 %v1225
      %v6299 = vpop.f32.mrf.mxu0
      %v6300 = vadd.f32 %v6276, %v6299
      %v6301 = vpop.f32.mrf.mxu0
      %v6302 = vadd.f32 %v6278, %v6301
      %6303 = vmatmul.bf16.gmra.mxu0 %v1241
      %v6304 = vpop.f32.mrf.mxu0
      %v6305 = vadd.f32 %v6281, %v6304
      %v6306 = vpop.f32.mrf.mxu0
      %v6307 = vadd.f32 %v6283, %v6306
      %6308 = vdwg.mxu0
      %6309 = vmatpush.bf16.msra.mxu0 %v3670
      %6310 = vmatpush.bf16.msra.mxu0 %v3665
      %6311 = vmatpush.bf16.msra.mxu0 %v3660
      %6312 = vmatpush.bf16.msra.mxu0 %v3655
      %6313 = vmatpush.bf16.msra.mxu0 %v3650
      %6314 = vmatpush.bf16.msra.mxu0 %v3645
      %6315 = vmatpush.bf16.msra.mxu0 %v3640
      %6316 = vmatpush.bf16.msra.mxu0 %v3635
      %6317 = vmatmul.bf16.gmra.mxu0 %v1210
      %v6318 = vpop.f32.mrf.mxu0
      %v6319 = vadd.f32 %v6295, %v6318
      %v6320 = vpop.f32.mrf.mxu0
      %v6321 = vadd.f32 %v6297, %v6320
      %6322 = vmatmul.bf16.gmra.mxu0 %v1226
      %v6323 = vpop.f32.mrf.mxu0
      %v6324 = vadd.f32 %v6300, %v6323
      %v6325 = vpop.f32.mrf.mxu0
      %v6326 = vadd.f32 %v6302, %v6325
      %6327 = vmatmul.bf16.gmra.mxu0 %v1242
      %v6328 = vpop.f32.mrf.mxu0
      %v6329 = vadd.f32 %v6305, %v6328
      %v6330 = vpop.f32.mrf.mxu0
      %v6331 = vadd.f32 %v6307, %v6330
      %6332 = vdwg.mxu0
      %6333 = vmatpush.bf16.msra.mxu0 %v3710
      %6334 = vmatpush.bf16.msra.mxu0 %v3705
      %6335 = vmatpush.bf16.msra.mxu0 %v3700
      %6336 = vmatpush.bf16.msra.mxu0 %v3695
      %6337 = vmatpush.bf16.msra.mxu0 %v3690
      %6338 = vmatpush.bf16.msra.mxu0 %v3685
      %6339 = vmatpush.bf16.msra.mxu0 %v3680
      %6340 = vmatpush.bf16.msra.mxu0 %v3675
      %6341 = vmatmul.bf16.gmra.mxu0 %v1211
      %v6342 = vpop.f32.mrf.mxu0
      %v6343 = vadd.f32 %v6319, %v6342
      %v6344 = vpop.f32.mrf.mxu0
      %v6345 = vadd.f32 %v6321, %v6344
      %6346 = vmatmul.bf16.gmra.mxu0 %v1227
      %v6347 = vpop.f32.mrf.mxu0
      %v6348 = vadd.f32 %v6324, %v6347
      %v6349 = vpop.f32.mrf.mxu0
      %v6350 = vadd.f32 %v6326, %v6349
      %6351 = vmatmul.bf16.gmra.mxu0 %v1243
      %v6352 = vpop.f32.mrf.mxu0
      %v6353 = vadd.f32 %v6329, %v6352
      %v6354 = vpop.f32.mrf.mxu0
      %v6355 = vadd.f32 %v6331, %v6354
      %6356 = vdwg.mxu0
      %6357 = vmatpush.bf16.msra.mxu0 %v3750
      %6358 = vmatpush.bf16.msra.mxu0 %v3745
      %6359 = vmatpush.bf16.msra.mxu0 %v3740
      %6360 = vmatpush.bf16.msra.mxu0 %v3735
      %6361 = vmatpush.bf16.msra.mxu0 %v3730
      %6362 = vmatpush.bf16.msra.mxu0 %v3725
      %6363 = vmatpush.bf16.msra.mxu0 %v3720
      %6364 = vmatpush.bf16.msra.mxu0 %v3715
      %6365 = vmatmul.bf16.gmra.mxu0 %v1212
      %v6366 = vpop.f32.mrf.mxu0
      %v6367 = vadd.f32 %v6343, %v6366
      %v6368 = vpop.f32.mrf.mxu0
      %v6369 = vadd.f32 %v6345, %v6368
      %6370 = vmatmul.bf16.gmra.mxu0 %v1228
      %v6371 = vpop.f32.mrf.mxu0
      %v6372 = vadd.f32 %v6348, %v6371
      %v6373 = vpop.f32.mrf.mxu0
      %v6374 = vadd.f32 %v6350, %v6373
      %6375 = vmatmul.bf16.gmra.mxu0 %v1244
      %v6376 = vpop.f32.mrf.mxu0
      %v6377 = vadd.f32 %v6353, %v6376
      %v6378 = vpop.f32.mrf.mxu0
      %v6379 = vadd.f32 %v6355, %v6378
      %6380 = vdwg.mxu0
      %6381 = vmatpush.bf16.msra.mxu0 %v3790
      %6382 = vmatpush.bf16.msra.mxu0 %v3785
      %6383 = vmatpush.bf16.msra.mxu0 %v3780
      %6384 = vmatpush.bf16.msra.mxu0 %v3775
      %6385 = vmatpush.bf16.msra.mxu0 %v3770
      %6386 = vmatpush.bf16.msra.mxu0 %v3765
      %6387 = vmatpush.bf16.msra.mxu0 %v3760
      %6388 = vmatpush.bf16.msra.mxu0 %v3755
      %6389 = vmatmul.bf16.gmra.mxu0 %v1213
      %v6390 = vpop.f32.mrf.mxu0
      %v6391 = vadd.f32 %v6367, %v6390
      %v6392 = vpop.f32.mrf.mxu0
      %v6393 = vadd.f32 %v6369, %v6392
      %6394 = vmatmul.bf16.gmra.mxu0 %v1229
      %v6395 = vpop.f32.mrf.mxu0
      %v6396 = vadd.f32 %v6372, %v6395
      %v6397 = vpop.f32.mrf.mxu0
      %v6398 = vadd.f32 %v6374, %v6397
      %6399 = vmatmul.bf16.gmra.mxu0 %v1245
      %v6400 = vpop.f32.mrf.mxu0
      %v6401 = vadd.f32 %v6377, %v6400
      %v6402 = vpop.f32.mrf.mxu0
      %v6403 = vadd.f32 %v6379, %v6402
      %6404 = vdwg.mxu0
      %6405 = vmatpush.bf16.msra.mxu0 %v3830
      %6406 = vmatpush.bf16.msra.mxu0 %v3825
      %6407 = vmatpush.bf16.msra.mxu0 %v3820
      %6408 = vmatpush.bf16.msra.mxu0 %v3815
      %6409 = vmatpush.bf16.msra.mxu0 %v3810
      %6410 = vmatpush.bf16.msra.mxu0 %v3805
      %6411 = vmatpush.bf16.msra.mxu0 %v3800
      %6412 = vmatpush.bf16.msra.mxu0 %v3795
      %6413 = vmatmul.bf16.gmra.mxu0 %v1214
      %v6414 = vpop.f32.mrf.mxu0
      %v6415 = vadd.f32 %v6391, %v6414
      %v6416 = vpop.f32.mrf.mxu0
      %v6417 = vadd.f32 %v6393, %v6416
      %6418 = vmatmul.bf16.gmra.mxu0 %v1230
      %v6419 = vpop.f32.mrf.mxu0
      %v6420 = vadd.f32 %v6396, %v6419
      %v6421 = vpop.f32.mrf.mxu0
      %v6422 = vadd.f32 %v6398, %v6421
      %6423 = vmatmul.bf16.gmra.mxu0 %v1246
      %v6424 = vpop.f32.mrf.mxu0
      %v6425 = vadd.f32 %v6401, %v6424
      %v6426 = vpop.f32.mrf.mxu0
      %v6427 = vadd.f32 %v6403, %v6426
      %6428 = vdwg.mxu0
      %6429 = vmatpush.bf16.msra.mxu0 %v3870
      %6430 = vmatpush.bf16.msra.mxu0 %v3865
      %6431 = vmatpush.bf16.msra.mxu0 %v3860
      %6432 = vmatpush.bf16.msra.mxu0 %v3855
      %6433 = vmatpush.bf16.msra.mxu0 %v3850
      %6434 = vmatpush.bf16.msra.mxu0 %v3845
      %6435 = vmatpush.bf16.msra.mxu0 %v3840
      %6436 = vmatpush.bf16.msra.mxu0 %v3835
      %6437 = vmatmul.bf16.gmra.mxu0 %v1215
      %v6438 = vpop.f32.mrf.mxu0
      %v6439 = vadd.f32 %v6415, %v6438
      %v6440 = vpop.f32.mrf.mxu0
      %v6441 = vadd.f32 %v6417, %v6440
      %6442 = vmatmul.bf16.gmra.mxu0 %v1231
      %v6443 = vpop.f32.mrf.mxu0
      %v6444 = vadd.f32 %v6420, %v6443
      %v6445 = vpop.f32.mrf.mxu0
      %v6446 = vadd.f32 %v6422, %v6445
      %6447 = vmatmul.bf16.gmra.mxu0 %v1247
      %v6448 = vpop.f32.mrf.mxu0
      %v6449 = vadd.f32 %v6425, %v6448
      %v6450 = vpop.f32.mrf.mxu0
      %v6451 = vadd.f32 %v6427, %v6450
      %6452 = vdwg.mxu0
      %6453 = vmatpush.bf16.msra.mxu0 %v3910
      %6454 = vmatpush.bf16.msra.mxu0 %v3905
      %6455 = vmatpush.bf16.msra.mxu0 %v3900
      %6456 = vmatpush.bf16.msra.mxu0 %v3895
      %6457 = vmatpush.bf16.msra.mxu0 %v3890
      %6458 = vmatpush.bf16.msra.mxu0 %v3885
      %6459 = vmatpush.bf16.msra.mxu0 %v3880
      %6460 = vmatpush.bf16.msra.mxu0 %v3875
      %6461 = vmatmul.bf16.gmra.mxu0 %v1216
      %v6462 = vpop.f32.mrf.mxu0
      %v6463 = vadd.f32 %v6439, %v6462
      %v6464 = vpop.f32.mrf.mxu0
      %v6465 = vadd.f32 %v6441, %v6464
      %6466 = vmatmul.bf16.gmra.mxu0 %v1232
      %v6467 = vpop.f32.mrf.mxu0
      %v6468 = vadd.f32 %v6444, %v6467
      %v6469 = vpop.f32.mrf.mxu0
      %v6470 = vadd.f32 %v6446, %v6469
      %6471 = vmatmul.bf16.gmra.mxu0 %v1248
      %v6472 = vpop.f32.mrf.mxu0
      %v6473 = vadd.f32 %v6449, %v6472
      %v6474 = vpop.f32.mrf.mxu0
      %v6475 = vadd.f32 %v6451, %v6474
      %6476 = vdwg.mxu0
      %6477 = vmatpush.bf16.msra.mxu0 0
      %6478 = vmatpush.bf16.msra.mxu0 0
      %6479 = vmatpush.bf16.msra.mxu0 %v3940
      %6480 = vmatpush.bf16.msra.mxu0 %v3935
      %6481 = vmatpush.bf16.msra.mxu0 %v3930
      %6482 = vmatpush.bf16.msra.mxu0 %v3925
      %6483 = vmatpush.bf16.msra.mxu0 %v3920
      %6484 = vmatpush.bf16.msra.mxu0 %v3915
      %6485 = vmatmul.bf16.gmra.mxu0 %v4573
      %v6486 = vpop.f32.mrf.mxu0
      %v6487 = vadd.f32 %v6463, %v6486
      %v6488 = vpop.f32.mrf.mxu0
      %v6489 = vadd.f32 %v6465, %v6488
      %6490 = vmatmul.bf16.gmra.mxu0 %v4576
      %v6491 = vpop.f32.mrf.mxu0
      %v6492 = vadd.f32 %v6468, %v6491
      %v6493 = vpop.f32.mrf.mxu0
      %v6494 = vadd.f32 %v6470, %v6493
      %6495 = vmatmul.bf16.gmra.mxu0 %v4579
      %v6496 = vpop.f32.mrf.mxu0
      %v6497 = vadd.f32 %v6473, %v6496
      %v6498 = vpop.f32.mrf.mxu0
      %v6499 = vadd.f32 %v6475, %v6498
      %6500 = vdwg.mxu0
      %v6501 = vld [vmem:[%s247] sm:$0xff]
      %v6502 = vld [vmem:[%s247 + $0x8] sm:$0xf]
      %v6503 = vld [vmem:[%s247 + $0xc] sm:$0xff]
      %v6504 = vld [vmem:[%s247 + $0x14] sm:$0xf]
      %v6505 = vld [vmem:[%s247 + $0x18] sm:$0xff]
      %v6506 = vld [vmem:[%s247 + $0x20] sm:$0xf]
      %v6507 = vld [vmem:[%s247 + $0x24] sm:$0xff]
      %v6508 = vld [vmem:[%s247 + $0x2c] sm:$0xf]
      %v6509 = vld [vmem:[%s247 + $0x30] sm:$0xff]
      %v6510 = vld [vmem:[%s247 + $0x38] sm:$0xf]
      %v6511 = vld [vmem:[%s247 + $0x3c] sm:$0xff]
      %v6512 = vld [vmem:[%s247 + $0x44] sm:$0xf]
      %v6513 = vld [vmem:[%s247 + $0x48] sm:$0xff]
      %v6514 = vld [vmem:[%s247 + $0x50] sm:$0xf]
      %v6515 = vld [vmem:[%s247 + $0x54] sm:$0xff]
      %v6516 = vld [vmem:[%s247 + $0x5c] sm:$0xf]
      %v6517 = vld [vmem:[%s247 + $0x60] sm:$0xff]
      %v6518 = vld [vmem:[%s247 + $0x68] sm:$0xf]
      %v6519 = vld [vmem:[%s247 + $0x6c] sm:$0xff]
      %v6520 = vld [vmem:[%s247 + $0x74] sm:$0xf]
      %v6521 = vld [vmem:[%s247 + $0x78] sm:$0xff]
      %v6522 = vld [vmem:[%s247 + $0x80] sm:$0xf]
      %v6523 = vld [vmem:[%s247 + $0x84] sm:$0xff]
      %v6524 = vld [vmem:[%s247 + $0x8c] sm:$0xf]
      %v6525 = vld [vmem:[%s247 + $0x90] sm:$0xff]
      %v6526 = vld [vmem:[%s247 + $0x98] sm:$0xf]
      %v6527 = vld [vmem:[%s247 + $0x9c] sm:$0xff]
      %v6528 = vld [vmem:[%s247 + $0xa4] sm:$0xf]
      %v6529 = vld [vmem:[%s247 + $0xa8] sm:$0xff]
      %v6530 = vld [vmem:[%s247 + $0xb0] sm:$0xf]
      %v6531 = vld [vmem:[%s247 + $0xb4] sm:$0xff]
      %v6532 = vld [vmem:[%s247 + $0xbc] sm:$0xf]
      %v6533 = vld [vmem:[%s247 + $0xc0] sm:$0xff]
      %v6534 = vld [vmem:[%s247 + $0xc8] sm:$0xf]
      %v6535 = vld [vmem:[%s247 + $0xcc] sm:$0xff]
      %v6536 = vld [vmem:[%s247 + $0xd4] sm:$0xf]
      %v6537 = vld [vmem:[%s247 + $0xd8] sm:$0xff]
      %v6538 = vld [vmem:[%s247 + $0xe0] sm:$0xf]
      %v6539 = vld [vmem:[%s247 + $0xe4] sm:$0xff]
      %v6540 = vld [vmem:[%s247 + $0xec] sm:$0xf]
      %v6541 = vld [vmem:[%s247 + $0xf0] sm:$0xff]
      %v6542 = vld [vmem:[%s247 + $0xf8] sm:$0xf]
      %v6543 = vld [vmem:[%s247 + $0xfc] sm:$0xff]
      %v6544 = vld [vmem:[%s247 + $0x104] sm:$0xf]
      %v6545 = vld [vmem:[%s247 + $0x108] sm:$0xff]
      %v6546 = vld [vmem:[%s247 + $0x110] sm:$0xf]
      %v6547 = vld [vmem:[%s247 + $0x114] sm:$0xff]
      %v6548 = vld [vmem:[%s247 + $0x11c] sm:$0xf]
      %v6549 = vld [vmem:[%s247 + $0x120] sm:$0xff]
      %v6550 = vld [vmem:[%s247 + $0x128] sm:$0xf]
      %v6551 = vld [vmem:[%s247 + $0x12c] sm:$0xff]
      %v6552 = vld [vmem:[%s247 + $0x134] sm:$0xf]
      %v6553 = vld [vmem:[%s247 + $0x138] sm:$0xff]
      %v6554 = vld [vmem:[%s247 + $0x140] sm:$0xf]
      %v6555 = vld [vmem:[%s247 + $0x144] sm:$0xff]
      %v6556 = vld [vmem:[%s247 + $0x14c] sm:$0xf]
      %v6557 = vld [vmem:[%s247 + $0x150] sm:$0xff]
      %v6558 = vld [vmem:[%s247 + $0x158] sm:$0xf]
      %v6559 = vld [vmem:[%s247 + $0x15c] sm:$0xff]
      %v6560 = vld [vmem:[%s247 + $0x164] sm:$0xf]
      %v6561 = vld [vmem:[%s247 + $0x168] sm:$0xff]
      %v6562 = vld [vmem:[%s247 + $0x170] sm:$0xf]
      %v6563 = vld [vmem:[%s247 + $0x174] sm:$0xff]
      %v6564 = vld [vmem:[%s247 + $0x17c] sm:$0xf]
      %v6565 = vld [vmem:[%s247 + $0x180] sm:$0xff]
      %v6566 = vld [vmem:[%s247 + $0x188] sm:$0xf]
      %v6567 = vld [vmem:[%s247 + $0x18c] sm:$0xff]
      %v6568 = vld [vmem:[%s247 + $0x194] sm:$0xf]
      %v6569 = vld [vmem:[%s247 + $0x198] sm:$0xff]
      %v6570 = vld [vmem:[%s247 + $0x1a0] sm:$0xf]
      %v6571 = vld [vmem:[%s247 + $0x1a4] sm:$0xff]
      %v6572 = vld [vmem:[%s247 + $0x1ac] sm:$0xf]
      %v6573 = vld [vmem:[%s247 + $0x1b0] sm:$0xff]
      %v6574 = vld [vmem:[%s247 + $0x1b8] sm:$0xf]
      %v6575 = vld [vmem:[%s247 + $0x1bc] sm:$0xff]
      %v6576 = vld [vmem:[%s247 + $0x1c4] sm:$0xf]
      %v6577 = vld [vmem:[%s247 + $0x1c8] sm:$0xff]
      %v6578 = vld [vmem:[%s247 + $0x1d0] sm:$0xf]
      %v6579 = vld [vmem:[%s247 + $0x1d4] sm:$0xff]
      %v6580 = vld [vmem:[%s247 + $0x1dc] sm:$0xf]
      %v6581 = vld [vmem:[%s247 + $0x1e0] sm:$0xff]
      %v6582 = vld [vmem:[%s247 + $0x1e8] sm:$0xf]
      %v6583 = vld [vmem:[%s247 + $0x1ec] sm:$0xff]
      %v6584 = vld [vmem:[%s247 + $0x1f4] sm:$0xf]
      %v6585 = vld [vmem:[%s247 + $0x1f8] sm:$0xff]
      %v6586 = vld [vmem:[%s247 + $0x200] sm:$0xf]
      %v6587 = vld [vmem:[%s247 + $0x204] sm:$0xff]
      %v6588 = vld [vmem:[%s247 + $0x20c] sm:$0xf]
      %v6589 = vld [vmem:[%s247 + $0x210] sm:$0xff]
      %v6590 = vld [vmem:[%s247 + $0x218] sm:$0xf]
      %v6591 = vld [vmem:[%s247 + $0x21c] sm:$0xff]
      %v6592 = vld [vmem:[%s247 + $0x224] sm:$0xf]
      %v6593 = vld [vmem:[%s247 + $0x228] sm:$0xff]
      %v6594 = vld [vmem:[%s247 + $0x230] sm:$0xf]
      %v6595 = vld [vmem:[%s247 + $0x234] sm:$0xff]
      %v6596 = vld [vmem:[%s247 + $0x23c] sm:$0xf]
      %v6597 = vld [vmem:[%s247 + $0x240] sm:$0xff]
      %v6598 = vld [vmem:[%s247 + $0x248] sm:$0xf]
      %v6599 = vld [vmem:[%s247 + $0x24c] sm:$0xff]
      %v6600 = vld [vmem:[%s247 + $0x254] sm:$0xf]
      %v6601 = vld [vmem:[%s247 + $0x258] sm:$0xff]
      %v6602 = vld [vmem:[%s247 + $0x260] sm:$0xf]
      %v6603 = vld [vmem:[%s247 + $0x264] sm:$0xff]
      %v6604 = vld [vmem:[%s247 + $0x26c] sm:$0xf]
      %v6605 = vld [vmem:[%s247 + $0x270] sm:$0xff]
      %v6606 = vld [vmem:[%s247 + $0x278] sm:$0xf]
      %v6607 = vld [vmem:[%s247 + $0x27c] sm:$0xff]
      %v6608 = vld [vmem:[%s247 + $0x284] sm:$0xf]
      %v6609 = vld [vmem:[%s247 + $0x288] sm:$0xff]
      %v6610 = vld [vmem:[%s247 + $0x290] sm:$0xf]
      %v6611 = vld [vmem:[%s247 + $0x294] sm:$0xff]
      %v6612 = vld [vmem:[%s247 + $0x29c] sm:$0xf]
      %v6613 = vld [vmem:[%s247 + $0x2a0] sm:$0xff]
      %v6614 = vld [vmem:[%s247 + $0x2a8] sm:$0xf]
      %v6615 = vld [vmem:[%s247 + $0x2ac] sm:$0xff]
      %v6616 = vld [vmem:[%s247 + $0x2b4] sm:$0xf]
      %v6617 = vld [vmem:[%s247 + $0x2b8] sm:$0xff]
      %v6618 = vld [vmem:[%s247 + $0x2c0] sm:$0xf]
      %v6619 = vld [vmem:[%s247 + $0x2c4] sm:$0xff]
      %v6620 = vld [vmem:[%s247 + $0x2cc] sm:$0xf]
      %v6621 = vld [vmem:[%s247 + $0x2d0] sm:$0xff]
      %v6622 = vld [vmem:[%s247 + $0x2d8] sm:$0xf]
      %v6623 = vld [vmem:[%s247 + $0x2dc] sm:$0xff]
      %v6624 = vld [vmem:[%s247 + $0x2e4] sm:$0xf]
      %v6625 = vld [vmem:[%s247 + $0x2e8] sm:$0xff]
      %v6626 = vld [vmem:[%s247 + $0x2f0] sm:$0xf]
      %v6627 = vld [vmem:[%s247 + $0x2f4] sm:$0xff]
      %v6628 = vld [vmem:[%s247 + $0x2fc] sm:$0xf]
      %v6629 = vld [vmem:[%s4] sm:$0xff]
      %v6630 = vld [vmem:[%s4 + $0x8] sm:$0xff]
      %v6631 = vld [vmem:[%s4 + $0x10] sm:$0xff]
      %v6632 = vld [vmem:[%s4 + $0x18] sm:$0xff]
      %v6633 = vld [vmem:[%s4 + $0x20] sm:$0xff]
      %v6634 = vld [vmem:[%s4 + $0x28] sm:$0xff]
      %v6635 = vld [vmem:[%s4 + $0x30] sm:$0xff]
      %v6636 = vld [vmem:[%s4 + $0x38] sm:$0xff]
      %v6637 = vld [vmem:[%s4 + $0x40] sm:$0xff]
      %v6638 = vld [vmem:[%s4 + $0x48] sm:$0xff]
      %v6639 = vld [vmem:[%s4 + $0x50] sm:$0xff]
      %v6640 = vld [vmem:[%s4 + $0x58] sm:$0xff]
      %v6641 = vld [vmem:[%s4 + $0x60] sm:$0xff]
      %v6642 = vld [vmem:[%s4 + $0x68] sm:$0xff]
      %v6643 = vld [vmem:[%s4 + $0x70] sm:$0xff]
      %v6644 = vld [vmem:[%s4 + $0x78] sm:$0xff]
      %v6645 = vld [vmem:[%s4 + $0x80] sm:$0xff]
      %v6646 = vld [vmem:[%s4 + $0x88] sm:$0xff]
      %v6647 = vld [vmem:[%s4 + $0x90] sm:$0xff]
      %v6648 = vld [vmem:[%s4 + $0x98] sm:$0xff]
      %v6649 = vld [vmem:[%s4 + $0xa0] sm:$0xff]
      %v6650 = vld [vmem:[%s4 + $0xa8] sm:$0xff]
      %v6651 = vld [vmem:[%s4 + $0xb0] sm:$0xff]
      %v6652 = vld [vmem:[%s4 + $0xb8] sm:$0xff]
      %v6653 = vld [vmem:[%s4 + $0xc0] sm:$0xff]
      %v6654 = vld [vmem:[%s4 + $0xc8] sm:$0xff]
      %v6655 = vld [vmem:[%s4 + $0xd0] sm:$0xff]
      %v6656 = vld [vmem:[%s4 + $0xd8] sm:$0xff]
      %v6657 = vld [vmem:[%s4 + $0xe0] sm:$0xff]
      %v6658 = vld [vmem:[%s4 + $0xe8] sm:$0xff]
      %v6659 = vld [vmem:[%s4 + $0xf0] sm:$0xff]
      %v6660 = vld [vmem:[%s4 + $0xf8] sm:$0xff]
      %v6661 = vld [vmem:[%s4 + $0x100] sm:$0xff]
      %v6662 = vld [vmem:[%s4 + $0x108] sm:$0xff]
      %v6663 = vld [vmem:[%s4 + $0x110] sm:$0xff]
      %v6664 = vld [vmem:[%s4 + $0x118] sm:$0xff]
      %v6665 = vld [vmem:[%s4 + $0x120] sm:$0xff]
      %v6666 = vld [vmem:[%s4 + $0x128] sm:$0xff]
      %v6667 = vld [vmem:[%s4 + $0x130] sm:$0xff]
      %v6668 = vld [vmem:[%s4 + $0x138] sm:$0xff]
      %v6669 = vld [vmem:[%s4 + $0x140] sm:$0xff]
      %v6670 = vld [vmem:[%s4 + $0x148] sm:$0xff]
      %v6671 = vld [vmem:[%s4 + $0x150] sm:$0xff]
      %v6672 = vld [vmem:[%s4 + $0x158] sm:$0xff]
      %v6673 = vld [vmem:[%s4 + $0x160] sm:$0xff]
      %v6674 = vld [vmem:[%s4 + $0x168] sm:$0xff]
      %v6675 = vld [vmem:[%s4 + $0x170] sm:$0xff]
      %v6676 = vld [vmem:[%s4 + $0x178] sm:$0xff]
      %v6805 = vunpack.c.l.b16 %v6501
      %v6806 = vunpack.c.h.b16 %v6501
      %v6807 = vunpack.c.l.b16 %v6502
      %v6808 = vunpack.c.l.b16 %v6503
      %v6809 = vunpack.c.h.b16 %v6503
      %v6810 = vunpack.c.l.b16 %v6504
      %v6811 = vunpack.c.l.b16 %v6505
      %v6812 = vunpack.c.h.b16 %v6505
      %v6813 = vunpack.c.l.b16 %v6506
      %v6814 = vunpack.c.l.b16 %v6507
      %v6815 = vunpack.c.h.b16 %v6507
      %v6816 = vunpack.c.l.b16 %v6508
      %v6817 = vunpack.c.l.b16 %v6509
      %v6818 = vunpack.c.h.b16 %v6509
      %v6819 = vunpack.c.l.b16 %v6510
      %v6820 = vunpack.c.l.b16 %v6511
      %v6821 = vunpack.c.h.b16 %v6511
      %v6822 = vunpack.c.l.b16 %v6512
      %v6823 = vunpack.c.l.b16 %v6513
      %v6824 = vunpack.c.h.b16 %v6513
      %v6825 = vunpack.c.l.b16 %v6514
      %v6826 = vunpack.c.l.b16 %v6515
      %v6827 = vunpack.c.h.b16 %v6515
      %v6828 = vunpack.c.l.b16 %v6516
      %v6829 = vunpack.c.l.b16 %v6517
      %v6830 = vunpack.c.h.b16 %v6517
      %v6831 = vunpack.c.l.b16 %v6518
      %v6832 = vunpack.c.l.b16 %v6519
      %v6833 = vunpack.c.h.b16 %v6519
      %v6834 = vunpack.c.l.b16 %v6520
      %v6835 = vunpack.c.l.b16 %v6521
      %v6836 = vunpack.c.h.b16 %v6521
      %v6837 = vunpack.c.l.b16 %v6522
      %v6838 = vunpack.c.l.b16 %v6523
      %v6839 = vunpack.c.h.b16 %v6523
      %v6840 = vunpack.c.l.b16 %v6524
      %v6841 = vunpack.c.l.b16 %v6525
      %v6842 = vunpack.c.h.b16 %v6525
      %v6843 = vunpack.c.l.b16 %v6526
      %v6844 = vunpack.c.l.b16 %v6527
      %v6845 = vunpack.c.h.b16 %v6527
      %v6846 = vunpack.c.l.b16 %v6528
      %v6847 = vunpack.c.l.b16 %v6529
      %v6848 = vunpack.c.h.b16 %v6529
      %v6849 = vunpack.c.l.b16 %v6530
      %v6850 = vunpack.c.l.b16 %v6531
      %v6851 = vunpack.c.h.b16 %v6531
      %v6852 = vunpack.c.l.b16 %v6532
      %v6853 = vunpack.c.l.b16 %v6533
      %v6854 = vunpack.c.h.b16 %v6533
      %v6855 = vunpack.c.l.b16 %v6534
      %v6856 = vunpack.c.l.b16 %v6535
      %v6857 = vunpack.c.h.b16 %v6535
      %v6858 = vunpack.c.l.b16 %v6536
      %v6859 = vunpack.c.l.b16 %v6537
      %v6860 = vunpack.c.h.b16 %v6537
      %v6861 = vunpack.c.l.b16 %v6538
      %v6862 = vunpack.c.l.b16 %v6539
      %v6863 = vunpack.c.h.b16 %v6539
      %v6864 = vunpack.c.l.b16 %v6540
      %v6865 = vunpack.c.l.b16 %v6541
      %v6866 = vunpack.c.h.b16 %v6541
      %v6867 = vunpack.c.l.b16 %v6542
      %v6868 = vunpack.c.l.b16 %v6543
      %v6869 = vunpack.c.h.b16 %v6543
      %v6870 = vunpack.c.l.b16 %v6544
      %v6871 = vunpack.c.l.b16 %v6545
      %v6872 = vunpack.c.h.b16 %v6545
      %v6873 = vunpack.c.l.b16 %v6546
      %v6874 = vunpack.c.l.b16 %v6547
      %v6875 = vunpack.c.h.b16 %v6547
      %v6876 = vunpack.c.l.b16 %v6548
      %v6877 = vunpack.c.l.b16 %v6549
      %v6878 = vunpack.c.h.b16 %v6549
      %v6879 = vunpack.c.l.b16 %v6550
      %v6880 = vunpack.c.l.b16 %v6551
      %v6881 = vunpack.c.h.b16 %v6551
      %v6882 = vunpack.c.l.b16 %v6552
      %v6883 = vunpack.c.l.b16 %v6553
      %v6884 = vunpack.c.h.b16 %v6553
      %v6885 = vunpack.c.l.b16 %v6554
      %v6886 = vunpack.c.l.b16 %v6555
      %v6887 = vunpack.c.h.b16 %v6555
      %v6888 = vunpack.c.l.b16 %v6556
      %v6889 = vunpack.c.l.b16 %v6557
      %v6890 = vunpack.c.h.b16 %v6557
      %v6891 = vunpack.c.l.b16 %v6558
      %v6892 = vunpack.c.l.b16 %v6559
      %v6893 = vunpack.c.h.b16 %v6559
      %v6894 = vunpack.c.l.b16 %v6560
      %v6895 = vunpack.c.l.b16 %v6561
      %v6896 = vunpack.c.h.b16 %v6561
      %v6897 = vunpack.c.l.b16 %v6562
      %v6898 = vunpack.c.l.b16 %v6563
      %v6899 = vunpack.c.h.b16 %v6563
      %v6900 = vunpack.c.l.b16 %v6564
      %v6901 = vunpack.c.l.b16 %v6565
      %v6902 = vunpack.c.h.b16 %v6565
      %v6903 = vunpack.c.l.b16 %v6566
      %v6904 = vunpack.c.l.b16 %v6567
      %v6905 = vunpack.c.h.b16 %v6567
      %v6906 = vunpack.c.l.b16 %v6568
      %v6907 = vunpack.c.l.b16 %v6569
      %v6908 = vunpack.c.h.b16 %v6569
      %v6909 = vunpack.c.l.b16 %v6570
      %v6910 = vunpack.c.l.b16 %v6571
      %v6911 = vunpack.c.h.b16 %v6571
      %v6912 = vunpack.c.l.b16 %v6572
      %v6913 = vunpack.c.l.b16 %v6573
      %v6914 = vunpack.c.h.b16 %v6573
      %v6915 = vunpack.c.l.b16 %v6574
      %v6916 = vunpack.c.l.b16 %v6575
      %v6917 = vunpack.c.h.b16 %v6575
      %v6918 = vunpack.c.l.b16 %v6576
      %v6919 = vunpack.c.l.b16 %v6577
      %v6920 = vunpack.c.h.b16 %v6577
      %v6921 = vunpack.c.l.b16 %v6578
      %v6922 = vunpack.c.l.b16 %v6579
      %v6923 = vunpack.c.h.b16 %v6579
      %v6924 = vunpack.c.l.b16 %v6580
      %v6925 = vunpack.c.l.b16 %v6581
      %v6926 = vunpack.c.h.b16 %v6581
      %v6927 = vunpack.c.l.b16 %v6582
      %v6928 = vunpack.c.l.b16 %v6583
      %v6929 = vunpack.c.h.b16 %v6583
      %v6930 = vunpack.c.l.b16 %v6584
      %v6931 = vunpack.c.l.b16 %v6585
      %v6932 = vunpack.c.h.b16 %v6585
      %v6933 = vunpack.c.l.b16 %v6586
      %v6934 = vunpack.c.l.b16 %v6587
      %v6935 = vunpack.c.h.b16 %v6587
      %v6936 = vunpack.c.l.b16 %v6588
      %v6937 = vunpack.c.l.b16 %v6589
      %v6938 = vunpack.c.h.b16 %v6589
      %v6939 = vunpack.c.l.b16 %v6590
      %v6940 = vunpack.c.l.b16 %v6591
      %v6941 = vunpack.c.h.b16 %v6591
      %v6942 = vunpack.c.l.b16 %v6592
      %v6943 = vunpack.c.l.b16 %v6593
      %v6944 = vunpack.c.h.b16 %v6593
      %v6945 = vunpack.c.l.b16 %v6594
      %v6946 = vunpack.c.l.b16 %v6595
      %v6947 = vunpack.c.h.b16 %v6595
      %v6948 = vunpack.c.l.b16 %v6596
      %v6949 = vunpack.c.l.b16 %v6597
      %v6950 = vunpack.c.h.b16 %v6597
      %v6951 = vunpack.c.l.b16 %v6598
      %v6952 = vunpack.c.l.b16 %v6599
      %v6953 = vunpack.c.h.b16 %v6599
      %v6954 = vunpack.c.l.b16 %v6600
      %v6955 = vunpack.c.l.b16 %v6601
      %v6956 = vunpack.c.h.b16 %v6601
      %v6957 = vunpack.c.l.b16 %v6602
      %v6958 = vunpack.c.l.b16 %v6603
      %v6959 = vunpack.c.h.b16 %v6603
      %v6960 = vunpack.c.l.b16 %v6604
      %v6961 = vunpack.c.l.b16 %v6605
      %v6962 = vunpack.c.h.b16 %v6605
      %v6963 = vunpack.c.l.b16 %v6606
      %v6964 = vunpack.c.l.b16 %v6607
      %v6965 = vunpack.c.h.b16 %v6607
      %v6966 = vunpack.c.l.b16 %v6608
      %v6967 = vunpack.c.l.b16 %v6609
      %v6968 = vunpack.c.h.b16 %v6609
      %v6969 = vunpack.c.l.b16 %v6610
      %v6970 = vunpack.c.l.b16 %v6611
      %v6971 = vunpack.c.h.b16 %v6611
      %v6972 = vunpack.c.l.b16 %v6612
      %v6973 = vunpack.c.l.b16 %v6613
      %v6974 = vunpack.c.h.b16 %v6613
      %v6975 = vunpack.c.l.b16 %v6614
      %v6976 = vunpack.c.l.b16 %v6615
      %v6977 = vunpack.c.h.b16 %v6615
      %v6978 = vunpack.c.l.b16 %v6616
      %v6979 = vunpack.c.l.b16 %v6617
      %v6980 = vunpack.c.h.b16 %v6617
      %v6981 = vunpack.c.l.b16 %v6618
      %v6982 = vunpack.c.l.b16 %v6619
      %v6983 = vunpack.c.h.b16 %v6619
      %v6984 = vunpack.c.l.b16 %v6620
      %v6985 = vunpack.c.l.b16 %v6621
      %v6986 = vunpack.c.h.b16 %v6621
      %v6987 = vunpack.c.l.b16 %v6622
      %v6988 = vunpack.c.l.b16 %v6623
      %v6989 = vunpack.c.h.b16 %v6623
      %v6990 = vunpack.c.l.b16 %v6624
      %v6991 = vunpack.c.l.b16 %v6625
      %v6992 = vunpack.c.h.b16 %v6625
      %v6993 = vunpack.c.l.b16 %v6626
      %v6994 = vunpack.c.l.b16 %v6627
      %v6995 = vunpack.c.h.b16 %v6627
      %v6996 = vunpack.c.l.b16 %v6628
      %v6997 = vpack.c.b16 %v6808, %v6805
      %v6998 = vpack.c.b16 %v6809, %v6806
      %v6999 = vpack.c.b16 %v6810, %v6807
      %v7000 = vpack.c.b16 %v6814, %v6811
      %v7001 = vpack.c.b16 %v6815, %v6812
      %v7002 = vpack.c.b16 %v6816, %v6813
      %v7003 = vpack.c.b16 %v6820, %v6817
      %v7004 = vpack.c.b16 %v6821, %v6818
      %v7005 = vpack.c.b16 %v6822, %v6819
      %v7006 = vpack.c.b16 %v6826, %v6823
      %v7007 = vpack.c.b16 %v6827, %v6824
      %v7008 = vpack.c.b16 %v6828, %v6825
      %v7009 = vpack.c.b16 %v6832, %v6829
      %v7010 = vpack.c.b16 %v6833, %v6830
      %v7011 = vpack.c.b16 %v6834, %v6831
      %v7012 = vpack.c.b16 %v6838, %v6835
      %v7013 = vpack.c.b16 %v6839, %v6836
      %v7014 = vpack.c.b16 %v6840, %v6837
      %v7015 = vpack.c.b16 %v6844, %v6841
      %v7016 = vpack.c.b16 %v6845, %v6842
      %v7017 = vpack.c.b16 %v6846, %v6843
      %v7018 = vpack.c.b16 %v6850, %v6847
      %v7019 = vpack.c.b16 %v6851, %v6848
      %v7020 = vpack.c.b16 %v6852, %v6849
      %v7021 = vpack.c.b16 %v6856, %v6853
      %v7022 = vpack.c.b16 %v6857, %v6854
      %v7023 = vpack.c.b16 %v6858, %v6855
      %v7024 = vpack.c.b16 %v6862, %v6859
      %v7025 = vpack.c.b16 %v6863, %v6860
      %v7026 = vpack.c.b16 %v6864, %v6861
      %v7027 = vpack.c.b16 %v6868, %v6865
      %v7028 = vpack.c.b16 %v6869, %v6866
      %v7029 = vpack.c.b16 %v6870, %v6867
      %v7030 = vpack.c.b16 %v6874, %v6871
      %v7031 = vpack.c.b16 %v6875, %v6872
      %v7032 = vpack.c.b16 %v6876, %v6873
      %v7033 = vpack.c.b16 %v6880, %v6877
      %v7034 = vpack.c.b16 %v6881, %v6878
      %v7035 = vpack.c.b16 %v6882, %v6879
      %v7036 = vpack.c.b16 %v6886, %v6883
      %v7037 = vpack.c.b16 %v6887, %v6884
      %v7038 = vpack.c.b16 %v6888, %v6885
      %v7039 = vpack.c.b16 %v6892, %v6889
      %v7040 = vpack.c.b16 %v6893, %v6890
      %v7041 = vpack.c.b16 %v6894, %v6891
      %v7042 = vpack.c.b16 %v6898, %v6895
      %v7043 = vpack.c.b16 %v6899, %v6896
      %v7044 = vpack.c.b16 %v6900, %v6897
      %v7045 = vpack.c.b16 %v6904, %v6901
      %v7046 = vpack.c.b16 %v6905, %v6902
      %v7047 = vpack.c.b16 %v6906, %v6903
      %v7048 = vpack.c.b16 %v6910, %v6907
      %v7049 = vpack.c.b16 %v6911, %v6908
      %v7050 = vpack.c.b16 %v6912, %v6909
      %v7051 = vpack.c.b16 %v6916, %v6913
      %v7052 = vpack.c.b16 %v6917, %v6914
      %v7053 = vpack.c.b16 %v6918, %v6915
      %v7054 = vpack.c.b16 %v6922, %v6919
      %v7055 = vpack.c.b16 %v6923, %v6920
      %v7056 = vpack.c.b16 %v6924, %v6921
      %v7057 = vpack.c.b16 %v6928, %v6925
      %v7058 = vpack.c.b16 %v6929, %v6926
      %v7059 = vpack.c.b16 %v6930, %v6927
      %v7060 = vpack.c.b16 %v6934, %v6931
      %v7061 = vpack.c.b16 %v6935, %v6932
      %v7062 = vpack.c.b16 %v6936, %v6933
      %v7063 = vpack.c.b16 %v6940, %v6937
      %v7064 = vpack.c.b16 %v6941, %v6938
      %v7065 = vpack.c.b16 %v6942, %v6939
      %v7066 = vpack.c.b16 %v6946, %v6943
      %v7067 = vpack.c.b16 %v6947, %v6944
      %v7068 = vpack.c.b16 %v6948, %v6945
      %v7069 = vpack.c.b16 %v6952, %v6949
      %v7070 = vpack.c.b16 %v6953, %v6950
      %v7071 = vpack.c.b16 %v6954, %v6951
      %v7072 = vpack.c.b16 %v6958, %v6955
      %v7073 = vpack.c.b16 %v6959, %v6956
      %v7074 = vpack.c.b16 %v6960, %v6957
      %v7075 = vpack.c.b16 %v6964, %v6961
      %v7076 = vpack.c.b16 %v6965, %v6962
      %v7077 = vpack.c.b16 %v6966, %v6963
      %v7078 = vpack.c.b16 %v6970, %v6967
      %v7079 = vpack.c.b16 %v6971, %v6968
      %v7080 = vpack.c.b16 %v6972, %v6969
      %v7081 = vpack.c.b16 %v6976, %v6973
      %v7082 = vpack.c.b16 %v6977, %v6974
      %v7083 = vpack.c.b16 %v6978, %v6975
      %v7084 = vpack.c.b16 %v6982, %v6979
      %v7085 = vpack.c.b16 %v6983, %v6980
      %v7086 = vpack.c.b16 %v6984, %v6981
      %v7087 = vpack.c.b16 %v6988, %v6985
      %v7088 = vpack.c.b16 %v6989, %v6986
      %v7089 = vpack.c.b16 %v6990, %v6987
      %v7090 = vpack.c.b16 %v6994, %v6991
      %v7091 = vpack.c.b16 %v6995, %v6992
      %v7092 = vpack.c.b16 %v6996, %v6993
      %v7237 = vunpack.c.l.b16 %v6629
      %v7238 = vunpack.c.h.b16 %v6629
      %v7239 = vunpack.c.l.b16 %v6630
      %v7240 = vunpack.c.h.b16 %v6630
      %v7241 = vunpack.c.l.b16 %v6631
      %v7242 = vunpack.c.h.b16 %v6631
      %v7243 = vunpack.c.l.b16 %v6632
      %v7244 = vunpack.c.h.b16 %v6632
      %v7245 = vunpack.c.l.b16 %v6633
      %v7246 = vunpack.c.h.b16 %v6633
      %v7247 = vunpack.c.l.b16 %v6634
      %v7248 = vunpack.c.h.b16 %v6634
      %v7249 = vunpack.c.l.b16 %v6635
      %v7250 = vunpack.c.h.b16 %v6635
      %v7251 = vunpack.c.l.b16 %v6636
      %v7252 = vunpack.c.h.b16 %v6636
      %v7253 = vunpack.c.l.b16 %v6637
      %v7254 = vunpack.c.h.b16 %v6637
      %v7255 = vunpack.c.l.b16 %v6638
      %v7256 = vunpack.c.h.b16 %v6638
      %v7257 = vunpack.c.l.b16 %v6639
      %v7258 = vunpack.c.h.b16 %v6639
      %v7259 = vunpack.c.l.b16 %v6640
      %v7260 = vunpack.c.h.b16 %v6640
      %v7261 = vunpack.c.l.b16 %v6641
      %v7262 = vunpack.c.h.b16 %v6641
      %v7263 = vunpack.c.l.b16 %v6642
      %v7264 = vunpack.c.h.b16 %v6642
      %v7265 = vunpack.c.l.b16 %v6643
      %v7266 = vunpack.c.h.b16 %v6643
      %v7267 = vunpack.c.l.b16 %v6644
      %v7268 = vunpack.c.h.b16 %v6644
      %v7269 = vunpack.c.l.b16 %v6645
      %v7270 = vunpack.c.h.b16 %v6645
      %v7271 = vunpack.c.l.b16 %v6646
      %v7272 = vunpack.c.h.b16 %v6646
      %v7273 = vunpack.c.l.b16 %v6647
      %v7274 = vunpack.c.h.b16 %v6647
      %v7275 = vunpack.c.l.b16 %v6648
      %v7276 = vunpack.c.h.b16 %v6648
      %v7277 = vunpack.c.l.b16 %v6649
      %v7278 = vunpack.c.h.b16 %v6649
      %v7279 = vunpack.c.l.b16 %v6650
      %v7280 = vunpack.c.h.b16 %v6650
      %v7281 = vunpack.c.l.b16 %v6651
      %v7282 = vunpack.c.h.b16 %v6651
      %v7283 = vunpack.c.l.b16 %v6652
      %v7284 = vunpack.c.h.b16 %v6652
      %v7285 = vunpack.c.l.b16 %v6653
      %v7286 = vunpack.c.h.b16 %v6653
      %v7287 = vunpack.c.l.b16 %v6654
      %v7288 = vunpack.c.h.b16 %v6654
      %v7289 = vunpack.c.l.b16 %v6655
      %v7290 = vunpack.c.h.b16 %v6655
      %v7291 = vunpack.c.l.b16 %v6656
      %v7292 = vunpack.c.h.b16 %v6656
      %v7293 = vunpack.c.l.b16 %v6657
      %v7294 = vunpack.c.h.b16 %v6657
      %v7295 = vunpack.c.l.b16 %v6658
      %v7296 = vunpack.c.h.b16 %v6658
      %v7297 = vunpack.c.l.b16 %v6659
      %v7298 = vunpack.c.h.b16 %v6659
      %v7299 = vunpack.c.l.b16 %v6660
      %v7300 = vunpack.c.h.b16 %v6660
      %v7301 = vunpack.c.l.b16 %v6661
      %v7302 = vunpack.c.h.b16 %v6661
      %v7303 = vunpack.c.l.b16 %v6662
      %v7304 = vunpack.c.h.b16 %v6662
      %v7305 = vunpack.c.l.b16 %v6663
      %v7306 = vunpack.c.h.b16 %v6663
      %v7307 = vunpack.c.l.b16 %v6664
      %v7308 = vunpack.c.h.b16 %v6664
      %v7309 = vunpack.c.l.b16 %v6665
      %v7310 = vunpack.c.h.b16 %v6665
      %v7311 = vunpack.c.l.b16 %v6666
      %v7312 = vunpack.c.h.b16 %v6666
      %v7313 = vunpack.c.l.b16 %v6667
      %v7314 = vunpack.c.h.b16 %v6667
      %v7315 = vunpack.c.l.b16 %v6668
      %v7316 = vunpack.c.h.b16 %v6668
      %v7317 = vunpack.c.l.b16 %v6669
      %v7318 = vunpack.c.h.b16 %v6669
      %v7319 = vunpack.c.l.b16 %v6670
      %v7320 = vunpack.c.h.b16 %v6670
      %v7321 = vunpack.c.l.b16 %v6671
      %v7322 = vunpack.c.h.b16 %v6671
      %v7323 = vunpack.c.l.b16 %v6672
      %v7324 = vunpack.c.h.b16 %v6672
      %v7325 = vunpack.c.l.b16 %v6673
      %v7326 = vunpack.c.h.b16 %v6673
      %v7327 = vunpack.c.l.b16 %v6674
      %v7328 = vunpack.c.h.b16 %v6674
      %v7329 = vunpack.c.l.b16 %v6675
      %v7330 = vunpack.c.h.b16 %v6675
      %v7331 = vunpack.c.l.b16 %v6676
      %v7332 = vunpack.c.h.b16 %v6676
      %v7333 = vpack.c.b16 %v7239, %v7237
      %v7334 = vpack.c.b16 %v7240, %v7238
      %v7335 = vpack.c.b16 %v7243, %v7241
      %v7336 = vpack.c.b16 %v7244, %v7242
      %v7337 = vpack.c.b16 %v7247, %v7245
      %v7338 = vpack.c.b16 %v7248, %v7246
      %v7339 = vpack.c.b16 %v7251, %v7249
      %v7340 = vpack.c.b16 %v7252, %v7250
      %v7341 = vpack.c.b16 %v7255, %v7253
      %v7342 = vpack.c.b16 %v7256, %v7254
      %v7343 = vpack.c.b16 %v7259, %v7257
      %v7344 = vpack.c.b16 %v7260, %v7258
      %v7345 = vpack.c.b16 %v7263, %v7261
      %v7346 = vpack.c.b16 %v7264, %v7262
      %v7347 = vpack.c.b16 %v7267, %v7265
      %v7348 = vpack.c.b16 %v7268, %v7266
      %v7349 = vpack.c.b16 %v7271, %v7269
      %v7350 = vpack.c.b16 %v7272, %v7270
      %v7351 = vpack.c.b16 %v7275, %v7273
      %v7352 = vpack.c.b16 %v7276, %v7274
      %v7353 = vpack.c.b16 %v7279, %v7277
      %v7354 = vpack.c.b16 %v7280, %v7278
      %v7355 = vpack.c.b16 %v7283, %v7281
      %v7356 = vpack.c.b16 %v7284, %v7282
      %v7357 = vpack.c.b16 %v7287, %v7285
      %v7358 = vpack.c.b16 %v7288, %v7286
      %v7359 = vpack.c.b16 %v7291, %v7289
      %v7360 = vpack.c.b16 %v7292, %v7290
      %v7361 = vpack.c.b16 %v7295, %v7293
      %v7362 = vpack.c.b16 %v7296, %v7294
      %v7363 = vpack.c.b16 %v7299, %v7297
      %v7364 = vpack.c.b16 %v7300, %v7298
      %v7365 = vpack.c.b16 %v7303, %v7301
      %v7366 = vpack.c.b16 %v7304, %v7302
      %v7367 = vpack.c.b16 %v7307, %v7305
      %v7368 = vpack.c.b16 %v7308, %v7306
      %v7369 = vpack.c.b16 %v7311, %v7309
      %v7370 = vpack.c.b16 %v7312, %v7310
      %v7371 = vpack.c.b16 %v7315, %v7313
      %v7372 = vpack.c.b16 %v7316, %v7314
      %v7373 = vpack.c.b16 %v7319, %v7317
      %v7374 = vpack.c.b16 %v7320, %v7318
      %v7375 = vpack.c.b16 %v7323, %v7321
      %v7376 = vpack.c.b16 %v7324, %v7322
      %v7377 = vpack.c.b16 %v7327, %v7325
      %v7378 = vpack.c.b16 %v7328, %v7326
      %v7379 = vpack.c.b16 %v7331, %v7329
      %v7380 = vpack.c.b16 %v7332, %v7330
      %7429 = vmatpush.bf16.msra.mxu0 %v7347
      %7430 = vmatpush.bf16.msra.mxu0 %v7345
      %7431 = vmatpush.bf16.msra.mxu0 %v7343
      %7432 = vmatpush.bf16.msra.mxu0 %v7341
      %7433 = vmatpush.bf16.msra.mxu0 %v7339
      %7434 = vmatpush.bf16.msra.mxu0 %v7337
      %7435 = vmatpush.bf16.msra.mxu0 %v7335
      %7436 = vmatpush.bf16.msra.mxu0 %v7333
      %7437 = vmatmul.bf16.gmra.mxu0 %v6997
      %v7438 = vpop.f32.mrf.mxu0
      %v7439 = vadd.f32 0.0, %v7438
      %v7440 = vpop.f32.mrf.mxu0
      %v7441 = vadd.f32 0.0, %v7440
      %7442 = vmatmul.bf16.gmra.mxu0 %v7000
      %v7443 = vpop.f32.mrf.mxu0
      %v7444 = vadd.f32 0.0, %v7443
      %v7445 = vpop.f32.mrf.mxu0
      %v7446 = vadd.f32 0.0, %v7445
      %7447 = vmatmul.bf16.gmra.mxu0 %v7003
      %v7448 = vpop.f32.mrf.mxu0
      %v7449 = vadd.f32 0.0, %v7448
      %v7450 = vpop.f32.mrf.mxu0
      %v7451 = vadd.f32 0.0, %v7450
      %7452 = vmatmul.bf16.gmra.mxu0 %v7006
      %v7453 = vpop.f32.mrf.mxu0
      %v7454 = vadd.f32 0.0, %v7453
      %v7455 = vpop.f32.mrf.mxu0
      %v7456 = vadd.f32 0.0, %v7455
      %7457 = vmatmul.bf16.gmra.mxu0 %v7009
      %v7458 = vpop.f32.mrf.mxu0
      %v7459 = vadd.f32 0.0, %v7458
      %v7460 = vpop.f32.mrf.mxu0
      %v7461 = vadd.f32 0.0, %v7460
      %7462 = vmatmul.bf16.gmra.mxu0 %v7012
      %v7463 = vpop.f32.mrf.mxu0
      %v7464 = vadd.f32 0.0, %v7463
      %v7465 = vpop.f32.mrf.mxu0
      %v7466 = vadd.f32 0.0, %v7465
      %7467 = vmatmul.bf16.gmra.mxu0 %v7015
      %v7468 = vpop.f32.mrf.mxu0
      %v7469 = vadd.f32 0.0, %v7468
      %v7470 = vpop.f32.mrf.mxu0
      %v7471 = vadd.f32 0.0, %v7470
      %7472 = vmatmul.bf16.gmra.mxu0 %v7018
      %v7473 = vpop.f32.mrf.mxu0
      %v7474 = vadd.f32 0.0, %v7473
      %v7475 = vpop.f32.mrf.mxu0
      %v7476 = vadd.f32 0.0, %v7475
      %7477 = vmatmul.bf16.gmra.mxu0 %v7021
      %v7478 = vpop.f32.mrf.mxu0
      %v7479 = vadd.f32 0.0, %v7478
      %v7480 = vpop.f32.mrf.mxu0
      %v7481 = vadd.f32 0.0, %v7480
      %7482 = vmatmul.bf16.gmra.mxu0 %v7024
      %v7483 = vpop.f32.mrf.mxu0
      %v7484 = vadd.f32 0.0, %v7483
      %v7485 = vpop.f32.mrf.mxu0
      %v7486 = vadd.f32 0.0, %v7485
      %7487 = vmatmul.bf16.gmra.mxu0 %v7027
      %v7488 = vpop.f32.mrf.mxu0
      %v7489 = vadd.f32 0.0, %v7488
      %v7490 = vpop.f32.mrf.mxu0
      %v7491 = vadd.f32 0.0, %v7490
      %7492 = vmatmul.bf16.gmra.mxu0 %v7030
      %v7493 = vpop.f32.mrf.mxu0
      %v7494 = vadd.f32 0.0, %v7493
      %v7495 = vpop.f32.mrf.mxu0
      %v7496 = vadd.f32 0.0, %v7495
      %7497 = vmatmul.bf16.gmra.mxu0 %v7033
      %v7498 = vpop.f32.mrf.mxu0
      %v7499 = vadd.f32 0.0, %v7498
      %v7500 = vpop.f32.mrf.mxu0
      %v7501 = vadd.f32 0.0, %v7500
      %7502 = vmatmul.bf16.gmra.mxu0 %v7036
      %v7503 = vpop.f32.mrf.mxu0
      %v7504 = vadd.f32 0.0, %v7503
      %v7505 = vpop.f32.mrf.mxu0
      %v7506 = vadd.f32 0.0, %v7505
      %7507 = vmatmul.bf16.gmra.mxu0 %v7039
      %v7508 = vpop.f32.mrf.mxu0
      %v7509 = vadd.f32 0.0, %v7508
      %v7510 = vpop.f32.mrf.mxu0
      %v7511 = vadd.f32 0.0, %v7510
      %7512 = vmatmul.bf16.gmra.mxu0 %v7042
      %v7513 = vpop.f32.mrf.mxu0
      %v7514 = vadd.f32 0.0, %v7513
      %v7515 = vpop.f32.mrf.mxu0
      %v7516 = vadd.f32 0.0, %v7515
      %7517 = vmatmul.bf16.gmra.mxu0 %v7045
      %v7518 = vpop.f32.mrf.mxu0
      %v7519 = vadd.f32 0.0, %v7518
      %v7520 = vpop.f32.mrf.mxu0
      %v7521 = vadd.f32 0.0, %v7520
      %7522 = vmatmul.bf16.gmra.mxu0 %v7048
      %v7523 = vpop.f32.mrf.mxu0
      %v7524 = vadd.f32 0.0, %v7523
      %v7525 = vpop.f32.mrf.mxu0
      %v7526 = vadd.f32 0.0, %v7525
      %7527 = vmatmul.bf16.gmra.mxu0 %v7051
      %v7528 = vpop.f32.mrf.mxu0
      %v7529 = vadd.f32 0.0, %v7528
      %v7530 = vpop.f32.mrf.mxu0
      %v7531 = vadd.f32 0.0, %v7530
      %7532 = vmatmul.bf16.gmra.mxu0 %v7054
      %v7533 = vpop.f32.mrf.mxu0
      %v7534 = vadd.f32 0.0, %v7533
      %v7535 = vpop.f32.mrf.mxu0
      %v7536 = vadd.f32 0.0, %v7535
      %7537 = vmatmul.bf16.gmra.mxu0 %v7057
      %v7538 = vpop.f32.mrf.mxu0
      %v7539 = vadd.f32 0.0, %v7538
      %v7540 = vpop.f32.mrf.mxu0
      %v7541 = vadd.f32 0.0, %v7540
      %7542 = vmatmul.bf16.gmra.mxu0 %v7060
      %v7543 = vpop.f32.mrf.mxu0
      %v7544 = vadd.f32 0.0, %v7543
      %v7545 = vpop.f32.mrf.mxu0
      %v7546 = vadd.f32 0.0, %v7545
      %7547 = vmatmul.bf16.gmra.mxu0 %v7063
      %v7548 = vpop.f32.mrf.mxu0
      %v7549 = vadd.f32 0.0, %v7548
      %v7550 = vpop.f32.mrf.mxu0
      %v7551 = vadd.f32 0.0, %v7550
      %7552 = vmatmul.bf16.gmra.mxu0 %v7066
      %v7553 = vpop.f32.mrf.mxu0
      %v7554 = vadd.f32 0.0, %v7553
      %v7555 = vpop.f32.mrf.mxu0
      %v7556 = vadd.f32 0.0, %v7555
      %7557 = vmatmul.bf16.gmra.mxu0 %v7069
      %v7558 = vpop.f32.mrf.mxu0
      %v7559 = vadd.f32 0.0, %v7558
      %v7560 = vpop.f32.mrf.mxu0
      %v7561 = vadd.f32 0.0, %v7560
      %7562 = vmatmul.bf16.gmra.mxu0 %v7072
      %v7563 = vpop.f32.mrf.mxu0
      %v7564 = vadd.f32 0.0, %v7563
      %v7565 = vpop.f32.mrf.mxu0
      %v7566 = vadd.f32 0.0, %v7565
      %7567 = vmatmul.bf16.gmra.mxu0 %v7075
      %v7568 = vpop.f32.mrf.mxu0
      %v7569 = vadd.f32 0.0, %v7568
      %v7570 = vpop.f32.mrf.mxu0
      %v7571 = vadd.f32 0.0, %v7570
      %7572 = vmatmul.bf16.gmra.mxu0 %v7078
      %v7573 = vpop.f32.mrf.mxu0
      %v7574 = vadd.f32 0.0, %v7573
      %v7575 = vpop.f32.mrf.mxu0
      %v7576 = vadd.f32 0.0, %v7575
      %7577 = vmatmul.bf16.gmra.mxu0 %v7081
      %v7578 = vpop.f32.mrf.mxu0
      %v7579 = vadd.f32 0.0, %v7578
      %v7580 = vpop.f32.mrf.mxu0
      %v7581 = vadd.f32 0.0, %v7580
      %7582 = vmatmul.bf16.gmra.mxu0 %v7084
      %v7583 = vpop.f32.mrf.mxu0
      %v7584 = vadd.f32 0.0, %v7583
      %v7585 = vpop.f32.mrf.mxu0
      %v7586 = vadd.f32 0.0, %v7585
      %7587 = vmatmul.bf16.gmra.mxu0 %v7087
      %v7588 = vpop.f32.mrf.mxu0
      %v7589 = vadd.f32 0.0, %v7588
      %v7590 = vpop.f32.mrf.mxu0
      %v7591 = vadd.f32 0.0, %v7590
      %7592 = vmatmul.bf16.gmra.mxu0 %v7090
      %v7593 = vpop.f32.mrf.mxu0
      %v7594 = vadd.f32 0.0, %v7593
      %v7595 = vpop.f32.mrf.mxu0
      %v7596 = vadd.f32 0.0, %v7595
      %7597 = vdwg.mxu0
      %7598 = vmatpush.bf16.msra.mxu0 %v7363
      %7599 = vmatpush.bf16.msra.mxu0 %v7361
      %7600 = vmatpush.bf16.msra.mxu0 %v7359
      %7601 = vmatpush.bf16.msra.mxu0 %v7357
      %7602 = vmatpush.bf16.msra.mxu0 %v7355
      %7603 = vmatpush.bf16.msra.mxu0 %v7353
      %7604 = vmatpush.bf16.msra.mxu0 %v7351
      %7605 = vmatpush.bf16.msra.mxu0 %v7349
      %7606 = vmatmul.bf16.gmra.mxu0 %v6998
      %v7607 = vpop.f32.mrf.mxu0
      %v7608 = vadd.f32 %v7439, %v7607
      %v7609 = vpop.f32.mrf.mxu0
      %v7610 = vadd.f32 %v7441, %v7609
      %7611 = vmatmul.bf16.gmra.mxu0 %v7001
      %v7612 = vpop.f32.mrf.mxu0
      %v7613 = vadd.f32 %v7444, %v7612
      %v7614 = vpop.f32.mrf.mxu0
      %v7615 = vadd.f32 %v7446, %v7614
      %7616 = vmatmul.bf16.gmra.mxu0 %v7004
      %v7617 = vpop.f32.mrf.mxu0
      %v7618 = vadd.f32 %v7449, %v7617
      %v7619 = vpop.f32.mrf.mxu0
      %v7620 = vadd.f32 %v7451, %v7619
      %7621 = vmatmul.bf16.gmra.mxu0 %v7007
      %v7622 = vpop.f32.mrf.mxu0
      %v7623 = vadd.f32 %v7454, %v7622
      %v7624 = vpop.f32.mrf.mxu0
      %v7625 = vadd.f32 %v7456, %v7624
      %7626 = vmatmul.bf16.gmra.mxu0 %v7010
      %v7627 = vpop.f32.mrf.mxu0
      %v7628 = vadd.f32 %v7459, %v7627
      %v7629 = vpop.f32.mrf.mxu0
      %v7630 = vadd.f32 %v7461, %v7629
      %7631 = vmatmul.bf16.gmra.mxu0 %v7013
      %v7632 = vpop.f32.mrf.mxu0
      %v7633 = vadd.f32 %v7464, %v7632
      %v7634 = vpop.f32.mrf.mxu0
      %v7635 = vadd.f32 %v7466, %v7634
      %7636 = vmatmul.bf16.gmra.mxu0 %v7016
      %v7637 = vpop.f32.mrf.mxu0
      %v7638 = vadd.f32 %v7469, %v7637
      %v7639 = vpop.f32.mrf.mxu0
      %v7640 = vadd.f32 %v7471, %v7639
      %7641 = vmatmul.bf16.gmra.mxu0 %v7019
      %v7642 = vpop.f32.mrf.mxu0
      %v7643 = vadd.f32 %v7474, %v7642
      %v7644 = vpop.f32.mrf.mxu0
      %v7645 = vadd.f32 %v7476, %v7644
      %7646 = vmatmul.bf16.gmra.mxu0 %v7022
      %v7647 = vpop.f32.mrf.mxu0
      %v7648 = vadd.f32 %v7479, %v7647
      %v7649 = vpop.f32.mrf.mxu0
      %v7650 = vadd.f32 %v7481, %v7649
      %7651 = vmatmul.bf16.gmra.mxu0 %v7025
      %v7652 = vpop.f32.mrf.mxu0
      %v7653 = vadd.f32 %v7484, %v7652
      %v7654 = vpop.f32.mrf.mxu0
      %v7655 = vadd.f32 %v7486, %v7654
      %7656 = vmatmul.bf16.gmra.mxu0 %v7028
      %v7657 = vpop.f32.mrf.mxu0
      %v7658 = vadd.f32 %v7489, %v7657
      %v7659 = vpop.f32.mrf.mxu0
      %v7660 = vadd.f32 %v7491, %v7659
      %7661 = vmatmul.bf16.gmra.mxu0 %v7031
      %v7662 = vpop.f32.mrf.mxu0
      %v7663 = vadd.f32 %v7494, %v7662
      %v7664 = vpop.f32.mrf.mxu0
      %v7665 = vadd.f32 %v7496, %v7664
      %7666 = vmatmul.bf16.gmra.mxu0 %v7034
      %v7667 = vpop.f32.mrf.mxu0
      %v7668 = vadd.f32 %v7499, %v7667
      %v7669 = vpop.f32.mrf.mxu0
      %v7670 = vadd.f32 %v7501, %v7669
      %7671 = vmatmul.bf16.gmra.mxu0 %v7037
      %v7672 = vpop.f32.mrf.mxu0
      %v7673 = vadd.f32 %v7504, %v7672
      %v7674 = vpop.f32.mrf.mxu0
      %v7675 = vadd.f32 %v7506, %v7674
      %7676 = vmatmul.bf16.gmra.mxu0 %v7040
      %v7677 = vpop.f32.mrf.mxu0
      %v7678 = vadd.f32 %v7509, %v7677
      %v7679 = vpop.f32.mrf.mxu0
      %v7680 = vadd.f32 %v7511, %v7679
      %7681 = vmatmul.bf16.gmra.mxu0 %v7043
      %v7682 = vpop.f32.mrf.mxu0
      %v7683 = vadd.f32 %v7514, %v7682
      %v7684 = vpop.f32.mrf.mxu0
      %v7685 = vadd.f32 %v7516, %v7684
      %7686 = vmatmul.bf16.gmra.mxu0 %v7046
      %v7687 = vpop.f32.mrf.mxu0
      %v7688 = vadd.f32 %v7519, %v7687
      %v7689 = vpop.f32.mrf.mxu0
      %v7690 = vadd.f32 %v7521, %v7689
      %7691 = vmatmul.bf16.gmra.mxu0 %v7049
      %v7692 = vpop.f32.mrf.mxu0
      %v7693 = vadd.f32 %v7524, %v7692
      %v7694 = vpop.f32.mrf.mxu0
      %v7695 = vadd.f32 %v7526, %v7694
      %7696 = vmatmul.bf16.gmra.mxu0 %v7052
      %v7697 = vpop.f32.mrf.mxu0
      %v7698 = vadd.f32 %v7529, %v7697
      %v7699 = vpop.f32.mrf.mxu0
      %v7700 = vadd.f32 %v7531, %v7699
      %7701 = vmatmul.bf16.gmra.mxu0 %v7055
      %v7702 = vpop.f32.mrf.mxu0
      %v7703 = vadd.f32 %v7534, %v7702
      %v7704 = vpop.f32.mrf.mxu0
      %v7705 = vadd.f32 %v7536, %v7704
      %7706 = vmatmul.bf16.gmra.mxu0 %v7058
      %v7707 = vpop.f32.mrf.mxu0
      %v7708 = vadd.f32 %v7539, %v7707
      %v7709 = vpop.f32.mrf.mxu0
      %v7710 = vadd.f32 %v7541, %v7709
      %7711 = vmatmul.bf16.gmra.mxu0 %v7061
      %v7712 = vpop.f32.mrf.mxu0
      %v7713 = vadd.f32 %v7544, %v7712
      %v7714 = vpop.f32.mrf.mxu0
      %v7715 = vadd.f32 %v7546, %v7714
      %7716 = vmatmul.bf16.gmra.mxu0 %v7064
      %v7717 = vpop.f32.mrf.mxu0
      %v7718 = vadd.f32 %v7549, %v7717
      %v7719 = vpop.f32.mrf.mxu0
      %v7720 = vadd.f32 %v7551, %v7719
      %7721 = vmatmul.bf16.gmra.mxu0 %v7067
      %v7722 = vpop.f32.mrf.mxu0
      %v7723 = vadd.f32 %v7554, %v7722
      %v7724 = vpop.f32.mrf.mxu0
      %v7725 = vadd.f32 %v7556, %v7724
      %7726 = vmatmul.bf16.gmra.mxu0 %v7070
      %v7727 = vpop.f32.mrf.mxu0
      %v7728 = vadd.f32 %v7559, %v7727
      %v7729 = vpop.f32.mrf.mxu0
      %v7730 = vadd.f32 %v7561, %v7729
      %7731 = vmatmul.bf16.gmra.mxu0 %v7073
      %v7732 = vpop.f32.mrf.mxu0
      %v7733 = vadd.f32 %v7564, %v7732
      %v7734 = vpop.f32.mrf.mxu0
      %v7735 = vadd.f32 %v7566, %v7734
      %7736 = vmatmul.bf16.gmra.mxu0 %v7076
      %v7737 = vpop.f32.mrf.mxu0
      %v7738 = vadd.f32 %v7569, %v7737
      %v7739 = vpop.f32.mrf.mxu0
      %v7740 = vadd.f32 %v7571, %v7739
      %7741 = vmatmul.bf16.gmra.mxu0 %v7079
      %v7742 = vpop.f32.mrf.mxu0
      %v7743 = vadd.f32 %v7574, %v7742
      %v7744 = vpop.f32.mrf.mxu0
      %v7745 = vadd.f32 %v7576, %v7744
      %7746 = vmatmul.bf16.gmra.mxu0 %v7082
      %v7747 = vpop.f32.mrf.mxu0
      %v7748 = vadd.f32 %v7579, %v7747
      %v7749 = vpop.f32.mrf.mxu0
      %v7750 = vadd.f32 %v7581, %v7749
      %7751 = vmatmul.bf16.gmra.mxu0 %v7085
      %v7752 = vpop.f32.mrf.mxu0
      %v7753 = vadd.f32 %v7584, %v7752
      %v7754 = vpop.f32.mrf.mxu0
      %v7755 = vadd.f32 %v7586, %v7754
      %7756 = vmatmul.bf16.gmra.mxu0 %v7088
      %v7757 = vpop.f32.mrf.mxu0
      %v7758 = vadd.f32 %v7589, %v7757
      %v7759 = vpop.f32.mrf.mxu0
      %v7760 = vadd.f32 %v7591, %v7759
      %7761 = vmatmul.bf16.gmra.mxu0 %v7091
      %v7762 = vpop.f32.mrf.mxu0
      %v7763 = vadd.f32 %v7594, %v7762
      %v7764 = vpop.f32.mrf.mxu0
      %v7765 = vadd.f32 %v7596, %v7764
      %7766 = vdwg.mxu0
      %7767 = vmatpush.bf16.msra.mxu0 %v7379
      %7768 = vmatpush.bf16.msra.mxu0 %v7377
      %7769 = vmatpush.bf16.msra.mxu0 %v7375
      %7770 = vmatpush.bf16.msra.mxu0 %v7373
      %7771 = vmatpush.bf16.msra.mxu0 %v7371
      %7772 = vmatpush.bf16.msra.mxu0 %v7369
      %7773 = vmatpush.bf16.msra.mxu0 %v7367
      %7774 = vmatpush.bf16.msra.mxu0 %v7365
      %7775 = vmatmul.bf16.gmra.mxu0 %v6999
      %v7776 = vpop.f32.mrf.mxu0
      %v7777 = vadd.f32 %v7608, %v7776
      %v7778 = vpop.f32.mrf.mxu0
      %v7779 = vadd.f32 %v7610, %v7778
      %7780 = vmatmul.bf16.gmra.mxu0 %v7002
      %v7781 = vpop.f32.mrf.mxu0
      %v7782 = vadd.f32 %v7613, %v7781
      %v7783 = vpop.f32.mrf.mxu0
      %v7784 = vadd.f32 %v7615, %v7783
      %7785 = vmatmul.bf16.gmra.mxu0 %v7005
      %v7786 = vpop.f32.mrf.mxu0
      %v7787 = vadd.f32 %v7618, %v7786
      %v7788 = vpop.f32.mrf.mxu0
      %v7789 = vadd.f32 %v7620, %v7788
      %7790 = vmatmul.bf16.gmra.mxu0 %v7008
      %v7791 = vpop.f32.mrf.mxu0
      %v7792 = vadd.f32 %v7623, %v7791
      %v7793 = vpop.f32.mrf.mxu0
      %v7794 = vadd.f32 %v7625, %v7793
      %7795 = vmatmul.bf16.gmra.mxu0 %v7011
      %v7796 = vpop.f32.mrf.mxu0
      %v7797 = vadd.f32 %v7628, %v7796
      %v7798 = vpop.f32.mrf.mxu0
      %v7799 = vadd.f32 %v7630, %v7798
      %7800 = vmatmul.bf16.gmra.mxu0 %v7014
      %v7801 = vpop.f32.mrf.mxu0
      %v7802 = vadd.f32 %v7633, %v7801
      %v7803 = vpop.f32.mrf.mxu0
      %v7804 = vadd.f32 %v7635, %v7803
      %7805 = vmatmul.bf16.gmra.mxu0 %v7017
      %v7806 = vpop.f32.mrf.mxu0
      %v7807 = vadd.f32 %v7638, %v7806
      %v7808 = vpop.f32.mrf.mxu0
      %v7809 = vadd.f32 %v7640, %v7808
      %7810 = vmatmul.bf16.gmra.mxu0 %v7020
      %v7811 = vpop.f32.mrf.mxu0
      %v7812 = vadd.f32 %v7643, %v7811
      %v7813 = vpop.f32.mrf.mxu0
      %v7814 = vadd.f32 %v7645, %v7813
      %7815 = vmatmul.bf16.gmra.mxu0 %v7023
      %v7816 = vpop.f32.mrf.mxu0
      %v7817 = vadd.f32 %v7648, %v7816
      %v7818 = vpop.f32.mrf.mxu0
      %v7819 = vadd.f32 %v7650, %v7818
      %7820 = vmatmul.bf16.gmra.mxu0 %v7026
      %v7821 = vpop.f32.mrf.mxu0
      %v7822 = vadd.f32 %v7653, %v7821
      %v7823 = vpop.f32.mrf.mxu0
      %v7824 = vadd.f32 %v7655, %v7823
      %7825 = vmatmul.bf16.gmra.mxu0 %v7029
      %v7826 = vpop.f32.mrf.mxu0
      %v7827 = vadd.f32 %v7658, %v7826
      %v7828 = vpop.f32.mrf.mxu0
      %v7829 = vadd.f32 %v7660, %v7828
      %7830 = vmatmul.bf16.gmra.mxu0 %v7032
      %v7831 = vpop.f32.mrf.mxu0
      %v7832 = vadd.f32 %v7663, %v7831
      %v7833 = vpop.f32.mrf.mxu0
      %v7834 = vadd.f32 %v7665, %v7833
      %7835 = vmatmul.bf16.gmra.mxu0 %v7035
      %v7836 = vpop.f32.mrf.mxu0
      %v7837 = vadd.f32 %v7668, %v7836
      %v7838 = vpop.f32.mrf.mxu0
      %v7839 = vadd.f32 %v7670, %v7838
      %7840 = vmatmul.bf16.gmra.mxu0 %v7038
      %v7841 = vpop.f32.mrf.mxu0
      %v7842 = vadd.f32 %v7673, %v7841
      %v7843 = vpop.f32.mrf.mxu0
      %v7844 = vadd.f32 %v7675, %v7843
      %7845 = vmatmul.bf16.gmra.mxu0 %v7041
      %v7846 = vpop.f32.mrf.mxu0
      %v7847 = vadd.f32 %v7678, %v7846
      %v7848 = vpop.f32.mrf.mxu0
      %v7849 = vadd.f32 %v7680, %v7848
      %7850 = vmatmul.bf16.gmra.mxu0 %v7044
      %v7851 = vpop.f32.mrf.mxu0
      %v7852 = vadd.f32 %v7683, %v7851
      %v7853 = vpop.f32.mrf.mxu0
      %v7854 = vadd.f32 %v7685, %v7853
      %7855 = vmatmul.bf16.gmra.mxu0 %v7047
      %v7856 = vpop.f32.mrf.mxu0
      %v7857 = vadd.f32 %v7688, %v7856
      %v7858 = vpop.f32.mrf.mxu0
      %v7859 = vadd.f32 %v7690, %v7858
      %7860 = vmatmul.bf16.gmra.mxu0 %v7050
      %v7861 = vpop.f32.mrf.mxu0
      %v7862 = vadd.f32 %v7693, %v7861
      %v7863 = vpop.f32.mrf.mxu0
      %v7864 = vadd.f32 %v7695, %v7863
      %7865 = vmatmul.bf16.gmra.mxu0 %v7053
      %v7866 = vpop.f32.mrf.mxu0
      %v7867 = vadd.f32 %v7698, %v7866
      %v7868 = vpop.f32.mrf.mxu0
      %v7869 = vadd.f32 %v7700, %v7868
      %7870 = vmatmul.bf16.gmra.mxu0 %v7056
      %v7871 = vpop.f32.mrf.mxu0
      %v7872 = vadd.f32 %v7703, %v7871
      %v7873 = vpop.f32.mrf.mxu0
      %v7874 = vadd.f32 %v7705, %v7873
      %7875 = vmatmul.bf16.gmra.mxu0 %v7059
      %v7876 = vpop.f32.mrf.mxu0
      %v7877 = vadd.f32 %v7708, %v7876
      %v7878 = vpop.f32.mrf.mxu0
      %v7879 = vadd.f32 %v7710, %v7878
      %7880 = vmatmul.bf16.gmra.mxu0 %v7062
      %v7881 = vpop.f32.mrf.mxu0
      %v7882 = vadd.f32 %v7713, %v7881
      %v7883 = vpop.f32.mrf.mxu0
      %v7884 = vadd.f32 %v7715, %v7883
      %7885 = vmatmul.bf16.gmra.mxu0 %v7065
      %v7886 = vpop.f32.mrf.mxu0
      %v7887 = vadd.f32 %v7718, %v7886
      %v7888 = vpop.f32.mrf.mxu0
      %v7889 = vadd.f32 %v7720, %v7888
      %7890 = vmatmul.bf16.gmra.mxu0 %v7068
      %v7891 = vpop.f32.mrf.mxu0
      %v7892 = vadd.f32 %v7723, %v7891
      %v7893 = vpop.f32.mrf.mxu0
      %v7894 = vadd.f32 %v7725, %v7893
      %7895 = vmatmul.bf16.gmra.mxu0 %v7071
      %v7896 = vpop.f32.mrf.mxu0
      %v7897 = vadd.f32 %v7728, %v7896
      %v7898 = vpop.f32.mrf.mxu0
      %v7899 = vadd.f32 %v7730, %v7898
      %7900 = vmatmul.bf16.gmra.mxu0 %v7074
      %v7901 = vpop.f32.mrf.mxu0
      %v7902 = vadd.f32 %v7733, %v7901
      %v7903 = vpop.f32.mrf.mxu0
      %v7904 = vadd.f32 %v7735, %v7903
      %7905 = vmatmul.bf16.gmra.mxu0 %v7077
      %v7906 = vpop.f32.mrf.mxu0
      %v7907 = vadd.f32 %v7738, %v7906
      %v7908 = vpop.f32.mrf.mxu0
      %v7909 = vadd.f32 %v7740, %v7908
      %7910 = vmatmul.bf16.gmra.mxu0 %v7080
      %v7911 = vpop.f32.mrf.mxu0
      %v7912 = vadd.f32 %v7743, %v7911
      %v7913 = vpop.f32.mrf.mxu0
      %v7914 = vadd.f32 %v7745, %v7913
      %7915 = vmatmul.bf16.gmra.mxu0 %v7083
      %v7916 = vpop.f32.mrf.mxu0
      %v7917 = vadd.f32 %v7748, %v7916
      %v7918 = vpop.f32.mrf.mxu0
      %v7919 = vadd.f32 %v7750, %v7918
      %7920 = vmatmul.bf16.gmra.mxu0 %v7086
      %v7921 = vpop.f32.mrf.mxu0
      %v7922 = vadd.f32 %v7753, %v7921
      %v7923 = vpop.f32.mrf.mxu0
      %v7924 = vadd.f32 %v7755, %v7923
      %7925 = vmatmul.bf16.gmra.mxu0 %v7089
      %v7926 = vpop.f32.mrf.mxu0
      %v7927 = vadd.f32 %v7758, %v7926
      %v7928 = vpop.f32.mrf.mxu0
      %v7929 = vadd.f32 %v7760, %v7928
      %7930 = vmatmul.bf16.gmra.mxu0 %v7092
      %v7931 = vpop.f32.mrf.mxu0
      %v7932 = vadd.f32 %v7763, %v7931
      %v7933 = vpop.f32.mrf.mxu0
      %v7934 = vadd.f32 %v7765, %v7933
      %7935 = vdwg.mxu0
      %7936 = vmatpush.bf16.msra.mxu0 %v7348
      %7937 = vmatpush.bf16.msra.mxu0 %v7346
      %7938 = vmatpush.bf16.msra.mxu0 %v7344
      %7939 = vmatpush.bf16.msra.mxu0 %v7342
      %7940 = vmatpush.bf16.msra.mxu0 %v7340
      %7941 = vmatpush.bf16.msra.mxu0 %v7338
      %7942 = vmatpush.bf16.msra.mxu0 %v7336
      %7943 = vmatpush.bf16.msra.mxu0 %v7334
      %7944 = vmatmul.bf16.gmra.mxu0 %v6997
      %v7945 = vpop.f32.mrf.mxu0
      %v7946 = vadd.f32 0.0, %v7945
      %v7947 = vpop.f32.mrf.mxu0
      %v7948 = vadd.f32 0.0, %v7947
      %7949 = vmatmul.bf16.gmra.mxu0 %v7000
      %v7950 = vpop.f32.mrf.mxu0
      %v7951 = vadd.f32 0.0, %v7950
      %v7952 = vpop.f32.mrf.mxu0
      %v7953 = vadd.f32 0.0, %v7952
      %7954 = vmatmul.bf16.gmra.mxu0 %v7003
      %v7955 = vpop.f32.mrf.mxu0
      %v7956 = vadd.f32 0.0, %v7955
      %v7957 = vpop.f32.mrf.mxu0
      %v7958 = vadd.f32 0.0, %v7957
      %7959 = vmatmul.bf16.gmra.mxu0 %v7006
      %v7960 = vpop.f32.mrf.mxu0
      %v7961 = vadd.f32 0.0, %v7960
      %v7962 = vpop.f32.mrf.mxu0
      %v7963 = vadd.f32 0.0, %v7962
      %7964 = vmatmul.bf16.gmra.mxu0 %v7009
      %v7965 = vpop.f32.mrf.mxu0
      %v7966 = vadd.f32 0.0, %v7965
      %v7967 = vpop.f32.mrf.mxu0
      %v7968 = vadd.f32 0.0, %v7967
      %7969 = vmatmul.bf16.gmra.mxu0 %v7012
      %v7970 = vpop.f32.mrf.mxu0
      %v7971 = vadd.f32 0.0, %v7970
      %v7972 = vpop.f32.mrf.mxu0
      %v7973 = vadd.f32 0.0, %v7972
      %7974 = vmatmul.bf16.gmra.mxu0 %v7015
      %v7975 = vpop.f32.mrf.mxu0
      %v7976 = vadd.f32 0.0, %v7975
      %v7977 = vpop.f32.mrf.mxu0
      %v7978 = vadd.f32 0.0, %v7977
      %7979 = vmatmul.bf16.gmra.mxu0 %v7018
      %v7980 = vpop.f32.mrf.mxu0
      %v7981 = vadd.f32 0.0, %v7980
      %v7982 = vpop.f32.mrf.mxu0
      %v7983 = vadd.f32 0.0, %v7982
      %7984 = vmatmul.bf16.gmra.mxu0 %v7021
      %v7985 = vpop.f32.mrf.mxu0
      %v7986 = vadd.f32 0.0, %v7985
      %v7987 = vpop.f32.mrf.mxu0
      %v7988 = vadd.f32 0.0, %v7987
      %7989 = vmatmul.bf16.gmra.mxu0 %v7024
      %v7990 = vpop.f32.mrf.mxu0
      %v7991 = vadd.f32 0.0, %v7990
      %v7992 = vpop.f32.mrf.mxu0
      %v7993 = vadd.f32 0.0, %v7992
      %7994 = vmatmul.bf16.gmra.mxu0 %v7027
      %v7995 = vpop.f32.mrf.mxu0
      %v7996 = vadd.f32 0.0, %v7995
      %v7997 = vpop.f32.mrf.mxu0
      %v7998 = vadd.f32 0.0, %v7997
      %7999 = vmatmul.bf16.gmra.mxu0 %v7030
      %v8000 = vpop.f32.mrf.mxu0
      %v8001 = vadd.f32 0.0, %v8000
      %v8002 = vpop.f32.mrf.mxu0
      %v8003 = vadd.f32 0.0, %v8002
      %8004 = vmatmul.bf16.gmra.mxu0 %v7033
      %v8005 = vpop.f32.mrf.mxu0
      %v8006 = vadd.f32 0.0, %v8005
      %v8007 = vpop.f32.mrf.mxu0
      %v8008 = vadd.f32 0.0, %v8007
      %8009 = vmatmul.bf16.gmra.mxu0 %v7036
      %v8010 = vpop.f32.mrf.mxu0
      %v8011 = vadd.f32 0.0, %v8010
      %v8012 = vpop.f32.mrf.mxu0
      %v8013 = vadd.f32 0.0, %v8012
      %8014 = vmatmul.bf16.gmra.mxu0 %v7039
      %v8015 = vpop.f32.mrf.mxu0
      %v8016 = vadd.f32 0.0, %v8015
      %v8017 = vpop.f32.mrf.mxu0
      %v8018 = vadd.f32 0.0, %v8017
      %8019 = vmatmul.bf16.gmra.mxu0 %v7042
      %v8020 = vpop.f32.mrf.mxu0
      %v8021 = vadd.f32 0.0, %v8020
      %v8022 = vpop.f32.mrf.mxu0
      %v8023 = vadd.f32 0.0, %v8022
      %8024 = vmatmul.bf16.gmra.mxu0 %v7045
      %v8025 = vpop.f32.mrf.mxu0
      %v8026 = vadd.f32 0.0, %v8025
      %v8027 = vpop.f32.mrf.mxu0
      %v8028 = vadd.f32 0.0, %v8027
      %8029 = vmatmul.bf16.gmra.mxu0 %v7048
      %v8030 = vpop.f32.mrf.mxu0
      %v8031 = vadd.f32 0.0, %v8030
      %v8032 = vpop.f32.mrf.mxu0
      %v8033 = vadd.f32 0.0, %v8032
      %8034 = vmatmul.bf16.gmra.mxu0 %v7051
      %v8035 = vpop.f32.mrf.mxu0
      %v8036 = vadd.f32 0.0, %v8035
      %v8037 = vpop.f32.mrf.mxu0
      %v8038 = vadd.f32 0.0, %v8037
      %8039 = vmatmul.bf16.gmra.mxu0 %v7054
      %v8040 = vpop.f32.mrf.mxu0
      %v8041 = vadd.f32 0.0, %v8040
      %v8042 = vpop.f32.mrf.mxu0
      %v8043 = vadd.f32 0.0, %v8042
      %8044 = vmatmul.bf16.gmra.mxu0 %v7057
      %v8045 = vpop.f32.mrf.mxu0
      %v8046 = vadd.f32 0.0, %v8045
      %v8047 = vpop.f32.mrf.mxu0
      %v8048 = vadd.f32 0.0, %v8047
      %8049 = vmatmul.bf16.gmra.mxu0 %v7060
      %v8050 = vpop.f32.mrf.mxu0
      %v8051 = vadd.f32 0.0, %v8050
      %v8052 = vpop.f32.mrf.mxu0
      %v8053 = vadd.f32 0.0, %v8052
      %8054 = vmatmul.bf16.gmra.mxu0 %v7063
      %v8055 = vpop.f32.mrf.mxu0
      %v8056 = vadd.f32 0.0, %v8055
      %v8057 = vpop.f32.mrf.mxu0
      %v8058 = vadd.f32 0.0, %v8057
      %8059 = vmatmul.bf16.gmra.mxu0 %v7066
      %v8060 = vpop.f32.mrf.mxu0
      %v8061 = vadd.f32 0.0, %v8060
      %v8062 = vpop.f32.mrf.mxu0
      %v8063 = vadd.f32 0.0, %v8062
      %8064 = vmatmul.bf16.gmra.mxu0 %v7069
      %v8065 = vpop.f32.mrf.mxu0
      %v8066 = vadd.f32 0.0, %v8065
      %v8067 = vpop.f32.mrf.mxu0
      %v8068 = vadd.f32 0.0, %v8067
      %8069 = vmatmul.bf16.gmra.mxu0 %v7072
      %v8070 = vpop.f32.mrf.mxu0
      %v8071 = vadd.f32 0.0, %v8070
      %v8072 = vpop.f32.mrf.mxu0
      %v8073 = vadd.f32 0.0, %v8072
      %8074 = vmatmul.bf16.gmra.mxu0 %v7075
      %v8075 = vpop.f32.mrf.mxu0
      %v8076 = vadd.f32 0.0, %v8075
      %v8077 = vpop.f32.mrf.mxu0
      %v8078 = vadd.f32 0.0, %v8077
      %8079 = vmatmul.bf16.gmra.mxu0 %v7078
      %v8080 = vpop.f32.mrf.mxu0
      %v8081 = vadd.f32 0.0, %v8080
      %v8082 = vpop.f32.mrf.mxu0
      %v8083 = vadd.f32 0.0, %v8082
      %8084 = vmatmul.bf16.gmra.mxu0 %v7081
      %v8085 = vpop.f32.mrf.mxu0
      %v8086 = vadd.f32 0.0, %v8085
      %v8087 = vpop.f32.mrf.mxu0
      %v8088 = vadd.f32 0.0, %v8087
      %8089 = vmatmul.bf16.gmra.mxu0 %v7084
      %v8090 = vpop.f32.mrf.mxu0
      %v8091 = vadd.f32 0.0, %v8090
      %v8092 = vpop.f32.mrf.mxu0
      %v8093 = vadd.f32 0.0, %v8092
      %8094 = vmatmul.bf16.gmra.mxu0 %v7087
      %v8095 = vpop.f32.mrf.mxu0
      %v8096 = vadd.f32 0.0, %v8095
      %v8097 = vpop.f32.mrf.mxu0
      %v8098 = vadd.f32 0.0, %v8097
      %8099 = vmatmul.bf16.gmra.mxu0 %v7090
      %v8100 = vpop.f32.mrf.mxu0
      %v8101 = vadd.f32 0.0, %v8100
      %v8102 = vpop.f32.mrf.mxu0
      %v8103 = vadd.f32 0.0, %v8102
      %8104 = vdwg.mxu0
      %8105 = vmatpush.bf16.msra.mxu0 %v7364
      %8106 = vmatpush.bf16.msra.mxu0 %v7362
      %8107 = vmatpush.bf16.msra.mxu0 %v7360
      %8108 = vmatpush.bf16.msra.mxu0 %v7358
      %8109 = vmatpush.bf16.msra.mxu0 %v7356
      %8110 = vmatpush.bf16.msra.mxu0 %v7354
      %8111 = vmatpush.bf16.msra.mxu0 %v7352
      %8112 = vmatpush.bf16.msra.mxu0 %v7350
      %8113 = vmatmul.bf16.gmra.mxu0 %v6998
      %v8114 = vpop.f32.mrf.mxu0
      %v8115 = vadd.f32 %v7946, %v8114
      %v8116 = vpop.f32.mrf.mxu0
      %v8117 = vadd.f32 %v7948, %v8116
      %8118 = vmatmul.bf16.gmra.mxu0 %v7001
      %v8119 = vpop.f32.mrf.mxu0
      %v8120 = vadd.f32 %v7951, %v8119
      %v8121 = vpop.f32.mrf.mxu0
      %v8122 = vadd.f32 %v7953, %v8121
      %8123 = vmatmul.bf16.gmra.mxu0 %v7004
      %v8124 = vpop.f32.mrf.mxu0
      %v8125 = vadd.f32 %v7956, %v8124
      %v8126 = vpop.f32.mrf.mxu0
      %v8127 = vadd.f32 %v7958, %v8126
      %8128 = vmatmul.bf16.gmra.mxu0 %v7007
      %v8129 = vpop.f32.mrf.mxu0
      %v8130 = vadd.f32 %v7961, %v8129
      %v8131 = vpop.f32.mrf.mxu0
      %v8132 = vadd.f32 %v7963, %v8131
      %8133 = vmatmul.bf16.gmra.mxu0 %v7010
      %v8134 = vpop.f32.mrf.mxu0
      %v8135 = vadd.f32 %v7966, %v8134
      %v8136 = vpop.f32.mrf.mxu0
      %v8137 = vadd.f32 %v7968, %v8136
      %8138 = vmatmul.bf16.gmra.mxu0 %v7013
      %v8139 = vpop.f32.mrf.mxu0
      %v8140 = vadd.f32 %v7971, %v8139
      %v8141 = vpop.f32.mrf.mxu0
      %v8142 = vadd.f32 %v7973, %v8141
      %8143 = vmatmul.bf16.gmra.mxu0 %v7016
      %v8144 = vpop.f32.mrf.mxu0
      %v8145 = vadd.f32 %v7976, %v8144
      %v8146 = vpop.f32.mrf.mxu0
      %v8147 = vadd.f32 %v7978, %v8146
      %8148 = vmatmul.bf16.gmra.mxu0 %v7019
      %v8149 = vpop.f32.mrf.mxu0
      %v8150 = vadd.f32 %v7981, %v8149
      %v8151 = vpop.f32.mrf.mxu0
      %v8152 = vadd.f32 %v7983, %v8151
      %8153 = vmatmul.bf16.gmra.mxu0 %v7022
      %v8154 = vpop.f32.mrf.mxu0
      %v8155 = vadd.f32 %v7986, %v8154
      %v8156 = vpop.f32.mrf.mxu0
      %v8157 = vadd.f32 %v7988, %v8156
      %8158 = vmatmul.bf16.gmra.mxu0 %v7025
      %v8159 = vpop.f32.mrf.mxu0
      %v8160 = vadd.f32 %v7991, %v8159
      %v8161 = vpop.f32.mrf.mxu0
      %v8162 = vadd.f32 %v7993, %v8161
      %8163 = vmatmul.bf16.gmra.mxu0 %v7028
      %v8164 = vpop.f32.mrf.mxu0
      %v8165 = vadd.f32 %v7996, %v8164
      %v8166 = vpop.f32.mrf.mxu0
      %v8167 = vadd.f32 %v7998, %v8166
      %8168 = vmatmul.bf16.gmra.mxu0 %v7031
      %v8169 = vpop.f32.mrf.mxu0
      %v8170 = vadd.f32 %v8001, %v8169
      %v8171 = vpop.f32.mrf.mxu0
      %v8172 = vadd.f32 %v8003, %v8171
      %8173 = vmatmul.bf16.gmra.mxu0 %v7034
      %v8174 = vpop.f32.mrf.mxu0
      %v8175 = vadd.f32 %v8006, %v8174
      %v8176 = vpop.f32.mrf.mxu0
      %v8177 = vadd.f32 %v8008, %v8176
      %8178 = vmatmul.bf16.gmra.mxu0 %v7037
      %v8179 = vpop.f32.mrf.mxu0
      %v8180 = vadd.f32 %v8011, %v8179
      %v8181 = vpop.f32.mrf.mxu0
      %v8182 = vadd.f32 %v8013, %v8181
      %8183 = vmatmul.bf16.gmra.mxu0 %v7040
      %v8184 = vpop.f32.mrf.mxu0
      %v8185 = vadd.f32 %v8016, %v8184
      %v8186 = vpop.f32.mrf.mxu0
      %v8187 = vadd.f32 %v8018, %v8186
      %8188 = vmatmul.bf16.gmra.mxu0 %v7043
      %v8189 = vpop.f32.mrf.mxu0
      %v8190 = vadd.f32 %v8021, %v8189
      %v8191 = vpop.f32.mrf.mxu0
      %v8192 = vadd.f32 %v8023, %v8191
      %8193 = vmatmul.bf16.gmra.mxu0 %v7046
      %v8194 = vpop.f32.mrf.mxu0
      %v8195 = vadd.f32 %v8026, %v8194
      %v8196 = vpop.f32.mrf.mxu0
      %v8197 = vadd.f32 %v8028, %v8196
      %8198 = vmatmul.bf16.gmra.mxu0 %v7049
      %v8199 = vpop.f32.mrf.mxu0
      %v8200 = vadd.f32 %v8031, %v8199
      %v8201 = vpop.f32.mrf.mxu0
      %v8202 = vadd.f32 %v8033, %v8201
      %8203 = vmatmul.bf16.gmra.mxu0 %v7052
      %v8204 = vpop.f32.mrf.mxu0
      %v8205 = vadd.f32 %v8036, %v8204
      %v8206 = vpop.f32.mrf.mxu0
      %v8207 = vadd.f32 %v8038, %v8206
      %8208 = vmatmul.bf16.gmra.mxu0 %v7055
      %v8209 = vpop.f32.mrf.mxu0
      %v8210 = vadd.f32 %v8041, %v8209
      %v8211 = vpop.f32.mrf.mxu0
      %v8212 = vadd.f32 %v8043, %v8211
      %8213 = vmatmul.bf16.gmra.mxu0 %v7058
      %v8214 = vpop.f32.mrf.mxu0
      %v8215 = vadd.f32 %v8046, %v8214
      %v8216 = vpop.f32.mrf.mxu0
      %v8217 = vadd.f32 %v8048, %v8216
      %8218 = vmatmul.bf16.gmra.mxu0 %v7061
      %v8219 = vpop.f32.mrf.mxu0
      %v8220 = vadd.f32 %v8051, %v8219
      %v8221 = vpop.f32.mrf.mxu0
      %v8222 = vadd.f32 %v8053, %v8221
      %8223 = vmatmul.bf16.gmra.mxu0 %v7064
      %v8224 = vpop.f32.mrf.mxu0
      %v8225 = vadd.f32 %v8056, %v8224
      %v8226 = vpop.f32.mrf.mxu0
      %v8227 = vadd.f32 %v8058, %v8226
      %8228 = vmatmul.bf16.gmra.mxu0 %v7067
      %v8229 = vpop.f32.mrf.mxu0
      %v8230 = vadd.f32 %v8061, %v8229
      %v8231 = vpop.f32.mrf.mxu0
      %v8232 = vadd.f32 %v8063, %v8231
      %8233 = vmatmul.bf16.gmra.mxu0 %v7070
      %v8234 = vpop.f32.mrf.mxu0
      %v8235 = vadd.f32 %v8066, %v8234
      %v8236 = vpop.f32.mrf.mxu0
      %v8237 = vadd.f32 %v8068, %v8236
      %8238 = vmatmul.bf16.gmra.mxu0 %v7073
      %v8239 = vpop.f32.mrf.mxu0
      %v8240 = vadd.f32 %v8071, %v8239
      %v8241 = vpop.f32.mrf.mxu0
      %v8242 = vadd.f32 %v8073, %v8241
      %8243 = vmatmul.bf16.gmra.mxu0 %v7076
      %v8244 = vpop.f32.mrf.mxu0
      %v8245 = vadd.f32 %v8076, %v8244
      %v8246 = vpop.f32.mrf.mxu0
      %v8247 = vadd.f32 %v8078, %v8246
      %8248 = vmatmul.bf16.gmra.mxu0 %v7079
      %v8249 = vpop.f32.mrf.mxu0
      %v8250 = vadd.f32 %v8081, %v8249
      %v8251 = vpop.f32.mrf.mxu0
      %v8252 = vadd.f32 %v8083, %v8251
      %8253 = vmatmul.bf16.gmra.mxu0 %v7082
      %v8254 = vpop.f32.mrf.mxu0
      %v8255 = vadd.f32 %v8086, %v8254
      %v8256 = vpop.f32.mrf.mxu0
      %v8257 = vadd.f32 %v8088, %v8256
      %8258 = vmatmul.bf16.gmra.mxu0 %v7085
      %v8259 = vpop.f32.mrf.mxu0
      %v8260 = vadd.f32 %v8091, %v8259
      %v8261 = vpop.f32.mrf.mxu0
      %v8262 = vadd.f32 %v8093, %v8261
      %8263 = vmatmul.bf16.gmra.mxu0 %v7088
      %v8264 = vpop.f32.mrf.mxu0
      %v8265 = vadd.f32 %v8096, %v8264
      %v8266 = vpop.f32.mrf.mxu0
      %v8267 = vadd.f32 %v8098, %v8266
      %8268 = vmatmul.bf16.gmra.mxu0 %v7091
      %v8269 = vpop.f32.mrf.mxu0
      %v8270 = vadd.f32 %v8101, %v8269
      %v8271 = vpop.f32.mrf.mxu0
      %v8272 = vadd.f32 %v8103, %v8271
      %8273 = vdwg.mxu0
      %8274 = vmatpush.bf16.msra.mxu0 %v7380
      %8275 = vmatpush.bf16.msra.mxu0 %v7378
      %8276 = vmatpush.bf16.msra.mxu0 %v7376
      %8277 = vmatpush.bf16.msra.mxu0 %v7374
      %8278 = vmatpush.bf16.msra.mxu0 %v7372
      %8279 = vmatpush.bf16.msra.mxu0 %v7370
      %8280 = vmatpush.bf16.msra.mxu0 %v7368
      %8281 = vmatpush.bf16.msra.mxu0 %v7366
      %8282 = vmatmul.bf16.gmra.mxu0 %v6999
      %v8283 = vpop.f32.mrf.mxu0
      %v8284 = vadd.f32 %v8115, %v8283
      %v8285 = vpop.f32.mrf.mxu0
      %v8286 = vadd.f32 %v8117, %v8285
      %8287 = vmatmul.bf16.gmra.mxu0 %v7002
      %v8288 = vpop.f32.mrf.mxu0
      %v8289 = vadd.f32 %v8120, %v8288
      %v8290 = vpop.f32.mrf.mxu0
      %v8291 = vadd.f32 %v8122, %v8290
      %8292 = vmatmul.bf16.gmra.mxu0 %v7005
      %v8293 = vpop.f32.mrf.mxu0
      %v8294 = vadd.f32 %v8125, %v8293
      %v8295 = vpop.f32.mrf.mxu0
      %v8296 = vadd.f32 %v8127, %v8295
      %8297 = vmatmul.bf16.gmra.mxu0 %v7008
      %v8298 = vpop.f32.mrf.mxu0
      %v8299 = vadd.f32 %v8130, %v8298
      %v8300 = vpop.f32.mrf.mxu0
      %v8301 = vadd.f32 %v8132, %v8300
      %8302 = vmatmul.bf16.gmra.mxu0 %v7011
      %v8303 = vpop.f32.mrf.mxu0
      %v8304 = vadd.f32 %v8135, %v8303
      %v8305 = vpop.f32.mrf.mxu0
      %v8306 = vadd.f32 %v8137, %v8305
      %8307 = vmatmul.bf16.gmra.mxu0 %v7014
      %v8308 = vpop.f32.mrf.mxu0
      %v8309 = vadd.f32 %v8140, %v8308
      %v8310 = vpop.f32.mrf.mxu0
      %v8311 = vadd.f32 %v8142, %v8310
      %8312 = vmatmul.bf16.gmra.mxu0 %v7017
      %v8313 = vpop.f32.mrf.mxu0
      %v8314 = vadd.f32 %v8145, %v8313
      %v8315 = vpop.f32.mrf.mxu0
      %v8316 = vadd.f32 %v8147, %v8315
      %8317 = vmatmul.bf16.gmra.mxu0 %v7020
      %v8318 = vpop.f32.mrf.mxu0
      %v8319 = vadd.f32 %v8150, %v8318
      %v8320 = vpop.f32.mrf.mxu0
      %v8321 = vadd.f32 %v8152, %v8320
      %8322 = vmatmul.bf16.gmra.mxu0 %v7023
      %v8323 = vpop.f32.mrf.mxu0
      %v8324 = vadd.f32 %v8155, %v8323
      %v8325 = vpop.f32.mrf.mxu0
      %v8326 = vadd.f32 %v8157, %v8325
      %8327 = vmatmul.bf16.gmra.mxu0 %v7026
      %v8328 = vpop.f32.mrf.mxu0
      %v8329 = vadd.f32 %v8160, %v8328
      %v8330 = vpop.f32.mrf.mxu0
      %v8331 = vadd.f32 %v8162, %v8330
      %8332 = vmatmul.bf16.gmra.mxu0 %v7029
      %v8333 = vpop.f32.mrf.mxu0
      %v8334 = vadd.f32 %v8165, %v8333
      %v8335 = vpop.f32.mrf.mxu0
      %v8336 = vadd.f32 %v8167, %v8335
      %8337 = vmatmul.bf16.gmra.mxu0 %v7032
      %v8338 = vpop.f32.mrf.mxu0
      %v8339 = vadd.f32 %v8170, %v8338
      %v8340 = vpop.f32.mrf.mxu0
      %v8341 = vadd.f32 %v8172, %v8340
      %8342 = vmatmul.bf16.gmra.mxu0 %v7035
      %v8343 = vpop.f32.mrf.mxu0
      %v8344 = vadd.f32 %v8175, %v8343
      %v8345 = vpop.f32.mrf.mxu0
      %v8346 = vadd.f32 %v8177, %v8345
      %8347 = vmatmul.bf16.gmra.mxu0 %v7038
      %v8348 = vpop.f32.mrf.mxu0
      %v8349 = vadd.f32 %v8180, %v8348
      %v8350 = vpop.f32.mrf.mxu0
      %v8351 = vadd.f32 %v8182, %v8350
      %8352 = vmatmul.bf16.gmra.mxu0 %v7041
      %v8353 = vpop.f32.mrf.mxu0
      %v8354 = vadd.f32 %v8185, %v8353
      %v8355 = vpop.f32.mrf.mxu0
      %v8356 = vadd.f32 %v8187, %v8355
      %8357 = vmatmul.bf16.gmra.mxu0 %v7044
      %v8358 = vpop.f32.mrf.mxu0
      %v8359 = vadd.f32 %v8190, %v8358
      %v8360 = vpop.f32.mrf.mxu0
      %v8361 = vadd.f32 %v8192, %v8360
      %8362 = vmatmul.bf16.gmra.mxu0 %v7047
      %v8363 = vpop.f32.mrf.mxu0
      %v8364 = vadd.f32 %v8195, %v8363
      %v8365 = vpop.f32.mrf.mxu0
      %v8366 = vadd.f32 %v8197, %v8365
      %8367 = vmatmul.bf16.gmra.mxu0 %v7050
      %v8368 = vpop.f32.mrf.mxu0
      %v8369 = vadd.f32 %v8200, %v8368
      %v8370 = vpop.f32.mrf.mxu0
      %v8371 = vadd.f32 %v8202, %v8370
      %8372 = vmatmul.bf16.gmra.mxu0 %v7053
      %v8373 = vpop.f32.mrf.mxu0
      %v8374 = vadd.f32 %v8205, %v8373
      %v8375 = vpop.f32.mrf.mxu0
      %v8376 = vadd.f32 %v8207, %v8375
      %8377 = vmatmul.bf16.gmra.mxu0 %v7056
      %v8378 = vpop.f32.mrf.mxu0
      %v8379 = vadd.f32 %v8210, %v8378
      %v8380 = vpop.f32.mrf.mxu0
      %v8381 = vadd.f32 %v8212, %v8380
      %8382 = vmatmul.bf16.gmra.mxu0 %v7059
      %v8383 = vpop.f32.mrf.mxu0
      %v8384 = vadd.f32 %v8215, %v8383
      %v8385 = vpop.f32.mrf.mxu0
      %v8386 = vadd.f32 %v8217, %v8385
      %8387 = vmatmul.bf16.gmra.mxu0 %v7062
      %v8388 = vpop.f32.mrf.mxu0
      %v8389 = vadd.f32 %v8220, %v8388
      %v8390 = vpop.f32.mrf.mxu0
      %v8391 = vadd.f32 %v8222, %v8390
      %8392 = vmatmul.bf16.gmra.mxu0 %v7065
      %v8393 = vpop.f32.mrf.mxu0
      %v8394 = vadd.f32 %v8225, %v8393
      %v8395 = vpop.f32.mrf.mxu0
      %v8396 = vadd.f32 %v8227, %v8395
      %8397 = vmatmul.bf16.gmra.mxu0 %v7068
      %v8398 = vpop.f32.mrf.mxu0
      %v8399 = vadd.f32 %v8230, %v8398
      %v8400 = vpop.f32.mrf.mxu0
      %v8401 = vadd.f32 %v8232, %v8400
      %8402 = vmatmul.bf16.gmra.mxu0 %v7071
      %v8403 = vpop.f32.mrf.mxu0
      %v8404 = vadd.f32 %v8235, %v8403
      %v8405 = vpop.f32.mrf.mxu0
      %v8406 = vadd.f32 %v8237, %v8405
      %8407 = vmatmul.bf16.gmra.mxu0 %v7074
      %v8408 = vpop.f32.mrf.mxu0
      %v8409 = vadd.f32 %v8240, %v8408
      %v8410 = vpop.f32.mrf.mxu0
      %v8411 = vadd.f32 %v8242, %v8410
      %8412 = vmatmul.bf16.gmra.mxu0 %v7077
      %v8413 = vpop.f32.mrf.mxu0
      %v8414 = vadd.f32 %v8245, %v8413
      %v8415 = vpop.f32.mrf.mxu0
      %v8416 = vadd.f32 %v8247, %v8415
      %8417 = vmatmul.bf16.gmra.mxu0 %v7080
      %v8418 = vpop.f32.mrf.mxu0
      %v8419 = vadd.f32 %v8250, %v8418
      %v8420 = vpop.f32.mrf.mxu0
      %v8421 = vadd.f32 %v8252, %v8420
      %8422 = vmatmul.bf16.gmra.mxu0 %v7083
      %v8423 = vpop.f32.mrf.mxu0
      %v8424 = vadd.f32 %v8255, %v8423
      %v8425 = vpop.f32.mrf.mxu0
      %v8426 = vadd.f32 %v8257, %v8425
      %8427 = vmatmul.bf16.gmra.mxu0 %v7086
      %v8428 = vpop.f32.mrf.mxu0
      %v8429 = vadd.f32 %v8260, %v8428
      %v8430 = vpop.f32.mrf.mxu0
      %v8431 = vadd.f32 %v8262, %v8430
      %8432 = vmatmul.bf16.gmra.mxu0 %v7089
      %v8433 = vpop.f32.mrf.mxu0
      %v8434 = vadd.f32 %v8265, %v8433
      %v8435 = vpop.f32.mrf.mxu0
      %v8436 = vadd.f32 %v8267, %v8435
      %8437 = vmatmul.bf16.gmra.mxu0 %v7092
      %v8438 = vpop.f32.mrf.mxu0
      %v8439 = vadd.f32 %v8270, %v8438
      %v8440 = vpop.f32.mrf.mxu0
      %v8441 = vadd.f32 %v8272, %v8440
      %8442 = vdwg.mxu0
      %v8443 = vld [vmem:[%s3] sm:$0xff]
      %v8444 = vld [vmem:[%s3 + $0x8] sm:$0xff]
      %v8445 = vld [vmem:[%s3 + $0x10] sm:$0xff]
      %v8446 = vld [vmem:[%s3 + $0x18] sm:$0xff]
      %v8447 = vld [vmem:[%s3 + $0x20] sm:$0xff]
      %v8448 = vld [vmem:[%s3 + $0x28] sm:$0xff]
      %v8449 = vld [vmem:[%s3 + $0x30] sm:$0xff]
      %v8450 = vld [vmem:[%s3 + $0x38] sm:$0xff]
      %v8451 = vld [vmem:[%s3 + $0x40] sm:$0xff]
      %v8452 = vld [vmem:[%s3 + $0x48] sm:$0xff]
      %v8453 = vld [vmem:[%s3 + $0x50] sm:$0xff]
      %v8454 = vld [vmem:[%s3 + $0x58] sm:$0xff]
      %v8455 = vld [vmem:[%s3 + $0x60] sm:$0xff]
      %v8456 = vld [vmem:[%s3 + $0x68] sm:$0xff]
      %v8457 = vld [vmem:[%s3 + $0x70] sm:$0xff]
      %v8458 = vld [vmem:[%s3 + $0x78] sm:$0xff]
      %v8459 = vld [vmem:[%s3 + $0x80] sm:$0xff]
      %v8460 = vld [vmem:[%s3 + $0x88] sm:$0xff]
      %v8461 = vld [vmem:[%s3 + $0x90] sm:$0xff]
      %v8462 = vld [vmem:[%s3 + $0x98] sm:$0xff]
      %v8463 = vld [vmem:[%s3 + $0xa0] sm:$0xff]
      %v8464 = vld [vmem:[%s3 + $0xa8] sm:$0xff]
      %v8465 = vld [vmem:[%s3 + $0xb0] sm:$0xff]
      %v8466 = vld [vmem:[%s3 + $0xb8] sm:$0xff]
      %v8467 = vld [vmem:[%s3 + $0xc0] sm:$0xff]
      %v8468 = vld [vmem:[%s3 + $0xc8] sm:$0xff]
      %v8469 = vld [vmem:[%s3 + $0xd0] sm:$0xff]
      %v8470 = vld [vmem:[%s3 + $0xd8] sm:$0xff]
      %v8471 = vld [vmem:[%s3 + $0xe0] sm:$0xff]
      %v8472 = vld [vmem:[%s3 + $0xe8] sm:$0xff]
      %v8473 = vld [vmem:[%s3 + $0xf0] sm:$0xff]
      %v8474 = vld [vmem:[%s3 + $0xf8] sm:$0xff]
      %v8475 = vld [vmem:[%s3 + $0x100] sm:$0xff]
      %v8476 = vld [vmem:[%s3 + $0x108] sm:$0xff]
      %v8477 = vld [vmem:[%s3 + $0x110] sm:$0xff]
      %v8478 = vld [vmem:[%s3 + $0x118] sm:$0xff]
      %v8479 = vld [vmem:[%s3 + $0x120] sm:$0xff]
      %v8480 = vld [vmem:[%s3 + $0x128] sm:$0xff]
      %v8481 = vld [vmem:[%s3 + $0x130] sm:$0xff]
      %v8482 = vld [vmem:[%s3 + $0x138] sm:$0xff]
      %v8483 = vld [vmem:[%s3 + $0x140] sm:$0xff]
      %v8484 = vld [vmem:[%s3 + $0x148] sm:$0xff]
      %v8485 = vld [vmem:[%s3 + $0x150] sm:$0xff]
      %v8486 = vld [vmem:[%s3 + $0x158] sm:$0xff]
      %v8487 = vld [vmem:[%s3 + $0x160] sm:$0xff]
      %v8488 = vld [vmem:[%s3 + $0x168] sm:$0xff]
      %v8489 = vld [vmem:[%s3 + $0x170] sm:$0xff]
      %v8490 = vld [vmem:[%s3 + $0x178] sm:$0xff]
      %v8491 = vpack.c.bf16 %v7779, %v7777
      %v8492 = vpack.c.bf16 %v8286, %v8284
      %v8493 = vpack.c.bf16 %v7784, %v7782
      %v8494 = vpack.c.bf16 %v8291, %v8289
      %v8495 = vpack.c.bf16 %v7789, %v7787
      %v8496 = vpack.c.bf16 %v8296, %v8294
      %v8497 = vpack.c.bf16 %v7794, %v7792
      %v8498 = vpack.c.bf16 %v8301, %v8299
      %v8499 = vpack.c.bf16 %v7799, %v7797
      %v8500 = vpack.c.bf16 %v8306, %v8304
      %v8501 = vpack.c.bf16 %v7804, %v7802
      %v8502 = vpack.c.bf16 %v8311, %v8309
      %v8503 = vpack.c.bf16 %v7809, %v7807
      %v8504 = vpack.c.bf16 %v8316, %v8314
      %v8505 = vpack.c.bf16 %v7814, %v7812
      %v8506 = vpack.c.bf16 %v8321, %v8319
      %v8507 = vpack.c.bf16 %v7819, %v7817
      %v8508 = vpack.c.bf16 %v8326, %v8324
      %v8509 = vpack.c.bf16 %v7824, %v7822
      %v8510 = vpack.c.bf16 %v8331, %v8329
      %v8511 = vpack.c.bf16 %v7829, %v7827
      %v8512 = vpack.c.bf16 %v8336, %v8334
      %v8513 = vpack.c.bf16 %v7834, %v7832
      %v8514 = vpack.c.bf16 %v8341, %v8339
      %v8515 = vpack.c.bf16 %v7839, %v7837
      %v8516 = vpack.c.bf16 %v8346, %v8344
      %v8517 = vpack.c.bf16 %v7844, %v7842
      %v8518 = vpack.c.bf16 %v8351, %v8349
      %v8519 = vpack.c.bf16 %v7849, %v7847
      %v8520 = vpack.c.bf16 %v8356, %v8354
      %v8521 = vpack.c.bf16 %v7854, %v7852
      %v8522 = vpack.c.bf16 %v8361, %v8359
      %v8523 = vpack.c.bf16 %v7859, %v7857
      %v8524 = vpack.c.bf16 %v8366, %v8364
      %v8525 = vpack.c.bf16 %v7864, %v7862
      %v8526 = vpack.c.bf16 %v8371, %v8369
      %v8527 = vpack.c.bf16 %v7869, %v7867
      %v8528 = vpack.c.bf16 %v8376, %v8374
      %v8529 = vpack.c.bf16 %v7874, %v7872
      %v8530 = vpack.c.bf16 %v8381, %v8379
      %v8531 = vpack.c.bf16 %v7879, %v7877
      %v8532 = vpack.c.bf16 %v8386, %v8384
      %v8533 = vpack.c.bf16 %v7884, %v7882
      %v8534 = vpack.c.bf16 %v8391, %v8389
      %v8535 = vpack.c.bf16 %v7889, %v7887
      %v8536 = vpack.c.bf16 %v8396, %v8394
      %v8537 = vpack.c.bf16 %v7894, %v7892
      %v8538 = vpack.c.bf16 %v8401, %v8399
      %v8539 = vpack.c.bf16 %v7899, %v7897
      %v8540 = vpack.c.bf16 %v8406, %v8404
      %v8541 = vpack.c.bf16 %v7904, %v7902
      %v8542 = vpack.c.bf16 %v8411, %v8409
      %v8543 = vpack.c.bf16 %v7909, %v7907
      %v8544 = vpack.c.bf16 %v8416, %v8414
      %v8545 = vpack.c.bf16 %v7914, %v7912
      %v8546 = vpack.c.bf16 %v8421, %v8419
      %v8547 = vpack.c.bf16 %v7919, %v7917
      %v8548 = vpack.c.bf16 %v8426, %v8424
      %v8549 = vpack.c.bf16 %v7924, %v7922
      %v8550 = vpack.c.bf16 %v8431, %v8429
      %v8551 = vpack.c.bf16 %v7929, %v7927
      %v8552 = vpack.c.bf16 %v8436, %v8434
      %v8553 = vpack.c.bf16 %v7934, %v7932
      %v8554 = vpack.c.bf16 %v8441, %v8439
      %v8603 = vunpack.c.l.b16 %v8443
      %v8604 = vunpack.c.h.b16 %v8443
      %v8605 = vunpack.c.l.b16 %v8444
      %v8606 = vunpack.c.h.b16 %v8444
      %v8607 = vunpack.c.l.b16 %v8445
      %v8608 = vunpack.c.h.b16 %v8445
      %v8609 = vunpack.c.l.b16 %v8446
      %v8610 = vunpack.c.h.b16 %v8446
      %v8611 = vunpack.c.l.b16 %v8447
      %v8612 = vunpack.c.h.b16 %v8447
      %v8613 = vunpack.c.l.b16 %v8448
      %v8614 = vunpack.c.h.b16 %v8448
      %v8615 = vunpack.c.l.b16 %v8449
      %v8616 = vunpack.c.h.b16 %v8449
      %v8617 = vunpack.c.l.b16 %v8450
      %v8618 = vunpack.c.h.b16 %v8450
      %v8619 = vunpack.c.l.b16 %v8451
      %v8620 = vunpack.c.h.b16 %v8451
      %v8621 = vunpack.c.l.b16 %v8452
      %v8622 = vunpack.c.h.b16 %v8452
      %v8623 = vunpack.c.l.b16 %v8453
      %v8624 = vunpack.c.h.b16 %v8453
      %v8625 = vunpack.c.l.b16 %v8454
      %v8626 = vunpack.c.h.b16 %v8454
      %v8627 = vunpack.c.l.b16 %v8455
      %v8628 = vunpack.c.h.b16 %v8455
      %v8629 = vunpack.c.l.b16 %v8456
      %v8630 = vunpack.c.h.b16 %v8456
      %v8631 = vunpack.c.l.b16 %v8457
      %v8632 = vunpack.c.h.b16 %v8457
      %v8633 = vunpack.c.l.b16 %v8458
      %v8634 = vunpack.c.h.b16 %v8458
      %v8635 = vunpack.c.l.b16 %v8459
      %v8636 = vunpack.c.h.b16 %v8459
      %v8637 = vunpack.c.l.b16 %v8460
      %v8638 = vunpack.c.h.b16 %v8460
      %v8639 = vunpack.c.l.b16 %v8461
      %v8640 = vunpack.c.h.b16 %v8461
      %v8641 = vunpack.c.l.b16 %v8462
      %v8642 = vunpack.c.h.b16 %v8462
      %v8643 = vunpack.c.l.b16 %v8463
      %v8644 = vunpack.c.h.b16 %v8463
      %v8645 = vunpack.c.l.b16 %v8464
      %v8646 = vunpack.c.h.b16 %v8464
      %v8647 = vunpack.c.l.b16 %v8465
      %v8648 = vunpack.c.h.b16 %v8465
      %v8649 = vunpack.c.l.b16 %v8466
      %v8650 = vunpack.c.h.b16 %v8466
      %v8651 = vunpack.c.l.b16 %v8467
      %v8652 = vunpack.c.h.b16 %v8467
      %v8653 = vunpack.c.l.b16 %v8468
      %v8654 = vunpack.c.h.b16 %v8468
      %v8655 = vunpack.c.l.b16 %v8469
      %v8656 = vunpack.c.h.b16 %v8469
      %v8657 = vunpack.c.l.b16 %v8470
      %v8658 = vunpack.c.h.b16 %v8470
      %v8659 = vunpack.c.l.b16 %v8471
      %v8660 = vunpack.c.h.b16 %v8471
      %v8661 = vunpack.c.l.b16 %v8472
      %v8662 = vunpack.c.h.b16 %v8472
      %v8663 = vunpack.c.l.b16 %v8473
      %v8664 = vunpack.c.h.b16 %v8473
      %v8665 = vunpack.c.l.b16 %v8474
      %v8666 = vunpack.c.h.b16 %v8474
      %v8667 = vunpack.c.l.b16 %v8475
      %v8668 = vunpack.c.h.b16 %v8475
      %v8669 = vunpack.c.l.b16 %v8476
      %v8670 = vunpack.c.h.b16 %v8476
      %v8671 = vunpack.c.l.b16 %v8477
      %v8672 = vunpack.c.h.b16 %v8477
      %v8673 = vunpack.c.l.b16 %v8478
      %v8674 = vunpack.c.h.b16 %v8478
      %v8675 = vunpack.c.l.b16 %v8479
      %v8676 = vunpack.c.h.b16 %v8479
      %v8677 = vunpack.c.l.b16 %v8480
      %v8678 = vunpack.c.h.b16 %v8480
      %v8679 = vunpack.c.l.b16 %v8481
      %v8680 = vunpack.c.h.b16 %v8481
      %v8681 = vunpack.c.l.b16 %v8482
      %v8682 = vunpack.c.h.b16 %v8482
      %v8683 = vunpack.c.l.b16 %v8483
      %v8684 = vunpack.c.h.b16 %v8483
      %v8685 = vunpack.c.l.b16 %v8484
      %v8686 = vunpack.c.h.b16 %v8484
      %v8687 = vunpack.c.l.b16 %v8485
      %v8688 = vunpack.c.h.b16 %v8485
      %v8689 = vunpack.c.l.b16 %v8486
      %v8690 = vunpack.c.h.b16 %v8486
      %v8691 = vunpack.c.l.b16 %v8487
      %v8692 = vunpack.c.h.b16 %v8487
      %v8693 = vunpack.c.l.b16 %v8488
      %v8694 = vunpack.c.h.b16 %v8488
      %v8695 = vunpack.c.l.b16 %v8489
      %v8696 = vunpack.c.h.b16 %v8489
      %v8697 = vunpack.c.l.b16 %v8490
      %v8698 = vunpack.c.h.b16 %v8490
      %v8699 = vpack.c.b16 %v8607, %v8603
      %v8700 = vpack.c.b16 %v8608, %v8604
      %v8701 = vpack.c.b16 %v8609, %v8605
      %v8702 = vpack.c.b16 %v8610, %v8606
      %v8703 = vpack.c.b16 %v8615, %v8611
      %v8704 = vpack.c.b16 %v8616, %v8612
      %v8705 = vpack.c.b16 %v8617, %v8613
      %v8706 = vpack.c.b16 %v8618, %v8614
      %v8707 = vpack.c.b16 %v8623, %v8619
      %v8708 = vpack.c.b16 %v8624, %v8620
      %v8709 = vpack.c.b16 %v8625, %v8621
      %v8710 = vpack.c.b16 %v8626, %v8622
      %v8711 = vpack.c.b16 %v8631, %v8627
      %v8712 = vpack.c.b16 %v8632, %v8628
      %v8713 = vpack.c.b16 %v8633, %v8629
      %v8714 = vpack.c.b16 %v8634, %v8630
      %v8715 = vpack.c.b16 %v8639, %v8635
      %v8716 = vpack.c.b16 %v8640, %v8636
      %v8717 = vpack.c.b16 %v8641, %v8637
      %v8718 = vpack.c.b16 %v8642, %v8638
      %v8719 = vpack.c.b16 %v8647, %v8643
      %v8720 = vpack.c.b16 %v8648, %v8644
      %v8721 = vpack.c.b16 %v8649, %v8645
      %v8722 = vpack.c.b16 %v8650, %v8646
      %v8723 = vpack.c.b16 %v8655, %v8651
      %v8724 = vpack.c.b16 %v8656, %v8652
      %v8725 = vpack.c.b16 %v8657, %v8653
      %v8726 = vpack.c.b16 %v8658, %v8654
      %v8727 = vpack.c.b16 %v8663, %v8659
      %v8728 = vpack.c.b16 %v8664, %v8660
      %v8729 = vpack.c.b16 %v8665, %v8661
      %v8730 = vpack.c.b16 %v8666, %v8662
      %v8731 = vpack.c.b16 %v8671, %v8667
      %v8732 = vpack.c.b16 %v8672, %v8668
      %v8733 = vpack.c.b16 %v8673, %v8669
      %v8734 = vpack.c.b16 %v8674, %v8670
      %v8735 = vpack.c.b16 %v8679, %v8675
      %v8736 = vpack.c.b16 %v8680, %v8676
      %v8737 = vpack.c.b16 %v8681, %v8677
      %v8738 = vpack.c.b16 %v8682, %v8678
      %v8739 = vpack.c.b16 %v8687, %v8683
      %v8740 = vpack.c.b16 %v8688, %v8684
      %v8741 = vpack.c.b16 %v8689, %v8685
      %v8742 = vpack.c.b16 %v8690, %v8686
      %v8743 = vpack.c.b16 %v8695, %v8691
      %v8744 = vpack.c.b16 %v8696, %v8692
      %v8745 = vpack.c.b16 %v8697, %v8693
      %v8746 = vpack.c.b16 %v8698, %v8694
      %8795 = vmatpush.bf16.msra.mxu0 %v8505
      %8796 = vmatpush.bf16.msra.mxu0 %v8503
      %8797 = vmatpush.bf16.msra.mxu0 %v8501
      %8798 = vmatpush.bf16.msra.mxu0 %v8499
      %8799 = vmatpush.bf16.msra.mxu0 %v8497
      %8800 = vmatpush.bf16.msra.mxu0 %v8495
      %8801 = vmatpush.bf16.msra.mxu0 %v8493
      %8802 = vmatpush.bf16.msra.mxu0 %v8491
      %8803 = vmatmul.bf16.gmra.mxu0 %v8699
      %v8804 = vpop.f32.mrf.mxu0
      %v8805 = vadd.f32 0.0, %v8804
      %v8806 = vpop.f32.mrf.mxu0
      %v8807 = vadd.f32 0.0, %v8806
      %8808 = vmatmul.bf16.gmra.mxu0 %v8703
      %v8809 = vpop.f32.mrf.mxu0
      %v8810 = vadd.f32 0.0, %v8809
      %v8811 = vpop.f32.mrf.mxu0
      %v8812 = vadd.f32 0.0, %v8811
      %8813 = vmatmul.bf16.gmra.mxu0 %v8707
      %v8814 = vpop.f32.mrf.mxu0
      %v8815 = vadd.f32 0.0, %v8814
      %v8816 = vpop.f32.mrf.mxu0
      %v8817 = vadd.f32 0.0, %v8816
      %8818 = vmatmul.bf16.gmra.mxu0 %v8711
      %v8819 = vpop.f32.mrf.mxu0
      %v8820 = vadd.f32 0.0, %v8819
      %v8821 = vpop.f32.mrf.mxu0
      %v8822 = vadd.f32 0.0, %v8821
      %8823 = vmatmul.bf16.gmra.mxu0 %v8715
      %v8824 = vpop.f32.mrf.mxu0
      %v8825 = vadd.f32 0.0, %v8824
      %v8826 = vpop.f32.mrf.mxu0
      %v8827 = vadd.f32 0.0, %v8826
      %8828 = vmatmul.bf16.gmra.mxu0 %v8719
      %v8829 = vpop.f32.mrf.mxu0
      %v8830 = vadd.f32 0.0, %v8829
      %v8831 = vpop.f32.mrf.mxu0
      %v8832 = vadd.f32 0.0, %v8831
      %8833 = vmatmul.bf16.gmra.mxu0 %v8723
      %v8834 = vpop.f32.mrf.mxu0
      %v8835 = vadd.f32 0.0, %v8834
      %v8836 = vpop.f32.mrf.mxu0
      %v8837 = vadd.f32 0.0, %v8836
      %8838 = vmatmul.bf16.gmra.mxu0 %v8727
      %v8839 = vpop.f32.mrf.mxu0
      %v8840 = vadd.f32 0.0, %v8839
      %v8841 = vpop.f32.mrf.mxu0
      %v8842 = vadd.f32 0.0, %v8841
      %8843 = vmatmul.bf16.gmra.mxu0 %v8731
      %v8844 = vpop.f32.mrf.mxu0
      %v8845 = vadd.f32 0.0, %v8844
      %v8846 = vpop.f32.mrf.mxu0
      %v8847 = vadd.f32 0.0, %v8846
      %8848 = vmatmul.bf16.gmra.mxu0 %v8735
      %v8849 = vpop.f32.mrf.mxu0
      %v8850 = vadd.f32 0.0, %v8849
      %v8851 = vpop.f32.mrf.mxu0
      %v8852 = vadd.f32 0.0, %v8851
      %8853 = vmatmul.bf16.gmra.mxu0 %v8739
      %v8854 = vpop.f32.mrf.mxu0
      %v8855 = vadd.f32 0.0, %v8854
      %v8856 = vpop.f32.mrf.mxu0
      %v8857 = vadd.f32 0.0, %v8856
      %8858 = vmatmul.bf16.gmra.mxu0 %v8743
      %v8859 = vpop.f32.mrf.mxu0
      %v8860 = vadd.f32 0.0, %v8859
      %v8861 = vpop.f32.mrf.mxu0
      %v8862 = vadd.f32 0.0, %v8861
      %8863 = vdwg.mxu0
      %8864 = vmatpush.bf16.msra.mxu0 %v8521
      %8865 = vmatpush.bf16.msra.mxu0 %v8519
      %8866 = vmatpush.bf16.msra.mxu0 %v8517
      %8867 = vmatpush.bf16.msra.mxu0 %v8515
      %8868 = vmatpush.bf16.msra.mxu0 %v8513
      %8869 = vmatpush.bf16.msra.mxu0 %v8511
      %8870 = vmatpush.bf16.msra.mxu0 %v8509
      %8871 = vmatpush.bf16.msra.mxu0 %v8507
      %8872 = vmatmul.bf16.gmra.mxu0 %v8700
      %v8873 = vpop.f32.mrf.mxu0
      %v8874 = vadd.f32 %v8805, %v8873
      %v8875 = vpop.f32.mrf.mxu0
      %v8876 = vadd.f32 %v8807, %v8875
      %8877 = vmatmul.bf16.gmra.mxu0 %v8704
      %v8878 = vpop.f32.mrf.mxu0
      %v8879 = vadd.f32 %v8810, %v8878
      %v8880 = vpop.f32.mrf.mxu0
      %v8881 = vadd.f32 %v8812, %v8880
      %8882 = vmatmul.bf16.gmra.mxu0 %v8708
      %v8883 = vpop.f32.mrf.mxu0
      %v8884 = vadd.f32 %v8815, %v8883
      %v8885 = vpop.f32.mrf.mxu0
      %v8886 = vadd.f32 %v8817, %v8885
      %8887 = vmatmul.bf16.gmra.mxu0 %v8712
      %v8888 = vpop.f32.mrf.mxu0
      %v8889 = vadd.f32 %v8820, %v8888
      %v8890 = vpop.f32.mrf.mxu0
      %v8891 = vadd.f32 %v8822, %v8890
      %8892 = vmatmul.bf16.gmra.mxu0 %v8716
      %v8893 = vpop.f32.mrf.mxu0
      %v8894 = vadd.f32 %v8825, %v8893
      %v8895 = vpop.f32.mrf.mxu0
      %v8896 = vadd.f32 %v8827, %v8895
      %8897 = vmatmul.bf16.gmra.mxu0 %v8720
      %v8898 = vpop.f32.mrf.mxu0
      %v8899 = vadd.f32 %v8830, %v8898
      %v8900 = vpop.f32.mrf.mxu0
      %v8901 = vadd.f32 %v8832, %v8900
      %8902 = vmatmul.bf16.gmra.mxu0 %v8724
      %v8903 = vpop.f32.mrf.mxu0
      %v8904 = vadd.f32 %v8835, %v8903
      %v8905 = vpop.f32.mrf.mxu0
      %v8906 = vadd.f32 %v8837, %v8905
      %8907 = vmatmul.bf16.gmra.mxu0 %v8728
      %v8908 = vpop.f32.mrf.mxu0
      %v8909 = vadd.f32 %v8840, %v8908
      %v8910 = vpop.f32.mrf.mxu0
      %v8911 = vadd.f32 %v8842, %v8910
      %8912 = vmatmul.bf16.gmra.mxu0 %v8732
      %v8913 = vpop.f32.mrf.mxu0
      %v8914 = vadd.f32 %v8845, %v8913
      %v8915 = vpop.f32.mrf.mxu0
      %v8916 = vadd.f32 %v8847, %v8915
      %8917 = vmatmul.bf16.gmra.mxu0 %v8736
      %v8918 = vpop.f32.mrf.mxu0
      %v8919 = vadd.f32 %v8850, %v8918
      %v8920 = vpop.f32.mrf.mxu0
      %v8921 = vadd.f32 %v8852, %v8920
      %8922 = vmatmul.bf16.gmra.mxu0 %v8740
      %v8923 = vpop.f32.mrf.mxu0
      %v8924 = vadd.f32 %v8855, %v8923
      %v8925 = vpop.f32.mrf.mxu0
      %v8926 = vadd.f32 %v8857, %v8925
      %8927 = vmatmul.bf16.gmra.mxu0 %v8744
      %v8928 = vpop.f32.mrf.mxu0
      %v8929 = vadd.f32 %v8860, %v8928
      %v8930 = vpop.f32.mrf.mxu0
      %v8931 = vadd.f32 %v8862, %v8930
      %8932 = vdwg.mxu0
      %8933 = vmatpush.bf16.msra.mxu0 %v8537
      %8934 = vmatpush.bf16.msra.mxu0 %v8535
      %8935 = vmatpush.bf16.msra.mxu0 %v8533
      %8936 = vmatpush.bf16.msra.mxu0 %v8531
      %8937 = vmatpush.bf16.msra.mxu0 %v8529
      %8938 = vmatpush.bf16.msra.mxu0 %v8527
      %8939 = vmatpush.bf16.msra.mxu0 %v8525
      %8940 = vmatpush.bf16.msra.mxu0 %v8523
      %8941 = vmatmul.bf16.gmra.mxu0 %v8701
      %v8942 = vpop.f32.mrf.mxu0
      %v8943 = vadd.f32 %v8874, %v8942
      %v8944 = vpop.f32.mrf.mxu0
      %v8945 = vadd.f32 %v8876, %v8944
      %8946 = vmatmul.bf16.gmra.mxu0 %v8705
      %v8947 = vpop.f32.mrf.mxu0
      %v8948 = vadd.f32 %v8879, %v8947
      %v8949 = vpop.f32.mrf.mxu0
      %v8950 = vadd.f32 %v8881, %v8949
      %8951 = vmatmul.bf16.gmra.mxu0 %v8709
      %v8952 = vpop.f32.mrf.mxu0
      %v8953 = vadd.f32 %v8884, %v8952
      %v8954 = vpop.f32.mrf.mxu0
      %v8955 = vadd.f32 %v8886, %v8954
      %8956 = vmatmul.bf16.gmra.mxu0 %v8713
      %v8957 = vpop.f32.mrf.mxu0
      %v8958 = vadd.f32 %v8889, %v8957
      %v8959 = vpop.f32.mrf.mxu0
      %v8960 = vadd.f32 %v8891, %v8959
      %8961 = vmatmul.bf16.gmra.mxu0 %v8717
      %v8962 = vpop.f32.mrf.mxu0
      %v8963 = vadd.f32 %v8894, %v8962
      %v8964 = vpop.f32.mrf.mxu0
      %v8965 = vadd.f32 %v8896, %v8964
      %8966 = vmatmul.bf16.gmra.mxu0 %v8721
      %v8967 = vpop.f32.mrf.mxu0
      %v8968 = vadd.f32 %v8899, %v8967
      %v8969 = vpop.f32.mrf.mxu0
      %v8970 = vadd.f32 %v8901, %v8969
      %8971 = vmatmul.bf16.gmra.mxu0 %v8725
      %v8972 = vpop.f32.mrf.mxu0
      %v8973 = vadd.f32 %v8904, %v8972
      %v8974 = vpop.f32.mrf.mxu0
      %v8975 = vadd.f32 %v8906, %v8974
      %8976 = vmatmul.bf16.gmra.mxu0 %v8729
      %v8977 = vpop.f32.mrf.mxu0
      %v8978 = vadd.f32 %v8909, %v8977
      %v8979 = vpop.f32.mrf.mxu0
      %v8980 = vadd.f32 %v8911, %v8979
      %8981 = vmatmul.bf16.gmra.mxu0 %v8733
      %v8982 = vpop.f32.mrf.mxu0
      %v8983 = vadd.f32 %v8914, %v8982
      %v8984 = vpop.f32.mrf.mxu0
      %v8985 = vadd.f32 %v8916, %v8984
      %8986 = vmatmul.bf16.gmra.mxu0 %v8737
      %v8987 = vpop.f32.mrf.mxu0
      %v8988 = vadd.f32 %v8919, %v8987
      %v8989 = vpop.f32.mrf.mxu0
      %v8990 = vadd.f32 %v8921, %v8989
      %8991 = vmatmul.bf16.gmra.mxu0 %v8741
      %v8992 = vpop.f32.mrf.mxu0
      %v8993 = vadd.f32 %v8924, %v8992
      %v8994 = vpop.f32.mrf.mxu0
      %v8995 = vadd.f32 %v8926, %v8994
      %8996 = vmatmul.bf16.gmra.mxu0 %v8745
      %v8997 = vpop.f32.mrf.mxu0
      %v8998 = vadd.f32 %v8929, %v8997
      %v8999 = vpop.f32.mrf.mxu0
      %v9000 = vadd.f32 %v8931, %v8999
      %9001 = vdwg.mxu0
      %9002 = vmatpush.bf16.msra.mxu0 %v8553
      %9003 = vmatpush.bf16.msra.mxu0 %v8551
      %9004 = vmatpush.bf16.msra.mxu0 %v8549
      %9005 = vmatpush.bf16.msra.mxu0 %v8547
      %9006 = vmatpush.bf16.msra.mxu0 %v8545
      %9007 = vmatpush.bf16.msra.mxu0 %v8543
      %9008 = vmatpush.bf16.msra.mxu0 %v8541
      %9009 = vmatpush.bf16.msra.mxu0 %v8539
      %9010 = vmatmul.bf16.gmra.mxu0 %v8702
      %v9011 = vpop.f32.mrf.mxu0
      %v9012 = vadd.f32 %v8943, %v9011
      %v9013 = vpop.f32.mrf.mxu0
      %v9014 = vadd.f32 %v8945, %v9013
      %9015 = vmatmul.bf16.gmra.mxu0 %v8706
      %v9016 = vpop.f32.mrf.mxu0
      %v9017 = vadd.f32 %v8948, %v9016
      %v9018 = vpop.f32.mrf.mxu0
      %v9019 = vadd.f32 %v8950, %v9018
      %9020 = vmatmul.bf16.gmra.mxu0 %v8710
      %v9021 = vpop.f32.mrf.mxu0
      %v9022 = vadd.f32 %v8953, %v9021
      %v9023 = vpop.f32.mrf.mxu0
      %v9024 = vadd.f32 %v8955, %v9023
      %9025 = vmatmul.bf16.gmra.mxu0 %v8714
      %v9026 = vpop.f32.mrf.mxu0
      %v9027 = vadd.f32 %v8958, %v9026
      %v9028 = vpop.f32.mrf.mxu0
      %v9029 = vadd.f32 %v8960, %v9028
      %9030 = vmatmul.bf16.gmra.mxu0 %v8718
      %v9031 = vpop.f32.mrf.mxu0
      %v9032 = vadd.f32 %v8963, %v9031
      %v9033 = vpop.f32.mrf.mxu0
      %v9034 = vadd.f32 %v8965, %v9033
      %9035 = vmatmul.bf16.gmra.mxu0 %v8722
      %v9036 = vpop.f32.mrf.mxu0
      %v9037 = vadd.f32 %v8968, %v9036
      %v9038 = vpop.f32.mrf.mxu0
      %v9039 = vadd.f32 %v8970, %v9038
      %9040 = vmatmul.bf16.gmra.mxu0 %v8726
      %v9041 = vpop.f32.mrf.mxu0
      %v9042 = vadd.f32 %v8973, %v9041
      %v9043 = vpop.f32.mrf.mxu0
      %v9044 = vadd.f32 %v8975, %v9043
      %9045 = vmatmul.bf16.gmra.mxu0 %v8730
      %v9046 = vpop.f32.mrf.mxu0
      %v9047 = vadd.f32 %v8978, %v9046
      %v9048 = vpop.f32.mrf.mxu0
      %v9049 = vadd.f32 %v8980, %v9048
      %9050 = vmatmul.bf16.gmra.mxu0 %v8734
      %v9051 = vpop.f32.mrf.mxu0
      %v9052 = vadd.f32 %v8983, %v9051
      %v9053 = vpop.f32.mrf.mxu0
      %v9054 = vadd.f32 %v8985, %v9053
      %9055 = vmatmul.bf16.gmra.mxu0 %v8738
      %v9056 = vpop.f32.mrf.mxu0
      %v9057 = vadd.f32 %v8988, %v9056
      %v9058 = vpop.f32.mrf.mxu0
      %v9059 = vadd.f32 %v8990, %v9058
      %9060 = vmatmul.bf16.gmra.mxu0 %v8742
      %v9061 = vpop.f32.mrf.mxu0
      %v9062 = vadd.f32 %v8993, %v9061
      %v9063 = vpop.f32.mrf.mxu0
      %v9064 = vadd.f32 %v8995, %v9063
      %9065 = vmatmul.bf16.gmra.mxu0 %v8746
      %v9066 = vpop.f32.mrf.mxu0
      %v9067 = vadd.f32 %v8998, %v9066
      %v9068 = vpop.f32.mrf.mxu0
      %v9069 = vadd.f32 %v9000, %v9068
      %9070 = vdwg.mxu0
      %9071 = vmatpush.bf16.msra.mxu0 %v8506
      %9072 = vmatpush.bf16.msra.mxu0 %v8504
      %9073 = vmatpush.bf16.msra.mxu0 %v8502
      %9074 = vmatpush.bf16.msra.mxu0 %v8500
      %9075 = vmatpush.bf16.msra.mxu0 %v8498
      %9076 = vmatpush.bf16.msra.mxu0 %v8496
      %9077 = vmatpush.bf16.msra.mxu0 %v8494
      %9078 = vmatpush.bf16.msra.mxu0 %v8492
      %9079 = vmatmul.bf16.gmra.mxu0 %v8699
      %v9080 = vpop.f32.mrf.mxu0
      %v9081 = vadd.f32 0.0, %v9080
      %v9082 = vpop.f32.mrf.mxu0
      %v9083 = vadd.f32 0.0, %v9082
      %9084 = vmatmul.bf16.gmra.mxu0 %v8703
      %v9085 = vpop.f32.mrf.mxu0
      %v9086 = vadd.f32 0.0, %v9085
      %v9087 = vpop.f32.mrf.mxu0
      %v9088 = vadd.f32 0.0, %v9087
      %9089 = vmatmul.bf16.gmra.mxu0 %v8707
      %v9090 = vpop.f32.mrf.mxu0
      %v9091 = vadd.f32 0.0, %v9090
      %v9092 = vpop.f32.mrf.mxu0
      %v9093 = vadd.f32 0.0, %v9092
      %9094 = vmatmul.bf16.gmra.mxu0 %v8711
      %v9095 = vpop.f32.mrf.mxu0
      %v9096 = vadd.f32 0.0, %v9095
      %v9097 = vpop.f32.mrf.mxu0
      %v9098 = vadd.f32 0.0, %v9097
      %9099 = vmatmul.bf16.gmra.mxu0 %v8715
      %v9100 = vpop.f32.mrf.mxu0
      %v9101 = vadd.f32 0.0, %v9100
      %v9102 = vpop.f32.mrf.mxu0
      %v9103 = vadd.f32 0.0, %v9102
      %9104 = vmatmul.bf16.gmra.mxu0 %v8719
      %v9105 = vpop.f32.mrf.mxu0
      %v9106 = vadd.f32 0.0, %v9105
      %v9107 = vpop.f32.mrf.mxu0
      %v9108 = vadd.f32 0.0, %v9107
      %9109 = vmatmul.bf16.gmra.mxu0 %v8723
      %v9110 = vpop.f32.mrf.mxu0
      %v9111 = vadd.f32 0.0, %v9110
      %v9112 = vpop.f32.mrf.mxu0
      %v9113 = vadd.f32 0.0, %v9112
      %9114 = vmatmul.bf16.gmra.mxu0 %v8727
      %v9115 = vpop.f32.mrf.mxu0
      %v9116 = vadd.f32 0.0, %v9115
      %v9117 = vpop.f32.mrf.mxu0
      %v9118 = vadd.f32 0.0, %v9117
      %9119 = vmatmul.bf16.gmra.mxu0 %v8731
      %v9120 = vpop.f32.mrf.mxu0
      %v9121 = vadd.f32 0.0, %v9120
      %v9122 = vpop.f32.mrf.mxu0
      %v9123 = vadd.f32 0.0, %v9122
      %9124 = vmatmul.bf16.gmra.mxu0 %v8735
      %v9125 = vpop.f32.mrf.mxu0
      %v9126 = vadd.f32 0.0, %v9125
      %v9127 = vpop.f32.mrf.mxu0
      %v9128 = vadd.f32 0.0, %v9127
      %9129 = vmatmul.bf16.gmra.mxu0 %v8739
      %v9130 = vpop.f32.mrf.mxu0
      %v9131 = vadd.f32 0.0, %v9130
      %v9132 = vpop.f32.mrf.mxu0
      %v9133 = vadd.f32 0.0, %v9132
      %9134 = vmatmul.bf16.gmra.mxu0 %v8743
      %v9135 = vpop.f32.mrf.mxu0
      %v9136 = vadd.f32 0.0, %v9135
      %v9137 = vpop.f32.mrf.mxu0
      %v9138 = vadd.f32 0.0, %v9137
      %9139 = vdwg.mxu0
      %9140 = vmatpush.bf16.msra.mxu0 %v8522
      %9141 = vmatpush.bf16.msra.mxu0 %v8520
      %9142 = vmatpush.bf16.msra.mxu0 %v8518
      %9143 = vmatpush.bf16.msra.mxu0 %v8516
      %9144 = vmatpush.bf16.msra.mxu0 %v8514
      %9145 = vmatpush.bf16.msra.mxu0 %v8512
      %9146 = vmatpush.bf16.msra.mxu0 %v8510
      %9147 = vmatpush.bf16.msra.mxu0 %v8508
      %9148 = vmatmul.bf16.gmra.mxu0 %v8700
      %v9149 = vpop.f32.mrf.mxu0
      %v9150 = vadd.f32 %v9081, %v9149
      %v9151 = vpop.f32.mrf.mxu0
      %v9152 = vadd.f32 %v9083, %v9151
      %9153 = vmatmul.bf16.gmra.mxu0 %v8704
      %v9154 = vpop.f32.mrf.mxu0
      %v9155 = vadd.f32 %v9086, %v9154
      %v9156 = vpop.f32.mrf.mxu0
      %v9157 = vadd.f32 %v9088, %v9156
      %9158 = vmatmul.bf16.gmra.mxu0 %v8708
      %v9159 = vpop.f32.mrf.mxu0
      %v9160 = vadd.f32 %v9091, %v9159
      %v9161 = vpop.f32.mrf.mxu0
      %v9162 = vadd.f32 %v9093, %v9161
      %9163 = vmatmul.bf16.gmra.mxu0 %v8712
      %v9164 = vpop.f32.mrf.mxu0
      %v9165 = vadd.f32 %v9096, %v9164
      %v9166 = vpop.f32.mrf.mxu0
      %v9167 = vadd.f32 %v9098, %v9166
      %9168 = vmatmul.bf16.gmra.mxu0 %v8716
      %v9169 = vpop.f32.mrf.mxu0
      %v9170 = vadd.f32 %v9101, %v9169
      %v9171 = vpop.f32.mrf.mxu0
      %v9172 = vadd.f32 %v9103, %v9171
      %9173 = vmatmul.bf16.gmra.mxu0 %v8720
      %v9174 = vpop.f32.mrf.mxu0
      %v9175 = vadd.f32 %v9106, %v9174
      %v9176 = vpop.f32.mrf.mxu0
      %v9177 = vadd.f32 %v9108, %v9176
      %9178 = vmatmul.bf16.gmra.mxu0 %v8724
      %v9179 = vpop.f32.mrf.mxu0
      %v9180 = vadd.f32 %v9111, %v9179
      %v9181 = vpop.f32.mrf.mxu0
      %v9182 = vadd.f32 %v9113, %v9181
      %9183 = vmatmul.bf16.gmra.mxu0 %v8728
      %v9184 = vpop.f32.mrf.mxu0
      %v9185 = vadd.f32 %v9116, %v9184
      %v9186 = vpop.f32.mrf.mxu0
      %v9187 = vadd.f32 %v9118, %v9186
      %9188 = vmatmul.bf16.gmra.mxu0 %v8732
      %v9189 = vpop.f32.mrf.mxu0
      %v9190 = vadd.f32 %v9121, %v9189
      %v9191 = vpop.f32.mrf.mxu0
      %v9192 = vadd.f32 %v9123, %v9191
      %9193 = vmatmul.bf16.gmra.mxu0 %v8736
      %v9194 = vpop.f32.mrf.mxu0
      %v9195 = vadd.f32 %v9126, %v9194
      %v9196 = vpop.f32.mrf.mxu0
      %v9197 = vadd.f32 %v9128, %v9196
      %9198 = vmatmul.bf16.gmra.mxu0 %v8740
      %v9199 = vpop.f32.mrf.mxu0
      %v9200 = vadd.f32 %v9131, %v9199
      %v9201 = vpop.f32.mrf.mxu0
      %v9202 = vadd.f32 %v9133, %v9201
      %9203 = vmatmul.bf16.gmra.mxu0 %v8744
      %v9204 = vpop.f32.mrf.mxu0
      %v9205 = vadd.f32 %v9136, %v9204
      %v9206 = vpop.f32.mrf.mxu0
      %v9207 = vadd.f32 %v9138, %v9206
      %9208 = vdwg.mxu0
      %9209 = vmatpush.bf16.msra.mxu0 %v8538
      %9210 = vmatpush.bf16.msra.mxu0 %v8536
      %9211 = vmatpush.bf16.msra.mxu0 %v8534
      %9212 = vmatpush.bf16.msra.mxu0 %v8532
      %9213 = vmatpush.bf16.msra.mxu0 %v8530
      %9214 = vmatpush.bf16.msra.mxu0 %v8528
      %9215 = vmatpush.bf16.msra.mxu0 %v8526
      %9216 = vmatpush.bf16.msra.mxu0 %v8524
      %9217 = vmatmul.bf16.gmra.mxu0 %v8701
      %v9218 = vpop.f32.mrf.mxu0
      %v9219 = vadd.f32 %v9150, %v9218
      %v9220 = vpop.f32.mrf.mxu0
      %v9221 = vadd.f32 %v9152, %v9220
      %9222 = vmatmul.bf16.gmra.mxu0 %v8705
      %v9223 = vpop.f32.mrf.mxu0
      %v9224 = vadd.f32 %v9155, %v9223
      %v9225 = vpop.f32.mrf.mxu0
      %v9226 = vadd.f32 %v9157, %v9225
      %9227 = vmatmul.bf16.gmra.mxu0 %v8709
      %v9228 = vpop.f32.mrf.mxu0
      %v9229 = vadd.f32 %v9160, %v9228
      %v9230 = vpop.f32.mrf.mxu0
      %v9231 = vadd.f32 %v9162, %v9230
      %9232 = vmatmul.bf16.gmra.mxu0 %v8713
      %v9233 = vpop.f32.mrf.mxu0
      %v9234 = vadd.f32 %v9165, %v9233
      %v9235 = vpop.f32.mrf.mxu0
      %v9236 = vadd.f32 %v9167, %v9235
      %9237 = vmatmul.bf16.gmra.mxu0 %v8717
      %v9238 = vpop.f32.mrf.mxu0
      %v9239 = vadd.f32 %v9170, %v9238
      %v9240 = vpop.f32.mrf.mxu0
      %v9241 = vadd.f32 %v9172, %v9240
      %9242 = vmatmul.bf16.gmra.mxu0 %v8721
      %v9243 = vpop.f32.mrf.mxu0
      %v9244 = vadd.f32 %v9175, %v9243
      %v9245 = vpop.f32.mrf.mxu0
      %v9246 = vadd.f32 %v9177, %v9245
      %9247 = vmatmul.bf16.gmra.mxu0 %v8725
      %v9248 = vpop.f32.mrf.mxu0
      %v9249 = vadd.f32 %v9180, %v9248
      %v9250 = vpop.f32.mrf.mxu0
      %v9251 = vadd.f32 %v9182, %v9250
      %9252 = vmatmul.bf16.gmra.mxu0 %v8729
      %v9253 = vpop.f32.mrf.mxu0
      %v9254 = vadd.f32 %v9185, %v9253
      %v9255 = vpop.f32.mrf.mxu0
      %v9256 = vadd.f32 %v9187, %v9255
      %9257 = vmatmul.bf16.gmra.mxu0 %v8733
      %v9258 = vpop.f32.mrf.mxu0
      %v9259 = vadd.f32 %v9190, %v9258
      %v9260 = vpop.f32.mrf.mxu0
      %v9261 = vadd.f32 %v9192, %v9260
      %9262 = vmatmul.bf16.gmra.mxu0 %v8737
      %v9263 = vpop.f32.mrf.mxu0
      %v9264 = vadd.f32 %v9195, %v9263
      %v9265 = vpop.f32.mrf.mxu0
      %v9266 = vadd.f32 %v9197, %v9265
      %9267 = vmatmul.bf16.gmra.mxu0 %v8741
      %v9268 = vpop.f32.mrf.mxu0
      %v9269 = vadd.f32 %v9200, %v9268
      %v9270 = vpop.f32.mrf.mxu0
      %v9271 = vadd.f32 %v9202, %v9270
      %9272 = vmatmul.bf16.gmra.mxu0 %v8745
      %v9273 = vpop.f32.mrf.mxu0
      %v9274 = vadd.f32 %v9205, %v9273
      %v9275 = vpop.f32.mrf.mxu0
      %v9276 = vadd.f32 %v9207, %v9275
      %9277 = vdwg.mxu0
      %9278 = vmatpush.bf16.msra.mxu0 %v8554
      %9279 = vmatpush.bf16.msra.mxu0 %v8552
      %9280 = vmatpush.bf16.msra.mxu0 %v8550
      %9281 = vmatpush.bf16.msra.mxu0 %v8548
      %9282 = vmatpush.bf16.msra.mxu0 %v8546
      %9283 = vmatpush.bf16.msra.mxu0 %v8544
      %9284 = vmatpush.bf16.msra.mxu0 %v8542
      %9285 = vmatpush.bf16.msra.mxu0 %v8540
      %9286 = vmatmul.bf16.gmra.mxu0 %v8702
      %v9287 = vpop.f32.mrf.mxu0
      %v9288 = vadd.f32 %v9219, %v9287
      %v9289 = vpop.f32.mrf.mxu0
      %v9290 = vadd.f32 %v9221, %v9289
      %9291 = vmatmul.bf16.gmra.mxu0 %v8706
      %v9292 = vpop.f32.mrf.mxu0
      %v9293 = vadd.f32 %v9224, %v9292
      %v9294 = vpop.f32.mrf.mxu0
      %v9295 = vadd.f32 %v9226, %v9294
      %9296 = vmatmul.bf16.gmra.mxu0 %v8710
      %v9297 = vpop.f32.mrf.mxu0
      %v9298 = vadd.f32 %v9229, %v9297
      %v9299 = vpop.f32.mrf.mxu0
      %v9300 = vadd.f32 %v9231, %v9299
      %9301 = vmatmul.bf16.gmra.mxu0 %v8714
      %v9302 = vpop.f32.mrf.mxu0
      %v9303 = vadd.f32 %v9234, %v9302
      %v9304 = vpop.f32.mrf.mxu0
      %v9305 = vadd.f32 %v9236, %v9304
      %9306 = vmatmul.bf16.gmra.mxu0 %v8718
      %v9307 = vpop.f32.mrf.mxu0
      %v9308 = vadd.f32 %v9239, %v9307
      %v9309 = vpop.f32.mrf.mxu0
      %v9310 = vadd.f32 %v9241, %v9309
      %9311 = vmatmul.bf16.gmra.mxu0 %v8722
      %v9312 = vpop.f32.mrf.mxu0
      %v9313 = vadd.f32 %v9244, %v9312
      %v9314 = vpop.f32.mrf.mxu0
      %v9315 = vadd.f32 %v9246, %v9314
      %9316 = vmatmul.bf16.gmra.mxu0 %v8726
      %v9317 = vpop.f32.mrf.mxu0
      %v9318 = vadd.f32 %v9249, %v9317
      %v9319 = vpop.f32.mrf.mxu0
      %v9320 = vadd.f32 %v9251, %v9319
      %9321 = vmatmul.bf16.gmra.mxu0 %v8730
      %v9322 = vpop.f32.mrf.mxu0
      %v9323 = vadd.f32 %v9254, %v9322
      %v9324 = vpop.f32.mrf.mxu0
      %v9325 = vadd.f32 %v9256, %v9324
      %9326 = vmatmul.bf16.gmra.mxu0 %v8734
      %v9327 = vpop.f32.mrf.mxu0
      %v9328 = vadd.f32 %v9259, %v9327
      %v9329 = vpop.f32.mrf.mxu0
      %v9330 = vadd.f32 %v9261, %v9329
      %9331 = vmatmul.bf16.gmra.mxu0 %v8738
      %v9332 = vpop.f32.mrf.mxu0
      %v9333 = vadd.f32 %v9264, %v9332
      %v9334 = vpop.f32.mrf.mxu0
      %v9335 = vadd.f32 %v9266, %v9334
      %9336 = vmatmul.bf16.gmra.mxu0 %v8742
      %v9337 = vpop.f32.mrf.mxu0
      %v9338 = vadd.f32 %v9269, %v9337
      %v9339 = vpop.f32.mrf.mxu0
      %v9340 = vadd.f32 %v9271, %v9339
      %9341 = vmatmul.bf16.gmra.mxu0 %v8746
      %v9342 = vpop.f32.mrf.mxu0
      %v9343 = vadd.f32 %v9274, %v9342
      %v9344 = vpop.f32.mrf.mxu0
      %v9345 = vadd.f32 %v9276, %v9344
      %9346 = vdwg.mxu0
      %v9347 = vsub.f32 %v4951, %v9012
      %v9348 = vsub.f32 %v5335, %v9288
      %v9349 = vsub.f32 %v4953, %v9014
      %v9350 = vsub.f32 %v5337, %v9290
      %v9351 = vsub.f32 %v4956, %v9017
      %v9352 = vsub.f32 %v5340, %v9293
      %v9353 = vsub.f32 %v4958, %v9019
      %v9354 = vsub.f32 %v5342, %v9295
      %v9355 = vsub.f32 %v4961, %v9022
      %v9356 = vsub.f32 %v5345, %v9298
      %v9357 = vsub.f32 %v4963, %v9024
      %v9358 = vsub.f32 %v5347, %v9300
      %v9359 = vmul.f32 %v9347, %v9347
      %v9360 = vmul.f32 %v9348, %v9348
      %v9361 = vmul.f32 %v9349, %v9349
      %v9362 = vmul.f32 %v9350, %v9350
      %v9363 = vmul.f32 %v9351, %v9351
      %v9364 = vmul.f32 %v9352, %v9352
      %v9365 = vmul.f32 %v9353, %v9353
      %v9366 = vmul.f32 %v9354, %v9354
      %v9367 = vmul.f32 %v9355, %v9355
      %v9368 = vmul.f32 %v9356, %v9356
      %v9369 = vmul.f32 %v9357, %v9357
      %v9370 = vmul.f32 %v9358, %v9358
      %v9371 = vadd.f32 %v9359, 0.0
      %v9372 = vadd.f32 %v9360, 0.0
      %v9373 = vadd.f32 %v9361, 0.0
      %v9374 = vadd.f32 %v9362, 0.0
      %v9375 = vadd.f32 %v9363, 0.0
      %v9376 = vadd.f32 %v9364, 0.0
      %v9377 = vadd.f32 %v9365, 0.0
      %v9378 = vadd.f32 %v9366, 0.0
      %v9379 = vadd.f32 %v9367, 0.0
      %v9380 = vadd.f32 %v9368, 0.0
      %v9381 = vadd.f32 %v9369, 0.0
      %v9382 = vadd.f32 %v9370, 0.0
      %9395 = vrot.lane.b32.xlu0 %v9027, 16
      %v9396 = vpop.permute.xlu0 %9395
      %9397 = vrot.lane.b32.xlu0 %v9303, 16
      %v9398 = vpop.permute.xlu0 %9397
      %9399 = vrot.lane.b32.xlu0 %v9029, 16
      %v9400 = vpop.permute.xlu0 %9399
      %9401 = vrot.lane.b32.xlu0 %v9305, 16
      %v9402 = vpop.permute.xlu0 %9401
      %9403 = vrot.lane.b32.xlu0 %v9032, 16
      %v9404 = vpop.permute.xlu0 %9403
      %9405 = vrot.lane.b32.xlu0 %v9308, 16
      %v9406 = vpop.permute.xlu0 %9405
      %9407 = vrot.lane.b32.xlu0 %v9034, 16
      %v9408 = vpop.permute.xlu0 %9407
      %9409 = vrot.lane.b32.xlu0 %v9310, 16
      %v9410 = vpop.permute.xlu0 %9409
      %9411 = vrot.lane.b32.xlu0 %v9037, 16
      %v9412 = vpop.permute.xlu0 %9411
      %9413 = vrot.lane.b32.xlu0 %v9313, 16
      %v9414 = vpop.permute.xlu0 %9413
      %9415 = vrot.lane.b32.xlu0 %v9039, 16
      %v9416 = vpop.permute.xlu0 %9415
      %9417 = vrot.lane.b32.xlu0 %v9315, 16
      %v9418 = vpop.permute.xlu0 %9417
      %vm9419 = vcmask 130048
      %v9420 = vsel %vm9419, %v9396, %v9398
      %v9421 = vsel %vm9419, %v9400, %v9402
      %v9422 = vsel %vm9419, %v9404, %v9406
      %v9423 = vsel %vm9419, %v9408, %v9410
      %v9424 = vsel %vm9419, %v9412, %v9414
      %v9425 = vsel %vm9419, %v9416, %v9418
      %v9438 = vsub.f32 %v5335, %v9396
      %v9439 = vsub.f32 %v5719, %v9420
      %v9440 = vsub.f32 %v5337, %v9400
      %v9441 = vsub.f32 %v5721, %v9421
      %v9442 = vsub.f32 %v5340, %v9404
      %v9443 = vsub.f32 %v5724, %v9422
      %v9444 = vsub.f32 %v5342, %v9408
      %v9445 = vsub.f32 %v5726, %v9423
      %v9446 = vsub.f32 %v5345, %v9412
      %v9447 = vsub.f32 %v5729, %v9424
      %v9448 = vsub.f32 %v5347, %v9416
      %v9449 = vsub.f32 %v5731, %v9425
      %v9450 = vmul.f32 %v9438, %v9438
      %v9451 = vmul.f32 %v9439, %v9439
      %v9452 = vmul.f32 %v9440, %v9440
      %v9453 = vmul.f32 %v9441, %v9441
      %v9454 = vmul.f32 %v9442, %v9442
      %v9455 = vmul.f32 %v9443, %v9443
      %v9456 = vmul.f32 %v9444, %v9444
      %v9457 = vmul.f32 %v9445, %v9445
      %v9458 = vmul.f32 %v9446, %v9446
      %v9459 = vmul.f32 %v9447, %v9447
      %v9460 = vmul.f32 %v9448, %v9448
      %v9461 = vmul.f32 %v9449, %v9449
      %9474 = vrot.lane.b32.xlu0 %v9450, 112
      %v9475 = vpop.permute.xlu0 %9474
      %9476 = vrot.lane.b32.xlu0 %v9451, 112
      %v9477 = vpop.permute.xlu0 %9476
      %9478 = vrot.lane.b32.xlu0 %v9452, 112
      %v9479 = vpop.permute.xlu0 %9478
      %9480 = vrot.lane.b32.xlu0 %v9453, 112
      %v9481 = vpop.permute.xlu0 %9480
      %9482 = vrot.lane.b32.xlu0 %v9454, 112
      %v9483 = vpop.permute.xlu0 %9482
      %9484 = vrot.lane.b32.xlu0 %v9455, 112
      %v9485 = vpop.permute.xlu0 %9484
      %9486 = vrot.lane.b32.xlu0 %v9456, 112
      %v9487 = vpop.permute.xlu0 %9486
      %9488 = vrot.lane.b32.xlu0 %v9457, 112
      %v9489 = vpop.permute.xlu0 %9488
      %9490 = vrot.lane.b32.xlu0 %v9458, 112
      %v9491 = vpop.permute.xlu0 %9490
      %9492 = vrot.lane.b32.xlu0 %v9459, 112
      %v9493 = vpop.permute.xlu0 %9492
      %9494 = vrot.lane.b32.xlu0 %v9460, 112
      %v9495 = vpop.permute.xlu0 %9494
      %9496 = vrot.lane.b32.xlu0 %v9461, 112
      %v9497 = vpop.permute.xlu0 %9496
      %vm9498 = vcmask 916480
      %v9499 = vsel %vm9498, %v9475, %v9477
      %v9500 = vsel %vm9498, %v9479, %v9481
      %v9501 = vsel %vm9498, %v9483, %v9485
      %v9502 = vsel %vm9498, %v9487, %v9489
      %v9503 = vsel %vm9498, %v9491, %v9493
      %v9504 = vsel %vm9498, %v9495, %v9497
      %v9517 = vadd.f32 %v9371, %v9499
      %v9518 = vadd.f32 %v9372, %v9477
      %v9519 = vadd.f32 %v9373, %v9500
      %v9520 = vadd.f32 %v9374, %v9481
      %v9521 = vadd.f32 %v9375, %v9501
      %v9522 = vadd.f32 %v9376, %v9485
      %v9523 = vadd.f32 %v9377, %v9502
      %v9524 = vadd.f32 %v9378, %v9489
      %v9525 = vadd.f32 %v9379, %v9503
      %v9526 = vadd.f32 %v9380, %v9493
      %v9527 = vadd.f32 %v9381, %v9504
      %v9528 = vadd.f32 %v9382, %v9497
      %9541 = vrot.lane.b32.xlu0 %v9042, 32
      %v9542 = vpop.permute.xlu0 %9541
      %9543 = vrot.lane.b32.xlu0 %v9318, 32
      %v9544 = vpop.permute.xlu0 %9543
      %9545 = vrot.lane.b32.xlu0 %v9044, 32
      %v9546 = vpop.permute.xlu0 %9545
      %9547 = vrot.lane.b32.xlu0 %v9320, 32
      %v9548 = vpop.permute.xlu0 %9547
      %9549 = vrot.lane.b32.xlu0 %v9047, 32
      %v9550 = vpop.permute.xlu0 %9549
      %9551 = vrot.lane.b32.xlu0 %v9323, 32
      %v9552 = vpop.permute.xlu0 %9551
      %9553 = vrot.lane.b32.xlu0 %v9049, 32
      %v9554 = vpop.permute.xlu0 %9553
      %9555 = vrot.lane.b32.xlu0 %v9325, 32
      %v9556 = vpop.permute.xlu0 %9555
      %9557 = vrot.lane.b32.xlu0 %v9052, 32
      %v9558 = vpop.permute.xlu0 %9557
      %9559 = vrot.lane.b32.xlu0 %v9328, 32
      %v9560 = vpop.permute.xlu0 %9559
      %9561 = vrot.lane.b32.xlu0 %v9054, 32
      %v9562 = vpop.permute.xlu0 %9561
      %9563 = vrot.lane.b32.xlu0 %v9330, 32
      %v9564 = vpop.permute.xlu0 %9563
      %vm9565 = vcmask 261120
      %v9566 = vsel %vm9565, %v9542, %v9544
      %v9567 = vsel %vm9565, %v9546, %v9548
      %v9568 = vsel %vm9565, %v9550, %v9552
      %v9569 = vsel %vm9565, %v9554, %v9556
      %v9570 = vsel %vm9565, %v9558, %v9560
      %v9571 = vsel %vm9565, %v9562, %v9564
      %v9584 = vsub.f32 %v5719, %v9542
      %v9585 = vsub.f32 %v6103, %v9566
      %v9586 = vsub.f32 %v5721, %v9546
      %v9587 = vsub.f32 %v6105, %v9567
      %v9588 = vsub.f32 %v5724, %v9550
      %v9589 = vsub.f32 %v6108, %v9568
      %v9590 = vsub.f32 %v5726, %v9554
      %v9591 = vsub.f32 %v6110, %v9569
      %v9592 = vsub.f32 %v5729, %v9558
      %v9593 = vsub.f32 %v6113, %v9570
      %v9594 = vsub.f32 %v5731, %v9562
      %v9595 = vsub.f32 %v6115, %v9571
      %v9596 = vmul.f32 %v9584, %v9584
      %v9597 = vmul.f32 %v9585, %v9585
      %v9598 = vmul.f32 %v9586, %v9586
      %v9599 = vmul.f32 %v9587, %v9587
      %v9600 = vmul.f32 %v9588, %v9588
      %v9601 = vmul.f32 %v9589, %v9589
      %v9602 = vmul.f32 %v9590, %v9590
      %v9603 = vmul.f32 %v9591, %v9591
      %v9604 = vmul.f32 %v9592, %v9592
      %v9605 = vmul.f32 %v9593, %v9593
      %v9606 = vmul.f32 %v9594, %v9594
      %v9607 = vmul.f32 %v9595, %v9595
      %9620 = vrot.lane.b32.xlu0 %v9596, 96
      %v9621 = vpop.permute.xlu0 %9620
      %9622 = vrot.lane.b32.xlu0 %v9597, 96
      %v9623 = vpop.permute.xlu0 %9622
      %9624 = vrot.lane.b32.xlu0 %v9598, 96
      %v9625 = vpop.permute.xlu0 %9624
      %9626 = vrot.lane.b32.xlu0 %v9599, 96
      %v9627 = vpop.permute.xlu0 %9626
      %9628 = vrot.lane.b32.xlu0 %v9600, 96
      %v9629 = vpop.permute.xlu0 %9628
      %9630 = vrot.lane.b32.xlu0 %v9601, 96
      %v9631 = vpop.permute.xlu0 %9630
      %9632 = vrot.lane.b32.xlu0 %v9602, 96
      %v9633 = vpop.permute.xlu0 %9632
      %9634 = vrot.lane.b32.xlu0 %v9603, 96
      %v9635 = vpop.permute.xlu0 %9634
      %9636 = vrot.lane.b32.xlu0 %v9604, 96
      %v9637 = vpop.permute.xlu0 %9636
      %9638 = vrot.lane.b32.xlu0 %v9605, 96
      %v9639 = vpop.permute.xlu0 %9638
      %9640 = vrot.lane.b32.xlu0 %v9606, 96
      %v9641 = vpop.permute.xlu0 %9640
      %9642 = vrot.lane.b32.xlu0 %v9607, 96
      %v9643 = vpop.permute.xlu0 %9642
      %v9644 = vsel %vm4571, %v9621, %v9623
      %v9645 = vsel %vm4571, %v9625, %v9627
      %v9646 = vsel %vm4571, %v9629, %v9631
      %v9647 = vsel %vm4571, %v9633, %v9635
      %v9648 = vsel %vm4571, %v9637, %v9639
      %v9649 = vsel %vm4571, %v9641, %v9643
      %v9662 = vadd.f32 %v9517, %v9644
      %v9663 = vadd.f32 %v9518, %v9623
      %v9664 = vadd.f32 %v9519, %v9645
      %v9665 = vadd.f32 %v9520, %v9627
      %v9666 = vadd.f32 %v9521, %v9646
      %v9667 = vadd.f32 %v9522, %v9631
      %v9668 = vadd.f32 %v9523, %v9647
      %v9669 = vadd.f32 %v9524, %v9635
      %v9670 = vadd.f32 %v9525, %v9648
      %v9671 = vadd.f32 %v9526, %v9639
      %v9672 = vadd.f32 %v9527, %v9649
      %v9673 = vadd.f32 %v9528, %v9643
      %9686 = vrot.lane.b32.xlu0 %v9057, 48
      %v9687 = vpop.permute.xlu0 %9686
      %9688 = vrot.lane.b32.xlu0 %v9333, 48
      %v9689 = vpop.permute.xlu0 %9688
      %9690 = vrot.lane.b32.xlu0 %v9059, 48
      %v9691 = vpop.permute.xlu0 %9690
      %9692 = vrot.lane.b32.xlu0 %v9335, 48
      %v9693 = vpop.permute.xlu0 %9692
      %9694 = vrot.lane.b32.xlu0 %v9062, 48
      %v9695 = vpop.permute.xlu0 %9694
      %9696 = vrot.lane.b32.xlu0 %v9338, 48
      %v9697 = vpop.permute.xlu0 %9696
      %9698 = vrot.lane.b32.xlu0 %v9064, 48
      %v9699 = vpop.permute.xlu0 %9698
      %9700 = vrot.lane.b32.xlu0 %v9340, 48
      %v9701 = vpop.permute.xlu0 %9700
      %9702 = vrot.lane.b32.xlu0 %v9067, 48
      %v9703 = vpop.permute.xlu0 %9702
      %9704 = vrot.lane.b32.xlu0 %v9343, 48
      %v9705 = vpop.permute.xlu0 %9704
      %9706 = vrot.lane.b32.xlu0 %v9069, 48
      %v9707 = vpop.permute.xlu0 %9706
      %9708 = vrot.lane.b32.xlu0 %v9345, 48
      %v9709 = vpop.permute.xlu0 %9708
      %vm9710 = vcmask 392192
      %v9711 = vsel %vm9710, %v9687, %v9689
      %v9712 = vsel %vm9710, %v9691, %v9693
      %v9713 = vsel %vm9710, %v9695, %v9697
      %v9714 = vsel %vm9710, %v9699, %v9701
      %v9715 = vsel %vm9710, %v9703, %v9705
      %v9716 = vsel %vm9710, %v9707, %v9709
      %v9729 = vsub.f32 %v6103, %v9687
      %v9730 = vsub.f32 %v6487, %v9711
      %v9731 = vsub.f32 %v6105, %v9691
      %v9732 = vsub.f32 %v6489, %v9712
      %v9733 = vsub.f32 %v6108, %v9695
      %v9734 = vsub.f32 %v6492, %v9713
      %v9735 = vsub.f32 %v6110, %v9699
      %v9736 = vsub.f32 %v6494, %v9714
      %v9737 = vsub.f32 %v6113, %v9703
      %v9738 = vsub.f32 %v6497, %v9715
      %v9739 = vsub.f32 %v6115, %v9707
      %v9740 = vsub.f32 %v6499, %v9716
      %v9741 = vmul.f32 %v9729, %v9729
      %v9742 = vmul.f32 %v9730, %v9730
      %v9743 = vmul.f32 %v9731, %v9731
      %v9744 = vmul.f32 %v9732, %v9732
      %v9745 = vmul.f32 %v9733, %v9733
      %v9746 = vmul.f32 %v9734, %v9734
      %v9747 = vmul.f32 %v9735, %v9735
      %v9748 = vmul.f32 %v9736, %v9736
      %v9749 = vmul.f32 %v9737, %v9737
      %v9750 = vmul.f32 %v9738, %v9738
      %v9751 = vmul.f32 %v9739, %v9739
      %v9752 = vmul.f32 %v9740, %v9740
      %9765 = vrot.lane.b32.xlu0 %v9741, 80
      %v9766 = vpop.permute.xlu0 %9765
      %9767 = vrot.lane.b32.xlu0 %v9742, 80
      %v9768 = vpop.permute.xlu0 %9767
      %9769 = vrot.lane.b32.xlu0 %v9743, 80
      %v9770 = vpop.permute.xlu0 %9769
      %9771 = vrot.lane.b32.xlu0 %v9744, 80
      %v9772 = vpop.permute.xlu0 %9771
      %9773 = vrot.lane.b32.xlu0 %v9745, 80
      %v9774 = vpop.permute.xlu0 %9773
      %9775 = vrot.lane.b32.xlu0 %v9746, 80
      %v9776 = vpop.permute.xlu0 %9775
      %9777 = vrot.lane.b32.xlu0 %v9747, 80
      %v9778 = vpop.permute.xlu0 %9777
      %9779 = vrot.lane.b32.xlu0 %v9748, 80
      %v9780 = vpop.permute.xlu0 %9779
      %9781 = vrot.lane.b32.xlu0 %v9749, 80
      %v9782 = vpop.permute.xlu0 %9781
      %9783 = vrot.lane.b32.xlu0 %v9750, 80
      %v9784 = vpop.permute.xlu0 %9783
      %9785 = vrot.lane.b32.xlu0 %v9751, 80
      %v9786 = vpop.permute.xlu0 %9785
      %9787 = vrot.lane.b32.xlu0 %v9752, 80
      %v9788 = vpop.permute.xlu0 %9787
      %vm9789 = vcmask 654336
      %v9790 = vsel %vm9789, %v9766, %v9768
      %v9791 = vsel %vm9789, %v9770, %v9772
      %v9792 = vsel %vm9789, %v9774, %v9776
      %v9793 = vsel %vm9789, %v9778, %v9780
      %v9794 = vsel %vm9789, %v9782, %v9784
      %v9795 = vsel %vm9789, %v9786, %v9788
      %v9808 = vadd.f32 %v9662, %v9790
      %v9809 = vadd.f32 %v9663, %v9768
      %v9810 = vadd.f32 %v9664, %v9791
      %v9811 = vadd.f32 %v9665, %v9772
      %v9812 = vadd.f32 %v9666, %v9792
      %v9813 = vadd.f32 %v9667, %v9776
      %v9814 = vadd.f32 %v9668, %v9793
      %v9815 = vadd.f32 %v9669, %v9780
      %v9816 = vadd.f32 %v9670, %v9794
      %v9817 = vadd.f32 %v9671, %v9784
      %v9818 = vadd.f32 %v9672, %v9795
      %v9819 = vadd.f32 %v9673, %v9788
      %v9820 = vsel %vm9419, %v9809, 0.0
      %v9821 = vadd.f32 %v9808, %v9820
      %v9822 = vadd.f32 %v9821, %v9810
      %v9823 = vsel %vm9419, %v9811, 0.0
      %v9824 = vadd.f32 %v9822, %v9823
      %v9825 = vadd.f32 %v9824, %v9812
      %v9826 = vsel %vm9419, %v9813, 0.0
      %v9827 = vadd.f32 %v9825, %v9826
      %v9828 = vadd.f32 %v9827, %v9814
      %v9829 = vsel %vm9419, %v9815, 0.0
      %v9830 = vadd.f32 %v9828, %v9829
      %v9831 = vadd.f32 %v9830, %v9816
      %v9832 = vsel %vm9419, %v9817, 0.0
      %v9833 = vadd.f32 %v9831, %v9832
      %v9834 = vadd.f32 %v9833, %v9818
      %v9835 = vsel %vm9419, %v9819, 0.0
      %v9836 = vadd.f32 %v9834, %v9835
      %9837 = vadd.xlane.f32.xlu0 %v9836
      %v9838 = vpop.xlane.xlu0 %9837
      %v9839 = vrot.slane %v9838, 4
      %v9840 = vadd.f32 %v9838, %v9839
      %v9841 = vrot.slane %v9840, 2
      %v9842 = vadd.f32 %v9840, %v9841
      %v9843 = vrot.slane %v9842, 1
      %v9844 = vadd.f32 %v9842, %v9843
      %s9845 = vtos %v9844
      %s9846 = smul.f32 %s9845, 0.0009765625
      %v9847 = vstv %s9846
      %9848 = vst [vmem:[%s252] sm:$0xff] %v9847
      %p9849 = scmp.lt.s32.totalorder %s16, 1
      %s9850 = scalar_select %p9849, %s16, 1
      %s9851 = smul.addr %s9850, 8
      %s9852 = scalar_lea.vmem %s5, %s9851
      // Predicated region
      $region41: #{run.1} parent=39 // pred_check
        %p9853 = pneg %p149
      $region42: #{run.1} parent=39 // pred_check_branch
        %9855 = sbr.rel (%p9853) target = $region44
      $region43: #{run.1} parent=39 // pred_region
        _
      $region44: #{run.1} parent=39 // pred_fallthru
        _
    $region40: #{run.1} parent=5 // pred_fallthru
      _
    %p9856 = scmp.le.s32.totalorder 2, %s11
    // Predicated region
    $region45: #{run.1} parent=5 // pred_check
      %p9857 = pneg %p9856
    $region46: #{run.1} parent=5 // pred_check_branch
      %9859 = sbr.rel (%p9857) target = $region48
    $region47: #{run.1} parent=5 // pred_region
      %s9860 = ssub.s32 %s11, 2
      // Predicated region
      $region49: #{run.1} parent=47 // pred_check
        %p9861 = pneg %p155
      $region50: #{run.1} parent=47 // pred_check_branch
        %9863 = sbr.rel (%p9861) target = $region52
      $region51: #{run.1} parent=47 // pred_region
        %p9864 = scmp.lt.s32.totalorder %s17, 1
        %s9865 = scalar_select %p9864, %s17, 1
        %s9866 = smul.addr %s9865, 8
        %s9867 = scalar_lea.vmem %s5, %s9866
      $region52: #{run.1} parent=47 // pred_fallthru
        _
    $region48: #{run.1} parent=5 // pred_fallthru
      _
  $region6: #{run.1} parent=0 // loop_footer
    %s15 = sadd.s32 1, %s11
  $region7: #{run.1} parent=0 // loop_footer_branch
    %10 = sbr.rel target = $region3
  $region8: #{run.1} parent=0 // loop_exit
    _

</llo_original>
